<compile_context>
chip_gen: v5e
topology: v5e:2x2
jax: 0.10.0
libtpu: 0.0.40
codegen_flags: <defaults>
</compile_context>

<pallas_src>
import jax
import jax.numpy as jnp
from jax.experimental import pallas as pl
from jax.experimental.pallas import tpu as pltpu


# ---------------------------------------------------------------------------
# Fused kernel: 3 x (im2col conv + BN + ReLU [+ pool]) + flatten + linear
# ---------------------------------------------------------------------------
def _fused_svhn_kernel(x_ref, w0_ref, s0_ref, w1_ref, s1_ref, w2_ref, s2_ref,
                       fcw_ref, fcb_ref, o_ref,
                       pad0_ref, pad1_ref, pad2_ref, col_ref):
    f32 = jnp.float32

    def conv_bn_relu(x, pad_ref, w_ref, shift_ref, do_pool):
        # x:         (1, H, W, Cin) value
        # pad_ref:   (1, H+2, W+2, Cin) VMEM scratch (padding=1)
        # w_ref:     (9*Cin, Cout) bf16 im2col weight (BN scale folded in)
        # shift_ref: (1, Cout) f32 (conv bias + BN shift, pre-folded)
        n, h, w, cin = x.shape
        kdim, cout = w_ref.shape

        # ---- zero only the 1-pixel halo; interior is written exactly once ----
        pad_ref[:, 0:1, :, :] = jnp.zeros((n, 1, w + 2, cin), f32)
        pad_ref[:, h + 1:h + 2, :, :] = jnp.zeros((n, 1, w + 2, cin), f32)
        pad_ref[:, :, 0:1, :] = jnp.zeros((n, h + 2, 1, cin), f32)
        pad_ref[:, :, w + 1:w + 2, :] = jnp.zeros((n, h + 2, 1, cin), f32)
        pad_ref[:, 1:h + 1, 1:w + 1, :] = x

        # ---- im2col: 9 shifted-window copies into the (H*W, 9*Cin) bf16 scratch ----
        rows = n * h * w
        for ky in range(3):
            for kx in range(3):
                t = ky * 3 + kx
                tap = pad_ref[:, ky:ky + h, kx:kx + w, :].reshape(rows, cin)
                col_ref[0:rows, t * cin:(t + 1) * cin] = tap.astype(col_ref.dtype)

        # ---- single MXU matmul per layer, folded BN + ReLU epilogue in f32 ----
        y = jnp.dot(col_ref[0:rows, 0:kdim], w_ref[...], preferred_element_type=f32)
        y = jnp.maximum(y + shift_ref[...], 0.0).reshape(n, h, w, cout)

        if do_pool:  # MaxPool2d(kernel_size=2, stride=2)
            y = jnp.max(y.reshape(n, h // 2, 2, w, cout), axis=2)
            y = jnp.max(y.reshape(n, h // 2, w // 2, 2, cout), axis=3)
        return y

    y = conv_bn_relu(x_ref[...], pad0_ref, w0_ref, s0_ref, do_pool=False)
    y = conv_bn_relu(y, pad1_ref, w1_ref, s1_ref, do_pool=True)   # pool after d == 1
    y = conv_bn_relu(y, pad2_ref, w2_ref, s2_ref, do_pool=False)

    # ---- flatten (h, w, c) with lane-dense concatenates, then classifier -------------
    n, h, w, c = y.shape
    hw = h * w
    y3 = y.reshape(n, hw, c)
    pieces = [y3[:, p, :] for p in range(hw)]                  # each (n, c)
    group = 128 // c if (c <= 128 and 128 % c == 0) else 1
    if group > 1 and hw % group == 0:
        slabs = [jnp.concatenate(pieces[g * group:(g + 1) * group], axis=-1)
                 for g in range(hw // group)]                   # full 128-lane slabs
    else:
        slabs = pieces
    flat = slabs[0] if len(slabs) == 1 else jnp.concatenate(slabs, axis=-1)

    # TODO(synk): nn.Dropout(p=0.5) is identity in eval mode; training-mode random
    # masking is not implemented here.
    logits = jnp.dot(flat.astype(fcw_ref.dtype), fcw_ref[...],
                     preferred_element_type=f32) + fcb_ref[...]
    o_ref[...] = logits.reshape(o_ref.shape).astype(o_ref.dtype)


# ---------------------------------------------------------------------------
# Wrapper: one pallas_call, batch-parallel grid
# ---------------------------------------------------------------------------
def svhn_forward(x_nchw, prep):
    """SVHNNet.forward (eval mode). x_nchw: (N, C, H, W) float32 (PyTorch layout)."""
    x = jnp.transpose(x_nchw, (0, 2, 3, 1)).astype(jnp.float32)   # NCHW -> NHWC
    n, im_h, im_w, cin = x.shape
    convs = prep["convs"]
    assert len(convs) == 3, "kernel is specialized to net_depth=3 (pool after layer 1)"
    (w0, s0), (w1, s1), (w2, s2) = convs
    fcw, fcb = prep["fc_w"], prep["fc_b"]
    width = s0.shape[-1]
    ncls = fcw.shape[-1]
    h2, w2p = im_h // 2, im_w // 2            # spatial size after the single pool (d=1)
    num_feat = width * h2 * w2p
    # Tie the hard-coded depth-3 / single-pool structure to the prepared parameters.
    assert w0.shape == (9 * cin, width) and w1.shape == (9 * width, width) \
        and w2.shape == (9 * width, width), "conv weights do not match net_depth=3 layout"
    assert fcw.shape[0] == num_feat, "classifier rows must match width*(H//2)*(W//2)"

    kmax = 9 * max(cin, width)                # shared im2col scratch width
    mmax = im_h * im_w                        # shared im2col scratch rows (per image)

    def full_spec(a):
        nd = a.ndim
        return pl.BlockSpec(a.shape, lambda i: (0,) * nd)

    flops = 2 * n * (mmax * w0.shape[0] * width + mmax * w1.shape[0] * width
                     + h2 * w2p * w2.shape[0] * width + num_feat * ncls)
    bytes_accessed = (int(x.size) * x.dtype.itemsize
                      + sum(int(a.size) * a.dtype.itemsize
                            for a in (w0, s0, w1, s1, w2, s2, fcw, fcb))
                      + n * ncls * 4)

    out = pl.pallas_call(
        _fused_svhn_kernel,
        out_shape=jax.ShapeDtypeStruct((n, 1, ncls), jnp.float32),
        grid=(n,),
        in_specs=[
            pl.BlockSpec((1, im_h, im_w, cin), lambda i: (i, 0, 0, 0)),
            full_spec(w0), full_spec(s0),
            full_spec(w1), full_spec(s1),
            full_spec(w2), full_spec(s2),
            full_spec(fcw), full_spec(fcb),
        ],
        out_specs=pl.BlockSpec((1, 1, ncls), lambda i: (i, 0, 0)),
        scratch_shapes=[
            pltpu.VMEM((1, im_h + 2, im_w + 2, cin), jnp.float32),    # layer-0 padded input
            pltpu.VMEM((1, im_h + 2, im_w + 2, width), jnp.float32),  # layer-1 padded input
            pltpu.VMEM((1, h2 + 2, w2p + 2, width), jnp.float32),     # layer-2 padded input
            pltpu.VMEM((mmax, kmax), jnp.bfloat16),                   # shared im2col buffer
        ],
        compiler_params=pltpu.CompilerParams(
            dimension_semantics=("parallel",)),
        cost_estimate=pl.CostEstimate(flops=int(flops), transcendentals=0,
                                      bytes_accessed=int(bytes_accessed)),
    )(x, w0, s0, w1, s1, w2, s2, fcw, fcb)
    return out.reshape(n, ncls)


# ---------------------------------------------------------------------------
# Synthetic parameters (module shapes) + one-time folding / permutation
# ---------------------------------------------------------------------------
def init_params(key, *, in_channels=3, net_width=32, net_depth=3,
                num_classes=10, im_size=(16, 16)):
    params = {"convs": []}
    cin, h, w = in_channels, im_size[0], im_size[1]
    for d in range(net_depth):
        key, kw, kb, kg, kbt, km, kv = jax.random.split(key, 7)
        cout = net_width
        bound = 1.0 / jnp.sqrt(cin * 9.0)
        params["convs"].append({
            "w": jax.random.uniform(kw, (3, 3, cin, cout), jnp.float32,
                                    -bound, bound),                      # HWIO
            "b": jax.random.uniform(kb, (cout,), jnp.float32, -bound, bound),
            "gamma": 1.0 + 0.1 * jax.random.normal(kg, (cout,), jnp.float32),
            "beta": 0.1 * jax.random.normal(kbt, (cout,), jnp.float32),
            "rmean": 0.05 * jax.random.normal(km, (cout,), jnp.float32),
            "rvar": 1.0 + 0.1 * jax.random.uniform(kv, (cout,), jnp.float32),
        })
        cin = cout
        if d % 2 == 1:      # pool after odd-indexed layers
            h, w = h // 2, w // 2
    num_feat = cin * h * w
    key, kfw, kfb = jax.random.split(key, 3)
    fb = 1.0 / jnp.sqrt(float(num_feat))
    # fc_w rows are in torch NCHW-flatten order: row = c*(h*w) + y*w + x.
    params["fc_w"] = jax.random.uniform(kfw, (num_feat, num_classes),
                                        jnp.float32, -fb, fb)
    params["fc_b"] = jax.random.uniform(kfb, (num_classes,), jnp.float32, -fb, fb)
    params["_shape_feat"] = (cin, h, w)
    return params


def prepare_params(params, eps=1e-5):
    """One-time folding: BN scale into (9*Cin, Cout) bf16 im2col conv weights,
    conv bias + BN shift into one f32 vector, and a permutation of the classifier
    rows (bf16) that absorbs torch's NCHW flatten.
    NOTE: when loading a real PyTorch checkpoint, Conv2d weights must first be
    transposed OIHW -> HWIO and the same fc_w row permutation applied, otherwise
    the logits will be wrong."""
    assert len(params["convs"]) == 3, "prepared kernel assumes net_depth=3"
    convs = []
    for p in params["convs"]:
        s = p["gamma"] / jnp.sqrt(p["rvar"] + eps)                       # (Cout,)
        cin, cout = p["w"].shape[2], p["w"].shape[3]
        # rows ordered (ky, kx, ci) to match the im2col column layout in the kernel.
        w = (p["w"] * s).reshape(9 * cin, cout).astype(jnp.bfloat16)
        shift = ((p["b"] - p["rmean"]) * s + p["beta"]).reshape(1, cout)
        convs.append((w, shift.astype(jnp.float32)))
    c, h, w_ = params["_shape_feat"]
    ncls = params["fc_w"].shape[1]
    assert c == params["convs"][-1]["w"].shape[3]
    assert params["fc_w"].shape[0] == c * h * w_
    # torch row index c*(h*w)+y*w+x  ->  kernel flatten index (y*w+x)*C + c
    fc_w = (params["fc_w"].reshape(c, h, w_, ncls)
            .transpose(1, 2, 0, 3)
            .reshape(h * w_ * c, ncls)).astype(jnp.bfloat16)
    fc_b = params["fc_b"].reshape(1, ncls).astype(jnp.float32)
    return {"convs": convs, "fc_w": fc_w, "fc_b": fc_b}


if __name__ == "__main__":
    key = jax.random.PRNGKey(0)
    kx, kp = jax.random.split(key)
    # Small shapes consistent with the module: batch=2, channels=3 (svhn),
    # 16x16 spatial, net_width=32, net_depth=3, num_classes=10.
    x = jax.random.normal(kx, (2, 3, 16, 16), jnp.float32)
    params = init_params(kp, in_channels=3, net_width=32, net_depth=3,
                         num_classes=10, im_size=(16, 16))
    prep = prepare_params(params)

    fwd = jax.jit(svhn_forward)
    out = jax.block_until_ready(fwd(x, prep))
    assert out.shape == (2, 10), out.shape
    print("KERNEL_OK")
</pallas_src>

<mosaic_0001>
module attributes {stable_mosaic.version = 11 : i64} {
  func.func @_fused_svhn_kernel(%arg0: i32, %arg1: memref<1x16x16x3xf32, #tpu.memory_space<vmem>>, %arg2: memref<27x32xbf16, #tpu.memory_space<vmem>>, %arg3: memref<1x32xf32, #tpu.memory_space<vmem>>, %arg4: memref<288x32xbf16, #tpu.memory_space<vmem>>, %arg5: memref<1x32xf32, #tpu.memory_space<vmem>>, %arg6: memref<288x32xbf16, #tpu.memory_space<vmem>>, %arg7: memref<1x32xf32, #tpu.memory_space<vmem>>, %arg8: memref<2048x10xbf16, #tpu.memory_space<vmem>>, %arg9: memref<1x10xf32, #tpu.memory_space<vmem>>, %arg10: memref<1x1x10xf32, #tpu.memory_space<vmem>>, %arg11: memref<1x18x18x3xf32, #tpu.memory_space<vmem>>, %arg12: memref<1x18x18x32xf32, #tpu.memory_space<vmem>>, %arg13: memref<1x10x10x32xf32, #tpu.memory_space<vmem>>, %arg14: memref<256x288xbf16, #tpu.memory_space<vmem>>) attributes {dimension_semantics = [#tpu.dimension_semantics<parallel>], iteration_bounds = array<i64: 2>, scalar_prefetch = 0 : i64, scratch_operands = 4 : i64, tpu.core_type = #tpu.core_type<tc>, window_params = [{transform_indices = @transform_0, window_bounds = array<i64: 1, 16, 16, 3>}, {pipeline_mode = #tpu.pipeline_mode<synchronous>, transform_indices = @transform_1, window_bounds = array<i64: 27, 32>}, {pipeline_mode = #tpu.pipeline_mode<synchronous>, transform_indices = @transform_2, window_bounds = array<i64: 1, 32>}, {pipeline_mode = #tpu.pipeline_mode<synchronous>, transform_indices = @transform_3, window_bounds = array<i64: 288, 32>}, {pipeline_mode = #tpu.pipeline_mode<synchronous>, transform_indices = @transform_4, window_bounds = array<i64: 1, 32>}, {pipeline_mode = #tpu.pipeline_mode<synchronous>, transform_indices = @transform_5, window_bounds = array<i64: 288, 32>}, {pipeline_mode = #tpu.pipeline_mode<synchronous>, transform_indices = @transform_6, window_bounds = array<i64: 1, 32>}, {pipeline_mode = #tpu.pipeline_mode<synchronous>, transform_indices = @transform_7, window_bounds = array<i64: 2048, 10>}, {pipeline_mode = #tpu.pipeline_mode<synchronous>, transform_indices = @transform_8, window_bounds = array<i64: 1, 10>}, {transform_indices = @transform_9, window_bounds = array<i64: 1, 1, 10>}]} {
    %c0 = arith.constant 0 : index
    %c0_0 = arith.constant 0 : index
    %c0_1 = arith.constant 0 : index
    %c0_2 = arith.constant 0 : index
    %0 = vector.load %arg1[%c0, %c0_0, %c0_1, %c0_2] : memref<1x16x16x3xf32, #tpu.memory_space<vmem>>, vector<1x16x16x3xf32>
    %cst = arith.constant 0.000000e+00 : f32
    %1 = vector.broadcast %cst : f32 to vector<1x1x18x3xf32>
    %c0_3 = arith.constant 0 : index
    %c0_4 = arith.constant 0 : index
    %c0_5 = arith.constant 0 : index
    %c0_6 = arith.constant 0 : index
    %2 = vector.load %arg11[%c0_3, %c0_4, %c0_5, %c0_6] : memref<1x18x18x3xf32, #tpu.memory_space<vmem>>, vector<1x1x18x3xf32>
    tpu.vector_store %arg11[%c0_3, %c0_4, %c0_5, %c0_6], %1 {strides = array<i32>} : memref<1x18x18x3xf32, #tpu.memory_space<vmem>>, vector<1x1x18x3xf32>,
    %cst_7 = arith.constant 0.000000e+00 : f32
    %3 = vector.broadcast %cst_7 : f32 to vector<1x1x18x3xf32>
    %c0_8 = arith.constant 0 : index
    %c17 = arith.constant 17 : index
    %c0_9 = arith.constant 0 : index
    %c0_10 = arith.constant 0 : index
    %4 = vector.load %arg11[%c0_8, %c17, %c0_9, %c0_10] : memref<1x18x18x3xf32, #tpu.memory_space<vmem>>, vector<1x1x18x3xf32>
    tpu.vector_store %arg11[%c0_8, %c17, %c0_9, %c0_10], %3 {strides = array<i32>} : memref<1x18x18x3xf32, #tpu.memory_space<vmem>>, vector<1x1x18x3xf32>,
    %cst_11 = arith.constant 0.000000e+00 : f32
    %5 = vector.broadcast %cst_11 : f32 to vector<1x18x1x3xf32>
    %c0_12 = arith.constant 0 : index
    %c0_13 = arith.constant 0 : index
    %c0_14 = arith.constant 0 : index
    %c0_15 = arith.constant 0 : index
    %6 = vector.load %arg11[%c0_12, %c0_13, %c0_14, %c0_15] : memref<1x18x18x3xf32, #tpu.memory_space<vmem>>, vector<1x18x1x3xf32>
    tpu.vector_store %arg11[%c0_12, %c0_13, %c0_14, %c0_15], %5 {strides = array<i32>} : memref<1x18x18x3xf32, #tpu.memory_space<vmem>>, vector<1x18x1x3xf32>,
    %cst_16 = arith.constant 0.000000e+00 : f32
    %7 = vector.broadcast %cst_16 : f32 to vector<1x18x1x3xf32>
    %c0_17 = arith.constant 0 : index
    %c0_18 = arith.constant 0 : index
    %c17_19 = arith.constant 17 : index
    %c0_20 = arith.constant 0 : index
    %8 = vector.load %arg11[%c0_17, %c0_18, %c17_19, %c0_20] : memref<1x18x18x3xf32, #tpu.memory_space<vmem>>, vector<1x18x1x3xf32>
    tpu.vector_store %arg11[%c0_17, %c0_18, %c17_19, %c0_20], %7 {strides = array<i32>} : memref<1x18x18x3xf32, #tpu.memory_space<vmem>>, vector<1x18x1x3xf32>,
    %c0_21 = arith.constant 0 : index
    %c1 = arith.constant 1 : index
    %c1_22 = arith.constant 1 : index
    %c0_23 = arith.constant 0 : index
    %9 = vector.load %arg11[%c0_21, %c1, %c1_22, %c0_23] : memref<1x18x18x3xf32, #tpu.memory_space<vmem>>, vector<1x16x16x3xf32>
    tpu.vector_store %arg11[%c0_21, %c1, %c1_22, %c0_23], %0 {strides = array<i32>} : memref<1x18x18x3xf32, #tpu.memory_space<vmem>>, vector<1x16x16x3xf32>,
    %c0_24 = arith.constant 0 : index
    %c0_25 = arith.constant 0 : index
    %c0_26 = arith.constant 0 : index
    %c0_27 = arith.constant 0 : index
    %10 = vector.load %arg11[%c0_24, %c0_25, %c0_26, %c0_27] : memref<1x18x18x3xf32, #tpu.memory_space<vmem>>, vector<1x16x16x3xf32>
    %11 = vector.shape_cast %10 : vector<1x16x16x3xf32> to vector<256x3xf32>
    %12 = arith.truncf %11 : vector<256x3xf32> to vector<256x3xbf16>
    %c0_28 = arith.constant 0 : index
    %c0_29 = arith.constant 0 : index
    %13 = vector.load %arg14[%c0_28, %c0_29] : memref<256x288xbf16, #tpu.memory_space<vmem>>, vector<256x3xbf16>
    tpu.vector_store %arg14[%c0_28, %c0_29], %12 {strides = array<i32>} : memref<256x288xbf16, #tpu.memory_space<vmem>>, vector<256x3xbf16>,
    %c0_30 = arith.constant 0 : index
    %c0_31 = arith.constant 0 : index
    %c1_32 = arith.constant 1 : index
    %c0_33 = arith.constant 0 : index
    %14 = vector.load %arg11[%c0_30, %c0_31, %c1_32, %c0_33] : memref<1x18x18x3xf32, #tpu.memory_space<vmem>>, vector<1x16x16x3xf32>
    %15 = vector.shape_cast %14 : vector<1x16x16x3xf32> to vector<256x3xf32>
    %16 = arith.truncf %15 : vector<256x3xf32> to vector<256x3xbf16>
    %c0_34 = arith.constant 0 : index
    %c3 = arith.constant 3 : index
    %17 = vector.load %arg14[%c0_34, %c3] : memref<256x288xbf16, #tpu.memory_space<vmem>>, vector<256x3xbf16>
    tpu.vector_store %arg14[%c0_34, %c3], %16 {strides = array<i32>} : memref<256x288xbf16, #tpu.memory_space<vmem>>, vector<256x3xbf16>,
    %c0_35 = arith.constant 0 : index
    %c0_36 = arith.constant 0 : index
    %c2 = arith.constant 2 : index
    %c0_37 = arith.constant 0 : index
    %18 = vector.load %arg11[%c0_35, %c0_36, %c2, %c0_37] : memref<1x18x18x3xf32, #tpu.memory_space<vmem>>, vector<1x16x16x3xf32>
    %19 = vector.shape_cast %18 : vector<1x16x16x3xf32> to vector<256x3xf32>
    %20 = arith.truncf %19 : vector<256x3xf32> to vector<256x3xbf16>
    %c0_38 = arith.constant 0 : index
    %c6 = arith.constant 6 : index
    %21 = vector.load %arg14[%c0_38, %c6] : memref<256x288xbf16, #tpu.memory_space<vmem>>, vector<256x3xbf16>
    tpu.vector_store %arg14[%c0_38, %c6], %20 {strides = array<i32>} : memref<256x288xbf16, #tpu.memory_space<vmem>>, vector<256x3xbf16>,
    %c0_39 = arith.constant 0 : index
    %c1_40 = arith.constant 1 : index
    %c0_41 = arith.constant 0 : index
    %c0_42 = arith.constant 0 : index
    %22 = vector.load %arg11[%c0_39, %c1_40, %c0_41, %c0_42] : memref<1x18x18x3xf32, #tpu.memory_space<vmem>>, vector<1x16x16x3xf32>
    %23 = vector.shape_cast %22 : vector<1x16x16x3xf32> to vector<256x3xf32>
    %24 = arith.truncf %23 : vector<256x3xf32> to vector<256x3xbf16>
    %c0_43 = arith.constant 0 : index
    %c9 = arith.constant 9 : index
    %25 = vector.load %arg14[%c0_43, %c9] : memref<256x288xbf16, #tpu.memory_space<vmem>>, vector<256x3xbf16>
    tpu.vector_store %arg14[%c0_43, %c9], %24 {strides = array<i32>} : memref<256x288xbf16, #tpu.memory_space<vmem>>, vector<256x3xbf16>,
    %c0_44 = arith.constant 0 : index
    %c1_45 = arith.constant 1 : index
    %c1_46 = arith.constant 1 : index
    %c0_47 = arith.constant 0 : index
    %26 = vector.load %arg11[%c0_44, %c1_45, %c1_46, %c0_47] : memref<1x18x18x3xf32, #tpu.memory_space<vmem>>, vector<1x16x16x3xf32>
    %27 = vector.shape_cast %26 : vector<1x16x16x3xf32> to vector<256x3xf32>
    %28 = arith.truncf %27 : vector<256x3xf32> to vector<256x3xbf16>
    %c0_48 = arith.constant 0 : index
    %c12 = arith.constant 12 : index
    %29 = vector.load %arg14[%c0_48, %c12] : memref<256x288xbf16, #tpu.memory_space<vmem>>, vector<256x3xbf16>
    tpu.vector_store %arg14[%c0_48, %c12], %28 {strides = array<i32>} : memref<256x288xbf16, #tpu.memory_space<vmem>>, vector<256x3xbf16>,
    %c0_49 = arith.constant 0 : index
    %c1_50 = arith.constant 1 : index
    %c2_51 = arith.constant 2 : index
    %c0_52 = arith.constant 0 : index
    %30 = vector.load %arg11[%c0_49, %c1_50, %c2_51, %c0_52] : memref<1x18x18x3xf32, #tpu.memory_space<vmem>>, vector<1x16x16x3xf32>
    %31 = vector.shape_cast %30 : vector<1x16x16x3xf32> to vector<256x3xf32>
    %32 = arith.truncf %31 : vector<256x3xf32> to vector<256x3xbf16>
    %c0_53 = arith.constant 0 : index
    %c15 = arith.constant 15 : index
    %33 = vector.load %arg14[%c0_53, %c15] : memref<256x288xbf16, #tpu.memory_space<vmem>>, vector<256x3xbf16>
    tpu.vector_store %arg14[%c0_53, %c15], %32 {strides = array<i32>} : memref<256x288xbf16, #tpu.memory_space<vmem>>, vector<256x3xbf16>,
    %c0_54 = arith.constant 0 : index
    %c2_55 = arith.constant 2 : index
    %c0_56 = arith.constant 0 : index
    %c0_57 = arith.constant 0 : index
    %34 = vector.load %arg11[%c0_54, %c2_55, %c0_56, %c0_57] : memref<1x18x18x3xf32, #tpu.memory_space<vmem>>, vector<1x16x16x3xf32>
    %35 = vector.shape_cast %34 : vector<1x16x16x3xf32> to vector<256x3xf32>
    %36 = arith.truncf %35 : vector<256x3xf32> to vector<256x3xbf16>
    %c0_58 = arith.constant 0 : index
    %c18 = arith.constant 18 : index
    %37 = vector.load %arg14[%c0_58, %c18] : memref<256x288xbf16, #tpu.memory_space<vmem>>, vector<256x3xbf16>
    tpu.vector_store %arg14[%c0_58, %c18], %36 {strides = array<i32>} : memref<256x288xbf16, #tpu.memory_space<vmem>>, vector<256x3xbf16>,
    %c0_59 = arith.constant 0 : index
    %c2_60 = arith.constant 2 : index
    %c1_61 = arith.constant 1 : index
    %c0_62 = arith.constant 0 : index
    %38 = vector.load %arg11[%c0_59, %c2_60, %c1_61, %c0_62] : memref<1x18x18x3xf32, #tpu.memory_space<vmem>>, vector<1x16x16x3xf32>
    %39 = vector.shape_cast %38 : vector<1x16x16x3xf32> to vector<256x3xf32>
    %40 = arith.truncf %39 : vector<256x3xf32> to vector<256x3xbf16>
    %c0_63 = arith.constant 0 : index
    %c21 = arith.constant 21 : index
    %41 = vector.load %arg14[%c0_63, %c21] : memref<256x288xbf16, #tpu.memory_space<vmem>>, vector<256x3xbf16>
    tpu.vector_store %arg14[%c0_63, %c21], %40 {strides = array<i32>} : memref<256x288xbf16, #tpu.memory_space<vmem>>, vector<256x3xbf16>,
    %c0_64 = arith.constant 0 : index
    %c2_65 = arith.constant 2 : index
    %c2_66 = arith.constant 2 : index
    %c0_67 = arith.constant 0 : index
    %42 = vector.load %arg11[%c0_64, %c2_65, %c2_66, %c0_67] : memref<1x18x18x3xf32, #tpu.memory_space<vmem>>, vector<1x16x16x3xf32>
    %43 = vector.shape_cast %42 : vector<1x16x16x3xf32> to vector<256x3xf32>
    %44 = arith.truncf %43 : vector<256x3xf32> to vector<256x3xbf16>
    %c0_68 = arith.constant 0 : index
    %c24 = arith.constant 24 : index
    %45 = vector.load %arg14[%c0_68, %c24] : memref<256x288xbf16, #tpu.memory_space<vmem>>, vector<256x3xbf16>
    tpu.vector_store %arg14[%c0_68, %c24], %44 {strides = array<i32>} : memref<256x288xbf16, #tpu.memory_space<vmem>>, vector<256x3xbf16>,
    %c0_69 = arith.constant 0 : index
    %c0_70 = arith.constant 0 : index
    %46 = vector.load %arg14[%c0_69, %c0_70] : memref<256x288xbf16, #tpu.memory_space<vmem>>, vector<256x27xbf16>
    %c0_71 = arith.constant 0 : index
    %c0_72 = arith.constant 0 : index
    %47 = vector.load %arg2[%c0_71, %c0_72] : memref<27x32xbf16, #tpu.memory_space<vmem>>, vector<27x32xbf16>
    %cst_73 = arith.constant dense<0.000000e+00> : vector<256x32xf32>
    %48 = tpu.matmul %46, %47, %cst_73 {dimension_numbers = #tpu.dot_dimension_numbers<[1], [0], [0], [1], [0, 0, 1, 1], [], []>} : vector<256x27xbf16>, vector<27x32xbf16>, vector<256x32xf32> -> vector<256x32xf32>
    %c0_74 = arith.constant 0 : index
    %c0_75 = arith.constant 0 : index
    %49 = vector.load %arg3[%c0_74, %c0_75] : memref<1x32xf32, #tpu.memory_space<vmem>>, vector<1x32xf32>
    %50 = vector.broadcast %49 : vector<1x32xf32> to vector<256x32xf32>
    %51 = arith.addf %48, %50 : vector<256x32xf32>
    %cst_76 = arith.constant 0.000000e+00 : f32
    %52 = vector.broadcast %cst_76 : f32 to vector<256x32xf32>
    %53 = arith.maximumf %51, %52 : vector<256x32xf32>
    %54 = vector.shape_cast %53 : vector<256x32xf32> to vector<1x16x16x32xf32>
    %cst_77 = arith.constant 0.000000e+00 : f32
    %55 = vector.broadcast %cst_77 : f32 to vector<1x1x18x32xf32>
    %c0_78 = arith.constant 0 : index
    %c0_79 = arith.constant 0 : index
    %c0_80 = arith.constant 0 : index
    %c0_81 = arith.constant 0 : index
    %56 = vector.load %arg12[%c0_78, %c0_79, %c0_80, %c0_81] : memref<1x18x18x32xf32, #tpu.memory_space<vmem>>, vector<1x1x18x32xf32>
    tpu.vector_store %arg12[%c0_78, %c0_79, %c0_80, %c0_81], %55 {strides = array<i32>} : memref<1x18x18x32xf32, #tpu.memory_space<vmem>>, vector<1x1x18x32xf32>,
    %cst_82 = arith.constant 0.000000e+00 : f32
    %57 = vector.broadcast %cst_82 : f32 to vector<1x1x18x32xf32>
    %c0_83 = arith.constant 0 : index
    %c17_84 = arith.constant 17 : index
    %c0_85 = arith.constant 0 : index
    %c0_86 = arith.constant 0 : index
    %58 = vector.load %arg12[%c0_83, %c17_84, %c0_85, %c0_86] : memref<1x18x18x32xf32, #tpu.memory_space<vmem>>, vector<1x1x18x32xf32>
    tpu.vector_store %arg12[%c0_83, %c17_84, %c0_85, %c0_86], %57 {strides = array<i32>} : memref<1x18x18x32xf32, #tpu.memory_space<vmem>>, vector<1x1x18x32xf32>,
    %cst_87 = arith.constant 0.000000e+00 : f32
    %59 = vector.broadcast %cst_87 : f32 to vector<1x18x1x32xf32>
    %c0_88 = arith.constant 0 : index
    %c0_89 = arith.constant 0 : index
    %c0_90 = arith.constant 0 : index
    %c0_91 = arith.constant 0 : index
    %60 = vector.load %arg12[%c0_88, %c0_89, %c0_90, %c0_91] : memref<1x18x18x32xf32, #tpu.memory_space<vmem>>, vector<1x18x1x32xf32>
    tpu.vector_store %arg12[%c0_88, %c0_89, %c0_90, %c0_91], %59 {strides = array<i32>} : memref<1x18x18x32xf32, #tpu.memory_space<vmem>>, vector<1x18x1x32xf32>,
    %cst_92 = arith.constant 0.000000e+00 : f32
    %61 = vector.broadcast %cst_92 : f32 to vector<1x18x1x32xf32>
    %c0_93 = arith.constant 0 : index
    %c0_94 = arith.constant 0 : index
    %c17_95 = arith.constant 17 : index
    %c0_96 = arith.constant 0 : index
    %62 = vector.load %arg12[%c0_93, %c0_94, %c17_95, %c0_96] : memref<1x18x18x32xf32, #tpu.memory_space<vmem>>, vector<1x18x1x32xf32>
    tpu.vector_store %arg12[%c0_93, %c0_94, %c17_95, %c0_96], %61 {strides = array<i32>} : memref<1x18x18x32xf32, #tpu.memory_space<vmem>>, vector<1x18x1x32xf32>,
    %c0_97 = arith.constant 0 : index
    %c1_98 = arith.constant 1 : index
    %c1_99 = arith.constant 1 : index
    %c0_100 = arith.constant 0 : index
    %63 = vector.load %arg12[%c0_97, %c1_98, %c1_99, %c0_100] : memref<1x18x18x32xf32, #tpu.memory_space<vmem>>, vector<1x16x16x32xf32>
    tpu.vector_store %arg12[%c0_97, %c1_98, %c1_99, %c0_100], %54 {strides = array<i32>} : memref<1x18x18x32xf32, #tpu.memory_space<vmem>>, vector<1x16x16x32xf32>,
    %c0_101 = arith.constant 0 : index
    %c0_102 = arith.constant 0 : index
    %c0_103 = arith.constant 0 : index
    %c0_104 = arith.constant 0 : index
    %64 = vector.load %arg12[%c0_101, %c0_102, %c0_103, %c0_104] : memref<1x18x18x32xf32, #tpu.memory_space<vmem>>, vector<1x16x16x32xf32>
    %65 = vector.shape_cast %64 : vector<1x16x16x32xf32> to vector<256x32xf32>
    %66 = arith.truncf %65 : vector<256x32xf32> to vector<256x32xbf16>
    %c0_105 = arith.constant 0 : index
    %c0_106 = arith.constant 0 : index
    %67 = vector.load %arg14[%c0_105, %c0_106] : memref<256x288xbf16, #tpu.memory_space<vmem>>, vector<256x32xbf16>
    tpu.vector_store %arg14[%c0_105, %c0_106], %66 {strides = array<i32>} : memref<256x288xbf16, #tpu.memory_space<vmem>>, vector<256x32xbf16>,
    %c0_107 = arith.constant 0 : index
    %c0_108 = arith.constant 0 : index
    %c1_109 = arith.constant 1 : index
    %c0_110 = arith.constant 0 : index
    %68 = vector.load %arg12[%c0_107, %c0_108, %c1_109, %c0_110] : memref<1x18x18x32xf32, #tpu.memory_space<vmem>>, vector<1x16x16x32xf32>
    %69 = vector.shape_cast %68 : vector<1x16x16x32xf32> to vector<256x32xf32>
    %70 = arith.truncf %69 : vector<256x32xf32> to vector<256x32xbf16>
    %c0_111 = arith.constant 0 : index
    %c32 = arith.constant 32 : index
    %71 = vector.load %arg14[%c0_111, %c32] : memref<256x288xbf16, #tpu.memory_space<vmem>>, vector<256x32xbf16>
    tpu.vector_store %arg14[%c0_111, %c32], %70 {strides = array<i32>} : memref<256x288xbf16, #tpu.memory_space<vmem>>, vector<256x32xbf16>,
    %c0_112 = arith.constant 0 : index
    %c0_113 = arith.constant 0 : index
    %c2_114 = arith.constant 2 : index
    %c0_115 = arith.constant 0 : index
    %72 = vector.load %arg12[%c0_112, %c0_113, %c2_114, %c0_115] : memref<1x18x18x32xf32, #tpu.memory_space<vmem>>, vector<1x16x16x32xf32>
    %73 = vector.shape_cast %72 : vector<1x16x16x32xf32> to vector<256x32xf32>
    %74 = arith.truncf %73 : vector<256x32xf32> to vector<256x32xbf16>
    %c0_116 = arith.constant 0 : index
    %c64 = arith.constant 64 : index
    %75 = vector.load %arg14[%c0_116, %c64] : memref<256x288xbf16, #tpu.memory_space<vmem>>, vector<256x32xbf16>
    tpu.vector_store %arg14[%c0_116, %c64], %74 {strides = array<i32>} : memref<256x288xbf16, #tpu.memory_space<vmem>>, vector<256x32xbf16>,
    %c0_117 = arith.constant 0 : index
    %c1_118 = arith.constant 1 : index
    %c0_119 = arith.constant 0 : index
    %c0_120 = arith.constant 0 : index
    %76 = vector.load %arg12[%c0_117, %c1_118, %c0_119, %c0_120] : memref<1x18x18x32xf32, #tpu.memory_space<vmem>>, vector<1x16x16x32xf32>
    %77 = vector.shape_cast %76 : vector<1x16x16x32xf32> to vector<256x32xf32>
    %78 = arith.truncf %77 : vector<256x32xf32> to vector<256x32xbf16>
    %c0_121 = arith.constant 0 : index
    %c96 = arith.constant 96 : index
    %79 = vector.load %arg14[%c0_121, %c96] : memref<256x288xbf16, #tpu.memory_space<vmem>>, vector<256x32xbf16>
    tpu.vector_store %arg14[%c0_121, %c96], %78 {strides = array<i32>} : memref<256x288xbf16, #tpu.memory_space<vmem>>, vector<256x32xbf16>,
    %c0_122 = arith.constant 0 : index
    %c1_123 = arith.constant 1 : index
    %c1_124 = arith.constant 1 : index
    %c0_125 = arith.constant 0 : index
    %80 = vector.load %arg12[%c0_122, %c1_123, %c1_124, %c0_125] : memref<1x18x18x32xf32, #tpu.memory_space<vmem>>, vector<1x16x16x32xf32>
    %81 = vector.shape_cast %80 : vector<1x16x16x32xf32> to vector<256x32xf32>
    %82 = arith.truncf %81 : vector<256x32xf32> to vector<256x32xbf16>
    %c0_126 = arith.constant 0 : index
    %c128 = arith.constant 128 : index
    %83 = vector.load %arg14[%c0_126, %c128] : memref<256x288xbf16, #tpu.memory_space<vmem>>, vector<256x32xbf16>
    tpu.vector_store %arg14[%c0_126, %c128], %82 {strides = array<i32>} : memref<256x288xbf16, #tpu.memory_space<vmem>>, vector<256x32xbf16>,
    %c0_127 = arith.constant 0 : index
    %c1_128 = arith.constant 1 : index
    %c2_129 = arith.constant 2 : index
    %c0_130 = arith.constant 0 : index
    %84 = vector.load %arg12[%c0_127, %c1_128, %c2_129, %c0_130] : memref<1x18x18x32xf32, #tpu.memory_space<vmem>>, vector<1x16x16x32xf32>
    %85 = vector.shape_cast %84 : vector<1x16x16x32xf32> to vector<256x32xf32>
    %86 = arith.truncf %85 : vector<256x32xf32> to vector<256x32xbf16>
    %c0_131 = arith.constant 0 : index
    %c160 = arith.constant 160 : index
    %87 = vector.load %arg14[%c0_131, %c160] : memref<256x288xbf16, #tpu.memory_space<vmem>>, vector<256x32xbf16>
    tpu.vector_store %arg14[%c0_131, %c160], %86 {strides = array<i32>} : memref<256x288xbf16, #tpu.memory_space<vmem>>, vector<256x32xbf16>,
    %c0_132 = arith.constant 0 : index
    %c2_133 = arith.constant 2 : index
    %c0_134 = arith.constant 0 : index
    %c0_135 = arith.constant 0 : index
    %88 = vector.load %arg12[%c0_132, %c2_133, %c0_134, %c0_135] : memref<1x18x18x32xf32, #tpu.memory_space<vmem>>, vector<1x16x16x32xf32>
    %89 = vector.shape_cast %88 : vector<1x16x16x32xf32> to vector<256x32xf32>
    %90 = arith.truncf %89 : vector<256x32xf32> to vector<256x32xbf16>
    %c0_136 = arith.constant 0 : index
    %c192 = arith.constant 192 : index
    %91 = vector.load %arg14[%c0_136, %c192] : memref<256x288xbf16, #tpu.memory_space<vmem>>, vector<256x32xbf16>
    tpu.vector_store %arg14[%c0_136, %c192], %90 {strides = array<i32>} : memref<256x288xbf16, #tpu.memory_space<vmem>>, vector<256x32xbf16>,
    %c0_137 = arith.constant 0 : index
    %c2_138 = arith.constant 2 : index
    %c1_139 = arith.constant 1 : index
    %c0_140 = arith.constant 0 : index
    %92 = vector.load %arg12[%c0_137, %c2_138, %c1_139, %c0_140] : memref<1x18x18x32xf32, #tpu.memory_space<vmem>>, vector<1x16x16x32xf32>
    %93 = vector.shape_cast %92 : vector<1x16x16x32xf32> to vector<256x32xf32>
    %94 = arith.truncf %93 : vector<256x32xf32> to vector<256x32xbf16>
    %c0_141 = arith.constant 0 : index
    %c224 = arith.constant 224 : index
    %95 = vector.load %arg14[%c0_141, %c224] : memref<256x288xbf16, #tpu.memory_space<vmem>>, vector<256x32xbf16>
    tpu.vector_store %arg14[%c0_141, %c224], %94 {strides = array<i32>} : memref<256x288xbf16, #tpu.memory_space<vmem>>, vector<256x32xbf16>,
    %c0_142 = arith.constant 0 : index
    %c2_143 = arith.constant 2 : index
    %c2_144 = arith.constant 2 : index
    %c0_145 = arith.constant 0 : index
    %96 = vector.load %arg12[%c0_142, %c2_143, %c2_144, %c0_145] : memref<1x18x18x32xf32, #tpu.memory_space<vmem>>, vector<1x16x16x32xf32>
    %97 = vector.shape_cast %96 : vector<1x16x16x32xf32> to vector<256x32xf32>
    %98 = arith.truncf %97 : vector<256x32xf32> to vector<256x32xbf16>
    %c0_146 = arith.constant 0 : index
    %c256 = arith.constant 256 : index
    %99 = vector.load %arg14[%c0_146, %c256] : memref<256x288xbf16, #tpu.memory_space<vmem>>, vector<256x32xbf16>
    tpu.vector_store %arg14[%c0_146, %c256], %98 {strides = array<i32>} : memref<256x288xbf16, #tpu.memory_space<vmem>>, vector<256x32xbf16>,
    %c0_147 = arith.constant 0 : index
    %c0_148 = arith.constant 0 : index
    %100 = vector.load %arg14[%c0_147, %c0_148] : memref<256x288xbf16, #tpu.memory_space<vmem>>, vector<256x288xbf16>
    %c0_149 = arith.constant 0 : index
    %c0_150 = arith.constant 0 : index
    %101 = vector.load %arg4[%c0_149, %c0_150] : memref<288x32xbf16, #tpu.memory_space<vmem>>, vector<288x32xbf16>
    %cst_151 = arith.constant dense<0.000000e+00> : vector<256x32xf32>
    %102 = tpu.matmul %100, %101, %cst_151 {dimension_numbers = #tpu.dot_dimension_numbers<[1], [0], [0], [1], [0, 0, 1, 1], [], []>} : vector<256x288xbf16>, vector<288x32xbf16>, vector<256x32xf32> -> vector<256x32xf32>
    %c0_152 = arith.constant 0 : index
    %c0_153 = arith.constant 0 : index
    %103 = vector.load %arg5[%c0_152, %c0_153] : memref<1x32xf32, #tpu.memory_space<vmem>>, vector<1x32xf32>
    %104 = vector.broadcast %103 : vector<1x32xf32> to vector<256x32xf32>
    %105 = arith.addf %102, %104 : vector<256x32xf32>
    %cst_154 = arith.constant 0.000000e+00 : f32
    %106 = vector.broadcast %cst_154 : f32 to vector<256x32xf32>
    %107 = arith.maximumf %105, %106 : vector<256x32xf32>
    %108 = vector.shape_cast %107 : vector<256x32xf32> to vector<1x16x16x32xf32>
    %109 = vector.shape_cast %108 : vector<1x16x16x32xf32> to vector<1x8x2x16x32xf32>
    %cst_155 = arith.constant dense<0xFF800000> : vector<1x8x16x32xf32>
    %110 = vector.multi_reduction <maximumf>, %109, %cst_155 [2] : vector<1x8x2x16x32xf32> to vector<1x8x16x32xf32>
    %111 = vector.shape_cast %110 : vector<1x8x16x32xf32> to vector<1x8x8x2x32xf32>
    %cst_156 = arith.constant dense<0xFF800000> : vector<1x8x8x32xf32>
    %112 = vector.multi_reduction <maximumf>, %111, %cst_156 [3] : vector<1x8x8x2x32xf32> to vector<1x8x8x32xf32>
    %cst_157 = arith.constant 0.000000e+00 : f32
    %113 = vector.broadcast %cst_157 : f32 to vector<1x1x10x32xf32>
    %c0_158 = arith.constant 0 : index
    %c0_159 = arith.constant 0 : index
    %c0_160 = arith.constant 0 : index
    %c0_161 = arith.constant 0 : index
    %114 = vector.load %arg13[%c0_158, %c0_159, %c0_160, %c0_161] : memref<1x10x10x32xf32, #tpu.memory_space<vmem>>, vector<1x1x10x32xf32>
    tpu.vector_store %arg13[%c0_158, %c0_159, %c0_160, %c0_161], %113 {strides = array<i32>} : memref<1x10x10x32xf32, #tpu.memory_space<vmem>>, vector<1x1x10x32xf32>,
    %cst_162 = arith.constant 0.000000e+00 : f32
    %115 = vector.broadcast %cst_162 : f32 to vector<1x1x10x32xf32>
    %c0_163 = arith.constant 0 : index
    %c9_164 = arith.constant 9 : index
    %c0_165 = arith.constant 0 : index
    %c0_166 = arith.constant 0 : index
    %116 = vector.load %arg13[%c0_163, %c9_164, %c0_165, %c0_166] : memref<1x10x10x32xf32, #tpu.memory_space<vmem>>, vector<1x1x10x32xf32>
    tpu.vector_store %arg13[%c0_163, %c9_164, %c0_165, %c0_166], %115 {strides = array<i32>} : memref<1x10x10x32xf32, #tpu.memory_space<vmem>>, vector<1x1x10x32xf32>,
    %cst_167 = arith.constant 0.000000e+00 : f32
    %117 = vector.broadcast %cst_167 : f32 to vector<1x10x1x32xf32>
    %c0_168 = arith.constant 0 : index
    %c0_169 = arith.constant 0 : index
    %c0_170 = arith.constant 0 : index
    %c0_171 = arith.constant 0 : index
    %118 = vector.load %arg13[%c0_168, %c0_169, %c0_170, %c0_171] : memref<1x10x10x32xf32, #tpu.memory_space<vmem>>, vector<1x10x1x32xf32>
    tpu.vector_store %arg13[%c0_168, %c0_169, %c0_170, %c0_171], %117 {strides = array<i32>} : memref<1x10x10x32xf32, #tpu.memory_space<vmem>>, vector<1x10x1x32xf32>,
    %cst_172 = arith.constant 0.000000e+00 : f32
    %119 = vector.broadcast %cst_172 : f32 to vector<1x10x1x32xf32>
    %c0_173 = arith.constant 0 : index
    %c0_174 = arith.constant 0 : index
    %c9_175 = arith.constant 9 : index
    %c0_176 = arith.constant 0 : index
    %120 = vector.load %arg13[%c0_173, %c0_174, %c9_175, %c0_176] : memref<1x10x10x32xf32, #tpu.memory_space<vmem>>, vector<1x10x1x32xf32>
    tpu.vector_store %arg13[%c0_173, %c0_174, %c9_175, %c0_176], %119 {strides = array<i32>} : memref<1x10x10x32xf32, #tpu.memory_space<vmem>>, vector<1x10x1x32xf32>,
    %c0_177 = arith.constant 0 : index
    %c1_178 = arith.constant 1 : index
    %c1_179 = arith.constant 1 : index
    %c0_180 = arith.constant 0 : index
    %121 = vector.load %arg13[%c0_177, %c1_178, %c1_179, %c0_180] : memref<1x10x10x32xf32, #tpu.memory_space<vmem>>, vector<1x8x8x32xf32>
    tpu.vector_store %arg13[%c0_177, %c1_178, %c1_179, %c0_180], %112 {strides = array<i32>} : memref<1x10x10x32xf32, #tpu.memory_space<vmem>>, vector<1x8x8x32xf32>,
    %c0_181 = arith.constant 0 : index
    %c0_182 = arith.constant 0 : index
    %c0_183 = arith.constant 0 : index
    %c0_184 = arith.constant 0 : index
    %122 = vector.load %arg13[%c0_181, %c0_182, %c0_183, %c0_184] : memref<1x10x10x32xf32, #tpu.memory_space<vmem>>, vector<1x8x8x32xf32>
    %123 = vector.shape_cast %122 : vector<1x8x8x32xf32> to vector<64x32xf32>
    %124 = arith.truncf %123 : vector<64x32xf32> to vector<64x32xbf16>
    %c0_185 = arith.constant 0 : index
    %c0_186 = arith.constant 0 : index
    %125 = vector.load %arg14[%c0_185, %c0_186] : memref<256x288xbf16, #tpu.memory_space<vmem>>, vector<64x32xbf16>
    tpu.vector_store %arg14[%c0_185, %c0_186], %124 {strides = array<i32>} : memref<256x288xbf16, #tpu.memory_space<vmem>>, vector<64x32xbf16>,
    %c0_187 = arith.constant 0 : index
    %c0_188 = arith.constant 0 : index
    %c1_189 = arith.constant 1 : index
    %c0_190 = arith.constant 0 : index
    %126 = vector.load %arg13[%c0_187, %c0_188, %c1_189, %c0_190] : memref<1x10x10x32xf32, #tpu.memory_space<vmem>>, vector<1x8x8x32xf32>
    %127 = vector.shape_cast %126 : vector<1x8x8x32xf32> to vector<64x32xf32>
    %128 = arith.truncf %127 : vector<64x32xf32> to vector<64x32xbf16>
    %c0_191 = arith.constant 0 : index
    %c32_192 = arith.constant 32 : index
    %129 = vector.load %arg14[%c0_191, %c32_192] : memref<256x288xbf16, #tpu.memory_space<vmem>>, vector<64x32xbf16>
    tpu.vector_store %arg14[%c0_191, %c32_192], %128 {strides = array<i32>} : memref<256x288xbf16, #tpu.memory_space<vmem>>, vector<64x32xbf16>,
    %c0_193 = arith.constant 0 : index
    %c0_194 = arith.constant 0 : index
    %c2_195 = arith.constant 2 : index
    %c0_196 = arith.constant 0 : index
    %130 = vector.load %arg13[%c0_193, %c0_194, %c2_195, %c0_196] : memref<1x10x10x32xf32, #tpu.memory_space<vmem>>, vector<1x8x8x32xf32>
    %131 = vector.shape_cast %130 : vector<1x8x8x32xf32> to vector<64x32xf32>
    %132 = arith.truncf %131 : vector<64x32xf32> to vector<64x32xbf16>
    %c0_197 = arith.constant 0 : index
    %c64_198 = arith.constant 64 : index
    %133 = vector.load %arg14[%c0_197, %c64_198] : memref<256x288xbf16, #tpu.memory_space<vmem>>, vector<64x32xbf16>
    tpu.vector_store %arg14[%c0_197, %c64_198], %132 {strides = array<i32>} : memref<256x288xbf16, #tpu.memory_space<vmem>>, vector<64x32xbf16>,
    %c0_199 = arith.constant 0 : index
    %c1_200 = arith.constant 1 : index
    %c0_201 = arith.constant 0 : index
    %c0_202 = arith.constant 0 : index
    %134 = vector.load %arg13[%c0_199, %c1_200, %c0_201, %c0_202] : memref<1x10x10x32xf32, #tpu.memory_space<vmem>>, vector<1x8x8x32xf32>
    %135 = vector.shape_cast %134 : vector<1x8x8x32xf32> to vector<64x32xf32>
    %136 = arith.truncf %135 : vector<64x32xf32> to vector<64x32xbf16>
    %c0_203 = arith.constant 0 : index
    %c96_204 = arith.constant 96 : index
    %137 = vector.load %arg14[%c0_203, %c96_204] : memref<256x288xbf16, #tpu.memory_space<vmem>>, vector<64x32xbf16>
    tpu.vector_store %arg14[%c0_203, %c96_204], %136 {strides = array<i32>} : memref<256x288xbf16, #tpu.memory_space<vmem>>, vector<64x32xbf16>,
    %c0_205 = arith.constant 0 : index
    %c1_206 = arith.constant 1 : index
    %c1_207 = arith.constant 1 : index
    %c0_208 = arith.constant 0 : index
    %138 = vector.load %arg13[%c0_205, %c1_206, %c1_207, %c0_208] : memref<1x10x10x32xf32, #tpu.memory_space<vmem>>, vector<1x8x8x32xf32>
    %139 = vector.shape_cast %138 : vector<1x8x8x32xf32> to vector<64x32xf32>
    %140 = arith.truncf %139 : vector<64x32xf32> to vector<64x32xbf16>
    %c0_209 = arith.constant 0 : index
    %c128_210 = arith.constant 128 : index
    %141 = vector.load %arg14[%c0_209, %c128_210] : memref<256x288xbf16, #tpu.memory_space<vmem>>, vector<64x32xbf16>
    tpu.vector_store %arg14[%c0_209, %c128_210], %140 {strides = array<i32>} : memref<256x288xbf16, #tpu.memory_space<vmem>>, vector<64x32xbf16>,
    %c0_211 = arith.constant 0 : index
    %c1_212 = arith.constant 1 : index
    %c2_213 = arith.constant 2 : index
    %c0_214 = arith.constant 0 : index
    %142 = vector.load %arg13[%c0_211, %c1_212, %c2_213, %c0_214] : memref<1x10x10x32xf32, #tpu.memory_space<vmem>>, vector<1x8x8x32xf32>
    %143 = vector.shape_cast %142 : vector<1x8x8x32xf32> to vector<64x32xf32>
    %144 = arith.truncf %143 : vector<64x32xf32> to vector<64x32xbf16>
    %c0_215 = arith.constant 0 : index
    %c160_216 = arith.constant 160 : index
    %145 = vector.load %arg14[%c0_215, %c160_216] : memref<256x288xbf16, #tpu.memory_space<vmem>>, vector<64x32xbf16>
    tpu.vector_store %arg14[%c0_215, %c160_216], %144 {strides = array<i32>} : memref<256x288xbf16, #tpu.memory_space<vmem>>, vector<64x32xbf16>,
    %c0_217 = arith.constant 0 : index
    %c2_218 = arith.constant 2 : index
    %c0_219 = arith.constant 0 : index
    %c0_220 = arith.constant 0 : index
    %146 = vector.load %arg13[%c0_217, %c2_218, %c0_219, %c0_220] : memref<1x10x10x32xf32, #tpu.memory_space<vmem>>, vector<1x8x8x32xf32>
    %147 = vector.shape_cast %146 : vector<1x8x8x32xf32> to vector<64x32xf32>
    %148 = arith.truncf %147 : vector<64x32xf32> to vector<64x32xbf16>
    %c0_221 = arith.constant 0 : index
    %c192_222 = arith.constant 192 : index
    %149 = vector.load %arg14[%c0_221, %c192_222] : memref<256x288xbf16, #tpu.memory_space<vmem>>, vector<64x32xbf16>
    tpu.vector_store %arg14[%c0_221, %c192_222], %148 {strides = array<i32>} : memref<256x288xbf16, #tpu.memory_space<vmem>>, vector<64x32xbf16>,
    %c0_223 = arith.constant 0 : index
    %c2_224 = arith.constant 2 : index
    %c1_225 = arith.constant 1 : index
    %c0_226 = arith.constant 0 : index
    %150 = vector.load %arg13[%c0_223, %c2_224, %c1_225, %c0_226] : memref<1x10x10x32xf32, #tpu.memory_space<vmem>>, vector<1x8x8x32xf32>
    %151 = vector.shape_cast %150 : vector<1x8x8x32xf32> to vector<64x32xf32>
    %152 = arith.truncf %151 : vector<64x32xf32> to vector<64x32xbf16>
    %c0_227 = arith.constant 0 : index
    %c224_228 = arith.constant 224 : index
    %153 = vector.load %arg14[%c0_227, %c224_228] : memref<256x288xbf16, #tpu.memory_space<vmem>>, vector<64x32xbf16>
    tpu.vector_store %arg14[%c0_227, %c224_228], %152 {strides = array<i32>} : memref<256x288xbf16, #tpu.memory_space<vmem>>, vector<64x32xbf16>,
    %c0_229 = arith.constant 0 : index
    %c2_230 = arith.constant 2 : index
    %c2_231 = arith.constant 2 : index
    %c0_232 = arith.constant 0 : index
    %154 = vector.load %arg13[%c0_229, %c2_230, %c2_231, %c0_232] : memref<1x10x10x32xf32, #tpu.memory_space<vmem>>, vector<1x8x8x32xf32>
    %155 = vector.shape_cast %154 : vector<1x8x8x32xf32> to vector<64x32xf32>
    %156 = arith.truncf %155 : vector<64x32xf32> to vector<64x32xbf16>
    %c0_233 = arith.constant 0 : index
    %c256_234 = arith.constant 256 : index
    %157 = vector.load %arg14[%c0_233, %c256_234] : memref<256x288xbf16, #tpu.memory_space<vmem>>, vector<64x32xbf16>
    tpu.vector_store %arg14[%c0_233, %c256_234], %156 {strides = array<i32>} : memref<256x288xbf16, #tpu.memory_space<vmem>>, vector<64x32xbf16>,
    %c0_235 = arith.constant 0 : index
    %c0_236 = arith.constant 0 : index
    %158 = vector.load %arg14[%c0_235, %c0_236] : memref<256x288xbf16, #tpu.memory_space<vmem>>, vector<64x288xbf16>
    %c0_237 = arith.constant 0 : index
    %c0_238 = arith.constant 0 : index
    %159 = vector.load %arg6[%c0_237, %c0_238] : memref<288x32xbf16, #tpu.memory_space<vmem>>, vector<288x32xbf16>
    %cst_239 = arith.constant dense<0.000000e+00> : vector<64x32xf32>
    %160 = tpu.matmul %158, %159, %cst_239 {dimension_numbers = #tpu.dot_dimension_numbers<[1], [0], [0], [1], [0, 0, 1, 1], [], []>} : vector<64x288xbf16>, vector<288x32xbf16>, vector<64x32xf32> -> vector<64x32xf32>
    %c0_240 = arith.constant 0 : index
    %c0_241 = arith.constant 0 : index
    %161 = vector.load %arg7[%c0_240, %c0_241] : memref<1x32xf32, #tpu.memory_space<vmem>>, vector<1x32xf32>
    %162 = vector.broadcast %161 : vector<1x32xf32> to vector<64x32xf32>
    %163 = arith.addf %160, %162 : vector<64x32xf32>
    %cst_242 = arith.constant 0.000000e+00 : f32
    %164 = vector.broadcast %cst_242 : f32 to vector<64x32xf32>
    %165 = arith.maximumf %163, %164 : vector<64x32xf32>
    %166 = vector.shape_cast %165 : vector<64x32xf32> to vector<1x8x8x32xf32>
    %167 = vector.shape_cast %166 : vector<1x8x8x32xf32> to vector<1x64x32xf32>
    %168 = vector.extract_strided_slice %167 {offsets = [0, 0, 0], sizes = [1, 1, 32], strides = [1, 1, 1]} : vector<1x64x32xf32> to vector<1x1x32xf32>
    %169 = vector.shape_cast %168 : vector<1x1x32xf32> to vector<1x32xf32>
    %170 = vector.extract_strided_slice %167 {offsets = [0, 1, 0], sizes = [1, 1, 32], strides = [1, 1, 1]} : vector<1x64x32xf32> to vector<1x1x32xf32>
    %171 = vector.shape_cast %170 : vector<1x1x32xf32> to vector<1x32xf32>
    %172 = vector.extract_strided_slice %167 {offsets = [0, 2, 0], sizes = [1, 1, 32], strides = [1, 1, 1]} : vector<1x64x32xf32> to vector<1x1x32xf32>
    %173 = vector.shape_cast %172 : vector<1x1x32xf32> to vector<1x32xf32>
    %174 = vector.extract_strided_slice %167 {offsets = [0, 3, 0], sizes = [1, 1, 32], strides = [1, 1, 1]} : vector<1x64x32xf32> to vector<1x1x32xf32>
    %175 = vector.shape_cast %174 : vector<1x1x32xf32> to vector<1x32xf32>
    %176 = vector.extract_strided_slice %167 {offsets = [0, 4, 0], sizes = [1, 1, 32], strides = [1, 1, 1]} : vector<1x64x32xf32> to vector<1x1x32xf32>
    %177 = vector.shape_cast %176 : vector<1x1x32xf32> to vector<1x32xf32>
    %178 = vector.extract_strided_slice %167 {offsets = [0, 5, 0], sizes = [1, 1, 32], strides = [1, 1, 1]} : vector<1x64x32xf32> to vector<1x1x32xf32>
    %179 = vector.shape_cast %178 : vector<1x1x32xf32> to vector<1x32xf32>
    %180 = vector.extract_strided_slice %167 {offsets = [0, 6, 0], sizes = [1, 1, 32], strides = [1, 1, 1]} : vector<1x64x32xf32> to vector<1x1x32xf32>
    %181 = vector.shape_cast %180 : vector<1x1x32xf32> to vector<1x32xf32>
    %182 = vector.extract_strided_slice %167 {offsets = [0, 7, 0], sizes = [1, 1, 32], strides = [1, 1, 1]} : vector<1x64x32xf32> to vector<1x1x32xf32>
    %183 = vector.shape_cast %182 : vector<1x1x32xf32> to vector<1x32xf32>
    %184 = vector.extract_strided_slice %167 {offsets = [0, 8, 0], sizes = [1, 1, 32], strides = [1, 1, 1]} : vector<1x64x32xf32> to vector<1x1x32xf32>
    %185 = vector.shape_cast %184 : vector<1x1x32xf32> to vector<1x32xf32>
    %186 = vector.extract_strided_slice %167 {offsets = [0, 9, 0], sizes = [1, 1, 32], strides = [1, 1, 1]} : vector<1x64x32xf32> to vector<1x1x32xf32>
    %187 = vector.shape_cast %186 : vector<1x1x32xf32> to vector<1x32xf32>
    %188 = vector.extract_strided_slice %167 {offsets = [0, 10, 0], sizes = [1, 1, 32], strides = [1, 1, 1]} : vector<1x64x32xf32> to vector<1x1x32xf32>
    %189 = vector.shape_cast %188 : vector<1x1x32xf32> to vector<1x32xf32>
    %190 = vector.extract_strided_slice %167 {offsets = [0, 11, 0], sizes = [1, 1, 32], strides = [1, 1, 1]} : vector<1x64x32xf32> to vector<1x1x32xf32>
    %191 = vector.shape_cast %190 : vector<1x1x32xf32> to vector<1x32xf32>
    %192 = vector.extract_strided_slice %167 {offsets = [0, 12, 0], sizes = [1, 1, 32], strides = [1, 1, 1]} : vector<1x64x32xf32> to vector<1x1x32xf32>
    %193 = vector.shape_cast %192 : vector<1x1x32xf32> to vector<1x32xf32>
    %194 = vector.extract_strided_slice %167 {offsets = [0, 13, 0], sizes = [1, 1, 32], strides = [1, 1, 1]} : vector<1x64x32xf32> to vector<1x1x32xf32>
    %195 = vector.shape_cast %194 : vector<1x1x32xf32> to vector<1x32xf32>
    %196 = vector.extract_strided_slice %167 {offsets = [0, 14, 0], sizes = [1, 1, 32], strides = [1, 1, 1]} : vector<1x64x32xf32> to vector<1x1x32xf32>
    %197 = vector.shape_cast %196 : vector<1x1x32xf32> to vector<1x32xf32>
    %198 = vector.extract_strided_slice %167 {offsets = [0, 15, 0], sizes = [1, 1, 32], strides = [1, 1, 1]} : vector<1x64x32xf32> to vector<1x1x32xf32>
    %199 = vector.shape_cast %198 : vector<1x1x32xf32> to vector<1x32xf32>
    %200 = vector.extract_strided_slice %167 {offsets = [0, 16, 0], sizes = [1, 1, 32], strides = [1, 1, 1]} : vector<1x64x32xf32> to vector<1x1x32xf32>
    %201 = vector.shape_cast %200 : vector<1x1x32xf32> to vector<1x32xf32>
    %202 = vector.extract_strided_slice %167 {offsets = [0, 17, 0], sizes = [1, 1, 32], strides = [1, 1, 1]} : vector<1x64x32xf32> to vector<1x1x32xf32>
    %203 = vector.shape_cast %202 : vector<1x1x32xf32> to vector<1x32xf32>
    %204 = vector.extract_strided_slice %167 {offsets = [0, 18, 0], sizes = [1, 1, 32], strides = [1, 1, 1]} : vector<1x64x32xf32> to vector<1x1x32xf32>
    %205 = vector.shape_cast %204 : vector<1x1x32xf32> to vector<1x32xf32>
    %206 = vector.extract_strided_slice %167 {offsets = [0, 19, 0], sizes = [1, 1, 32], strides = [1, 1, 1]} : vector<1x64x32xf32> to vector<1x1x32xf32>
    %207 = vector.shape_cast %206 : vector<1x1x32xf32> to vector<1x32xf32>
    %208 = vector.extract_strided_slice %167 {offsets = [0, 20, 0], sizes = [1, 1, 32], strides = [1, 1, 1]} : vector<1x64x32xf32> to vector<1x1x32xf32>
    %209 = vector.shape_cast %208 : vector<1x1x32xf32> to vector<1x32xf32>
    %210 = vector.extract_strided_slice %167 {offsets = [0, 21, 0], sizes = [1, 1, 32], strides = [1, 1, 1]} : vector<1x64x32xf32> to vector<1x1x32xf32>
    %211 = vector.shape_cast %210 : vector<1x1x32xf32> to vector<1x32xf32>
    %212 = vector.extract_strided_slice %167 {offsets = [0, 22, 0], sizes = [1, 1, 32], strides = [1, 1, 1]} : vector<1x64x32xf32> to vector<1x1x32xf32>
    %213 = vector.shape_cast %212 : vector<1x1x32xf32> to vector<1x32xf32>
    %214 = vector.extract_strided_slice %167 {offsets = [0, 23, 0], sizes = [1, 1, 32], strides = [1, 1, 1]} : vector<1x64x32xf32> to vector<1x1x32xf32>
    %215 = vector.shape_cast %214 : vector<1x1x32xf32> to vector<1x32xf32>
    %216 = vector.extract_strided_slice %167 {offsets = [0, 24, 0], sizes = [1, 1, 32], strides = [1, 1, 1]} : vector<1x64x32xf32> to vector<1x1x32xf32>
    %217 = vector.shape_cast %216 : vector<1x1x32xf32> to vector<1x32xf32>
    %218 = vector.extract_strided_slice %167 {offsets = [0, 25, 0], sizes = [1, 1, 32], strides = [1, 1, 1]} : vector<1x64x32xf32> to vector<1x1x32xf32>
    %219 = vector.shape_cast %218 : vector<1x1x32xf32> to vector<1x32xf32>
    %220 = vector.extract_strided_slice %167 {offsets = [0, 26, 0], sizes = [1, 1, 32], strides = [1, 1, 1]} : vector<1x64x32xf32> to vector<1x1x32xf32>
    %221 = vector.shape_cast %220 : vector<1x1x32xf32> to vector<1x32xf32>
    %222 = vector.extract_strided_slice %167 {offsets = [0, 27, 0], sizes = [1, 1, 32], strides = [1, 1, 1]} : vector<1x64x32xf32> to vector<1x1x32xf32>
    %223 = vector.shape_cast %222 : vector<1x1x32xf32> to vector<1x32xf32>
    %224 = vector.extract_strided_slice %167 {offsets = [0, 28, 0], sizes = [1, 1, 32], strides = [1, 1, 1]} : vector<1x64x32xf32> to vector<1x1x32xf32>
    %225 = vector.shape_cast %224 : vector<1x1x32xf32> to vector<1x32xf32>
    %226 = vector.extract_strided_slice %167 {offsets = [0, 29, 0], sizes = [1, 1, 32], strides = [1, 1, 1]} : vector<1x64x32xf32> to vector<1x1x32xf32>
    %227 = vector.shape_cast %226 : vector<1x1x32xf32> to vector<1x32xf32>
    %228 = vector.extract_strided_slice %167 {offsets = [0, 30, 0], sizes = [1, 1, 32], strides = [1, 1, 1]} : vector<1x64x32xf32> to vector<1x1x32xf32>
    %229 = vector.shape_cast %228 : vector<1x1x32xf32> to vector<1x32xf32>
    %230 = vector.extract_strided_slice %167 {offsets = [0, 31, 0], sizes = [1, 1, 32], strides = [1, 1, 1]} : vector<1x64x32xf32> to vector<1x1x32xf32>
    %231 = vector.shape_cast %230 : vector<1x1x32xf32> to vector<1x32xf32>
    %232 = vector.extract_strided_slice %167 {offsets = [0, 32, 0], sizes = [1, 1, 32], strides = [1, 1, 1]} : vector<1x64x32xf32> to vector<1x1x32xf32>
    %233 = vector.shape_cast %232 : vector<1x1x32xf32> to vector<1x32xf32>
    %234 = vector.extract_strided_slice %167 {offsets = [0, 33, 0], sizes = [1, 1, 32], strides = [1, 1, 1]} : vector<1x64x32xf32> to vector<1x1x32xf32>
    %235 = vector.shape_cast %234 : vector<1x1x32xf32> to vector<1x32xf32>
    %236 = vector.extract_strided_slice %167 {offsets = [0, 34, 0], sizes = [1, 1, 32], strides = [1, 1, 1]} : vector<1x64x32xf32> to vector<1x1x32xf32>
    %237 = vector.shape_cast %236 : vector<1x1x32xf32> to vector<1x32xf32>
    %238 = vector.extract_strided_slice %167 {offsets = [0, 35, 0], sizes = [1, 1, 32], strides = [1, 1, 1]} : vector<1x64x32xf32> to vector<1x1x32xf32>
    %239 = vector.shape_cast %238 : vector<1x1x32xf32> to vector<1x32xf32>
    %240 = vector.extract_strided_slice %167 {offsets = [0, 36, 0], sizes = [1, 1, 32], strides = [1, 1, 1]} : vector<1x64x32xf32> to vector<1x1x32xf32>
    %241 = vector.shape_cast %240 : vector<1x1x32xf32> to vector<1x32xf32>
    %242 = vector.extract_strided_slice %167 {offsets = [0, 37, 0], sizes = [1, 1, 32], strides = [1, 1, 1]} : vector<1x64x32xf32> to vector<1x1x32xf32>
    %243 = vector.shape_cast %242 : vector<1x1x32xf32> to vector<1x32xf32>
    %244 = vector.extract_strided_slice %167 {offsets = [0, 38, 0], sizes = [1, 1, 32], strides = [1, 1, 1]} : vector<1x64x32xf32> to vector<1x1x32xf32>
    %245 = vector.shape_cast %244 : vector<1x1x32xf32> to vector<1x32xf32>
    %246 = vector.extract_strided_slice %167 {offsets = [0, 39, 0], sizes = [1, 1, 32], strides = [1, 1, 1]} : vector<1x64x32xf32> to vector<1x1x32xf32>
    %247 = vector.shape_cast %246 : vector<1x1x32xf32> to vector<1x32xf32>
    %248 = vector.extract_strided_slice %167 {offsets = [0, 40, 0], sizes = [1, 1, 32], strides = [1, 1, 1]} : vector<1x64x32xf32> to vector<1x1x32xf32>
    %249 = vector.shape_cast %248 : vector<1x1x32xf32> to vector<1x32xf32>
    %250 = vector.extract_strided_slice %167 {offsets = [0, 41, 0], sizes = [1, 1, 32], strides = [1, 1, 1]} : vector<1x64x32xf32> to vector<1x1x32xf32>
    %251 = vector.shape_cast %250 : vector<1x1x32xf32> to vector<1x32xf32>
    %252 = vector.extract_strided_slice %167 {offsets = [0, 42, 0], sizes = [1, 1, 32], strides = [1, 1, 1]} : vector<1x64x32xf32> to vector<1x1x32xf32>
    %253 = vector.shape_cast %252 : vector<1x1x32xf32> to vector<1x32xf32>
    %254 = vector.extract_strided_slice %167 {offsets = [0, 43, 0], sizes = [1, 1, 32], strides = [1, 1, 1]} : vector<1x64x32xf32> to vector<1x1x32xf32>
    %255 = vector.shape_cast %254 : vector<1x1x32xf32> to vector<1x32xf32>
    %256 = vector.extract_strided_slice %167 {offsets = [0, 44, 0], sizes = [1, 1, 32], strides = [1, 1, 1]} : vector<1x64x32xf32> to vector<1x1x32xf32>
    %257 = vector.shape_cast %256 : vector<1x1x32xf32> to vector<1x32xf32>
    %258 = vector.extract_strided_slice %167 {offsets = [0, 45, 0], sizes = [1, 1, 32], strides = [1, 1, 1]} : vector<1x64x32xf32> to vector<1x1x32xf32>
    %259 = vector.shape_cast %258 : vector<1x1x32xf32> to vector<1x32xf32>
    %260 = vector.extract_strided_slice %167 {offsets = [0, 46, 0], sizes = [1, 1, 32], strides = [1, 1, 1]} : vector<1x64x32xf32> to vector<1x1x32xf32>
    %261 = vector.shape_cast %260 : vector<1x1x32xf32> to vector<1x32xf32>
    %262 = vector.extract_strided_slice %167 {offsets = [0, 47, 0], sizes = [1, 1, 32], strides = [1, 1, 1]} : vector<1x64x32xf32> to vector<1x1x32xf32>
    %263 = vector.shape_cast %262 : vector<1x1x32xf32> to vector<1x32xf32>
    %264 = vector.extract_strided_slice %167 {offsets = [0, 48, 0], sizes = [1, 1, 32], strides = [1, 1, 1]} : vector<1x64x32xf32> to vector<1x1x32xf32>
    %265 = vector.shape_cast %264 : vector<1x1x32xf32> to vector<1x32xf32>
    %266 = vector.extract_strided_slice %167 {offsets = [0, 49, 0], sizes = [1, 1, 32], strides = [1, 1, 1]} : vector<1x64x32xf32> to vector<1x1x32xf32>
    %267 = vector.shape_cast %266 : vector<1x1x32xf32> to vector<1x32xf32>
    %268 = vector.extract_strided_slice %167 {offsets = [0, 50, 0], sizes = [1, 1, 32], strides = [1, 1, 1]} : vector<1x64x32xf32> to vector<1x1x32xf32>
    %269 = vector.shape_cast %268 : vector<1x1x32xf32> to vector<1x32xf32>
    %270 = vector.extract_strided_slice %167 {offsets = [0, 51, 0], sizes = [1, 1, 32], strides = [1, 1, 1]} : vector<1x64x32xf32> to vector<1x1x32xf32>
    %271 = vector.shape_cast %270 : vector<1x1x32xf32> to vector<1x32xf32>
    %272 = vector.extract_strided_slice %167 {offsets = [0, 52, 0], sizes = [1, 1, 32], strides = [1, 1, 1]} : vector<1x64x32xf32> to vector<1x1x32xf32>
    %273 = vector.shape_cast %272 : vector<1x1x32xf32> to vector<1x32xf32>
    %274 = vector.extract_strided_slice %167 {offsets = [0, 53, 0], sizes = [1, 1, 32], strides = [1, 1, 1]} : vector<1x64x32xf32> to vector<1x1x32xf32>
    %275 = vector.shape_cast %274 : vector<1x1x32xf32> to vector<1x32xf32>
    %276 = vector.extract_strided_slice %167 {offsets = [0, 54, 0], sizes = [1, 1, 32], strides = [1, 1, 1]} : vector<1x64x32xf32> to vector<1x1x32xf32>
    %277 = vector.shape_cast %276 : vector<1x1x32xf32> to vector<1x32xf32>
    %278 = vector.extract_strided_slice %167 {offsets = [0, 55, 0], sizes = [1, 1, 32], strides = [1, 1, 1]} : vector<1x64x32xf32> to vector<1x1x32xf32>
    %279 = vector.shape_cast %278 : vector<1x1x32xf32> to vector<1x32xf32>
    %280 = vector.extract_strided_slice %167 {offsets = [0, 56, 0], sizes = [1, 1, 32], strides = [1, 1, 1]} : vector<1x64x32xf32> to vector<1x1x32xf32>
    %281 = vector.shape_cast %280 : vector<1x1x32xf32> to vector<1x32xf32>
    %282 = vector.extract_strided_slice %167 {offsets = [0, 57, 0], sizes = [1, 1, 32], strides = [1, 1, 1]} : vector<1x64x32xf32> to vector<1x1x32xf32>
    %283 = vector.shape_cast %282 : vector<1x1x32xf32> to vector<1x32xf32>
    %284 = vector.extract_strided_slice %167 {offsets = [0, 58, 0], sizes = [1, 1, 32], strides = [1, 1, 1]} : vector<1x64x32xf32> to vector<1x1x32xf32>
    %285 = vector.shape_cast %284 : vector<1x1x32xf32> to vector<1x32xf32>
    %286 = vector.extract_strided_slice %167 {offsets = [0, 59, 0], sizes = [1, 1, 32], strides = [1, 1, 1]} : vector<1x64x32xf32> to vector<1x1x32xf32>
    %287 = vector.shape_cast %286 : vector<1x1x32xf32> to vector<1x32xf32>
    %288 = vector.extract_strided_slice %167 {offsets = [0, 60, 0], sizes = [1, 1, 32], strides = [1, 1, 1]} : vector<1x64x32xf32> to vector<1x1x32xf32>
    %289 = vector.shape_cast %288 : vector<1x1x32xf32> to vector<1x32xf32>
    %290 = vector.extract_strided_slice %167 {offsets = [0, 61, 0], sizes = [1, 1, 32], strides = [1, 1, 1]} : vector<1x64x32xf32> to vector<1x1x32xf32>
    %291 = vector.shape_cast %290 : vector<1x1x32xf32> to vector<1x32xf32>
    %292 = vector.extract_strided_slice %167 {offsets = [0, 62, 0], sizes = [1, 1, 32], strides = [1, 1, 1]} : vector<1x64x32xf32> to vector<1x1x32xf32>
    %293 = vector.shape_cast %292 : vector<1x1x32xf32> to vector<1x32xf32>
    %294 = vector.extract_strided_slice %167 {offsets = [0, 63, 0], sizes = [1, 1, 32], strides = [1, 1, 1]} : vector<1x64x32xf32> to vector<1x1x32xf32>
    %295 = vector.shape_cast %294 : vector<1x1x32xf32> to vector<1x32xf32>
    %296 = tpu.concatenate %169, %171, %173, %175 in 1 : vector<1x32xf32>, vector<1x32xf32>, vector<1x32xf32>, vector<1x32xf32> -> vector<1x128xf32>
    %297 = tpu.concatenate %177, %179, %181, %183 in 1 : vector<1x32xf32>, vector<1x32xf32>, vector<1x32xf32>, vector<1x32xf32> -> vector<1x128xf32>
    %298 = tpu.concatenate %185, %187, %189, %191 in 1 : vector<1x32xf32>, vector<1x32xf32>, vector<1x32xf32>, vector<1x32xf32> -> vector<1x128xf32>
    %299 = tpu.concatenate %193, %195, %197, %199 in 1 : vector<1x32xf32>, vector<1x32xf32>, vector<1x32xf32>, vector<1x32xf32> -> vector<1x128xf32>
    %300 = tpu.concatenate %201, %203, %205, %207 in 1 : vector<1x32xf32>, vector<1x32xf32>, vector<1x32xf32>, vector<1x32xf32> -> vector<1x128xf32>
    %301 = tpu.concatenate %209, %211, %213, %215 in 1 : vector<1x32xf32>, vector<1x32xf32>, vector<1x32xf32>, vector<1x32xf32> -> vector<1x128xf32>
    %302 = tpu.concatenate %217, %219, %221, %223 in 1 : vector<1x32xf32>, vector<1x32xf32>, vector<1x32xf32>, vector<1x32xf32> -> vector<1x128xf32>
    %303 = tpu.concatenate %225, %227, %229, %231 in 1 : vector<1x32xf32>, vector<1x32xf32>, vector<1x32xf32>, vector<1x32xf32> -> vector<1x128xf32>
    %304 = tpu.concatenate %233, %235, %237, %239 in 1 : vector<1x32xf32>, vector<1x32xf32>, vector<1x32xf32>, vector<1x32xf32> -> vector<1x128xf32>
    %305 = tpu.concatenate %241, %243, %245, %247 in 1 : vector<1x32xf32>, vector<1x32xf32>, vector<1x32xf32>, vector<1x32xf32> -> vector<1x128xf32>
    %306 = tpu.concatenate %249, %251, %253, %255 in 1 : vector<1x32xf32>, vector<1x32xf32>, vector<1x32xf32>, vector<1x32xf32> -> vector<1x128xf32>
    %307 = tpu.concatenate %257, %259, %261, %263 in 1 : vector<1x32xf32>, vector<1x32xf32>, vector<1x32xf32>, vector<1x32xf32> -> vector<1x128xf32>
    %308 = tpu.concatenate %265, %267, %269, %271 in 1 : vector<1x32xf32>, vector<1x32xf32>, vector<1x32xf32>, vector<1x32xf32> -> vector<1x128xf32>
    %309 = tpu.concatenate %273, %275, %277, %279 in 1 : vector<1x32xf32>, vector<1x32xf32>, vector<1x32xf32>, vector<1x32xf32> -> vector<1x128xf32>
    %310 = tpu.concatenate %281, %283, %285, %287 in 1 : vector<1x32xf32>, vector<1x32xf32>, vector<1x32xf32>, vector<1x32xf32> -> vector<1x128xf32>
    %311 = tpu.concatenate %289, %291, %293, %295 in 1 : vector<1x32xf32>, vector<1x32xf32>, vector<1x32xf32>, vector<1x32xf32> -> vector<1x128xf32>
    %312 = tpu.concatenate %296, %297, %298, %299, %300, %301, %302, %303, %304, %305, %306, %307, %308, %309, %310, %311 in 1 : vector<1x128xf32>, vector<1x128xf32>, vector<1x128xf32>, vector<1x128xf32>, vector<1x128xf32>, vector<1x128xf32>, vector<1x128xf32>, vector<1x128xf32>, vector<1x128xf32>, vector<1x128xf32>, vector<1x128xf32>, vector<1x128xf32>, vector<1x128xf32>, vector<1x128xf32>, vector<1x128xf32>, vector<1x128xf32> -> vector<1x2048xf32>
    %313 = arith.truncf %312 : vector<1x2048xf32> to vector<1x2048xbf16>
    %c0_243 = arith.constant 0 : index
    %c0_244 = arith.constant 0 : index
    %314 = vector.load %arg8[%c0_243, %c0_244] : memref<2048x10xbf16, #tpu.memory_space<vmem>>, vector<2048x10xbf16>
    %cst_245 = arith.constant dense<0.000000e+00> : vector<1x10xf32>
    %315 = tpu.matmul %313, %314, %cst_245 {dimension_numbers = #tpu.dot_dimension_numbers<[1], [0], [0], [1], [0, 0, 1, 1], [], []>} : vector<1x2048xbf16>, vector<2048x10xbf16>, vector<1x10xf32> -> vector<1x10xf32>
    %c0_246 = arith.constant 0 : index
    %c0_247 = arith.constant 0 : index
    %316 = vector.load %arg9[%c0_246, %c0_247] : memref<1x10xf32, #tpu.memory_space<vmem>>, vector<1x10xf32>
    %317 = arith.addf %315, %316 : vector<1x10xf32>
    %318 = vector.shape_cast %317 : vector<1x10xf32> to vector<1x1x10xf32>
    %c0_248 = arith.constant 0 : index
    %c0_249 = arith.constant 0 : index
    %c0_250 = arith.constant 0 : index
    %319 = vector.load %arg10[%c0_248, %c0_249, %c0_250] : memref<1x1x10xf32, #tpu.memory_space<vmem>>, vector<1x1x10xf32>
    tpu.vector_store %arg10[%c0_248, %c0_249, %c0_250], %318 {strides = array<i32>} : memref<1x1x10xf32, #tpu.memory_space<vmem>>, vector<1x1x10xf32>,
    return
  }
  func.func @transform_0(%arg0: i32) -> (i32, i32, i32, i32) {
    %c0_i32 = arith.constant 0 : i32
    %c0_i32_0 = arith.constant 0 : i32
    %c0_i32_1 = arith.constant 0 : i32
    %c0_i32_2 = arith.constant 0 : i32
    return %arg0, %c0_i32, %c0_i32_0, %c0_i32_1 : i32, i32, i32, i32
  }
  func.func @transform_1(%arg0: i32) -> (i32, i32) {
    %c0_i32 = arith.constant 0 : i32
    %c0_i32_0 = arith.constant 0 : i32
    %c0_i32_1 = arith.constant 0 : i32
    return %c0_i32, %c0_i32_0 : i32, i32
  }
  func.func @transform_2(%arg0: i32) -> (i32, i32) {
    %c0_i32 = arith.constant 0 : i32
    %c0_i32_0 = arith.constant 0 : i32
    %c0_i32_1 = arith.constant 0 : i32
    return %c0_i32, %c0_i32_0 : i32, i32
  }
  func.func @transform_3(%arg0: i32) -> (i32, i32) {
    %c0_i32 = arith.constant 0 : i32
    %c0_i32_0 = arith.constant 0 : i32
    %c0_i32_1 = arith.constant 0 : i32
    return %c0_i32, %c0_i32_0 : i32, i32
  }
  func.func @transform_4(%arg0: i32) -> (i32, i32) {
    %c0_i32 = arith.constant 0 : i32
    %c0_i32_0 = arith.constant 0 : i32
    %c0_i32_1 = arith.constant 0 : i32
    return %c0_i32, %c0_i32_0 : i32, i32
  }
  func.func @transform_5(%arg0: i32) -> (i32, i32) {
    %c0_i32 = arith.constant 0 : i32
    %c0_i32_0 = arith.constant 0 : i32
    %c0_i32_1 = arith.constant 0 : i32
    return %c0_i32, %c0_i32_0 : i32, i32
  }
  func.func @transform_6(%arg0: i32) -> (i32, i32) {
    %c0_i32 = arith.constant 0 : i32
    %c0_i32_0 = arith.constant 0 : i32
    %c0_i32_1 = arith.constant 0 : i32
    return %c0_i32, %c0_i32_0 : i32, i32
  }
  func.func @transform_7(%arg0: i32) -> (i32, i32) {
    %c0_i32 = arith.constant 0 : i32
    %c0_i32_0 = arith.constant 0 : i32
    %c0_i32_1 = arith.constant 0 : i32
    return %c0_i32, %c0_i32_0 : i32, i32
  }
  func.func @transform_8(%arg0: i32) -> (i32, i32) {
    %c0_i32 = arith.constant 0 : i32
    %c0_i32_0 = arith.constant 0 : i32
    %c0_i32_1 = arith.constant 0 : i32
    return %c0_i32, %c0_i32_0 : i32, i32
  }
  func.func @transform_9(%arg0: i32) -> (i32, i32, i32) {
    %c0_i32 = arith.constant 0 : i32
    %c0_i32_0 = arith.constant 0 : i32
    %c0_i32_1 = arith.constant 0 : i32
    return %arg0, %c0_i32, %c0_i32_0 : i32, i32, i32
  }
}

</mosaic_0001>

<llo_original>
// kernel: svhn_forward.1
$region0: #{svhn_forward.1}
  #allocation0 [shape = 'u32[]', space=smem, size = 0x4, offset = 0x4, fixed_abs, tag = 'smem constant byte address 0x4 - core index']
  #allocation1 [shape = 'u32[72,128]{1,0:T(1,128)}', space=vmem, size = 0x9000, scoped, tag = 'internal scratch']
  #allocation2 [shape = 'f32[1,18,18,3]{3,2,1,0:T(8,128)}', space=vmem, size = 0x36000, scoped, tag = 'scratch operand']
  #allocation3 [shape = 'f32[1,18,18,32]{3,2,1,0:T(8,128)}', space=vmem, size = 0x36000, scoped, tag = 'scratch operand']
  #allocation4 [shape = 'f32[1,10,10,32]{3,2,1,0:T(8,128)}', space=vmem, size = 0x14000, scoped, tag = 'scratch operand']
  #allocation5 [shape = 'bf16[256,288]{1,0:T(8,128)(2,1)}', space=vmem, size = 0x30000, scoped, tag = 'scratch operand']
  %s0 = inlined_call_operand.vmem [shape: f32[2,16,16,3], index: 0, kind: input, shape index: {}]
  %s1 = inlined_call_operand.vmem [shape: bf16[27,32], index: 1, kind: input, shape index: {}]
  %s2 = inlined_call_operand.vmem [shape: f32[1,32], index: 2, kind: input, shape index: {}]
  %s3 = inlined_call_operand.vmem [shape: bf16[288,32], index: 3, kind: input, shape index: {}]
  %s4 = inlined_call_operand.vmem [shape: f32[1,32], index: 4, kind: input, shape index: {}]
  %s5 = inlined_call_operand.vmem [shape: bf16[288,32], index: 5, kind: input, shape index: {}]
  %s6 = inlined_call_operand.vmem [shape: f32[1,32], index: 6, kind: input, shape index: {}]
  %s7 = inlined_call_operand.vmem [shape: bf16[2048,10], index: 7, kind: input, shape index: {}]
  %s8 = inlined_call_operand.vmem [shape: f32[1,10], index: 8, kind: input, shape index: {}]
  %s9 = inlined_call_operand.hbm [shape: f32[2,1,10], index: 9, kind: output, shape index: {}]
  %s10 = sld [smem:[#allocation0]]
  $region69: #{svhn_forward.1} parent=0
    _
  %s12 = ssub.s32 1, %s10
  %s13 = scalar_select 0, %s12, %s10
  $region1: #{svhn_forward.1} parent=0
    #allocation6 [shape = 'u8[1024]{0}', space=vmem, size = 0x400, scoped, tag = 'output window, operand 0']
    #allocation7 [shape = 's32[2]{0}', space=sflag, size = 0x8, scoped, tag = 'scoped memory for svhn_forward.1']
    %14 = vsyncpa [#allocation7], 0
    %s15 = scalar_lea.sflag [#allocation7], 1
    %16 = vsyncpa %s15, 0
    loop: start=0, step=1, limit=4
    $region2: #{svhn_forward.1} parent=1 // loop_pre_header
      _
    $region3: #{svhn_forward.1} parent=1 // loop_header
      %s18 = sphi 0, %s22
      %p19 = scmp.ge.s32.totalorder %s18, 4
      %s28 = sphi 0, %s30
      %s31 = sphi 0, %s28
      %s32 = sphi 0, %s31
      %s48 = sphi 0, %s32
      %s52 = sphi 0, %s52
      %s54 = sphi 0, %s52
      %s55 = sphi 0, %s54
      %s69 = sphi 0, %s55
      %s73 = sphi 0, %s73
      %s75 = sphi 0, %s73
      %s76 = sphi 0, %s75
      %s90 = sphi 0, %s76
      %s94 = sphi 0, %s94
      %s96 = sphi 0, %s94
      %s97 = sphi 0, %s96
      %s111 = sphi 0, %s97
      %s115 = sphi 0, %s115
      %s117 = sphi 0, %s115
      %s118 = sphi 0, %s117
      %s132 = sphi 0, %s118
      %s136 = sphi 0, %s136
      %s138 = sphi 0, %s136
      %s139 = sphi 0, %s138
      %s153 = sphi 0, %s139
      %s157 = sphi 0, %s157
      %s159 = sphi 0, %s157
      %s160 = sphi 0, %s159
      %s174 = sphi 0, %s160
      %s178 = sphi 0, %s178
      %s180 = sphi 0, %s178
      %s181 = sphi 0, %s180
      %s195 = sphi 0, %s181
      %s199 = sphi 0, %s199
      %s201 = sphi 0, %s199
      %s202 = sphi 0, %s201
      %s216 = sphi 0, %s202
      %s222 = sphi 0, %s224
      %s225 = sphi 0, %s222
      %s226 = sphi 0, %s225
      %s242 = sphi 0, %s226
    $region4: #{svhn_forward.1} parent=1 // loop_header_branch
      %21 = sbr.rel (%p19) target = $region8
    $region5: #{svhn_forward.1} parent=1 // loop_body
      %s23 = ssub.s32 %s18, 1
      %s24 = ssub.s32 %s18, 2
      %s25 = sadd.s32 %s18, 1
      %s26 = ssub.s32 %s18, %s25
      %p27 = scmp.eq.s32.totalorder %s26, 0
      %s29 = sadd.s32 %s28, 1
      %s30 = scalar_select %p27, %s28, %s29
      %p33 = pneg %p27
      %p34 = scmp.eq.s32.totalorder %s18, 1
      %p35 = por %p33, %p34
      %p36 = scmp.ne.s32.totalorder %s28, %s31
      %p37 = scmp.eq.s32.totalorder %s18, 0
      %p38 = por %p36, %p37
      %p39 = scmp.ne.s32.totalorder %s28, %s31
      %p40 = scmp.eq.s32.totalorder %s23, 1
      %p41 = por %p39, %p40
      %p42 = scmp.ne.s32.totalorder %s31, %s32
      %p43 = scmp.eq.s32.totalorder %s23, 0
      %p44 = por %p42, %p43
      %p45 = scmp.ne.s32.totalorder %s31, %s32
      %p46 = scmp.eq.s32.totalorder %s24, 1
      %p47 = por %p45, %p46
      %p49 = scmp.ne.s32.totalorder %s32, %s48
      %p50 = scmp.eq.s32.totalorder %s24, 0
      %p51 = por %p49, %p50
      %s53 = sadd.s32 %s52, 1
      %p56 = scmp.eq.s32.totalorder %s18, 1
      %p57 = scmp.ne.s32.totalorder %s52, %s54
      %p58 = scmp.eq.s32.totalorder %s18, 0
      %p59 = por %p57, %p58
      %p60 = scmp.ne.s32.totalorder %s52, %s54
      %p61 = scmp.eq.s32.totalorder %s23, 1
      %p62 = por %p60, %p61
      %p63 = scmp.ne.s32.totalorder %s54, %s55
      %p64 = scmp.eq.s32.totalorder %s23, 0
      %p65 = por %p63, %p64
      %p66 = scmp.ne.s32.totalorder %s54, %s55
      %p67 = scmp.eq.s32.totalorder %s24, 1
      %p68 = por %p66, %p67
      %p70 = scmp.ne.s32.totalorder %s55, %s69
      %p71 = scmp.eq.s32.totalorder %s24, 0
      %p72 = por %p70, %p71
      %s74 = sadd.s32 %s73, 1
      %p77 = scmp.eq.s32.totalorder %s18, 1
      %p78 = scmp.ne.s32.totalorder %s73, %s75
      %p79 = scmp.eq.s32.totalorder %s18, 0
      %p80 = por %p78, %p79
      %p81 = scmp.ne.s32.totalorder %s73, %s75
      %p82 = scmp.eq.s32.totalorder %s23, 1
      %p83 = por %p81, %p82
      %p84 = scmp.ne.s32.totalorder %s75, %s76
      %p85 = scmp.eq.s32.totalorder %s23, 0
      %p86 = por %p84, %p85
      %p87 = scmp.ne.s32.totalorder %s75, %s76
      %p88 = scmp.eq.s32.totalorder %s24, 1
      %p89 = por %p87, %p88
      %p91 = scmp.ne.s32.totalorder %s76, %s90
      %p92 = scmp.eq.s32.totalorder %s24, 0
      %p93 = por %p91, %p92
      %s95 = sadd.s32 %s94, 1
      %p98 = scmp.eq.s32.totalorder %s18, 1
      %p99 = scmp.ne.s32.totalorder %s94, %s96
      %p100 = scmp.eq.s32.totalorder %s18, 0
      %p101 = por %p99, %p100
      %p102 = scmp.ne.s32.totalorder %s94, %s96
      %p103 = scmp.eq.s32.totalorder %s23, 1
      %p104 = por %p102, %p103
      %p105 = scmp.ne.s32.totalorder %s96, %s97
      %p106 = scmp.eq.s32.totalorder %s23, 0
      %p107 = por %p105, %p106
      %p108 = scmp.ne.s32.totalorder %s96, %s97
      %p109 = scmp.eq.s32.totalorder %s24, 1
      %p110 = por %p108, %p109
      %p112 = scmp.ne.s32.totalorder %s97, %s111
      %p113 = scmp.eq.s32.totalorder %s24, 0
      %p114 = por %p112, %p113
      %s116 = sadd.s32 %s115, 1
      %p119 = scmp.eq.s32.totalorder %s18, 1
      %p120 = scmp.ne.s32.totalorder %s115, %s117
      %p121 = scmp.eq.s32.totalorder %s18, 0
      %p122 = por %p120, %p121
      %p123 = scmp.ne.s32.totalorder %s115, %s117
      %p124 = scmp.eq.s32.totalorder %s23, 1
      %p125 = por %p123, %p124
      %p126 = scmp.ne.s32.totalorder %s117, %s118
      %p127 = scmp.eq.s32.totalorder %s23, 0
      %p128 = por %p126, %p127
      %p129 = scmp.ne.s32.totalorder %s117, %s118
      %p130 = scmp.eq.s32.totalorder %s24, 1
      %p131 = por %p129, %p130
      %p133 = scmp.ne.s32.totalorder %s118, %s132
      %p134 = scmp.eq.s32.totalorder %s24, 0
      %p135 = por %p133, %p134
      %s137 = sadd.s32 %s136, 1
      %p140 = scmp.eq.s32.totalorder %s18, 1
      %p141 = scmp.ne.s32.totalorder %s136, %s138
      %p142 = scmp.eq.s32.totalorder %s18, 0
      %p143 = por %p141, %p142
      %p144 = scmp.ne.s32.totalorder %s136, %s138
      %p145 = scmp.eq.s32.totalorder %s23, 1
      %p146 = por %p144, %p145
      %p147 = scmp.ne.s32.totalorder %s138, %s139
      %p148 = scmp.eq.s32.totalorder %s23, 0
      %p149 = por %p147, %p148
      %p150 = scmp.ne.s32.totalorder %s138, %s139
      %p151 = scmp.eq.s32.totalorder %s24, 1
      %p152 = por %p150, %p151
      %p154 = scmp.ne.s32.totalorder %s139, %s153
      %p155 = scmp.eq.s32.totalorder %s24, 0
      %p156 = por %p154, %p155
      %s158 = sadd.s32 %s157, 1
      %p161 = scmp.eq.s32.totalorder %s18, 1
      %p162 = scmp.ne.s32.totalorder %s157, %s159
      %p163 = scmp.eq.s32.totalorder %s18, 0
      %p164 = por %p162, %p163
      %p165 = scmp.ne.s32.totalorder %s157, %s159
      %p166 = scmp.eq.s32.totalorder %s23, 1
      %p167 = por %p165, %p166
      %p168 = scmp.ne.s32.totalorder %s159, %s160
      %p169 = scmp.eq.s32.totalorder %s23, 0
      %p170 = por %p168, %p169
      %p171 = scmp.ne.s32.totalorder %s159, %s160
      %p172 = scmp.eq.s32.totalorder %s24, 1
      %p173 = por %p171, %p172
      %p175 = scmp.ne.s32.totalorder %s160, %s174
      %p176 = scmp.eq.s32.totalorder %s24, 0
      %p177 = por %p175, %p176
      %s179 = sadd.s32 %s178, 1
      %p182 = scmp.eq.s32.totalorder %s18, 1
      %p183 = scmp.ne.s32.totalorder %s178, %s180
      %p184 = scmp.eq.s32.totalorder %s18, 0
      %p185 = por %p183, %p184
      %p186 = scmp.ne.s32.totalorder %s178, %s180
      %p187 = scmp.eq.s32.totalorder %s23, 1
      %p188 = por %p186, %p187
      %p189 = scmp.ne.s32.totalorder %s180, %s181
      %p190 = scmp.eq.s32.totalorder %s23, 0
      %p191 = por %p189, %p190
      %p192 = scmp.ne.s32.totalorder %s180, %s181
      %p193 = scmp.eq.s32.totalorder %s24, 1
      %p194 = por %p192, %p193
      %p196 = scmp.ne.s32.totalorder %s181, %s195
      %p197 = scmp.eq.s32.totalorder %s24, 0
      %p198 = por %p196, %p197
      %s200 = sadd.s32 %s199, 1
      %p203 = scmp.eq.s32.totalorder %s18, 1
      %p204 = scmp.ne.s32.totalorder %s199, %s201
      %p205 = scmp.eq.s32.totalorder %s18, 0
      %p206 = por %p204, %p205
      %p207 = scmp.ne.s32.totalorder %s199, %s201
      %p208 = scmp.eq.s32.totalorder %s23, 1
      %p209 = por %p207, %p208
      %p210 = scmp.ne.s32.totalorder %s201, %s202
      %p211 = scmp.eq.s32.totalorder %s23, 0
      %p212 = por %p210, %p211
      %p213 = scmp.ne.s32.totalorder %s201, %s202
      %p214 = scmp.eq.s32.totalorder %s24, 1
      %p215 = por %p213, %p214
      %p217 = scmp.ne.s32.totalorder %s202, %s216
      %p218 = scmp.eq.s32.totalorder %s24, 0
      %p219 = por %p217, %p218
      %s220 = ssub.s32 %s18, %s25
      %p221 = scmp.eq.s32.totalorder %s220, 0
      %s223 = sadd.s32 %s222, 1
      %s224 = scalar_select %p221, %s222, %s223
      %p227 = pneg %p221
      %p228 = scmp.eq.s32.totalorder %s18, 1
      %p229 = por %p227, %p228
      %p230 = scmp.ne.s32.totalorder %s222, %s225
      %p231 = scmp.eq.s32.totalorder %s18, 0
      %p232 = por %p230, %p231
      %p233 = scmp.ne.s32.totalorder %s222, %s225
      %p234 = scmp.eq.s32.totalorder %s23, 1
      %p235 = por %p233, %p234
      %p236 = scmp.ne.s32.totalorder %s225, %s226
      %p237 = scmp.eq.s32.totalorder %s23, 0
      %p238 = por %p236, %p237
      %p239 = scmp.ne.s32.totalorder %s225, %s226
      %p240 = scmp.eq.s32.totalorder %s24, 1
      %p241 = por %p239, %p240
      %p243 = scmp.ne.s32.totalorder %s226, %s242
      %p244 = scmp.eq.s32.totalorder %s24, 0
      %p245 = por %p243, %p244
      %p246 = scmp.le.s32.totalorder 1, %s18
      %p247 = scmp.lt.s32.totalorder %s18, 3
      %p248 = pnand %p246, %p247
      %p249 = pneg %p248
      // Predicated region
      $region9: #{svhn_forward.1} parent=5 // pred_check
        _
      $region10: #{svhn_forward.1} parent=5 // pred_check_branch
        %251 = sbr.rel (%p248) target = $region12
      $region11: #{svhn_forward.1} parent=5 // pred_region
        %s252 = ssub.s32 %s18, 1
        // Predicated region
        $region13: #{svhn_forward.1} parent=11 // pred_check
          %p253 = pneg %p65
        $region14: #{svhn_forward.1} parent=11 // pred_check_branch
          %255 = sbr.rel (%p253) target = $region16
        $region15: #{svhn_forward.1} parent=11 // pred_region
          _
        $region16: #{svhn_forward.1} parent=11 // pred_fallthru
          _
        // Predicated region
        $region17: #{svhn_forward.1} parent=11 // pred_check
          %p256 = pneg %p86
        $region18: #{svhn_forward.1} parent=11 // pred_check_branch
          %258 = sbr.rel (%p256) target = $region20
        $region19: #{svhn_forward.1} parent=11 // pred_region
          _
        $region20: #{svhn_forward.1} parent=11 // pred_fallthru
          _
        // Predicated region
        $region21: #{svhn_forward.1} parent=11 // pred_check
          %p259 = pneg %p107
        $region22: #{svhn_forward.1} parent=11 // pred_check_branch
          %261 = sbr.rel (%p259) target = $region24
        $region23: #{svhn_forward.1} parent=11 // pred_region
          _
        $region24: #{svhn_forward.1} parent=11 // pred_fallthru
          _
        // Predicated region
        $region25: #{svhn_forward.1} parent=11 // pred_check
          %p262 = pneg %p128
        $region26: #{svhn_forward.1} parent=11 // pred_check_branch
          %264 = sbr.rel (%p262) target = $region28
        $region27: #{svhn_forward.1} parent=11 // pred_region
          _
        $region28: #{svhn_forward.1} parent=11 // pred_fallthru
          _
        // Predicated region
        $region29: #{svhn_forward.1} parent=11 // pred_check
          %p265 = pneg %p149
        $region30: #{svhn_forward.1} parent=11 // pred_check_branch
          %267 = sbr.rel (%p265) target = $region32
        $region31: #{svhn_forward.1} parent=11 // pred_region
          _
        $region32: #{svhn_forward.1} parent=11 // pred_fallthru
          _
        // Predicated region
        $region33: #{svhn_forward.1} parent=11 // pred_check
          %p268 = pneg %p170
        $region34: #{svhn_forward.1} parent=11 // pred_check_branch
          %270 = sbr.rel (%p268) target = $region36
        $region35: #{svhn_forward.1} parent=11 // pred_region
          _
        $region36: #{svhn_forward.1} parent=11 // pred_fallthru
          _
        // Predicated region
        $region37: #{svhn_forward.1} parent=11 // pred_check
          %p271 = pneg %p191
        $region38: #{svhn_forward.1} parent=11 // pred_check_branch
          %273 = sbr.rel (%p271) target = $region40
        $region39: #{svhn_forward.1} parent=11 // pred_region
          _
        $region40: #{svhn_forward.1} parent=11 // pred_fallthru
          _
        // Predicated region
        $region41: #{svhn_forward.1} parent=11 // pred_check
          %p274 = pneg %p212
        $region42: #{svhn_forward.1} parent=11 // pred_check_branch
          %276 = sbr.rel (%p274) target = $region44
        $region43: #{svhn_forward.1} parent=11 // pred_region
          _
        $region44: #{svhn_forward.1} parent=11 // pred_fallthru
          _
      $region12: #{svhn_forward.1} parent=5 // pred_fallthru
        _
      %p277 = scmp.lt.s32.totalorder %s18, 2
      // Predicated region
      $region45: #{svhn_forward.1} parent=5 // pred_check
        %p278 = pneg %p277
      $region46: #{svhn_forward.1} parent=5 // pred_check_branch
        %280 = sbr.rel (%p278) target = $region48
      $region47: #{svhn_forward.1} parent=5 // pred_region
        // Predicated region
        $region49: #{svhn_forward.1} parent=47 // pred_check
          %p281 = pneg %p38
        $region50: #{svhn_forward.1} parent=47 // pred_check_branch
          %283 = sbr.rel (%p281) target = $region52
        $region51: #{svhn_forward.1} parent=47 // pred_region
          %p284 = scmp.lt.s32.totalorder %s18, 1
          %s285 = scalar_select %p284, %s18, 1
          %s286 = smul.addr %s285, 32
          %s287 = smul.addr %s286, 8
          %s288 = scalar_lea.vmem %s0, %s287
        $region52: #{svhn_forward.1} parent=47 // pred_fallthru
          _
      $region48: #{svhn_forward.1} parent=5 // pred_fallthru
        _
      %p289 = scmp.le.s32.totalorder 1, %s18
      %p290 = scmp.lt.s32.totalorder %s18, 3
      %p291 = pnand %p289, %p290
      %p292 = pneg %p291
      // Predicated region
      $region53: #{svhn_forward.1} parent=5 // pred_check
        _
      $region54: #{svhn_forward.1} parent=5 // pred_check_branch
        %294 = sbr.rel (%p291) target = $region56
      $region55: #{svhn_forward.1} parent=5 // pred_region
        %s295 = ssub.s32 %s18, 1
        %p296 = scmp.lt.s32.totalorder %s23, 1
        %s297 = scalar_select %p296, %s23, 1
        %s298 = smul.addr %s297, 32
        %s299 = smul.addr %s298, 8
        %s300 = scalar_lea.vmem %s0, %s299
        %p301 = pneg %p44
        %p302 = pneg %p41
        %p303 = pneg %p65
        %p304 = pneg %p62
        %p305 = pneg %p86
        %p306 = pneg %p83
        %p307 = pneg %p107
        %p308 = pneg %p104
        %p309 = pneg %p128
        %p310 = pneg %p125
        %p311 = pneg %p149
        %p312 = pneg %p146
        %p313 = pneg %p170
        %p314 = pneg %p167
        %p315 = pneg %p191
        %p316 = pneg %p188
        %p317 = pneg %p212
        %p318 = pneg %p209
        %p319 = pneg %p238
        %p320 = pneg %p235
        %s321 = sand.u32 %s225, 1
        %s322 = scalar_lea.sflag [#allocation7], %s321
        %s323 = sand.u32 %s225, 1
        %s324 = scalar_lea.vmem [#allocation6], %s323
        %p325 = scmp.lt.s32.totalorder %s23, 1
        %s326 = scalar_select %p325, %s23, 1
        %s327 = smul.addr %s326, 32
        %s328 = smul.addr %s327, 8
        %s329 = scalar_lea.vmem %s0, %s328
        %v331 = vld [vmem:[%s329] sm:$0xff]
        %v332 = vld [vmem:[%s329 + $0x8] sm:$0xff]
        %v333 = vld [vmem:[%s329 + $0x10] sm:$0xff]
        %v334 = vld [vmem:[%s329 + $0x18] sm:$0xff]
        %v335 = vld [vmem:[%s329 + $0x20] sm:$0xff]
        %v336 = vld [vmem:[%s329 + $0x28] sm:$0xff]
        %v337 = vld [vmem:[%s329 + $0x30] sm:$0xff]
        %v338 = vld [vmem:[%s329 + $0x38] sm:$0xff]
        %v339 = vld [vmem:[%s329 + $0x40] sm:$0xff]
        %v340 = vld [vmem:[%s329 + $0x48] sm:$0xff]
        %v341 = vld [vmem:[%s329 + $0x50] sm:$0xff]
        %v342 = vld [vmem:[%s329 + $0x58] sm:$0xff]
        %v343 = vld [vmem:[%s329 + $0x60] sm:$0xff]
        %v344 = vld [vmem:[%s329 + $0x68] sm:$0xff]
        %v345 = vld [vmem:[%s329 + $0x70] sm:$0xff]
        %v346 = vld [vmem:[%s329 + $0x78] sm:$0xff]
        %v347 = vld [vmem:[%s329 + $0x80] sm:$0xff]
        %v348 = vld [vmem:[%s329 + $0x88] sm:$0xff]
        %v349 = vld [vmem:[%s329 + $0x90] sm:$0xff]
        %v350 = vld [vmem:[%s329 + $0x98] sm:$0xff]
        %v351 = vld [vmem:[%s329 + $0xa0] sm:$0xff]
        %v352 = vld [vmem:[%s329 + $0xa8] sm:$0xff]
        %v353 = vld [vmem:[%s329 + $0xb0] sm:$0xff]
        %v354 = vld [vmem:[%s329 + $0xb8] sm:$0xff]
        %v355 = vld [vmem:[%s329 + $0xc0] sm:$0xff]
        %v356 = vld [vmem:[%s329 + $0xc8] sm:$0xff]
        %v357 = vld [vmem:[%s329 + $0xd0] sm:$0xff]
        %v358 = vld [vmem:[%s329 + $0xd8] sm:$0xff]
        %v359 = vld [vmem:[%s329 + $0xe0] sm:$0xff]
        %v360 = vld [vmem:[%s329 + $0xe8] sm:$0xff]
        %v361 = vld [vmem:[%s329 + $0xf0] sm:$0xff]
        %v362 = vld [vmem:[%s329 + $0xf8] sm:$0xff]
        %vm363 = vcmask 23552
        %364 = vst.msk [vmem:[#allocation2] sm:$0xff] %vm363, 0.0
        %365 = vst.msk [vmem:[#allocation2 + $0x8] sm:$0xff] %vm363, 0.0
        %vm366 = vcmask 17408
        %367 = vst.msk [vmem:[#allocation2 + $0x10] sm:$0x3] %vm366, 0.0
        %s368 = scalar_lea.vmem [#allocation2], 408
        %369 = vst.msk [vmem:[%s368] sm:$0xff] %vm363, 0.0
        %370 = vst.msk [vmem:[%s368 + $0x8] sm:$0xff] %vm363, 0.0
        %371 = vst.msk [vmem:[%s368 + $0x10] sm:$0x3] %vm366, 0.0
        %vm372 = vcmask 16384
        %373 = vst.msk [vmem:[#allocation2] sm:$0x1] %vm372, 0.0
        %374 = vst.msk [vmem:[#allocation2 + $0x18] sm:$0x1] %vm372, 0.0
        %375 = vst.msk [vmem:[#allocation2 + $0x30] sm:$0x1] %vm372, 0.0
        %376 = vst.msk [vmem:[#allocation2 + $0x48] sm:$0x1] %vm372, 0.0
        %377 = vst.msk [vmem:[#allocation2 + $0x60] sm:$0x1] %vm372, 0.0
        %378 = vst.msk [vmem:[#allocation2 + $0x78] sm:$0x1] %vm372, 0.0
        %379 = vst.msk [vmem:[#allocation2 + $0x90] sm:$0x1] %vm372, 0.0
        %380 = vst.msk [vmem:[#allocation2 + $0xa8] sm:$0x1] %vm372, 0.0
        %381 = vst.msk [vmem:[#allocation2 + $0xc0] sm:$0x1] %vm372, 0.0
        %382 = vst.msk [vmem:[#allocation2 + $0xd8] sm:$0x1] %vm372, 0.0
        %383 = vst.msk [vmem:[#allocation2 + $0xf0] sm:$0x1] %vm372, 0.0
        %384 = vst.msk [vmem:[#allocation2 + $0x108] sm:$0x1] %vm372, 0.0
        %385 = vst.msk [vmem:[#allocation2 + $0x120] sm:$0x1] %vm372, 0.0
        %386 = vst.msk [vmem:[#allocation2 + $0x138] sm:$0x1] %vm372, 0.0
        %387 = vst.msk [vmem:[#allocation2 + $0x150] sm:$0x1] %vm372, 0.0
        %388 = vst.msk [vmem:[#allocation2 + $0x168] sm:$0x1] %vm372, 0.0
        %389 = vst.msk [vmem:[#allocation2 + $0x180] sm:$0x1] %vm372, 0.0
        %390 = vst.msk [vmem:[#allocation2 + $0x198] sm:$0x1] %vm372, 0.0
        %391 = vst.msk [vmem:[#allocation2 + $0x11] sm:$0x1] %vm372, 0.0
        %392 = vst.msk [vmem:[#allocation2 + $0x29] sm:$0x1] %vm372, 0.0
        %393 = vst.msk [vmem:[#allocation2 + $0x41] sm:$0x1] %vm372, 0.0
        %394 = vst.msk [vmem:[#allocation2 + $0x59] sm:$0x1] %vm372, 0.0
        %395 = vst.msk [vmem:[#allocation2 + $0x71] sm:$0x1] %vm372, 0.0
        %396 = vst.msk [vmem:[#allocation2 + $0x89] sm:$0x1] %vm372, 0.0
        %397 = vst.msk [vmem:[#allocation2 + $0xa1] sm:$0x1] %vm372, 0.0
        %398 = vst.msk [vmem:[#allocation2 + $0xb9] sm:$0x1] %vm372, 0.0
        %399 = vst.msk [vmem:[#allocation2 + $0xd1] sm:$0x1] %vm372, 0.0
        %400 = vst.msk [vmem:[#allocation2 + $0xe9] sm:$0x1] %vm372, 0.0
        %401 = vst.msk [vmem:[#allocation2 + $0x101] sm:$0x1] %vm372, 0.0
        %402 = vst.msk [vmem:[#allocation2 + $0x119] sm:$0x1] %vm372, 0.0
        %403 = vst.msk [vmem:[#allocation2 + $0x131] sm:$0x1] %vm372, 0.0
        %404 = vst.msk [vmem:[#allocation2 + $0x149] sm:$0x1] %vm372, 0.0
        %405 = vst.msk [vmem:[#allocation2 + $0x161] sm:$0x1] %vm372, 0.0
        %406 = vst.msk [vmem:[#allocation2 + $0x179] sm:$0x1] %vm372, 0.0
        %407 = vst.msk [vmem:[#allocation2 + $0x191] sm:$0x1] %vm372, 0.0
        %408 = vst.msk [vmem:[#allocation2 + $0x1a9] sm:$0x1] %vm372, 0.0
        %s409 = scalar_lea.vmem [#allocation2], 24
        %410 = vst.msk [vmem:[%s409 + $0x1] sm:$0xff] %vm363, %v331
        %411 = vst.msk [vmem:[%s409 + $0x9] sm:$0xff] %vm363, %v332
        %412 = vst.msk [vmem:[%s409 + $0x19] sm:$0xff] %vm363, %v333
        %413 = vst.msk [vmem:[%s409 + $0x21] sm:$0xff] %vm363, %v334
        %414 = vst.msk [vmem:[%s409 + $0x31] sm:$0xff] %vm363, %v335
        %415 = vst.msk [vmem:[%s409 + $0x39] sm:$0xff] %vm363, %v336
        %416 = vst.msk [vmem:[%s409 + $0x49] sm:$0xff] %vm363, %v337
        %417 = vst.msk [vmem:[%s409 + $0x51] sm:$0xff] %vm363, %v338
        %418 = vst.msk [vmem:[%s409 + $0x61] sm:$0xff] %vm363, %v339
        %419 = vst.msk [vmem:[%s409 + $0x69] sm:$0xff] %vm363, %v340
        %420 = vst.msk [vmem:[%s409 + $0x79] sm:$0xff] %vm363, %v341
        %421 = vst.msk [vmem:[%s409 + $0x81] sm:$0xff] %vm363, %v342
        %422 = vst.msk [vmem:[%s409 + $0x91] sm:$0xff] %vm363, %v343
        %423 = vst.msk [vmem:[%s409 + $0x99] sm:$0xff] %vm363, %v344
        %424 = vst.msk [vmem:[%s409 + $0xa9] sm:$0xff] %vm363, %v345
        %425 = vst.msk [vmem:[%s409 + $0xb1] sm:$0xff] %vm363, %v346
        %426 = vst.msk [vmem:[%s409 + $0xc1] sm:$0xff] %vm363, %v347
        %427 = vst.msk [vmem:[%s409 + $0xc9] sm:$0xff] %vm363, %v348
        %428 = vst.msk [vmem:[%s409 + $0xd9] sm:$0xff] %vm363, %v349
        %429 = vst.msk [vmem:[%s409 + $0xe1] sm:$0xff] %vm363, %v350
        %430 = vst.msk [vmem:[%s409 + $0xf1] sm:$0xff] %vm363, %v351
        %431 = vst.msk [vmem:[%s409 + $0xf9] sm:$0xff] %vm363, %v352
        %432 = vst.msk [vmem:[%s409 + $0x109] sm:$0xff] %vm363, %v353
        %433 = vst.msk [vmem:[%s409 + $0x111] sm:$0xff] %vm363, %v354
        %434 = vst.msk [vmem:[%s409 + $0x121] sm:$0xff] %vm363, %v355
        %435 = vst.msk [vmem:[%s409 + $0x129] sm:$0xff] %vm363, %v356
        %436 = vst.msk [vmem:[%s409 + $0x139] sm:$0xff] %vm363, %v357
        %437 = vst.msk [vmem:[%s409 + $0x141] sm:$0xff] %vm363, %v358
        %438 = vst.msk [vmem:[%s409 + $0x151] sm:$0xff] %vm363, %v359
        %439 = vst.msk [vmem:[%s409 + $0x159] sm:$0xff] %vm363, %v360
        %440 = vst.msk [vmem:[%s409 + $0x169] sm:$0xff] %vm363, %v361
        %441 = vst.msk [vmem:[%s409 + $0x171] sm:$0xff] %vm363, %v362
        %v442 = vld [vmem:[#allocation2] sm:$0xff]
        %v443 = vld [vmem:[#allocation2 + $0x8] sm:$0xff]
        %v444 = vld [vmem:[#allocation2 + $0x18] sm:$0xff]
        %v445 = vld [vmem:[#allocation2 + $0x20] sm:$0xff]
        %v446 = vld [vmem:[#allocation2 + $0x30] sm:$0xff]
        %v447 = vld [vmem:[#allocation2 + $0x38] sm:$0xff]
        %v448 = vld [vmem:[#allocation2 + $0x48] sm:$0xff]
        %v449 = vld [vmem:[#allocation2 + $0x50] sm:$0xff]
        %v450 = vld [vmem:[#allocation2 + $0x60] sm:$0xff]
        %v451 = vld [vmem:[#allocation2 + $0x68] sm:$0xff]
        %v452 = vld [vmem:[#allocation2 + $0x78] sm:$0xff]
        %v453 = vld [vmem:[#allocation2 + $0x80] sm:$0xff]
        %v454 = vld [vmem:[#allocation2 + $0x90] sm:$0xff]
        %v455 = vld [vmem:[#allocation2 + $0x98] sm:$0xff]
        %v456 = vld [vmem:[#allocation2 + $0xa8] sm:$0xff]
        %v457 = vld [vmem:[#allocation2 + $0xb0] sm:$0xff]
        %v458 = vld [vmem:[#allocation2 + $0xc0] sm:$0xff]
        %v459 = vld [vmem:[#allocation2 + $0xc8] sm:$0xff]
        %v460 = vld [vmem:[#allocation2 + $0xd8] sm:$0xff]
        %v461 = vld [vmem:[#allocation2 + $0xe0] sm:$0xff]
        %v462 = vld [vmem:[#allocation2 + $0xf0] sm:$0xff]
        %v463 = vld [vmem:[#allocation2 + $0xf8] sm:$0xff]
        %v464 = vld [vmem:[#allocation2 + $0x108] sm:$0xff]
        %v465 = vld [vmem:[#allocation2 + $0x110] sm:$0xff]
        %v466 = vld [vmem:[#allocation2 + $0x120] sm:$0xff]
        %v467 = vld [vmem:[#allocation2 + $0x128] sm:$0xff]
        %v468 = vld [vmem:[#allocation2 + $0x138] sm:$0xff]
        %v469 = vld [vmem:[#allocation2 + $0x140] sm:$0xff]
        %v470 = vld [vmem:[#allocation2 + $0x150] sm:$0xff]
        %v471 = vld [vmem:[#allocation2 + $0x158] sm:$0xff]
        %v472 = vld [vmem:[#allocation2 + $0x168] sm:$0xff]
        %v473 = vld [vmem:[#allocation2 + $0x170] sm:$0xff]
        %v474 = vpack.c.bf16 %v442, %v442
        %v475 = vpack.c.bf16 %v443, %v443
        %v476 = vpack.c.bf16 %v444, %v444
        %v477 = vpack.c.bf16 %v445, %v445
        %v478 = vpack.c.bf16 %v446, %v446
        %v479 = vpack.c.bf16 %v447, %v447
        %v480 = vpack.c.bf16 %v448, %v448
        %v481 = vpack.c.bf16 %v449, %v449
        %v482 = vpack.c.bf16 %v450, %v450
        %v483 = vpack.c.bf16 %v451, %v451
        %v484 = vpack.c.bf16 %v452, %v452
        %v485 = vpack.c.bf16 %v453, %v453
        %v486 = vpack.c.bf16 %v454, %v454
        %v487 = vpack.c.bf16 %v455, %v455
        %v488 = vpack.c.bf16 %v456, %v456
        %v489 = vpack.c.bf16 %v457, %v457
        %v490 = vpack.c.bf16 %v458, %v458
        %v491 = vpack.c.bf16 %v459, %v459
        %v492 = vpack.c.bf16 %v460, %v460
        %v493 = vpack.c.bf16 %v461, %v461
        %v494 = vpack.c.bf16 %v462, %v462
        %v495 = vpack.c.bf16 %v463, %v463
        %v496 = vpack.c.bf16 %v464, %v464
        %v497 = vpack.c.bf16 %v465, %v465
        %v498 = vpack.c.bf16 %v466, %v466
        %v499 = vpack.c.bf16 %v467, %v467
        %v500 = vpack.c.bf16 %v468, %v468
        %v501 = vpack.c.bf16 %v469, %v469
        %v502 = vpack.c.bf16 %v470, %v470
        %v503 = vpack.c.bf16 %v471, %v471
        %v504 = vpack.c.bf16 %v472, %v472
        %v505 = vpack.c.bf16 %v473, %v473
        %vm506 = vcmask 19456
        %507 = vst.msk [vmem:[#allocation5] sm:$0xf] %vm506, %v474
        %508 = vst.msk [vmem:[#allocation5 + $0xc] sm:$0xf] %vm506, %v475
        %509 = vst.msk [vmem:[#allocation5 + $0x18] sm:$0xf] %vm506, %v476
        %510 = vst.msk [vmem:[#allocation5 + $0x24] sm:$0xf] %vm506, %v477
        %511 = vst.msk [vmem:[#allocation5 + $0x30] sm:$0xf] %vm506, %v478
        %512 = vst.msk [vmem:[#allocation5 + $0x3c] sm:$0xf] %vm506, %v479
        %513 = vst.msk [vmem:[#allocation5 + $0x48] sm:$0xf] %vm506, %v480
        %514 = vst.msk [vmem:[#allocation5 + $0x54] sm:$0xf] %vm506, %v481
        %515 = vst.msk [vmem:[#allocation5 + $0x60] sm:$0xf] %vm506, %v482
        %516 = vst.msk [vmem:[#allocation5 + $0x6c] sm:$0xf] %vm506, %v483
        %517 = vst.msk [vmem:[#allocation5 + $0x78] sm:$0xf] %vm506, %v484
        %518 = vst.msk [vmem:[#allocation5 + $0x84] sm:$0xf] %vm506, %v485
        %519 = vst.msk [vmem:[#allocation5 + $0x90] sm:$0xf] %vm506, %v486
        %520 = vst.msk [vmem:[#allocation5 + $0x9c] sm:$0xf] %vm506, %v487
        %521 = vst.msk [vmem:[#allocation5 + $0xa8] sm:$0xf] %vm506, %v488
        %522 = vst.msk [vmem:[#allocation5 + $0xb4] sm:$0xf] %vm506, %v489
        %523 = vst.msk [vmem:[#allocation5 + $0xc0] sm:$0xf] %vm506, %v490
        %524 = vst.msk [vmem:[#allocation5 + $0xcc] sm:$0xf] %vm506, %v491
        %525 = vst.msk [vmem:[#allocation5 + $0xd8] sm:$0xf] %vm506, %v492
        %526 = vst.msk [vmem:[#allocation5 + $0xe4] sm:$0xf] %vm506, %v493
        %527 = vst.msk [vmem:[#allocation5 + $0xf0] sm:$0xf] %vm506, %v494
        %528 = vst.msk [vmem:[#allocation5 + $0xfc] sm:$0xf] %vm506, %v495
        %529 = vst.msk [vmem:[#allocation5 + $0x108] sm:$0xf] %vm506, %v496
        %530 = vst.msk [vmem:[#allocation5 + $0x114] sm:$0xf] %vm506, %v497
        %531 = vst.msk [vmem:[#allocation5 + $0x120] sm:$0xf] %vm506, %v498
        %532 = vst.msk [vmem:[#allocation5 + $0x12c] sm:$0xf] %vm506, %v499
        %533 = vst.msk [vmem:[#allocation5 + $0x138] sm:$0xf] %vm506, %v500
        %534 = vst.msk [vmem:[#allocation5 + $0x144] sm:$0xf] %vm506, %v501
        %535 = vst.msk [vmem:[#allocation5 + $0x150] sm:$0xf] %vm506, %v502
        %536 = vst.msk [vmem:[#allocation5 + $0x15c] sm:$0xf] %vm506, %v503
        %537 = vst.msk [vmem:[#allocation5 + $0x168] sm:$0xf] %vm506, %v504
        %538 = vst.msk [vmem:[#allocation5 + $0x174] sm:$0xf] %vm506, %v505
        %v539 = vld [vmem:[#allocation2 + $0x1] sm:$0xff]
        %v540 = vld [vmem:[#allocation2 + $0x9] sm:$0xff]
        %v541 = vld [vmem:[#allocation2 + $0x19] sm:$0xff]
        %v542 = vld [vmem:[#allocation2 + $0x21] sm:$0xff]
        %v543 = vld [vmem:[#allocation2 + $0x31] sm:$0xff]
        %v544 = vld [vmem:[#allocation2 + $0x39] sm:$0xff]
        %v545 = vld [vmem:[#allocation2 + $0x49] sm:$0xff]
        %v546 = vld [vmem:[#allocation2 + $0x51] sm:$0xff]
        %v547 = vld [vmem:[#allocation2 + $0x61] sm:$0xff]
        %v548 = vld [vmem:[#allocation2 + $0x69] sm:$0xff]
        %v549 = vld [vmem:[#allocation2 + $0x79] sm:$0xff]
        %v550 = vld [vmem:[#allocation2 + $0x81] sm:$0xff]
        %v551 = vld [vmem:[#allocation2 + $0x91] sm:$0xff]
        %v552 = vld [vmem:[#allocation2 + $0x99] sm:$0xff]
        %v553 = vld [vmem:[#allocation2 + $0xa9] sm:$0xff]
        %v554 = vld [vmem:[#allocation2 + $0xb1] sm:$0xff]
        %v555 = vld [vmem:[#allocation2 + $0xc1] sm:$0xff]
        %v556 = vld [vmem:[#allocation2 + $0xc9] sm:$0xff]
        %v557 = vld [vmem:[#allocation2 + $0xd9] sm:$0xff]
        %v558 = vld [vmem:[#allocation2 + $0xe1] sm:$0xff]
        %v559 = vld [vmem:[#allocation2 + $0xf1] sm:$0xff]
        %v560 = vld [vmem:[#allocation2 + $0xf9] sm:$0xff]
        %v561 = vld [vmem:[#allocation2 + $0x109] sm:$0xff]
        %v562 = vld [vmem:[#allocation2 + $0x111] sm:$0xff]
        %v563 = vld [vmem:[#allocation2 + $0x121] sm:$0xff]
        %v564 = vld [vmem:[#allocation2 + $0x129] sm:$0xff]
        %v565 = vld [vmem:[#allocation2 + $0x139] sm:$0xff]
        %v566 = vld [vmem:[#allocation2 + $0x141] sm:$0xff]
        %v567 = vld [vmem:[#allocation2 + $0x151] sm:$0xff]
        %v568 = vld [vmem:[#allocation2 + $0x159] sm:$0xff]
        %v569 = vld [vmem:[#allocation2 + $0x169] sm:$0xff]
        %v570 = vld [vmem:[#allocation2 + $0x171] sm:$0xff]
        %v571 = vpack.c.bf16 %v539, %v539
        %v572 = vpack.c.bf16 %v540, %v540
        %v573 = vpack.c.bf16 %v541, %v541
        %v574 = vpack.c.bf16 %v542, %v542
        %v575 = vpack.c.bf16 %v543, %v543
        %v576 = vpack.c.bf16 %v544, %v544
        %v577 = vpack.c.bf16 %v545, %v545
        %v578 = vpack.c.bf16 %v546, %v546
        %v579 = vpack.c.bf16 %v547, %v547
        %v580 = vpack.c.bf16 %v548, %v548
        %v581 = vpack.c.bf16 %v549, %v549
        %v582 = vpack.c.bf16 %v550, %v550
        %v583 = vpack.c.bf16 %v551, %v551
        %v584 = vpack.c.bf16 %v552, %v552
        %v585 = vpack.c.bf16 %v553, %v553
        %v586 = vpack.c.bf16 %v554, %v554
        %v587 = vpack.c.bf16 %v555, %v555
        %v588 = vpack.c.bf16 %v556, %v556
        %v589 = vpack.c.bf16 %v557, %v557
        %v590 = vpack.c.bf16 %v558, %v558
        %v591 = vpack.c.bf16 %v559, %v559
        %v592 = vpack.c.bf16 %v560, %v560
        %v593 = vpack.c.bf16 %v561, %v561
        %v594 = vpack.c.bf16 %v562, %v562
        %v595 = vpack.c.bf16 %v563, %v563
        %v596 = vpack.c.bf16 %v564, %v564
        %v597 = vpack.c.bf16 %v565, %v565
        %v598 = vpack.c.bf16 %v566, %v566
        %v599 = vpack.c.bf16 %v567, %v567
        %v600 = vpack.c.bf16 %v568, %v568
        %v601 = vpack.c.bf16 %v569, %v569
        %v602 = vpack.c.bf16 %v570, %v570
        %635 = vrot.lane.b32.xlu0 %v571, 3
        %v636 = vpop.permute.xlu0 %635
        %637 = vrot.lane.b32.xlu0 %v572, 3
        %v638 = vpop.permute.xlu0 %637
        %639 = vrot.lane.b32.xlu0 %v573, 3
        %v640 = vpop.permute.xlu0 %639
        %641 = vrot.lane.b32.xlu0 %v574, 3
        %v642 = vpop.permute.xlu0 %641
        %643 = vrot.lane.b32.xlu0 %v575, 3
        %v644 = vpop.permute.xlu0 %643
        %645 = vrot.lane.b32.xlu0 %v576, 3
        %v646 = vpop.permute.xlu0 %645
        %647 = vrot.lane.b32.xlu0 %v577, 3
        %v648 = vpop.permute.xlu0 %647
        %649 = vrot.lane.b32.xlu0 %v578, 3
        %v650 = vpop.permute.xlu0 %649
        %651 = vrot.lane.b32.xlu0 %v579, 3
        %v652 = vpop.permute.xlu0 %651
        %653 = vrot.lane.b32.xlu0 %v580, 3
        %v654 = vpop.permute.xlu0 %653
        %655 = vrot.lane.b32.xlu0 %v581, 3
        %v656 = vpop.permute.xlu0 %655
        %657 = vrot.lane.b32.xlu0 %v582, 3
        %v658 = vpop.permute.xlu0 %657
        %659 = vrot.lane.b32.xlu0 %v583, 3
        %v660 = vpop.permute.xlu0 %659
        %661 = vrot.lane.b32.xlu0 %v584, 3
        %v662 = vpop.permute.xlu0 %661
        %663 = vrot.lane.b32.xlu0 %v585, 3
        %v664 = vpop.permute.xlu0 %663
        %665 = vrot.lane.b32.xlu0 %v586, 3
        %v666 = vpop.permute.xlu0 %665
        %667 = vrot.lane.b32.xlu0 %v587, 3
        %v668 = vpop.permute.xlu0 %667
        %669 = vrot.lane.b32.xlu0 %v588, 3
        %v670 = vpop.permute.xlu0 %669
        %671 = vrot.lane.b32.xlu0 %v589, 3
        %v672 = vpop.permute.xlu0 %671
        %673 = vrot.lane.b32.xlu0 %v590, 3
        %v674 = vpop.permute.xlu0 %673
        %675 = vrot.lane.b32.xlu0 %v591, 3
        %v676 = vpop.permute.xlu0 %675
        %677 = vrot.lane.b32.xlu0 %v592, 3
        %v678 = vpop.permute.xlu0 %677
        %679 = vrot.lane.b32.xlu0 %v593, 3
        %v680 = vpop.permute.xlu0 %679
        %681 = vrot.lane.b32.xlu0 %v594, 3
        %v682 = vpop.permute.xlu0 %681
        %683 = vrot.lane.b32.xlu0 %v595, 3
        %v684 = vpop.permute.xlu0 %683
        %685 = vrot.lane.b32.xlu0 %v596, 3
        %v686 = vpop.permute.xlu0 %685
        %687 = vrot.lane.b32.xlu0 %v597, 3
        %v688 = vpop.permute.xlu0 %687
        %689 = vrot.lane.b32.xlu0 %v598, 3
        %v690 = vpop.permute.xlu0 %689
        %691 = vrot.lane.b32.xlu0 %v599, 3
        %v692 = vpop.permute.xlu0 %691
        %693 = vrot.lane.b32.xlu0 %v600, 3
        %v694 = vpop.permute.xlu0 %693
        %695 = vrot.lane.b32.xlu0 %v601, 3
        %v696 = vpop.permute.xlu0 %695
        %697 = vrot.lane.b32.xlu0 %v602, 3
        %v698 = vpop.permute.xlu0 %697
        %vm731 = vcmask 44056
        %732 = vst.msk [vmem:[#allocation5] sm:$0xf] %vm731, %v636
        %733 = vst.msk [vmem:[#allocation5 + $0xc] sm:$0xf] %vm731, %v638
        %734 = vst.msk [vmem:[#allocation5 + $0x18] sm:$0xf] %vm731, %v640
        %735 = vst.msk [vmem:[#allocation5 + $0x24] sm:$0xf] %vm731, %v642
        %736 = vst.msk [vmem:[#allocation5 + $0x30] sm:$0xf] %vm731, %v644
        %737 = vst.msk [vmem:[#allocation5 + $0x3c] sm:$0xf] %vm731, %v646
        %738 = vst.msk [vmem:[#allocation5 + $0x48] sm:$0xf] %vm731, %v648
        %739 = vst.msk [vmem:[#allocation5 + $0x54] sm:$0xf] %vm731, %v650
        %740 = vst.msk [vmem:[#allocation5 + $0x60] sm:$0xf] %vm731, %v652
        %741 = vst.msk [vmem:[#allocation5 + $0x6c] sm:$0xf] %vm731, %v654
        %742 = vst.msk [vmem:[#allocation5 + $0x78] sm:$0xf] %vm731, %v656
        %743 = vst.msk [vmem:[#allocation5 + $0x84] sm:$0xf] %vm731, %v658
        %744 = vst.msk [vmem:[#allocation5 + $0x90] sm:$0xf] %vm731, %v660
        %745 = vst.msk [vmem:[#allocation5 + $0x9c] sm:$0xf] %vm731, %v662
        %746 = vst.msk [vmem:[#allocation5 + $0xa8] sm:$0xf] %vm731, %v664
        %747 = vst.msk [vmem:[#allocation5 + $0xb4] sm:$0xf] %vm731, %v666
        %748 = vst.msk [vmem:[#allocation5 + $0xc0] sm:$0xf] %vm731, %v668
        %749 = vst.msk [vmem:[#allocation5 + $0xcc] sm:$0xf] %vm731, %v670
        %750 = vst.msk [vmem:[#allocation5 + $0xd8] sm:$0xf] %vm731, %v672
        %751 = vst.msk [vmem:[#allocation5 + $0xe4] sm:$0xf] %vm731, %v674
        %752 = vst.msk [vmem:[#allocation5 + $0xf0] sm:$0xf] %vm731, %v676
        %753 = vst.msk [vmem:[#allocation5 + $0xfc] sm:$0xf] %vm731, %v678
        %754 = vst.msk [vmem:[#allocation5 + $0x108] sm:$0xf] %vm731, %v680
        %755 = vst.msk [vmem:[#allocation5 + $0x114] sm:$0xf] %vm731, %v682
        %756 = vst.msk [vmem:[#allocation5 + $0x120] sm:$0xf] %vm731, %v684
        %757 = vst.msk [vmem:[#allocation5 + $0x12c] sm:$0xf] %vm731, %v686
        %758 = vst.msk [vmem:[#allocation5 + $0x138] sm:$0xf] %vm731, %v688
        %759 = vst.msk [vmem:[#allocation5 + $0x144] sm:$0xf] %vm731, %v690
        %760 = vst.msk [vmem:[#allocation5 + $0x150] sm:$0xf] %vm731, %v692
        %761 = vst.msk [vmem:[#allocation5 + $0x15c] sm:$0xf] %vm731, %v694
        %762 = vst.msk [vmem:[#allocation5 + $0x168] sm:$0xf] %vm731, %v696
        %763 = vst.msk [vmem:[#allocation5 + $0x174] sm:$0xf] %vm731, %v698
        %v764 = vld [vmem:[#allocation2 + $0x2] sm:$0xff]
        %v765 = vld [vmem:[#allocation2 + $0xa] sm:$0xff]
        %v766 = vld [vmem:[#allocation2 + $0x1a] sm:$0xff]
        %v767 = vld [vmem:[#allocation2 + $0x22] sm:$0xff]
        %v768 = vld [vmem:[#allocation2 + $0x32] sm:$0xff]
        %v769 = vld [vmem:[#allocation2 + $0x3a] sm:$0xff]
        %v770 = vld [vmem:[#allocation2 + $0x4a] sm:$0xff]
        %v771 = vld [vmem:[#allocation2 + $0x52] sm:$0xff]
        %v772 = vld [vmem:[#allocation2 + $0x62] sm:$0xff]
        %v773 = vld [vmem:[#allocation2 + $0x6a] sm:$0xff]
        %v774 = vld [vmem:[#allocation2 + $0x7a] sm:$0xff]
        %v775 = vld [vmem:[#allocation2 + $0x82] sm:$0xff]
        %v776 = vld [vmem:[#allocation2 + $0x92] sm:$0xff]
        %v777 = vld [vmem:[#allocation2 + $0x9a] sm:$0xff]
        %v778 = vld [vmem:[#allocation2 + $0xaa] sm:$0xff]
        %v779 = vld [vmem:[#allocation2 + $0xb2] sm:$0xff]
        %v780 = vld [vmem:[#allocation2 + $0xc2] sm:$0xff]
        %v781 = vld [vmem:[#allocation2 + $0xca] sm:$0xff]
        %v782 = vld [vmem:[#allocation2 + $0xda] sm:$0xff]
        %v783 = vld [vmem:[#allocation2 + $0xe2] sm:$0xff]
        %v784 = vld [vmem:[#allocation2 + $0xf2] sm:$0xff]
        %v785 = vld [vmem:[#allocation2 + $0xfa] sm:$0xff]
        %v786 = vld [vmem:[#allocation2 + $0x10a] sm:$0xff]
        %v787 = vld [vmem:[#allocation2 + $0x112] sm:$0xff]
        %v788 = vld [vmem:[#allocation2 + $0x122] sm:$0xff]
        %v789 = vld [vmem:[#allocation2 + $0x12a] sm:$0xff]
        %v790 = vld [vmem:[#allocation2 + $0x13a] sm:$0xff]
        %v791 = vld [vmem:[#allocation2 + $0x142] sm:$0xff]
        %v792 = vld [vmem:[#allocation2 + $0x152] sm:$0xff]
        %v793 = vld [vmem:[#allocation2 + $0x15a] sm:$0xff]
        %v794 = vld [vmem:[#allocation2 + $0x16a] sm:$0xff]
        %v795 = vld [vmem:[#allocation2 + $0x172] sm:$0xff]
        %v796 = vpack.c.bf16 %v764, %v764
        %v797 = vpack.c.bf16 %v765, %v765
        %v798 = vpack.c.bf16 %v766, %v766
        %v799 = vpack.c.bf16 %v767, %v767
        %v800 = vpack.c.bf16 %v768, %v768
        %v801 = vpack.c.bf16 %v769, %v769
        %v802 = vpack.c.bf16 %v770, %v770
        %v803 = vpack.c.bf16 %v771, %v771
        %v804 = vpack.c.bf16 %v772, %v772
        %v805 = vpack.c.bf16 %v773, %v773
        %v806 = vpack.c.bf16 %v774, %v774
        %v807 = vpack.c.bf16 %v775, %v775
        %v808 = vpack.c.bf16 %v776, %v776
        %v809 = vpack.c.bf16 %v777, %v777
        %v810 = vpack.c.bf16 %v778, %v778
        %v811 = vpack.c.bf16 %v779, %v779
        %v812 = vpack.c.bf16 %v780, %v780
        %v813 = vpack.c.bf16 %v781, %v781
        %v814 = vpack.c.bf16 %v782, %v782
        %v815 = vpack.c.bf16 %v783, %v783
        %v816 = vpack.c.bf16 %v784, %v784
        %v817 = vpack.c.bf16 %v785, %v785
        %v818 = vpack.c.bf16 %v786, %v786
        %v819 = vpack.c.bf16 %v787, %v787
        %v820 = vpack.c.bf16 %v788, %v788
        %v821 = vpack.c.bf16 %v789, %v789
        %v822 = vpack.c.bf16 %v790, %v790
        %v823 = vpack.c.bf16 %v791, %v791
        %v824 = vpack.c.bf16 %v792, %v792
        %v825 = vpack.c.bf16 %v793, %v793
        %v826 = vpack.c.bf16 %v794, %v794
        %v827 = vpack.c.bf16 %v795, %v795
        %860 = vrot.lane.b32.xlu0 %v796, 6
        %v861 = vpop.permute.xlu0 %860
        %862 = vrot.lane.b32.xlu0 %v797, 6
        %v863 = vpop.permute.xlu0 %862
        %864 = vrot.lane.b32.xlu0 %v798, 6
        %v865 = vpop.permute.xlu0 %864
        %866 = vrot.lane.b32.xlu0 %v799, 6
        %v867 = vpop.permute.xlu0 %866
        %868 = vrot.lane.b32.xlu0 %v800, 6
        %v869 = vpop.permute.xlu0 %868
        %870 = vrot.lane.b32.xlu0 %v801, 6
        %v871 = vpop.permute.xlu0 %870
        %872 = vrot.lane.b32.xlu0 %v802, 6
        %v873 = vpop.permute.xlu0 %872
        %874 = vrot.lane.b32.xlu0 %v803, 6
        %v875 = vpop.permute.xlu0 %874
        %876 = vrot.lane.b32.xlu0 %v804, 6
        %v877 = vpop.permute.xlu0 %876
        %878 = vrot.lane.b32.xlu0 %v805, 6
        %v879 = vpop.permute.xlu0 %878
        %880 = vrot.lane.b32.xlu0 %v806, 6
        %v881 = vpop.permute.xlu0 %880
        %882 = vrot.lane.b32.xlu0 %v807, 6
        %v883 = vpop.permute.xlu0 %882
        %884 = vrot.lane.b32.xlu0 %v808, 6
        %v885 = vpop.permute.xlu0 %884
        %886 = vrot.lane.b32.xlu0 %v809, 6
        %v887 = vpop.permute.xlu0 %886
        %888 = vrot.lane.b32.xlu0 %v810, 6
        %v889 = vpop.permute.xlu0 %888
        %890 = vrot.lane.b32.xlu0 %v811, 6
        %v891 = vpop.permute.xlu0 %890
        %892 = vrot.lane.b32.xlu0 %v812, 6
        %v893 = vpop.permute.xlu0 %892
        %894 = vrot.lane.b32.xlu0 %v813, 6
        %v895 = vpop.permute.xlu0 %894
        %896 = vrot.lane.b32.xlu0 %v814, 6
        %v897 = vpop.permute.xlu0 %896
        %898 = vrot.lane.b32.xlu0 %v815, 6
        %v899 = vpop.permute.xlu0 %898
        %900 = vrot.lane.b32.xlu0 %v816, 6
        %v901 = vpop.permute.xlu0 %900
        %902 = vrot.lane.b32.xlu0 %v817, 6
        %v903 = vpop.permute.xlu0 %902
        %904 = vrot.lane.b32.xlu0 %v818, 6
        %v905 = vpop.permute.xlu0 %904
        %906 = vrot.lane.b32.xlu0 %v819, 6
        %v907 = vpop.permute.xlu0 %906
        %908 = vrot.lane.b32.xlu0 %v820, 6
        %v909 = vpop.permute.xlu0 %908
        %910 = vrot.lane.b32.xlu0 %v821, 6
        %v911 = vpop.permute.xlu0 %910
        %912 = vrot.lane.b32.xlu0 %v822, 6
        %v913 = vpop.permute.xlu0 %912
        %914 = vrot.lane.b32.xlu0 %v823, 6
        %v915 = vpop.permute.xlu0 %914
        %916 = vrot.lane.b32.xlu0 %v824, 6
        %v917 = vpop.permute.xlu0 %916
        %918 = vrot.lane.b32.xlu0 %v825, 6
        %v919 = vpop.permute.xlu0 %918
        %920 = vrot.lane.b32.xlu0 %v826, 6
        %v921 = vpop.permute.xlu0 %920
        %922 = vrot.lane.b32.xlu0 %v827, 6
        %v923 = vpop.permute.xlu0 %922
        %vm956 = vcmask 68656
        %957 = vst.msk [vmem:[#allocation5] sm:$0xf] %vm956, %v861
        %958 = vst.msk [vmem:[#allocation5 + $0xc] sm:$0xf] %vm956, %v863
        %959 = vst.msk [vmem:[#allocation5 + $0x18] sm:$0xf] %vm956, %v865
        %960 = vst.msk [vmem:[#allocation5 + $0x24] sm:$0xf] %vm956, %v867
        %961 = vst.msk [vmem:[#allocation5 + $0x30] sm:$0xf] %vm956, %v869
        %962 = vst.msk [vmem:[#allocation5 + $0x3c] sm:$0xf] %vm956, %v871
        %963 = vst.msk [vmem:[#allocation5 + $0x48] sm:$0xf] %vm956, %v873
        %964 = vst.msk [vmem:[#allocation5 + $0x54] sm:$0xf] %vm956, %v875
        %965 = vst.msk [vmem:[#allocation5 + $0x60] sm:$0xf] %vm956, %v877
        %966 = vst.msk [vmem:[#allocation5 + $0x6c] sm:$0xf] %vm956, %v879
        %967 = vst.msk [vmem:[#allocation5 + $0x78] sm:$0xf] %vm956, %v881
        %968 = vst.msk [vmem:[#allocation5 + $0x84] sm:$0xf] %vm956, %v883
        %969 = vst.msk [vmem:[#allocation5 + $0x90] sm:$0xf] %vm956, %v885
        %970 = vst.msk [vmem:[#allocation5 + $0x9c] sm:$0xf] %vm956, %v887
        %971 = vst.msk [vmem:[#allocation5 + $0xa8] sm:$0xf] %vm956, %v889
        %972 = vst.msk [vmem:[#allocation5 + $0xb4] sm:$0xf] %vm956, %v891
        %973 = vst.msk [vmem:[#allocation5 + $0xc0] sm:$0xf] %vm956, %v893
        %974 = vst.msk [vmem:[#allocation5 + $0xcc] sm:$0xf] %vm956, %v895
        %975 = vst.msk [vmem:[#allocation5 + $0xd8] sm:$0xf] %vm956, %v897
        %976 = vst.msk [vmem:[#allocation5 + $0xe4] sm:$0xf] %vm956, %v899
        %977 = vst.msk [vmem:[#allocation5 + $0xf0] sm:$0xf] %vm956, %v901
        %978 = vst.msk [vmem:[#allocation5 + $0xfc] sm:$0xf] %vm956, %v903
        %979 = vst.msk [vmem:[#allocation5 + $0x108] sm:$0xf] %vm956, %v905
        %980 = vst.msk [vmem:[#allocation5 + $0x114] sm:$0xf] %vm956, %v907
        %981 = vst.msk [vmem:[#allocation5 + $0x120] sm:$0xf] %vm956, %v909
        %982 = vst.msk [vmem:[#allocation5 + $0x12c] sm:$0xf] %vm956, %v911
        %983 = vst.msk [vmem:[#allocation5 + $0x138] sm:$0xf] %vm956, %v913
        %984 = vst.msk [vmem:[#allocation5 + $0x144] sm:$0xf] %vm956, %v915
        %985 = vst.msk [vmem:[#allocation5 + $0x150] sm:$0xf] %vm956, %v917
        %986 = vst.msk [vmem:[#allocation5 + $0x15c] sm:$0xf] %vm956, %v919
        %987 = vst.msk [vmem:[#allocation5 + $0x168] sm:$0xf] %vm956, %v921
        %988 = vst.msk [vmem:[#allocation5 + $0x174] sm:$0xf] %vm956, %v923
        %v989 = vld [vmem:[%s409] sm:$0xff]
        %v990 = vld [vmem:[%s409 + $0x8] sm:$0xff]
        %v991 = vld [vmem:[%s409 + $0x18] sm:$0xff]
        %v992 = vld [vmem:[%s409 + $0x20] sm:$0xff]
        %v993 = vld [vmem:[%s409 + $0x30] sm:$0xff]
        %v994 = vld [vmem:[%s409 + $0x38] sm:$0xff]
        %v995 = vld [vmem:[%s409 + $0x48] sm:$0xff]
        %v996 = vld [vmem:[%s409 + $0x50] sm:$0xff]
        %v997 = vld [vmem:[%s409 + $0x60] sm:$0xff]
        %v998 = vld [vmem:[%s409 + $0x68] sm:$0xff]
        %v999 = vld [vmem:[%s409 + $0x78] sm:$0xff]
        %v1000 = vld [vmem:[%s409 + $0x80] sm:$0xff]
        %v1001 = vld [vmem:[%s409 + $0x90] sm:$0xff]
        %v1002 = vld [vmem:[%s409 + $0x98] sm:$0xff]
        %v1003 = vld [vmem:[%s409 + $0xa8] sm:$0xff]
        %v1004 = vld [vmem:[%s409 + $0xb0] sm:$0xff]
        %v1005 = vld [vmem:[%s409 + $0xc0] sm:$0xff]
        %v1006 = vld [vmem:[%s409 + $0xc8] sm:$0xff]
        %v1007 = vld [vmem:[%s409 + $0xd8] sm:$0xff]
        %v1008 = vld [vmem:[%s409 + $0xe0] sm:$0xff]
        %v1009 = vld [vmem:[%s409 + $0xf0] sm:$0xff]
        %v1010 = vld [vmem:[%s409 + $0xf8] sm:$0xff]
        %v1011 = vld [vmem:[%s409 + $0x108] sm:$0xff]
        %v1012 = vld [vmem:[%s409 + $0x110] sm:$0xff]
        %v1013 = vld [vmem:[%s409 + $0x120] sm:$0xff]
        %v1014 = vld [vmem:[%s409 + $0x128] sm:$0xff]
        %v1015 = vld [vmem:[%s409 + $0x138] sm:$0xff]
        %v1016 = vld [vmem:[%s409 + $0x140] sm:$0xff]
        %v1017 = vld [vmem:[%s409 + $0x150] sm:$0xff]
        %v1018 = vld [vmem:[%s409 + $0x158] sm:$0xff]
        %v1019 = vld [vmem:[%s409 + $0x168] sm:$0xff]
        %v1020 = vld [vmem:[%s409 + $0x170] sm:$0xff]
        %v1021 = vpack.c.bf16 %v989, %v989
        %v1022 = vpack.c.bf16 %v990, %v990
        %v1023 = vpack.c.bf16 %v991, %v991
        %v1024 = vpack.c.bf16 %v992, %v992
        %v1025 = vpack.c.bf16 %v993, %v993
        %v1026 = vpack.c.bf16 %v994, %v994
        %v1027 = vpack.c.bf16 %v995, %v995
        %v1028 = vpack.c.bf16 %v996, %v996
        %v1029 = vpack.c.bf16 %v997, %v997
        %v1030 = vpack.c.bf16 %v998, %v998
        %v1031 = vpack.c.bf16 %v999, %v999
        %v1032 = vpack.c.bf16 %v1000, %v1000
        %v1033 = vpack.c.bf16 %v1001, %v1001
        %v1034 = vpack.c.bf16 %v1002, %v1002
        %v1035 = vpack.c.bf16 %v1003, %v1003
        %v1036 = vpack.c.bf16 %v1004, %v1004
        %v1037 = vpack.c.bf16 %v1005, %v1005
        %v1038 = vpack.c.bf16 %v1006, %v1006
        %v1039 = vpack.c.bf16 %v1007, %v1007
        %v1040 = vpack.c.bf16 %v1008, %v1008
        %v1041 = vpack.c.bf16 %v1009, %v1009
        %v1042 = vpack.c.bf16 %v1010, %v1010
        %v1043 = vpack.c.bf16 %v1011, %v1011
        %v1044 = vpack.c.bf16 %v1012, %v1012
        %v1045 = vpack.c.bf16 %v1013, %v1013
        %v1046 = vpack.c.bf16 %v1014, %v1014
        %v1047 = vpack.c.bf16 %v1015, %v1015
        %v1048 = vpack.c.bf16 %v1016, %v1016
        %v1049 = vpack.c.bf16 %v1017, %v1017
        %v1050 = vpack.c.bf16 %v1018, %v1018
        %v1051 = vpack.c.bf16 %v1019, %v1019
        %v1052 = vpack.c.bf16 %v1020, %v1020
        %1085 = vrot.lane.b32.xlu0 %v1021, 9
        %v1086 = vpop.permute.xlu0 %1085
        %1087 = vrot.lane.b32.xlu0 %v1022, 9
        %v1088 = vpop.permute.xlu0 %1087
        %1089 = vrot.lane.b32.xlu0 %v1023, 9
        %v1090 = vpop.permute.xlu0 %1089
        %1091 = vrot.lane.b32.xlu0 %v1024, 9
        %v1092 = vpop.permute.xlu0 %1091
        %1093 = vrot.lane.b32.xlu0 %v1025, 9
        %v1094 = vpop.permute.xlu0 %1093
        %1095 = vrot.lane.b32.xlu0 %v1026, 9
        %v1096 = vpop.permute.xlu0 %1095
        %1097 = vrot.lane.b32.xlu0 %v1027, 9
        %v1098 = vpop.permute.xlu0 %1097
        %1099 = vrot.lane.b32.xlu0 %v1028, 9
        %v1100 = vpop.permute.xlu0 %1099
        %1101 = vrot.lane.b32.xlu0 %v1029, 9
        %v1102 = vpop.permute.xlu0 %1101
        %1103 = vrot.lane.b32.xlu0 %v1030, 9
        %v1104 = vpop.permute.xlu0 %1103
        %1105 = vrot.lane.b32.xlu0 %v1031, 9
        %v1106 = vpop.permute.xlu0 %1105
        %1107 = vrot.lane.b32.xlu0 %v1032, 9
        %v1108 = vpop.permute.xlu0 %1107
        %1109 = vrot.lane.b32.xlu0 %v1033, 9
        %v1110 = vpop.permute.xlu0 %1109
        %1111 = vrot.lane.b32.xlu0 %v1034, 9
        %v1112 = vpop.permute.xlu0 %1111
        %1113 = vrot.lane.b32.xlu0 %v1035, 9
        %v1114 = vpop.permute.xlu0 %1113
        %1115 = vrot.lane.b32.xlu0 %v1036, 9
        %v1116 = vpop.permute.xlu0 %1115
        %1117 = vrot.lane.b32.xlu0 %v1037, 9
        %v1118 = vpop.permute.xlu0 %1117
        %1119 = vrot.lane.b32.xlu0 %v1038, 9
        %v1120 = vpop.permute.xlu0 %1119
        %1121 = vrot.lane.b32.xlu0 %v1039, 9
        %v1122 = vpop.permute.xlu0 %1121
        %1123 = vrot.lane.b32.xlu0 %v1040, 9
        %v1124 = vpop.permute.xlu0 %1123
        %1125 = vrot.lane.b32.xlu0 %v1041, 9
        %v1126 = vpop.permute.xlu0 %1125
        %1127 = vrot.lane.b32.xlu0 %v1042, 9
        %v1128 = vpop.permute.xlu0 %1127
        %1129 = vrot.lane.b32.xlu0 %v1043, 9
        %v1130 = vpop.permute.xlu0 %1129
        %1131 = vrot.lane.b32.xlu0 %v1044, 9
        %v1132 = vpop.permute.xlu0 %1131
        %1133 = vrot.lane.b32.xlu0 %v1045, 9
        %v1134 = vpop.permute.xlu0 %1133
        %1135 = vrot.lane.b32.xlu0 %v1046, 9
        %v1136 = vpop.permute.xlu0 %1135
        %1137 = vrot.lane.b32.xlu0 %v1047, 9
        %v1138 = vpop.permute.xlu0 %1137
        %1139 = vrot.lane.b32.xlu0 %v1048, 9
        %v1140 = vpop.permute.xlu0 %1139
        %1141 = vrot.lane.b32.xlu0 %v1049, 9
        %v1142 = vpop.permute.xlu0 %1141
        %1143 = vrot.lane.b32.xlu0 %v1050, 9
        %v1144 = vpop.permute.xlu0 %1143
        %1145 = vrot.lane.b32.xlu0 %v1051, 9
        %v1146 = vpop.permute.xlu0 %1145
        %1147 = vrot.lane.b32.xlu0 %v1052, 9
        %v1148 = vpop.permute.xlu0 %1147
        %vm1181 = vcmask 93256
        %1182 = vst.msk [vmem:[#allocation5] sm:$0xf] %vm1181, %v1086
        %1183 = vst.msk [vmem:[#allocation5 + $0xc] sm:$0xf] %vm1181, %v1088
        %1184 = vst.msk [vmem:[#allocation5 + $0x18] sm:$0xf] %vm1181, %v1090
        %1185 = vst.msk [vmem:[#allocation5 + $0x24] sm:$0xf] %vm1181, %v1092
        %1186 = vst.msk [vmem:[#allocation5 + $0x30] sm:$0xf] %vm1181, %v1094
        %1187 = vst.msk [vmem:[#allocation5 + $0x3c] sm:$0xf] %vm1181, %v1096
        %1188 = vst.msk [vmem:[#allocation5 + $0x48] sm:$0xf] %vm1181, %v1098
        %1189 = vst.msk [vmem:[#allocation5 + $0x54] sm:$0xf] %vm1181, %v1100
        %1190 = vst.msk [vmem:[#allocation5 + $0x60] sm:$0xf] %vm1181, %v1102
        %1191 = vst.msk [vmem:[#allocation5 + $0x6c] sm:$0xf] %vm1181, %v1104
        %1192 = vst.msk [vmem:[#allocation5 + $0x78] sm:$0xf] %vm1181, %v1106
        %1193 = vst.msk [vmem:[#allocation5 + $0x84] sm:$0xf] %vm1181, %v1108
        %1194 = vst.msk [vmem:[#allocation5 + $0x90] sm:$0xf] %vm1181, %v1110
        %1195 = vst.msk [vmem:[#allocation5 + $0x9c] sm:$0xf] %vm1181, %v1112
        %1196 = vst.msk [vmem:[#allocation5 + $0xa8] sm:$0xf] %vm1181, %v1114
        %1197 = vst.msk [vmem:[#allocation5 + $0xb4] sm:$0xf] %vm1181, %v1116
        %1198 = vst.msk [vmem:[#allocation5 + $0xc0] sm:$0xf] %vm1181, %v1118
        %1199 = vst.msk [vmem:[#allocation5 + $0xcc] sm:$0xf] %vm1181, %v1120
        %1200 = vst.msk [vmem:[#allocation5 + $0xd8] sm:$0xf] %vm1181, %v1122
        %1201 = vst.msk [vmem:[#allocation5 + $0xe4] sm:$0xf] %vm1181, %v1124
        %1202 = vst.msk [vmem:[#allocation5 + $0xf0] sm:$0xf] %vm1181, %v1126
        %1203 = vst.msk [vmem:[#allocation5 + $0xfc] sm:$0xf] %vm1181, %v1128
        %1204 = vst.msk [vmem:[#allocation5 + $0x108] sm:$0xf] %vm1181, %v1130
        %1205 = vst.msk [vmem:[#allocation5 + $0x114] sm:$0xf] %vm1181, %v1132
        %1206 = vst.msk [vmem:[#allocation5 + $0x120] sm:$0xf] %vm1181, %v1134
        %1207 = vst.msk [vmem:[#allocation5 + $0x12c] sm:$0xf] %vm1181, %v1136
        %1208 = vst.msk [vmem:[#allocation5 + $0x138] sm:$0xf] %vm1181, %v1138
        %1209 = vst.msk [vmem:[#allocation5 + $0x144] sm:$0xf] %vm1181, %v1140
        %1210 = vst.msk [vmem:[#allocation5 + $0x150] sm:$0xf] %vm1181, %v1142
        %1211 = vst.msk [vmem:[#allocation5 + $0x15c] sm:$0xf] %vm1181, %v1144
        %1212 = vst.msk [vmem:[#allocation5 + $0x168] sm:$0xf] %vm1181, %v1146
        %1213 = vst.msk [vmem:[#allocation5 + $0x174] sm:$0xf] %vm1181, %v1148
        %v1214 = vld [vmem:[%s409 + $0x1] sm:$0xff]
        %v1215 = vld [vmem:[%s409 + $0x9] sm:$0xff]
        %v1216 = vld [vmem:[%s409 + $0x19] sm:$0xff]
        %v1217 = vld [vmem:[%s409 + $0x21] sm:$0xff]
        %v1218 = vld [vmem:[%s409 + $0x31] sm:$0xff]
        %v1219 = vld [vmem:[%s409 + $0x39] sm:$0xff]
        %v1220 = vld [vmem:[%s409 + $0x49] sm:$0xff]
        %v1221 = vld [vmem:[%s409 + $0x51] sm:$0xff]
        %v1222 = vld [vmem:[%s409 + $0x61] sm:$0xff]
        %v1223 = vld [vmem:[%s409 + $0x69] sm:$0xff]
        %v1224 = vld [vmem:[%s409 + $0x79] sm:$0xff]
        %v1225 = vld [vmem:[%s409 + $0x81] sm:$0xff]
        %v1226 = vld [vmem:[%s409 + $0x91] sm:$0xff]
        %v1227 = vld [vmem:[%s409 + $0x99] sm:$0xff]
        %v1228 = vld [vmem:[%s409 + $0xa9] sm:$0xff]
        %v1229 = vld [vmem:[%s409 + $0xb1] sm:$0xff]
        %v1230 = vld [vmem:[%s409 + $0xc1] sm:$0xff]
        %v1231 = vld [vmem:[%s409 + $0xc9] sm:$0xff]
        %v1232 = vld [vmem:[%s409 + $0xd9] sm:$0xff]
        %v1233 = vld [vmem:[%s409 + $0xe1] sm:$0xff]
        %v1234 = vld [vmem:[%s409 + $0xf1] sm:$0xff]
        %v1235 = vld [vmem:[%s409 + $0xf9] sm:$0xff]
        %v1236 = vld [vmem:[%s409 + $0x109] sm:$0xff]
        %v1237 = vld [vmem:[%s409 + $0x111] sm:$0xff]
        %v1238 = vld [vmem:[%s409 + $0x121] sm:$0xff]
        %v1239 = vld [vmem:[%s409 + $0x129] sm:$0xff]
        %v1240 = vld [vmem:[%s409 + $0x139] sm:$0xff]
        %v1241 = vld [vmem:[%s409 + $0x141] sm:$0xff]
        %v1242 = vld [vmem:[%s409 + $0x151] sm:$0xff]
        %v1243 = vld [vmem:[%s409 + $0x159] sm:$0xff]
        %v1244 = vld [vmem:[%s409 + $0x169] sm:$0xff]
        %v1245 = vld [vmem:[%s409 + $0x171] sm:$0xff]
        %v1246 = vpack.c.bf16 %v1214, %v1214
        %v1247 = vpack.c.bf16 %v1215, %v1215
        %v1248 = vpack.c.bf16 %v1216, %v1216
        %v1249 = vpack.c.bf16 %v1217, %v1217
        %v1250 = vpack.c.bf16 %v1218, %v1218
        %v1251 = vpack.c.bf16 %v1219, %v1219
        %v1252 = vpack.c.bf16 %v1220, %v1220
        %v1253 = vpack.c.bf16 %v1221, %v1221
        %v1254 = vpack.c.bf16 %v1222, %v1222
        %v1255 = vpack.c.bf16 %v1223, %v1223
        %v1256 = vpack.c.bf16 %v1224, %v1224
        %v1257 = vpack.c.bf16 %v1225, %v1225
        %v1258 = vpack.c.bf16 %v1226, %v1226
        %v1259 = vpack.c.bf16 %v1227, %v1227
        %v1260 = vpack.c.bf16 %v1228, %v1228
        %v1261 = vpack.c.bf16 %v1229, %v1229
        %v1262 = vpack.c.bf16 %v1230, %v1230
        %v1263 = vpack.c.bf16 %v1231, %v1231
        %v1264 = vpack.c.bf16 %v1232, %v1232
        %v1265 = vpack.c.bf16 %v1233, %v1233
        %v1266 = vpack.c.bf16 %v1234, %v1234
        %v1267 = vpack.c.bf16 %v1235, %v1235
        %v1268 = vpack.c.bf16 %v1236, %v1236
        %v1269 = vpack.c.bf16 %v1237, %v1237
        %v1270 = vpack.c.bf16 %v1238, %v1238
        %v1271 = vpack.c.bf16 %v1239, %v1239
        %v1272 = vpack.c.bf16 %v1240, %v1240
        %v1273 = vpack.c.bf16 %v1241, %v1241
        %v1274 = vpack.c.bf16 %v1242, %v1242
        %v1275 = vpack.c.bf16 %v1243, %v1243
        %v1276 = vpack.c.bf16 %v1244, %v1244
        %v1277 = vpack.c.bf16 %v1245, %v1245
        %1310 = vrot.lane.b32.xlu0 %v1246, 12
        %v1311 = vpop.permute.xlu0 %1310
        %1312 = vrot.lane.b32.xlu0 %v1247, 12
        %v1313 = vpop.permute.xlu0 %1312
        %1314 = vrot.lane.b32.xlu0 %v1248, 12
        %v1315 = vpop.permute.xlu0 %1314
        %1316 = vrot.lane.b32.xlu0 %v1249, 12
        %v1317 = vpop.permute.xlu0 %1316
        %1318 = vrot.lane.b32.xlu0 %v1250, 12
        %v1319 = vpop.permute.xlu0 %1318
        %1320 = vrot.lane.b32.xlu0 %v1251, 12
        %v1321 = vpop.permute.xlu0 %1320
        %1322 = vrot.lane.b32.xlu0 %v1252, 12
        %v1323 = vpop.permute.xlu0 %1322
        %1324 = vrot.lane.b32.xlu0 %v1253, 12
        %v1325 = vpop.permute.xlu0 %1324
        %1326 = vrot.lane.b32.xlu0 %v1254, 12
        %v1327 = vpop.permute.xlu0 %1326
        %1328 = vrot.lane.b32.xlu0 %v1255, 12
        %v1329 = vpop.permute.xlu0 %1328
        %1330 = vrot.lane.b32.xlu0 %v1256, 12
        %v1331 = vpop.permute.xlu0 %1330
        %1332 = vrot.lane.b32.xlu0 %v1257, 12
        %v1333 = vpop.permute.xlu0 %1332
        %1334 = vrot.lane.b32.xlu0 %v1258, 12
        %v1335 = vpop.permute.xlu0 %1334
        %1336 = vrot.lane.b32.xlu0 %v1259, 12
        %v1337 = vpop.permute.xlu0 %1336
        %1338 = vrot.lane.b32.xlu0 %v1260, 12
        %v1339 = vpop.permute.xlu0 %1338
        %1340 = vrot.lane.b32.xlu0 %v1261, 12
        %v1341 = vpop.permute.xlu0 %1340
        %1342 = vrot.lane.b32.xlu0 %v1262, 12
        %v1343 = vpop.permute.xlu0 %1342
        %1344 = vrot.lane.b32.xlu0 %v1263, 12
        %v1345 = vpop.permute.xlu0 %1344
        %1346 = vrot.lane.b32.xlu0 %v1264, 12
        %v1347 = vpop.permute.xlu0 %1346
        %1348 = vrot.lane.b32.xlu0 %v1265, 12
        %v1349 = vpop.permute.xlu0 %1348
        %1350 = vrot.lane.b32.xlu0 %v1266, 12
        %v1351 = vpop.permute.xlu0 %1350
        %1352 = vrot.lane.b32.xlu0 %v1267, 12
        %v1353 = vpop.permute.xlu0 %1352
        %1354 = vrot.lane.b32.xlu0 %v1268, 12
        %v1355 = vpop.permute.xlu0 %1354
        %1356 = vrot.lane.b32.xlu0 %v1269, 12
        %v1357 = vpop.permute.xlu0 %1356
        %1358 = vrot.lane.b32.xlu0 %v1270, 12
        %v1359 = vpop.permute.xlu0 %1358
        %1360 = vrot.lane.b32.xlu0 %v1271, 12
        %v1361 = vpop.permute.xlu0 %1360
        %1362 = vrot.lane.b32.xlu0 %v1272, 12
        %v1363 = vpop.permute.xlu0 %1362
        %1364 = vrot.lane.b32.xlu0 %v1273, 12
        %v1365 = vpop.permute.xlu0 %1364
        %1366 = vrot.lane.b32.xlu0 %v1274, 12
        %v1367 = vpop.permute.xlu0 %1366
        %1368 = vrot.lane.b32.xlu0 %v1275, 12
        %v1369 = vpop.permute.xlu0 %1368
        %1370 = vrot.lane.b32.xlu0 %v1276, 12
        %v1371 = vpop.permute.xlu0 %1370
        %1372 = vrot.lane.b32.xlu0 %v1277, 12
        %v1373 = vpop.permute.xlu0 %1372
        %vm1406 = vcmask 117856
        %1407 = vst.msk [vmem:[#allocation5] sm:$0xf] %vm1406, %v1311
        %1408 = vst.msk [vmem:[#allocation5 + $0xc] sm:$0xf] %vm1406, %v1313
        %1409 = vst.msk [vmem:[#allocation5 + $0x18] sm:$0xf] %vm1406, %v1315
        %1410 = vst.msk [vmem:[#allocation5 + $0x24] sm:$0xf] %vm1406, %v1317
        %1411 = vst.msk [vmem:[#allocation5 + $0x30] sm:$0xf] %vm1406, %v1319
        %1412 = vst.msk [vmem:[#allocation5 + $0x3c] sm:$0xf] %vm1406, %v1321
        %1413 = vst.msk [vmem:[#allocation5 + $0x48] sm:$0xf] %vm1406, %v1323
        %1414 = vst.msk [vmem:[#allocation5 + $0x54] sm:$0xf] %vm1406, %v1325
        %1415 = vst.msk [vmem:[#allocation5 + $0x60] sm:$0xf] %vm1406, %v1327
        %1416 = vst.msk [vmem:[#allocation5 + $0x6c] sm:$0xf] %vm1406, %v1329
        %1417 = vst.msk [vmem:[#allocation5 + $0x78] sm:$0xf] %vm1406, %v1331
        %1418 = vst.msk [vmem:[#allocation5 + $0x84] sm:$0xf] %vm1406, %v1333
        %1419 = vst.msk [vmem:[#allocation5 + $0x90] sm:$0xf] %vm1406, %v1335
        %1420 = vst.msk [vmem:[#allocation5 + $0x9c] sm:$0xf] %vm1406, %v1337
        %1421 = vst.msk [vmem:[#allocation5 + $0xa8] sm:$0xf] %vm1406, %v1339
        %1422 = vst.msk [vmem:[#allocation5 + $0xb4] sm:$0xf] %vm1406, %v1341
        %1423 = vst.msk [vmem:[#allocation5 + $0xc0] sm:$0xf] %vm1406, %v1343
        %1424 = vst.msk [vmem:[#allocation5 + $0xcc] sm:$0xf] %vm1406, %v1345
        %1425 = vst.msk [vmem:[#allocation5 + $0xd8] sm:$0xf] %vm1406, %v1347
        %1426 = vst.msk [vmem:[#allocation5 + $0xe4] sm:$0xf] %vm1406, %v1349
        %1427 = vst.msk [vmem:[#allocation5 + $0xf0] sm:$0xf] %vm1406, %v1351
        %1428 = vst.msk [vmem:[#allocation5 + $0xfc] sm:$0xf] %vm1406, %v1353
        %1429 = vst.msk [vmem:[#allocation5 + $0x108] sm:$0xf] %vm1406, %v1355
        %1430 = vst.msk [vmem:[#allocation5 + $0x114] sm:$0xf] %vm1406, %v1357
        %1431 = vst.msk [vmem:[#allocation5 + $0x120] sm:$0xf] %vm1406, %v1359
        %1432 = vst.msk [vmem:[#allocation5 + $0x12c] sm:$0xf] %vm1406, %v1361
        %1433 = vst.msk [vmem:[#allocation5 + $0x138] sm:$0xf] %vm1406, %v1363
        %1434 = vst.msk [vmem:[#allocation5 + $0x144] sm:$0xf] %vm1406, %v1365
        %1435 = vst.msk [vmem:[#allocation5 + $0x150] sm:$0xf] %vm1406, %v1367
        %1436 = vst.msk [vmem:[#allocation5 + $0x15c] sm:$0xf] %vm1406, %v1369
        %1437 = vst.msk [vmem:[#allocation5 + $0x168] sm:$0xf] %vm1406, %v1371
        %1438 = vst.msk [vmem:[#allocation5 + $0x174] sm:$0xf] %vm1406, %v1373
        %v1439 = vld [vmem:[%s409 + $0x2] sm:$0xff]
        %v1440 = vld [vmem:[%s409 + $0xa] sm:$0xff]
        %v1441 = vld [vmem:[%s409 + $0x1a] sm:$0xff]
        %v1442 = vld [vmem:[%s409 + $0x22] sm:$0xff]
        %v1443 = vld [vmem:[%s409 + $0x32] sm:$0xff]
        %v1444 = vld [vmem:[%s409 + $0x3a] sm:$0xff]
        %v1445 = vld [vmem:[%s409 + $0x4a] sm:$0xff]
        %v1446 = vld [vmem:[%s409 + $0x52] sm:$0xff]
        %v1447 = vld [vmem:[%s409 + $0x62] sm:$0xff]
        %v1448 = vld [vmem:[%s409 + $0x6a] sm:$0xff]
        %v1449 = vld [vmem:[%s409 + $0x7a] sm:$0xff]
        %v1450 = vld [vmem:[%s409 + $0x82] sm:$0xff]
        %v1451 = vld [vmem:[%s409 + $0x92] sm:$0xff]
        %v1452 = vld [vmem:[%s409 + $0x9a] sm:$0xff]
        %v1453 = vld [vmem:[%s409 + $0xaa] sm:$0xff]
        %v1454 = vld [vmem:[%s409 + $0xb2] sm:$0xff]
        %v1455 = vld [vmem:[%s409 + $0xc2] sm:$0xff]
        %v1456 = vld [vmem:[%s409 + $0xca] sm:$0xff]
        %v1457 = vld [vmem:[%s409 + $0xda] sm:$0xff]
        %v1458 = vld [vmem:[%s409 + $0xe2] sm:$0xff]
        %v1459 = vld [vmem:[%s409 + $0xf2] sm:$0xff]
        %v1460 = vld [vmem:[%s409 + $0xfa] sm:$0xff]
        %v1461 = vld [vmem:[%s409 + $0x10a] sm:$0xff]
        %v1462 = vld [vmem:[%s409 + $0x112] sm:$0xff]
        %v1463 = vld [vmem:[%s409 + $0x122] sm:$0xff]
        %v1464 = vld [vmem:[%s409 + $0x12a] sm:$0xff]
        %v1465 = vld [vmem:[%s409 + $0x13a] sm:$0xff]
        %v1466 = vld [vmem:[%s409 + $0x142] sm:$0xff]
        %v1467 = vld [vmem:[%s409 + $0x152] sm:$0xff]
        %v1468 = vld [vmem:[%s409 + $0x15a] sm:$0xff]
        %v1469 = vld [vmem:[%s409 + $0x16a] sm:$0xff]
        %v1470 = vld [vmem:[%s409 + $0x172] sm:$0xff]
        %v1471 = vpack.c.bf16 %v1439, %v1439
        %v1472 = vpack.c.bf16 %v1440, %v1440
        %v1473 = vpack.c.bf16 %v1441, %v1441
        %v1474 = vpack.c.bf16 %v1442, %v1442
        %v1475 = vpack.c.bf16 %v1443, %v1443
        %v1476 = vpack.c.bf16 %v1444, %v1444
        %v1477 = vpack.c.bf16 %v1445, %v1445
        %v1478 = vpack.c.bf16 %v1446, %v1446
        %v1479 = vpack.c.bf16 %v1447, %v1447
        %v1480 = vpack.c.bf16 %v1448, %v1448
        %v1481 = vpack.c.bf16 %v1449, %v1449
        %v1482 = vpack.c.bf16 %v1450, %v1450
        %v1483 = vpack.c.bf16 %v1451, %v1451
        %v1484 = vpack.c.bf16 %v1452, %v1452
        %v1485 = vpack.c.bf16 %v1453, %v1453
        %v1486 = vpack.c.bf16 %v1454, %v1454
        %v1487 = vpack.c.bf16 %v1455, %v1455
        %v1488 = vpack.c.bf16 %v1456, %v1456
        %v1489 = vpack.c.bf16 %v1457, %v1457
        %v1490 = vpack.c.bf16 %v1458, %v1458
        %v1491 = vpack.c.bf16 %v1459, %v1459
        %v1492 = vpack.c.bf16 %v1460, %v1460
        %v1493 = vpack.c.bf16 %v1461, %v1461
        %v1494 = vpack.c.bf16 %v1462, %v1462
        %v1495 = vpack.c.bf16 %v1463, %v1463
        %v1496 = vpack.c.bf16 %v1464, %v1464
        %v1497 = vpack.c.bf16 %v1465, %v1465
        %v1498 = vpack.c.bf16 %v1466, %v1466
        %v1499 = vpack.c.bf16 %v1467, %v1467
        %v1500 = vpack.c.bf16 %v1468, %v1468
        %v1501 = vpack.c.bf16 %v1469, %v1469
        %v1502 = vpack.c.bf16 %v1470, %v1470
        %1535 = vrot.lane.b32.xlu0 %v1471, 15
        %v1536 = vpop.permute.xlu0 %1535
        %1537 = vrot.lane.b32.xlu0 %v1472, 15
        %v1538 = vpop.permute.xlu0 %1537
        %1539 = vrot.lane.b32.xlu0 %v1473, 15
        %v1540 = vpop.permute.xlu0 %1539
        %1541 = vrot.lane.b32.xlu0 %v1474, 15
        %v1542 = vpop.permute.xlu0 %1541
        %1543 = vrot.lane.b32.xlu0 %v1475, 15
        %v1544 = vpop.permute.xlu0 %1543
        %1545 = vrot.lane.b32.xlu0 %v1476, 15
        %v1546 = vpop.permute.xlu0 %1545
        %1547 = vrot.lane.b32.xlu0 %v1477, 15
        %v1548 = vpop.permute.xlu0 %1547
        %1549 = vrot.lane.b32.xlu0 %v1478, 15
        %v1550 = vpop.permute.xlu0 %1549
        %1551 = vrot.lane.b32.xlu0 %v1479, 15
        %v1552 = vpop.permute.xlu0 %1551
        %1553 = vrot.lane.b32.xlu0 %v1480, 15
        %v1554 = vpop.permute.xlu0 %1553
        %1555 = vrot.lane.b32.xlu0 %v1481, 15
        %v1556 = vpop.permute.xlu0 %1555
        %1557 = vrot.lane.b32.xlu0 %v1482, 15
        %v1558 = vpop.permute.xlu0 %1557
        %1559 = vrot.lane.b32.xlu0 %v1483, 15
        %v1560 = vpop.permute.xlu0 %1559
        %1561 = vrot.lane.b32.xlu0 %v1484, 15
        %v1562 = vpop.permute.xlu0 %1561
        %1563 = vrot.lane.b32.xlu0 %v1485, 15
        %v1564 = vpop.permute.xlu0 %1563
        %1565 = vrot.lane.b32.xlu0 %v1486, 15
        %v1566 = vpop.permute.xlu0 %1565
        %1567 = vrot.lane.b32.xlu0 %v1487, 15
        %v1568 = vpop.permute.xlu0 %1567
        %1569 = vrot.lane.b32.xlu0 %v1488, 15
        %v1570 = vpop.permute.xlu0 %1569
        %1571 = vrot.lane.b32.xlu0 %v1489, 15
        %v1572 = vpop.permute.xlu0 %1571
        %1573 = vrot.lane.b32.xlu0 %v1490, 15
        %v1574 = vpop.permute.xlu0 %1573
        %1575 = vrot.lane.b32.xlu0 %v1491, 15
        %v1576 = vpop.permute.xlu0 %1575
        %1577 = vrot.lane.b32.xlu0 %v1492, 15
        %v1578 = vpop.permute.xlu0 %1577
        %1579 = vrot.lane.b32.xlu0 %v1493, 15
        %v1580 = vpop.permute.xlu0 %1579
        %1581 = vrot.lane.b32.xlu0 %v1494, 15
        %v1582 = vpop.permute.xlu0 %1581
        %1583 = vrot.lane.b32.xlu0 %v1495, 15
        %v1584 = vpop.permute.xlu0 %1583
        %1585 = vrot.lane.b32.xlu0 %v1496, 15
        %v1586 = vpop.permute.xlu0 %1585
        %1587 = vrot.lane.b32.xlu0 %v1497, 15
        %v1588 = vpop.permute.xlu0 %1587
        %1589 = vrot.lane.b32.xlu0 %v1498, 15
        %v1590 = vpop.permute.xlu0 %1589
        %1591 = vrot.lane.b32.xlu0 %v1499, 15
        %v1592 = vpop.permute.xlu0 %1591
        %1593 = vrot.lane.b32.xlu0 %v1500, 15
        %v1594 = vpop.permute.xlu0 %1593
        %1595 = vrot.lane.b32.xlu0 %v1501, 15
        %v1596 = vpop.permute.xlu0 %1595
        %1597 = vrot.lane.b32.xlu0 %v1502, 15
        %v1598 = vpop.permute.xlu0 %1597
        %vm1631 = vcmask 142456
        %1632 = vst.msk [vmem:[#allocation5] sm:$0xf] %vm1631, %v1536
        %1633 = vst.msk [vmem:[#allocation5 + $0xc] sm:$0xf] %vm1631, %v1538
        %1634 = vst.msk [vmem:[#allocation5 + $0x18] sm:$0xf] %vm1631, %v1540
        %1635 = vst.msk [vmem:[#allocation5 + $0x24] sm:$0xf] %vm1631, %v1542
        %1636 = vst.msk [vmem:[#allocation5 + $0x30] sm:$0xf] %vm1631, %v1544
        %1637 = vst.msk [vmem:[#allocation5 + $0x3c] sm:$0xf] %vm1631, %v1546
        %1638 = vst.msk [vmem:[#allocation5 + $0x48] sm:$0xf] %vm1631, %v1548
        %1639 = vst.msk [vmem:[#allocation5 + $0x54] sm:$0xf] %vm1631, %v1550
        %1640 = vst.msk [vmem:[#allocation5 + $0x60] sm:$0xf] %vm1631, %v1552
        %1641 = vst.msk [vmem:[#allocation5 + $0x6c] sm:$0xf] %vm1631, %v1554
        %1642 = vst.msk [vmem:[#allocation5 + $0x78] sm:$0xf] %vm1631, %v1556
        %1643 = vst.msk [vmem:[#allocation5 + $0x84] sm:$0xf] %vm1631, %v1558
        %1644 = vst.msk [vmem:[#allocation5 + $0x90] sm:$0xf] %vm1631, %v1560
        %1645 = vst.msk [vmem:[#allocation5 + $0x9c] sm:$0xf] %vm1631, %v1562
        %1646 = vst.msk [vmem:[#allocation5 + $0xa8] sm:$0xf] %vm1631, %v1564
        %1647 = vst.msk [vmem:[#allocation5 + $0xb4] sm:$0xf] %vm1631, %v1566
        %1648 = vst.msk [vmem:[#allocation5 + $0xc0] sm:$0xf] %vm1631, %v1568
        %1649 = vst.msk [vmem:[#allocation5 + $0xcc] sm:$0xf] %vm1631, %v1570
        %1650 = vst.msk [vmem:[#allocation5 + $0xd8] sm:$0xf] %vm1631, %v1572
        %1651 = vst.msk [vmem:[#allocation5 + $0xe4] sm:$0xf] %vm1631, %v1574
        %1652 = vst.msk [vmem:[#allocation5 + $0xf0] sm:$0xf] %vm1631, %v1576
        %1653 = vst.msk [vmem:[#allocation5 + $0xfc] sm:$0xf] %vm1631, %v1578
        %1654 = vst.msk [vmem:[#allocation5 + $0x108] sm:$0xf] %vm1631, %v1580
        %1655 = vst.msk [vmem:[#allocation5 + $0x114] sm:$0xf] %vm1631, %v1582
        %1656 = vst.msk [vmem:[#allocation5 + $0x120] sm:$0xf] %vm1631, %v1584
        %1657 = vst.msk [vmem:[#allocation5 + $0x12c] sm:$0xf] %vm1631, %v1586
        %1658 = vst.msk [vmem:[#allocation5 + $0x138] sm:$0xf] %vm1631, %v1588
        %1659 = vst.msk [vmem:[#allocation5 + $0x144] sm:$0xf] %vm1631, %v1590
        %1660 = vst.msk [vmem:[#allocation5 + $0x150] sm:$0xf] %vm1631, %v1592
        %1661 = vst.msk [vmem:[#allocation5 + $0x15c] sm:$0xf] %vm1631, %v1594
        %1662 = vst.msk [vmem:[#allocation5 + $0x168] sm:$0xf] %vm1631, %v1596
        %1663 = vst.msk [vmem:[#allocation5 + $0x174] sm:$0xf] %vm1631, %v1598
        %s1664 = scalar_lea.vmem [#allocation2], 48
        %v1665 = vld [vmem:[%s1664] sm:$0xff]
        %v1666 = vld [vmem:[%s1664 + $0x8] sm:$0xff]
        %v1667 = vld [vmem:[%s1664 + $0x18] sm:$0xff]
        %v1668 = vld [vmem:[%s1664 + $0x20] sm:$0xff]
        %v1669 = vld [vmem:[%s1664 + $0x30] sm:$0xff]
        %v1670 = vld [vmem:[%s1664 + $0x38] sm:$0xff]
        %v1671 = vld [vmem:[%s1664 + $0x48] sm:$0xff]
        %v1672 = vld [vmem:[%s1664 + $0x50] sm:$0xff]
        %v1673 = vld [vmem:[%s1664 + $0x60] sm:$0xff]
        %v1674 = vld [vmem:[%s1664 + $0x68] sm:$0xff]
        %v1675 = vld [vmem:[%s1664 + $0x78] sm:$0xff]
        %v1676 = vld [vmem:[%s1664 + $0x80] sm:$0xff]
        %v1677 = vld [vmem:[%s1664 + $0x90] sm:$0xff]
        %v1678 = vld [vmem:[%s1664 + $0x98] sm:$0xff]
        %v1679 = vld [vmem:[%s1664 + $0xa8] sm:$0xff]
        %v1680 = vld [vmem:[%s1664 + $0xb0] sm:$0xff]
        %v1681 = vld [vmem:[%s1664 + $0xc0] sm:$0xff]
        %v1682 = vld [vmem:[%s1664 + $0xc8] sm:$0xff]
        %v1683 = vld [vmem:[%s1664 + $0xd8] sm:$0xff]
        %v1684 = vld [vmem:[%s1664 + $0xe0] sm:$0xff]
        %v1685 = vld [vmem:[%s1664 + $0xf0] sm:$0xff]
        %v1686 = vld [vmem:[%s1664 + $0xf8] sm:$0xff]
        %v1687 = vld [vmem:[%s1664 + $0x108] sm:$0xff]
        %v1688 = vld [vmem:[%s1664 + $0x110] sm:$0xff]
        %v1689 = vld [vmem:[%s1664 + $0x120] sm:$0xff]
        %v1690 = vld [vmem:[%s1664 + $0x128] sm:$0xff]
        %v1691 = vld [vmem:[%s1664 + $0x138] sm:$0xff]
        %v1692 = vld [vmem:[%s1664 + $0x140] sm:$0xff]
        %v1693 = vld [vmem:[%s1664 + $0x150] sm:$0xff]
        %v1694 = vld [vmem:[%s1664 + $0x158] sm:$0xff]
        %v1695 = vld [vmem:[%s1664 + $0x168] sm:$0xff]
        %v1696 = vld [vmem:[%s1664 + $0x170] sm:$0xff]
        %v1697 = vpack.c.bf16 %v1665, %v1665
        %v1698 = vpack.c.bf16 %v1666, %v1666
        %v1699 = vpack.c.bf16 %v1667, %v1667
        %v1700 = vpack.c.bf16 %v1668, %v1668
        %v1701 = vpack.c.bf16 %v1669, %v1669
        %v1702 = vpack.c.bf16 %v1670, %v1670
        %v1703 = vpack.c.bf16 %v1671, %v1671
        %v1704 = vpack.c.bf16 %v1672, %v1672
        %v1705 = vpack.c.bf16 %v1673, %v1673
        %v1706 = vpack.c.bf16 %v1674, %v1674
        %v1707 = vpack.c.bf16 %v1675, %v1675
        %v1708 = vpack.c.bf16 %v1676, %v1676
        %v1709 = vpack.c.bf16 %v1677, %v1677
        %v1710 = vpack.c.bf16 %v1678, %v1678
        %v1711 = vpack.c.bf16 %v1679, %v1679
        %v1712 = vpack.c.bf16 %v1680, %v1680
        %v1713 = vpack.c.bf16 %v1681, %v1681
        %v1714 = vpack.c.bf16 %v1682, %v1682
        %v1715 = vpack.c.bf16 %v1683, %v1683
        %v1716 = vpack.c.bf16 %v1684, %v1684
        %v1717 = vpack.c.bf16 %v1685, %v1685
        %v1718 = vpack.c.bf16 %v1686, %v1686
        %v1719 = vpack.c.bf16 %v1687, %v1687
        %v1720 = vpack.c.bf16 %v1688, %v1688
        %v1721 = vpack.c.bf16 %v1689, %v1689
        %v1722 = vpack.c.bf16 %v1690, %v1690
        %v1723 = vpack.c.bf16 %v1691, %v1691
        %v1724 = vpack.c.bf16 %v1692, %v1692
        %v1725 = vpack.c.bf16 %v1693, %v1693
        %v1726 = vpack.c.bf16 %v1694, %v1694
        %v1727 = vpack.c.bf16 %v1695, %v1695
        %v1728 = vpack.c.bf16 %v1696, %v1696
        %1761 = vrot.lane.b32.xlu0 %v1697, 18
        %v1762 = vpop.permute.xlu0 %1761
        %1763 = vrot.lane.b32.xlu0 %v1698, 18
        %v1764 = vpop.permute.xlu0 %1763
        %1765 = vrot.lane.b32.xlu0 %v1699, 18
        %v1766 = vpop.permute.xlu0 %1765
        %1767 = vrot.lane.b32.xlu0 %v1700, 18
        %v1768 = vpop.permute.xlu0 %1767
        %1769 = vrot.lane.b32.xlu0 %v1701, 18
        %v1770 = vpop.permute.xlu0 %1769
        %1771 = vrot.lane.b32.xlu0 %v1702, 18
        %v1772 = vpop.permute.xlu0 %1771
        %1773 = vrot.lane.b32.xlu0 %v1703, 18
        %v1774 = vpop.permute.xlu0 %1773
        %1775 = vrot.lane.b32.xlu0 %v1704, 18
        %v1776 = vpop.permute.xlu0 %1775
        %1777 = vrot.lane.b32.xlu0 %v1705, 18
        %v1778 = vpop.permute.xlu0 %1777
        %1779 = vrot.lane.b32.xlu0 %v1706, 18
        %v1780 = vpop.permute.xlu0 %1779
        %1781 = vrot.lane.b32.xlu0 %v1707, 18
        %v1782 = vpop.permute.xlu0 %1781
        %1783 = vrot.lane.b32.xlu0 %v1708, 18
        %v1784 = vpop.permute.xlu0 %1783
        %1785 = vrot.lane.b32.xlu0 %v1709, 18
        %v1786 = vpop.permute.xlu0 %1785
        %1787 = vrot.lane.b32.xlu0 %v1710, 18
        %v1788 = vpop.permute.xlu0 %1787
        %1789 = vrot.lane.b32.xlu0 %v1711, 18
        %v1790 = vpop.permute.xlu0 %1789
        %1791 = vrot.lane.b32.xlu0 %v1712, 18
        %v1792 = vpop.permute.xlu0 %1791
        %1793 = vrot.lane.b32.xlu0 %v1713, 18
        %v1794 = vpop.permute.xlu0 %1793
        %1795 = vrot.lane.b32.xlu0 %v1714, 18
        %v1796 = vpop.permute.xlu0 %1795
        %1797 = vrot.lane.b32.xlu0 %v1715, 18
        %v1798 = vpop.permute.xlu0 %1797
        %1799 = vrot.lane.b32.xlu0 %v1716, 18
        %v1800 = vpop.permute.xlu0 %1799
        %1801 = vrot.lane.b32.xlu0 %v1717, 18
        %v1802 = vpop.permute.xlu0 %1801
        %1803 = vrot.lane.b32.xlu0 %v1718, 18
        %v1804 = vpop.permute.xlu0 %1803
        %1805 = vrot.lane.b32.xlu0 %v1719, 18
        %v1806 = vpop.permute.xlu0 %1805
        %1807 = vrot.lane.b32.xlu0 %v1720, 18
        %v1808 = vpop.permute.xlu0 %1807
        %1809 = vrot.lane.b32.xlu0 %v1721, 18
        %v1810 = vpop.permute.xlu0 %1809
        %1811 = vrot.lane.b32.xlu0 %v1722, 18
        %v1812 = vpop.permute.xlu0 %1811
        %1813 = vrot.lane.b32.xlu0 %v1723, 18
        %v1814 = vpop.permute.xlu0 %1813
        %1815 = vrot.lane.b32.xlu0 %v1724, 18
        %v1816 = vpop.permute.xlu0 %1815
        %1817 = vrot.lane.b32.xlu0 %v1725, 18
        %v1818 = vpop.permute.xlu0 %1817
        %1819 = vrot.lane.b32.xlu0 %v1726, 18
        %v1820 = vpop.permute.xlu0 %1819
        %1821 = vrot.lane.b32.xlu0 %v1727, 18
        %v1822 = vpop.permute.xlu0 %1821
        %1823 = vrot.lane.b32.xlu0 %v1728, 18
        %v1824 = vpop.permute.xlu0 %1823
        %vm1857 = vcmask 167056
        %1858 = vst.msk [vmem:[#allocation5] sm:$0xf] %vm1857, %v1762
        %1859 = vst.msk [vmem:[#allocation5 + $0xc] sm:$0xf] %vm1857, %v1764
        %1860 = vst.msk [vmem:[#allocation5 + $0x18] sm:$0xf] %vm1857, %v1766
        %1861 = vst.msk [vmem:[#allocation5 + $0x24] sm:$0xf] %vm1857, %v1768
        %1862 = vst.msk [vmem:[#allocation5 + $0x30] sm:$0xf] %vm1857, %v1770
        %1863 = vst.msk [vmem:[#allocation5 + $0x3c] sm:$0xf] %vm1857, %v1772
        %1864 = vst.msk [vmem:[#allocation5 + $0x48] sm:$0xf] %vm1857, %v1774
        %1865 = vst.msk [vmem:[#allocation5 + $0x54] sm:$0xf] %vm1857, %v1776
        %1866 = vst.msk [vmem:[#allocation5 + $0x60] sm:$0xf] %vm1857, %v1778
        %1867 = vst.msk [vmem:[#allocation5 + $0x6c] sm:$0xf] %vm1857, %v1780
        %1868 = vst.msk [vmem:[#allocation5 + $0x78] sm:$0xf] %vm1857, %v1782
        %1869 = vst.msk [vmem:[#allocation5 + $0x84] sm:$0xf] %vm1857, %v1784
        %1870 = vst.msk [vmem:[#allocation5 + $0x90] sm:$0xf] %vm1857, %v1786
        %1871 = vst.msk [vmem:[#allocation5 + $0x9c] sm:$0xf] %vm1857, %v1788
        %1872 = vst.msk [vmem:[#allocation5 + $0xa8] sm:$0xf] %vm1857, %v1790
        %1873 = vst.msk [vmem:[#allocation5 + $0xb4] sm:$0xf] %vm1857, %v1792
        %1874 = vst.msk [vmem:[#allocation5 + $0xc0] sm:$0xf] %vm1857, %v1794
        %1875 = vst.msk [vmem:[#allocation5 + $0xcc] sm:$0xf] %vm1857, %v1796
        %1876 = vst.msk [vmem:[#allocation5 + $0xd8] sm:$0xf] %vm1857, %v1798
        %1877 = vst.msk [vmem:[#allocation5 + $0xe4] sm:$0xf] %vm1857, %v1800
        %1878 = vst.msk [vmem:[#allocation5 + $0xf0] sm:$0xf] %vm1857, %v1802
        %1879 = vst.msk [vmem:[#allocation5 + $0xfc] sm:$0xf] %vm1857, %v1804
        %1880 = vst.msk [vmem:[#allocation5 + $0x108] sm:$0xf] %vm1857, %v1806
        %1881 = vst.msk [vmem:[#allocation5 + $0x114] sm:$0xf] %vm1857, %v1808
        %1882 = vst.msk [vmem:[#allocation5 + $0x120] sm:$0xf] %vm1857, %v1810
        %1883 = vst.msk [vmem:[#allocation5 + $0x12c] sm:$0xf] %vm1857, %v1812
        %1884 = vst.msk [vmem:[#allocation5 + $0x138] sm:$0xf] %vm1857, %v1814
        %1885 = vst.msk [vmem:[#allocation5 + $0x144] sm:$0xf] %vm1857, %v1816
        %1886 = vst.msk [vmem:[#allocation5 + $0x150] sm:$0xf] %vm1857, %v1818
        %1887 = vst.msk [vmem:[#allocation5 + $0x15c] sm:$0xf] %vm1857, %v1820
        %1888 = vst.msk [vmem:[#allocation5 + $0x168] sm:$0xf] %vm1857, %v1822
        %1889 = vst.msk [vmem:[#allocation5 + $0x174] sm:$0xf] %vm1857, %v1824
        %v1890 = vld [vmem:[%s1664 + $0x1] sm:$0xff]
        %v1891 = vld [vmem:[%s1664 + $0x9] sm:$0xff]
        %v1892 = vld [vmem:[%s1664 + $0x19] sm:$0xff]
        %v1893 = vld [vmem:[%s1664 + $0x21] sm:$0xff]
        %v1894 = vld [vmem:[%s1664 + $0x31] sm:$0xff]
        %v1895 = vld [vmem:[%s1664 + $0x39] sm:$0xff]
        %v1896 = vld [vmem:[%s1664 + $0x49] sm:$0xff]
        %v1897 = vld [vmem:[%s1664 + $0x51] sm:$0xff]
        %v1898 = vld [vmem:[%s1664 + $0x61] sm:$0xff]
        %v1899 = vld [vmem:[%s1664 + $0x69] sm:$0xff]
        %v1900 = vld [vmem:[%s1664 + $0x79] sm:$0xff]
        %v1901 = vld [vmem:[%s1664 + $0x81] sm:$0xff]
        %v1902 = vld [vmem:[%s1664 + $0x91] sm:$0xff]
        %v1903 = vld [vmem:[%s1664 + $0x99] sm:$0xff]
        %v1904 = vld [vmem:[%s1664 + $0xa9] sm:$0xff]
        %v1905 = vld [vmem:[%s1664 + $0xb1] sm:$0xff]
        %v1906 = vld [vmem:[%s1664 + $0xc1] sm:$0xff]
        %v1907 = vld [vmem:[%s1664 + $0xc9] sm:$0xff]
        %v1908 = vld [vmem:[%s1664 + $0xd9] sm:$0xff]
        %v1909 = vld [vmem:[%s1664 + $0xe1] sm:$0xff]
        %v1910 = vld [vmem:[%s1664 + $0xf1] sm:$0xff]
        %v1911 = vld [vmem:[%s1664 + $0xf9] sm:$0xff]
        %v1912 = vld [vmem:[%s1664 + $0x109] sm:$0xff]
        %v1913 = vld [vmem:[%s1664 + $0x111] sm:$0xff]
        %v1914 = vld [vmem:[%s1664 + $0x121] sm:$0xff]
        %v1915 = vld [vmem:[%s1664 + $0x129] sm:$0xff]
        %v1916 = vld [vmem:[%s1664 + $0x139] sm:$0xff]
        %v1917 = vld [vmem:[%s1664 + $0x141] sm:$0xff]
        %v1918 = vld [vmem:[%s1664 + $0x151] sm:$0xff]
        %v1919 = vld [vmem:[%s1664 + $0x159] sm:$0xff]
        %v1920 = vld [vmem:[%s1664 + $0x169] sm:$0xff]
        %v1921 = vld [vmem:[%s1664 + $0x171] sm:$0xff]
        %v1922 = vpack.c.bf16 %v1890, %v1890
        %v1923 = vpack.c.bf16 %v1891, %v1891
        %v1924 = vpack.c.bf16 %v1892, %v1892
        %v1925 = vpack.c.bf16 %v1893, %v1893
        %v1926 = vpack.c.bf16 %v1894, %v1894
        %v1927 = vpack.c.bf16 %v1895, %v1895
        %v1928 = vpack.c.bf16 %v1896, %v1896
        %v1929 = vpack.c.bf16 %v1897, %v1897
        %v1930 = vpack.c.bf16 %v1898, %v1898
        %v1931 = vpack.c.bf16 %v1899, %v1899
        %v1932 = vpack.c.bf16 %v1900, %v1900
        %v1933 = vpack.c.bf16 %v1901, %v1901
        %v1934 = vpack.c.bf16 %v1902, %v1902
        %v1935 = vpack.c.bf16 %v1903, %v1903
        %v1936 = vpack.c.bf16 %v1904, %v1904
        %v1937 = vpack.c.bf16 %v1905, %v1905
        %v1938 = vpack.c.bf16 %v1906, %v1906
        %v1939 = vpack.c.bf16 %v1907, %v1907
        %v1940 = vpack.c.bf16 %v1908, %v1908
        %v1941 = vpack.c.bf16 %v1909, %v1909
        %v1942 = vpack.c.bf16 %v1910, %v1910
        %v1943 = vpack.c.bf16 %v1911, %v1911
        %v1944 = vpack.c.bf16 %v1912, %v1912
        %v1945 = vpack.c.bf16 %v1913, %v1913
        %v1946 = vpack.c.bf16 %v1914, %v1914
        %v1947 = vpack.c.bf16 %v1915, %v1915
        %v1948 = vpack.c.bf16 %v1916, %v1916
        %v1949 = vpack.c.bf16 %v1917, %v1917
        %v1950 = vpack.c.bf16 %v1918, %v1918
        %v1951 = vpack.c.bf16 %v1919, %v1919
        %v1952 = vpack.c.bf16 %v1920, %v1920
        %v1953 = vpack.c.bf16 %v1921, %v1921
        %1986 = vrot.lane.b32.xlu0 %v1922, 21
        %v1987 = vpop.permute.xlu0 %1986
        %1988 = vrot.lane.b32.xlu0 %v1923, 21
        %v1989 = vpop.permute.xlu0 %1988
        %1990 = vrot.lane.b32.xlu0 %v1924, 21
        %v1991 = vpop.permute.xlu0 %1990
        %1992 = vrot.lane.b32.xlu0 %v1925, 21
        %v1993 = vpop.permute.xlu0 %1992
        %1994 = vrot.lane.b32.xlu0 %v1926, 21
        %v1995 = vpop.permute.xlu0 %1994
        %1996 = vrot.lane.b32.xlu0 %v1927, 21
        %v1997 = vpop.permute.xlu0 %1996
        %1998 = vrot.lane.b32.xlu0 %v1928, 21
        %v1999 = vpop.permute.xlu0 %1998
        %2000 = vrot.lane.b32.xlu0 %v1929, 21
        %v2001 = vpop.permute.xlu0 %2000
        %2002 = vrot.lane.b32.xlu0 %v1930, 21
        %v2003 = vpop.permute.xlu0 %2002
        %2004 = vrot.lane.b32.xlu0 %v1931, 21
        %v2005 = vpop.permute.xlu0 %2004
        %2006 = vrot.lane.b32.xlu0 %v1932, 21
        %v2007 = vpop.permute.xlu0 %2006
        %2008 = vrot.lane.b32.xlu0 %v1933, 21
        %v2009 = vpop.permute.xlu0 %2008
        %2010 = vrot.lane.b32.xlu0 %v1934, 21
        %v2011 = vpop.permute.xlu0 %2010
        %2012 = vrot.lane.b32.xlu0 %v1935, 21
        %v2013 = vpop.permute.xlu0 %2012
        %2014 = vrot.lane.b32.xlu0 %v1936, 21
        %v2015 = vpop.permute.xlu0 %2014
        %2016 = vrot.lane.b32.xlu0 %v1937, 21
        %v2017 = vpop.permute.xlu0 %2016
        %2018 = vrot.lane.b32.xlu0 %v1938, 21
        %v2019 = vpop.permute.xlu0 %2018
        %2020 = vrot.lane.b32.xlu0 %v1939, 21
        %v2021 = vpop.permute.xlu0 %2020
        %2022 = vrot.lane.b32.xlu0 %v1940, 21
        %v2023 = vpop.permute.xlu0 %2022
        %2024 = vrot.lane.b32.xlu0 %v1941, 21
        %v2025 = vpop.permute.xlu0 %2024
        %2026 = vrot.lane.b32.xlu0 %v1942, 21
        %v2027 = vpop.permute.xlu0 %2026
        %2028 = vrot.lane.b32.xlu0 %v1943, 21
        %v2029 = vpop.permute.xlu0 %2028
        %2030 = vrot.lane.b32.xlu0 %v1944, 21
        %v2031 = vpop.permute.xlu0 %2030
        %2032 = vrot.lane.b32.xlu0 %v1945, 21
        %v2033 = vpop.permute.xlu0 %2032
        %2034 = vrot.lane.b32.xlu0 %v1946, 21
        %v2035 = vpop.permute.xlu0 %2034
        %2036 = vrot.lane.b32.xlu0 %v1947, 21
        %v2037 = vpop.permute.xlu0 %2036
        %2038 = vrot.lane.b32.xlu0 %v1948, 21
        %v2039 = vpop.permute.xlu0 %2038
        %2040 = vrot.lane.b32.xlu0 %v1949, 21
        %v2041 = vpop.permute.xlu0 %2040
        %2042 = vrot.lane.b32.xlu0 %v1950, 21
        %v2043 = vpop.permute.xlu0 %2042
        %2044 = vrot.lane.b32.xlu0 %v1951, 21
        %v2045 = vpop.permute.xlu0 %2044
        %2046 = vrot.lane.b32.xlu0 %v1952, 21
        %v2047 = vpop.permute.xlu0 %2046
        %2048 = vrot.lane.b32.xlu0 %v1953, 21
        %v2049 = vpop.permute.xlu0 %2048
        %vm2082 = vcmask 191656
        %2083 = vst.msk [vmem:[#allocation5] sm:$0xf] %vm2082, %v1987
        %2084 = vst.msk [vmem:[#allocation5 + $0xc] sm:$0xf] %vm2082, %v1989
        %2085 = vst.msk [vmem:[#allocation5 + $0x18] sm:$0xf] %vm2082, %v1991
        %2086 = vst.msk [vmem:[#allocation5 + $0x24] sm:$0xf] %vm2082, %v1993
        %2087 = vst.msk [vmem:[#allocation5 + $0x30] sm:$0xf] %vm2082, %v1995
        %2088 = vst.msk [vmem:[#allocation5 + $0x3c] sm:$0xf] %vm2082, %v1997
        %2089 = vst.msk [vmem:[#allocation5 + $0x48] sm:$0xf] %vm2082, %v1999
        %2090 = vst.msk [vmem:[#allocation5 + $0x54] sm:$0xf] %vm2082, %v2001
        %2091 = vst.msk [vmem:[#allocation5 + $0x60] sm:$0xf] %vm2082, %v2003
        %2092 = vst.msk [vmem:[#allocation5 + $0x6c] sm:$0xf] %vm2082, %v2005
        %2093 = vst.msk [vmem:[#allocation5 + $0x78] sm:$0xf] %vm2082, %v2007
        %2094 = vst.msk [vmem:[#allocation5 + $0x84] sm:$0xf] %vm2082, %v2009
        %2095 = vst.msk [vmem:[#allocation5 + $0x90] sm:$0xf] %vm2082, %v2011
        %2096 = vst.msk [vmem:[#allocation5 + $0x9c] sm:$0xf] %vm2082, %v2013
        %2097 = vst.msk [vmem:[#allocation5 + $0xa8] sm:$0xf] %vm2082, %v2015
        %2098 = vst.msk [vmem:[#allocation5 + $0xb4] sm:$0xf] %vm2082, %v2017
        %2099 = vst.msk [vmem:[#allocation5 + $0xc0] sm:$0xf] %vm2082, %v2019
        %2100 = vst.msk [vmem:[#allocation5 + $0xcc] sm:$0xf] %vm2082, %v2021
        %2101 = vst.msk [vmem:[#allocation5 + $0xd8] sm:$0xf] %vm2082, %v2023
        %2102 = vst.msk [vmem:[#allocation5 + $0xe4] sm:$0xf] %vm2082, %v2025
        %2103 = vst.msk [vmem:[#allocation5 + $0xf0] sm:$0xf] %vm2082, %v2027
        %2104 = vst.msk [vmem:[#allocation5 + $0xfc] sm:$0xf] %vm2082, %v2029
        %2105 = vst.msk [vmem:[#allocation5 + $0x108] sm:$0xf] %vm2082, %v2031
        %2106 = vst.msk [vmem:[#allocation5 + $0x114] sm:$0xf] %vm2082, %v2033
        %2107 = vst.msk [vmem:[#allocation5 + $0x120] sm:$0xf] %vm2082, %v2035
        %2108 = vst.msk [vmem:[#allocation5 + $0x12c] sm:$0xf] %vm2082, %v2037
        %2109 = vst.msk [vmem:[#allocation5 + $0x138] sm:$0xf] %vm2082, %v2039
        %2110 = vst.msk [vmem:[#allocation5 + $0x144] sm:$0xf] %vm2082, %v2041
        %2111 = vst.msk [vmem:[#allocation5 + $0x150] sm:$0xf] %vm2082, %v2043
        %2112 = vst.msk [vmem:[#allocation5 + $0x15c] sm:$0xf] %vm2082, %v2045
        %2113 = vst.msk [vmem:[#allocation5 + $0x168] sm:$0xf] %vm2082, %v2047
        %2114 = vst.msk [vmem:[#allocation5 + $0x174] sm:$0xf] %vm2082, %v2049
        %v2115 = vld [vmem:[%s1664 + $0x2] sm:$0xff]
        %v2116 = vld [vmem:[%s1664 + $0xa] sm:$0xff]
        %v2117 = vld [vmem:[%s1664 + $0x1a] sm:$0xff]
        %v2118 = vld [vmem:[%s1664 + $0x22] sm:$0xff]
        %v2119 = vld [vmem:[%s1664 + $0x32] sm:$0xff]
        %v2120 = vld [vmem:[%s1664 + $0x3a] sm:$0xff]
        %v2121 = vld [vmem:[%s1664 + $0x4a] sm:$0xff]
        %v2122 = vld [vmem:[%s1664 + $0x52] sm:$0xff]
        %v2123 = vld [vmem:[%s1664 + $0x62] sm:$0xff]
        %v2124 = vld [vmem:[%s1664 + $0x6a] sm:$0xff]
        %v2125 = vld [vmem:[%s1664 + $0x7a] sm:$0xff]
        %v2126 = vld [vmem:[%s1664 + $0x82] sm:$0xff]
        %v2127 = vld [vmem:[%s1664 + $0x92] sm:$0xff]
        %v2128 = vld [vmem:[%s1664 + $0x9a] sm:$0xff]
        %v2129 = vld [vmem:[%s1664 + $0xaa] sm:$0xff]
        %v2130 = vld [vmem:[%s1664 + $0xb2] sm:$0xff]
        %v2131 = vld [vmem:[%s1664 + $0xc2] sm:$0xff]
        %v2132 = vld [vmem:[%s1664 + $0xca] sm:$0xff]
        %v2133 = vld [vmem:[%s1664 + $0xda] sm:$0xff]
        %v2134 = vld [vmem:[%s1664 + $0xe2] sm:$0xff]
        %v2135 = vld [vmem:[%s1664 + $0xf2] sm:$0xff]
        %v2136 = vld [vmem:[%s1664 + $0xfa] sm:$0xff]
        %v2137 = vld [vmem:[%s1664 + $0x10a] sm:$0xff]
        %v2138 = vld [vmem:[%s1664 + $0x112] sm:$0xff]
        %v2139 = vld [vmem:[%s1664 + $0x122] sm:$0xff]
        %v2140 = vld [vmem:[%s1664 + $0x12a] sm:$0xff]
        %v2141 = vld [vmem:[%s1664 + $0x13a] sm:$0xff]
        %v2142 = vld [vmem:[%s1664 + $0x142] sm:$0xff]
        %v2143 = vld [vmem:[%s1664 + $0x152] sm:$0xff]
        %v2144 = vld [vmem:[%s1664 + $0x15a] sm:$0xff]
        %v2145 = vld [vmem:[%s1664 + $0x16a] sm:$0xff]
        %v2146 = vld [vmem:[%s1664 + $0x172] sm:$0xff]
        %v2147 = vpack.c.bf16 %v2115, %v2115
        %v2148 = vpack.c.bf16 %v2116, %v2116
        %v2149 = vpack.c.bf16 %v2117, %v2117
        %v2150 = vpack.c.bf16 %v2118, %v2118
        %v2151 = vpack.c.bf16 %v2119, %v2119
        %v2152 = vpack.c.bf16 %v2120, %v2120
        %v2153 = vpack.c.bf16 %v2121, %v2121
        %v2154 = vpack.c.bf16 %v2122, %v2122
        %v2155 = vpack.c.bf16 %v2123, %v2123
        %v2156 = vpack.c.bf16 %v2124, %v2124
        %v2157 = vpack.c.bf16 %v2125, %v2125
        %v2158 = vpack.c.bf16 %v2126, %v2126
        %v2159 = vpack.c.bf16 %v2127, %v2127
        %v2160 = vpack.c.bf16 %v2128, %v2128
        %v2161 = vpack.c.bf16 %v2129, %v2129
        %v2162 = vpack.c.bf16 %v2130, %v2130
        %v2163 = vpack.c.bf16 %v2131, %v2131
        %v2164 = vpack.c.bf16 %v2132, %v2132
        %v2165 = vpack.c.bf16 %v2133, %v2133
        %v2166 = vpack.c.bf16 %v2134, %v2134
        %v2167 = vpack.c.bf16 %v2135, %v2135
        %v2168 = vpack.c.bf16 %v2136, %v2136
        %v2169 = vpack.c.bf16 %v2137, %v2137
        %v2170 = vpack.c.bf16 %v2138, %v2138
        %v2171 = vpack.c.bf16 %v2139, %v2139
        %v2172 = vpack.c.bf16 %v2140, %v2140
        %v2173 = vpack.c.bf16 %v2141, %v2141
        %v2174 = vpack.c.bf16 %v2142, %v2142
        %v2175 = vpack.c.bf16 %v2143, %v2143
        %v2176 = vpack.c.bf16 %v2144, %v2144
        %v2177 = vpack.c.bf16 %v2145, %v2145
        %v2178 = vpack.c.bf16 %v2146, %v2146
        %2211 = vrot.lane.b32.xlu0 %v2147, 24
        %v2212 = vpop.permute.xlu0 %2211
        %2213 = vrot.lane.b32.xlu0 %v2148, 24
        %v2214 = vpop.permute.xlu0 %2213
        %2215 = vrot.lane.b32.xlu0 %v2149, 24
        %v2216 = vpop.permute.xlu0 %2215
        %2217 = vrot.lane.b32.xlu0 %v2150, 24
        %v2218 = vpop.permute.xlu0 %2217
        %2219 = vrot.lane.b32.xlu0 %v2151, 24
        %v2220 = vpop.permute.xlu0 %2219
        %2221 = vrot.lane.b32.xlu0 %v2152, 24
        %v2222 = vpop.permute.xlu0 %2221
        %2223 = vrot.lane.b32.xlu0 %v2153, 24
        %v2224 = vpop.permute.xlu0 %2223
        %2225 = vrot.lane.b32.xlu0 %v2154, 24
        %v2226 = vpop.permute.xlu0 %2225
        %2227 = vrot.lane.b32.xlu0 %v2155, 24
        %v2228 = vpop.permute.xlu0 %2227
        %2229 = vrot.lane.b32.xlu0 %v2156, 24
        %v2230 = vpop.permute.xlu0 %2229
        %2231 = vrot.lane.b32.xlu0 %v2157, 24
        %v2232 = vpop.permute.xlu0 %2231
        %2233 = vrot.lane.b32.xlu0 %v2158, 24
        %v2234 = vpop.permute.xlu0 %2233
        %2235 = vrot.lane.b32.xlu0 %v2159, 24
        %v2236 = vpop.permute.xlu0 %2235
        %2237 = vrot.lane.b32.xlu0 %v2160, 24
        %v2238 = vpop.permute.xlu0 %2237
        %2239 = vrot.lane.b32.xlu0 %v2161, 24
        %v2240 = vpop.permute.xlu0 %2239
        %2241 = vrot.lane.b32.xlu0 %v2162, 24
        %v2242 = vpop.permute.xlu0 %2241
        %2243 = vrot.lane.b32.xlu0 %v2163, 24
        %v2244 = vpop.permute.xlu0 %2243
        %2245 = vrot.lane.b32.xlu0 %v2164, 24
        %v2246 = vpop.permute.xlu0 %2245
        %2247 = vrot.lane.b32.xlu0 %v2165, 24
        %v2248 = vpop.permute.xlu0 %2247
        %2249 = vrot.lane.b32.xlu0 %v2166, 24
        %v2250 = vpop.permute.xlu0 %2249
        %2251 = vrot.lane.b32.xlu0 %v2167, 24
        %v2252 = vpop.permute.xlu0 %2251
        %2253 = vrot.lane.b32.xlu0 %v2168, 24
        %v2254 = vpop.permute.xlu0 %2253
        %2255 = vrot.lane.b32.xlu0 %v2169, 24
        %v2256 = vpop.permute.xlu0 %2255
        %2257 = vrot.lane.b32.xlu0 %v2170, 24
        %v2258 = vpop.permute.xlu0 %2257
        %2259 = vrot.lane.b32.xlu0 %v2171, 24
        %v2260 = vpop.permute.xlu0 %2259
        %2261 = vrot.lane.b32.xlu0 %v2172, 24
        %v2262 = vpop.permute.xlu0 %2261
        %2263 = vrot.lane.b32.xlu0 %v2173, 24
        %v2264 = vpop.permute.xlu0 %2263
        %2265 = vrot.lane.b32.xlu0 %v2174, 24
        %v2266 = vpop.permute.xlu0 %2265
        %2267 = vrot.lane.b32.xlu0 %v2175, 24
        %v2268 = vpop.permute.xlu0 %2267
        %2269 = vrot.lane.b32.xlu0 %v2176, 24
        %v2270 = vpop.permute.xlu0 %2269
        %2271 = vrot.lane.b32.xlu0 %v2177, 24
        %v2272 = vpop.permute.xlu0 %2271
        %2273 = vrot.lane.b32.xlu0 %v2178, 24
        %v2274 = vpop.permute.xlu0 %2273
        %vm2307 = vcmask 216256
        %2308 = vst.msk [vmem:[#allocation5] sm:$0xf] %vm2307, %v2212
        %2309 = vst.msk [vmem:[#allocation5 + $0xc] sm:$0xf] %vm2307, %v2214
        %2310 = vst.msk [vmem:[#allocation5 + $0x18] sm:$0xf] %vm2307, %v2216
        %2311 = vst.msk [vmem:[#allocation5 + $0x24] sm:$0xf] %vm2307, %v2218
        %2312 = vst.msk [vmem:[#allocation5 + $0x30] sm:$0xf] %vm2307, %v2220
        %2313 = vst.msk [vmem:[#allocation5 + $0x3c] sm:$0xf] %vm2307, %v2222
        %2314 = vst.msk [vmem:[#allocation5 + $0x48] sm:$0xf] %vm2307, %v2224
        %2315 = vst.msk [vmem:[#allocation5 + $0x54] sm:$0xf] %vm2307, %v2226
        %2316 = vst.msk [vmem:[#allocation5 + $0x60] sm:$0xf] %vm2307, %v2228
        %2317 = vst.msk [vmem:[#allocation5 + $0x6c] sm:$0xf] %vm2307, %v2230
        %2318 = vst.msk [vmem:[#allocation5 + $0x78] sm:$0xf] %vm2307, %v2232
        %2319 = vst.msk [vmem:[#allocation5 + $0x84] sm:$0xf] %vm2307, %v2234
        %2320 = vst.msk [vmem:[#allocation5 + $0x90] sm:$0xf] %vm2307, %v2236
        %2321 = vst.msk [vmem:[#allocation5 + $0x9c] sm:$0xf] %vm2307, %v2238
        %2322 = vst.msk [vmem:[#allocation5 + $0xa8] sm:$0xf] %vm2307, %v2240
        %2323 = vst.msk [vmem:[#allocation5 + $0xb4] sm:$0xf] %vm2307, %v2242
        %2324 = vst.msk [vmem:[#allocation5 + $0xc0] sm:$0xf] %vm2307, %v2244
        %2325 = vst.msk [vmem:[#allocation5 + $0xcc] sm:$0xf] %vm2307, %v2246
        %2326 = vst.msk [vmem:[#allocation5 + $0xd8] sm:$0xf] %vm2307, %v2248
        %2327 = vst.msk [vmem:[#allocation5 + $0xe4] sm:$0xf] %vm2307, %v2250
        %2328 = vst.msk [vmem:[#allocation5 + $0xf0] sm:$0xf] %vm2307, %v2252
        %2329 = vst.msk [vmem:[#allocation5 + $0xfc] sm:$0xf] %vm2307, %v2254
        %2330 = vst.msk [vmem:[#allocation5 + $0x108] sm:$0xf] %vm2307, %v2256
        %2331 = vst.msk [vmem:[#allocation5 + $0x114] sm:$0xf] %vm2307, %v2258
        %2332 = vst.msk [vmem:[#allocation5 + $0x120] sm:$0xf] %vm2307, %v2260
        %2333 = vst.msk [vmem:[#allocation5 + $0x12c] sm:$0xf] %vm2307, %v2262
        %2334 = vst.msk [vmem:[#allocation5 + $0x138] sm:$0xf] %vm2307, %v2264
        %2335 = vst.msk [vmem:[#allocation5 + $0x144] sm:$0xf] %vm2307, %v2266
        %2336 = vst.msk [vmem:[#allocation5 + $0x150] sm:$0xf] %vm2307, %v2268
        %2337 = vst.msk [vmem:[#allocation5 + $0x15c] sm:$0xf] %vm2307, %v2270
        %2338 = vst.msk [vmem:[#allocation5 + $0x168] sm:$0xf] %vm2307, %v2272
        %2339 = vst.msk [vmem:[#allocation5 + $0x174] sm:$0xf] %vm2307, %v2274
        %v2340 = vld [vmem:[#allocation5] sm:$0xf]
        %v2341 = vld [vmem:[#allocation5 + $0xc] sm:$0xf]
        %v2342 = vld [vmem:[#allocation5 + $0x18] sm:$0xf]
        %v2343 = vld [vmem:[#allocation5 + $0x24] sm:$0xf]
        %v2344 = vld [vmem:[#allocation5 + $0x30] sm:$0xf]
        %v2345 = vld [vmem:[#allocation5 + $0x3c] sm:$0xf]
        %v2346 = vld [vmem:[#allocation5 + $0x48] sm:$0xf]
        %v2347 = vld [vmem:[#allocation5 + $0x54] sm:$0xf]
        %v2348 = vld [vmem:[#allocation5 + $0x60] sm:$0xf]
        %v2349 = vld [vmem:[#allocation5 + $0x6c] sm:$0xf]
        %v2350 = vld [vmem:[#allocation5 + $0x78] sm:$0xf]
        %v2351 = vld [vmem:[#allocation5 + $0x84] sm:$0xf]
        %v2352 = vld [vmem:[#allocation5 + $0x90] sm:$0xf]
        %v2353 = vld [vmem:[#allocation5 + $0x9c] sm:$0xf]
        %v2354 = vld [vmem:[#allocation5 + $0xa8] sm:$0xf]
        %v2355 = vld [vmem:[#allocation5 + $0xb4] sm:$0xf]
        %v2356 = vld [vmem:[#allocation5 + $0xc0] sm:$0xf]
        %v2357 = vld [vmem:[#allocation5 + $0xcc] sm:$0xf]
        %v2358 = vld [vmem:[#allocation5 + $0xd8] sm:$0xf]
        %v2359 = vld [vmem:[#allocation5 + $0xe4] sm:$0xf]
        %v2360 = vld [vmem:[#allocation5 + $0xf0] sm:$0xf]
        %v2361 = vld [vmem:[#allocation5 + $0xfc] sm:$0xf]
        %v2362 = vld [vmem:[#allocation5 + $0x108] sm:$0xf]
        %v2363 = vld [vmem:[#allocation5 + $0x114] sm:$0xf]
        %v2364 = vld [vmem:[#allocation5 + $0x120] sm:$0xf]
        %v2365 = vld [vmem:[#allocation5 + $0x12c] sm:$0xf]
        %v2366 = vld [vmem:[#allocation5 + $0x138] sm:$0xf]
        %v2367 = vld [vmem:[#allocation5 + $0x144] sm:$0xf]
        %v2368 = vld [vmem:[#allocation5 + $0x150] sm:$0xf]
        %v2369 = vld [vmem:[#allocation5 + $0x15c] sm:$0xf]
        %v2370 = vld [vmem:[#allocation5 + $0x168] sm:$0xf]
        %v2371 = vld [vmem:[#allocation5 + $0x174] sm:$0xf]
        %v2372 = vld [vmem:[%s1] sm:$0xf]
        %v2373 = vld [vmem:[%s1 + $0x4] sm:$0xf]
        %v2374 = vld [vmem:[%s1 + $0x8] sm:$0xf]
        %v2375 = vld [vmem:[%s1 + $0xc] sm:$0x3]
        %v2376 = vld [vmem:[%s2] sm:$0x1]
        %v2378 = vperm.slane %v2376, 0
        %v2412 = vunpack.c.l.b16 %v2340
        %v2413 = vunpack.c.l.b16 %v2341
        %v2414 = vunpack.c.l.b16 %v2342
        %v2415 = vunpack.c.l.b16 %v2343
        %v2416 = vunpack.c.l.b16 %v2344
        %v2417 = vunpack.c.l.b16 %v2345
        %v2418 = vunpack.c.l.b16 %v2346
        %v2419 = vunpack.c.l.b16 %v2347
        %v2420 = vunpack.c.l.b16 %v2348
        %v2421 = vunpack.c.l.b16 %v2349
        %v2422 = vunpack.c.l.b16 %v2350
        %v2423 = vunpack.c.l.b16 %v2351
        %v2424 = vunpack.c.l.b16 %v2352
        %v2425 = vunpack.c.l.b16 %v2353
        %v2426 = vunpack.c.l.b16 %v2354
        %v2427 = vunpack.c.l.b16 %v2355
        %v2428 = vunpack.c.l.b16 %v2356
        %v2429 = vunpack.c.l.b16 %v2357
        %v2430 = vunpack.c.l.b16 %v2358
        %v2431 = vunpack.c.l.b16 %v2359
        %v2432 = vunpack.c.l.b16 %v2360
        %v2433 = vunpack.c.l.b16 %v2361
        %v2434 = vunpack.c.l.b16 %v2362
        %v2435 = vunpack.c.l.b16 %v2363
        %v2436 = vunpack.c.l.b16 %v2364
        %v2437 = vunpack.c.l.b16 %v2365
        %v2438 = vunpack.c.l.b16 %v2366
        %v2439 = vunpack.c.l.b16 %v2367
        %v2440 = vunpack.c.l.b16 %v2368
        %v2441 = vunpack.c.l.b16 %v2369
        %v2442 = vunpack.c.l.b16 %v2370
        %v2443 = vunpack.c.l.b16 %v2371
        %v2444 = vpack.c.b16 %v2413, %v2412
        %v2445 = vpack.c.b16 %v2415, %v2414
        %v2446 = vpack.c.b16 %v2417, %v2416
        %v2447 = vpack.c.b16 %v2419, %v2418
        %v2448 = vpack.c.b16 %v2421, %v2420
        %v2449 = vpack.c.b16 %v2423, %v2422
        %v2450 = vpack.c.b16 %v2425, %v2424
        %v2451 = vpack.c.b16 %v2427, %v2426
        %v2452 = vpack.c.b16 %v2429, %v2428
        %v2453 = vpack.c.b16 %v2431, %v2430
        %v2454 = vpack.c.b16 %v2433, %v2432
        %v2455 = vpack.c.b16 %v2435, %v2434
        %v2456 = vpack.c.b16 %v2437, %v2436
        %v2457 = vpack.c.b16 %v2439, %v2438
        %v2458 = vpack.c.b16 %v2441, %v2440
        %v2459 = vpack.c.b16 %v2443, %v2442
        %v2464 = vunpack.c.l.b16 %v2372
        %v2465 = vunpack.c.l.b16 %v2373
        %v2466 = vunpack.c.l.b16 %v2374
        %v2467 = vunpack.c.l.b16 %v2375
        %v2468 = vpack.c.b16 %v2465, %v2464
        %v2469 = vpack.c.b16 %v2467, %v2466
        %vm2471 = vcmask 220160
        %v2473 = vsel %vm2471, %v2444, 0
        %v2476 = vsel %vm2471, %v2445, 0
        %v2479 = vsel %vm2471, %v2446, 0
        %v2482 = vsel %vm2471, %v2447, 0
        %v2485 = vsel %vm2471, %v2448, 0
        %v2488 = vsel %vm2471, %v2449, 0
        %v2491 = vsel %vm2471, %v2450, 0
        %v2494 = vsel %vm2471, %v2451, 0
        %v2497 = vsel %vm2471, %v2452, 0
        %v2500 = vsel %vm2471, %v2453, 0
        %v2503 = vsel %vm2471, %v2454, 0
        %v2506 = vsel %vm2471, %v2455, 0
        %v2509 = vsel %vm2471, %v2456, 0
        %v2512 = vsel %vm2471, %v2457, 0
        %v2515 = vsel %vm2471, %v2458, 0
        %v2518 = vsel %vm2471, %v2459, 0
        %vm2520 = vcmask 1044480
        %vm2521 = vcmask 1045504
        %v2522 = vsel %vm2520, 4294967295, 65535
        %v2523 = vsel %vm2521, %v2522, 0
        %v2525 = vand.u32 %v2469, %v2523
        %2527 = vmatpush.bf16.msra.mxu0 0
        %2528 = vmatpush.bf16.msra.mxu0 0
        %2529 = vmatpush.bf16.msra.mxu0 0
        %2530 = vmatpush.bf16.msra.mxu0 0
        %2531 = vmatpush.bf16.msra.mxu0 0
        %2532 = vmatpush.bf16.msra.mxu0 0
        %2533 = vmatpush.bf16.msra.mxu0 %v2525
        %2534 = vmatpush.bf16.msra.mxu0 %v2468
        %2535 = vmatmul.bf16.gmra.mxu0 %v2473
        %v2536 = vpop.f32.mrf.mxu0
        %v2537 = vadd.f32 %v2378, %v2536
        %v2538 = vpop.f32.mrf.mxu0
        %v2539 = vadd.f32 %v2378, %v2538
        %2540 = vmatmul.bf16.gmra.mxu0 %v2476
        %v2541 = vpop.f32.mrf.mxu0
        %v2542 = vadd.f32 %v2378, %v2541
        %v2543 = vpop.f32.mrf.mxu0
        %v2544 = vadd.f32 %v2378, %v2543
        %2545 = vmatmul.bf16.gmra.mxu0 %v2479
        %v2546 = vpop.f32.mrf.mxu0
        %v2547 = vadd.f32 %v2378, %v2546
        %v2548 = vpop.f32.mrf.mxu0
        %v2549 = vadd.f32 %v2378, %v2548
        %2550 = vmatmul.bf16.gmra.mxu0 %v2482
        %v2551 = vpop.f32.mrf.mxu0
        %v2552 = vadd.f32 %v2378, %v2551
        %v2553 = vpop.f32.mrf.mxu0
        %v2554 = vadd.f32 %v2378, %v2553
        %2555 = vmatmul.bf16.gmra.mxu0 %v2485
        %v2556 = vpop.f32.mrf.mxu0
        %v2557 = vadd.f32 %v2378, %v2556
        %v2558 = vpop.f32.mrf.mxu0
        %v2559 = vadd.f32 %v2378, %v2558
        %2560 = vmatmul.bf16.gmra.mxu0 %v2488
        %v2561 = vpop.f32.mrf.mxu0
        %v2562 = vadd.f32 %v2378, %v2561
        %v2563 = vpop.f32.mrf.mxu0
        %v2564 = vadd.f32 %v2378, %v2563
        %2565 = vmatmul.bf16.gmra.mxu0 %v2491
        %v2566 = vpop.f32.mrf.mxu0
        %v2567 = vadd.f32 %v2378, %v2566
        %v2568 = vpop.f32.mrf.mxu0
        %v2569 = vadd.f32 %v2378, %v2568
        %2570 = vmatmul.bf16.gmra.mxu0 %v2494
        %v2571 = vpop.f32.mrf.mxu0
        %v2572 = vadd.f32 %v2378, %v2571
        %v2573 = vpop.f32.mrf.mxu0
        %v2574 = vadd.f32 %v2378, %v2573
        %2575 = vmatmul.bf16.gmra.mxu0 %v2497
        %v2576 = vpop.f32.mrf.mxu0
        %v2577 = vadd.f32 %v2378, %v2576
        %v2578 = vpop.f32.mrf.mxu0
        %v2579 = vadd.f32 %v2378, %v2578
        %2580 = vmatmul.bf16.gmra.mxu0 %v2500
        %v2581 = vpop.f32.mrf.mxu0
        %v2582 = vadd.f32 %v2378, %v2581
        %v2583 = vpop.f32.mrf.mxu0
        %v2584 = vadd.f32 %v2378, %v2583
        %2585 = vmatmul.bf16.gmra.mxu0 %v2503
        %v2586 = vpop.f32.mrf.mxu0
        %v2587 = vadd.f32 %v2378, %v2586
        %v2588 = vpop.f32.mrf.mxu0
        %v2589 = vadd.f32 %v2378, %v2588
        %2590 = vmatmul.bf16.gmra.mxu0 %v2506
        %v2591 = vpop.f32.mrf.mxu0
        %v2592 = vadd.f32 %v2378, %v2591
        %v2593 = vpop.f32.mrf.mxu0
        %v2594 = vadd.f32 %v2378, %v2593
        %2595 = vmatmul.bf16.gmra.mxu0 %v2509
        %v2596 = vpop.f32.mrf.mxu0
        %v2597 = vadd.f32 %v2378, %v2596
        %v2598 = vpop.f32.mrf.mxu0
        %v2599 = vadd.f32 %v2378, %v2598
        %2600 = vmatmul.bf16.gmra.mxu0 %v2512
        %v2601 = vpop.f32.mrf.mxu0
        %v2602 = vadd.f32 %v2378, %v2601
        %v2603 = vpop.f32.mrf.mxu0
        %v2604 = vadd.f32 %v2378, %v2603
        %2605 = vmatmul.bf16.gmra.mxu0 %v2515
        %v2606 = vpop.f32.mrf.mxu0
        %v2607 = vadd.f32 %v2378, %v2606
        %v2608 = vpop.f32.mrf.mxu0
        %v2609 = vadd.f32 %v2378, %v2608
        %2610 = vmatmul.bf16.gmra.mxu0 %v2518
        %v2611 = vpop.f32.mrf.mxu0
        %v2612 = vadd.f32 %v2378, %v2611
        %v2613 = vpop.f32.mrf.mxu0
        %v2614 = vadd.f32 %v2378, %v2613
        %2615 = vdwg.mxu0
        %v2616 = vmax.f32 %v2537, 0.0
        %v2617 = vmax.f32 %v2539, 0.0
        %v2618 = vmax.f32 %v2542, 0.0
        %v2619 = vmax.f32 %v2544, 0.0
        %v2620 = vmax.f32 %v2547, 0.0
        %v2621 = vmax.f32 %v2549, 0.0
        %v2622 = vmax.f32 %v2552, 0.0
        %v2623 = vmax.f32 %v2554, 0.0
        %v2624 = vmax.f32 %v2557, 0.0
        %v2625 = vmax.f32 %v2559, 0.0
        %v2626 = vmax.f32 %v2562, 0.0
        %v2627 = vmax.f32 %v2564, 0.0
        %v2628 = vmax.f32 %v2567, 0.0
        %v2629 = vmax.f32 %v2569, 0.0
        %v2630 = vmax.f32 %v2572, 0.0
        %v2631 = vmax.f32 %v2574, 0.0
        %v2632 = vmax.f32 %v2577, 0.0
        %v2633 = vmax.f32 %v2579, 0.0
        %v2634 = vmax.f32 %v2582, 0.0
        %v2635 = vmax.f32 %v2584, 0.0
        %v2636 = vmax.f32 %v2587, 0.0
        %v2637 = vmax.f32 %v2589, 0.0
        %v2638 = vmax.f32 %v2592, 0.0
        %v2639 = vmax.f32 %v2594, 0.0
        %v2640 = vmax.f32 %v2597, 0.0
        %v2641 = vmax.f32 %v2599, 0.0
        %v2642 = vmax.f32 %v2602, 0.0
        %v2643 = vmax.f32 %v2604, 0.0
        %v2644 = vmax.f32 %v2607, 0.0
        %v2645 = vmax.f32 %v2609, 0.0
        %v2646 = vmax.f32 %v2612, 0.0
        %v2647 = vmax.f32 %v2614, 0.0
        %vm2648 = vcmask 261120
        %2649 = vst.msk [vmem:[#allocation3] sm:$0xff] %vm2648, 0.0
        %2650 = vst.msk [vmem:[#allocation3 + $0x8] sm:$0xff] %vm2648, 0.0
        %vm2651 = vcmask 254976
        %2652 = vst.msk [vmem:[#allocation3 + $0x10] sm:$0x3] %vm2651, 0.0
        %s2653 = scalar_lea.vmem [#allocation3], 408
        %2654 = vst.msk [vmem:[%s2653] sm:$0xff] %vm2648, 0.0
        %2655 = vst.msk [vmem:[%s2653 + $0x8] sm:$0xff] %vm2648, 0.0
        %2656 = vst.msk [vmem:[%s2653 + $0x10] sm:$0x3] %vm2651, 0.0
        %vm2657 = vcmask 253952
        %2658 = vst.msk [vmem:[#allocation3] sm:$0x1] %vm2657, 0.0
        %2659 = vst.msk [vmem:[#allocation3 + $0x18] sm:$0x1] %vm2657, 0.0
        %2660 = vst.msk [vmem:[#allocation3 + $0x30] sm:$0x1] %vm2657, 0.0
        %2661 = vst.msk [vmem:[#allocation3 + $0x48] sm:$0x1] %vm2657, 0.0
        %2662 = vst.msk [vmem:[#allocation3 + $0x60] sm:$0x1] %vm2657, 0.0
        %2663 = vst.msk [vmem:[#allocation3 + $0x78] sm:$0x1] %vm2657, 0.0
        %2664 = vst.msk [vmem:[#allocation3 + $0x90] sm:$0x1] %vm2657, 0.0
        %2665 = vst.msk [vmem:[#allocation3 + $0xa8] sm:$0x1] %vm2657, 0.0
        %2666 = vst.msk [vmem:[#allocation3 + $0xc0] sm:$0x1] %vm2657, 0.0
        %2667 = vst.msk [vmem:[#allocation3 + $0xd8] sm:$0x1] %vm2657, 0.0
        %2668 = vst.msk [vmem:[#allocation3 + $0xf0] sm:$0x1] %vm2657, 0.0
        %2669 = vst.msk [vmem:[#allocation3 + $0x108] sm:$0x1] %vm2657, 0.0
        %2670 = vst.msk [vmem:[#allocation3 + $0x120] sm:$0x1] %vm2657, 0.0
        %2671 = vst.msk [vmem:[#allocation3 + $0x138] sm:$0x1] %vm2657, 0.0
        %2672 = vst.msk [vmem:[#allocation3 + $0x150] sm:$0x1] %vm2657, 0.0
        %2673 = vst.msk [vmem:[#allocation3 + $0x168] sm:$0x1] %vm2657, 0.0
        %2674 = vst.msk [vmem:[#allocation3 + $0x180] sm:$0x1] %vm2657, 0.0
        %2675 = vst.msk [vmem:[#allocation3 + $0x198] sm:$0x1] %vm2657, 0.0
        %2676 = vst.msk [vmem:[#allocation3 + $0x11] sm:$0x1] %vm2657, 0.0
        %2677 = vst.msk [vmem:[#allocation3 + $0x29] sm:$0x1] %vm2657, 0.0
        %2678 = vst.msk [vmem:[#allocation3 + $0x41] sm:$0x1] %vm2657, 0.0
        %2679 = vst.msk [vmem:[#allocation3 + $0x59] sm:$0x1] %vm2657, 0.0
        %2680 = vst.msk [vmem:[#allocation3 + $0x71] sm:$0x1] %vm2657, 0.0
        %2681 = vst.msk [vmem:[#allocation3 + $0x89] sm:$0x1] %vm2657, 0.0
        %2682 = vst.msk [vmem:[#allocation3 + $0xa1] sm:$0x1] %vm2657, 0.0
        %2683 = vst.msk [vmem:[#allocation3 + $0xb9] sm:$0x1] %vm2657, 0.0
        %2684 = vst.msk [vmem:[#allocation3 + $0xd1] sm:$0x1] %vm2657, 0.0
        %2685 = vst.msk [vmem:[#allocation3 + $0xe9] sm:$0x1] %vm2657, 0.0
        %2686 = vst.msk [vmem:[#allocation3 + $0x101] sm:$0x1] %vm2657, 0.0
        %2687 = vst.msk [vmem:[#allocation3 + $0x119] sm:$0x1] %vm2657, 0.0
        %2688 = vst.msk [vmem:[#allocation3 + $0x131] sm:$0x1] %vm2657, 0.0
        %2689 = vst.msk [vmem:[#allocation3 + $0x149] sm:$0x1] %vm2657, 0.0
        %2690 = vst.msk [vmem:[#allocation3 + $0x161] sm:$0x1] %vm2657, 0.0
        %2691 = vst.msk [vmem:[#allocation3 + $0x179] sm:$0x1] %vm2657, 0.0
        %2692 = vst.msk [vmem:[#allocation3 + $0x191] sm:$0x1] %vm2657, 0.0
        %2693 = vst.msk [vmem:[#allocation3 + $0x1a9] sm:$0x1] %vm2657, 0.0
        %s2694 = scalar_lea.vmem [#allocation3], 24
        %2695 = vst.msk [vmem:[%s2694 + $0x1] sm:$0xff] %vm2648, %v2616
        %2696 = vst.msk [vmem:[%s2694 + $0x9] sm:$0xff] %vm2648, %v2617
        %2697 = vst.msk [vmem:[%s2694 + $0x19] sm:$0xff] %vm2648, %v2618
        %2698 = vst.msk [vmem:[%s2694 + $0x21] sm:$0xff] %vm2648, %v2619
        %2699 = vst.msk [vmem:[%s2694 + $0x31] sm:$0xff] %vm2648, %v2620
        %2700 = vst.msk [vmem:[%s2694 + $0x39] sm:$0xff] %vm2648, %v2621
        %2701 = vst.msk [vmem:[%s2694 + $0x49] sm:$0xff] %vm2648, %v2622
        %2702 = vst.msk [vmem:[%s2694 + $0x51] sm:$0xff] %vm2648, %v2623
        %2703 = vst.msk [vmem:[%s2694 + $0x61] sm:$0xff] %vm2648, %v2624
        %2704 = vst.msk [vmem:[%s2694 + $0x69] sm:$0xff] %vm2648, %v2625
        %2705 = vst.msk [vmem:[%s2694 + $0x79] sm:$0xff] %vm2648, %v2626
        %2706 = vst.msk [vmem:[%s2694 + $0x81] sm:$0xff] %vm2648, %v2627
        %2707 = vst.msk [vmem:[%s2694 + $0x91] sm:$0xff] %vm2648, %v2628
        %2708 = vst.msk [vmem:[%s2694 + $0x99] sm:$0xff] %vm2648, %v2629
        %2709 = vst.msk [vmem:[%s2694 + $0xa9] sm:$0xff] %vm2648, %v2630
        %2710 = vst.msk [vmem:[%s2694 + $0xb1] sm:$0xff] %vm2648, %v2631
        %2711 = vst.msk [vmem:[%s2694 + $0xc1] sm:$0xff] %vm2648, %v2632
        %2712 = vst.msk [vmem:[%s2694 + $0xc9] sm:$0xff] %vm2648, %v2633
        %2713 = vst.msk [vmem:[%s2694 + $0xd9] sm:$0xff] %vm2648, %v2634
        %2714 = vst.msk [vmem:[%s2694 + $0xe1] sm:$0xff] %vm2648, %v2635
        %2715 = vst.msk [vmem:[%s2694 + $0xf1] sm:$0xff] %vm2648, %v2636
        %2716 = vst.msk [vmem:[%s2694 + $0xf9] sm:$0xff] %vm2648, %v2637
        %2717 = vst.msk [vmem:[%s2694 + $0x109] sm:$0xff] %vm2648, %v2638
        %2718 = vst.msk [vmem:[%s2694 + $0x111] sm:$0xff] %vm2648, %v2639
        %2719 = vst.msk [vmem:[%s2694 + $0x121] sm:$0xff] %vm2648, %v2640
        %2720 = vst.msk [vmem:[%s2694 + $0x129] sm:$0xff] %vm2648, %v2641
        %2721 = vst.msk [vmem:[%s2694 + $0x139] sm:$0xff] %vm2648, %v2642
        %2722 = vst.msk [vmem:[%s2694 + $0x141] sm:$0xff] %vm2648, %v2643
        %2723 = vst.msk [vmem:[%s2694 + $0x151] sm:$0xff] %vm2648, %v2644
        %2724 = vst.msk [vmem:[%s2694 + $0x159] sm:$0xff] %vm2648, %v2645
        %2725 = vst.msk [vmem:[%s2694 + $0x169] sm:$0xff] %vm2648, %v2646
        %2726 = vst.msk [vmem:[%s2694 + $0x171] sm:$0xff] %vm2648, %v2647
        %v2727 = vld [vmem:[#allocation3] sm:$0xff]
        %v2728 = vld [vmem:[#allocation3 + $0x8] sm:$0xff]
        %v2729 = vld [vmem:[#allocation3 + $0x18] sm:$0xff]
        %v2730 = vld [vmem:[#allocation3 + $0x20] sm:$0xff]
        %v2731 = vld [vmem:[#allocation3 + $0x30] sm:$0xff]
        %v2732 = vld [vmem:[#allocation3 + $0x38] sm:$0xff]
        %v2733 = vld [vmem:[#allocation3 + $0x48] sm:$0xff]
        %v2734 = vld [vmem:[#allocation3 + $0x50] sm:$0xff]
        %v2735 = vld [vmem:[#allocation3 + $0x60] sm:$0xff]
        %v2736 = vld [vmem:[#allocation3 + $0x68] sm:$0xff]
        %v2737 = vld [vmem:[#allocation3 + $0x78] sm:$0xff]
        %v2738 = vld [vmem:[#allocation3 + $0x80] sm:$0xff]
        %v2739 = vld [vmem:[#allocation3 + $0x90] sm:$0xff]
        %v2740 = vld [vmem:[#allocation3 + $0x98] sm:$0xff]
        %v2741 = vld [vmem:[#allocation3 + $0xa8] sm:$0xff]
        %v2742 = vld [vmem:[#allocation3 + $0xb0] sm:$0xff]
        %v2743 = vld [vmem:[#allocation3 + $0xc0] sm:$0xff]
        %v2744 = vld [vmem:[#allocation3 + $0xc8] sm:$0xff]
        %v2745 = vld [vmem:[#allocation3 + $0xd8] sm:$0xff]
        %v2746 = vld [vmem:[#allocation3 + $0xe0] sm:$0xff]
        %v2747 = vld [vmem:[#allocation3 + $0xf0] sm:$0xff]
        %v2748 = vld [vmem:[#allocation3 + $0xf8] sm:$0xff]
        %v2749 = vld [vmem:[#allocation3 + $0x108] sm:$0xff]
        %v2750 = vld [vmem:[#allocation3 + $0x110] sm:$0xff]
        %v2751 = vld [vmem:[#allocation3 + $0x120] sm:$0xff]
        %v2752 = vld [vmem:[#allocation3 + $0x128] sm:$0xff]
        %v2753 = vld [vmem:[#allocation3 + $0x138] sm:$0xff]
        %v2754 = vld [vmem:[#allocation3 + $0x140] sm:$0xff]
        %v2755 = vld [vmem:[#allocation3 + $0x150] sm:$0xff]
        %v2756 = vld [vmem:[#allocation3 + $0x158] sm:$0xff]
        %v2757 = vld [vmem:[#allocation3 + $0x168] sm:$0xff]
        %v2758 = vld [vmem:[#allocation3 + $0x170] sm:$0xff]
        %v2759 = vpack.c.bf16 %v2727, %v2727
        %v2760 = vpack.c.bf16 %v2728, %v2728
        %v2761 = vpack.c.bf16 %v2729, %v2729
        %v2762 = vpack.c.bf16 %v2730, %v2730
        %v2763 = vpack.c.bf16 %v2731, %v2731
        %v2764 = vpack.c.bf16 %v2732, %v2732
        %v2765 = vpack.c.bf16 %v2733, %v2733
        %v2766 = vpack.c.bf16 %v2734, %v2734
        %v2767 = vpack.c.bf16 %v2735, %v2735
        %v2768 = vpack.c.bf16 %v2736, %v2736
        %v2769 = vpack.c.bf16 %v2737, %v2737
        %v2770 = vpack.c.bf16 %v2738, %v2738
        %v2771 = vpack.c.bf16 %v2739, %v2739
        %v2772 = vpack.c.bf16 %v2740, %v2740
        %v2773 = vpack.c.bf16 %v2741, %v2741
        %v2774 = vpack.c.bf16 %v2742, %v2742
        %v2775 = vpack.c.bf16 %v2743, %v2743
        %v2776 = vpack.c.bf16 %v2744, %v2744
        %v2777 = vpack.c.bf16 %v2745, %v2745
        %v2778 = vpack.c.bf16 %v2746, %v2746
        %v2779 = vpack.c.bf16 %v2747, %v2747
        %v2780 = vpack.c.bf16 %v2748, %v2748
        %v2781 = vpack.c.bf16 %v2749, %v2749
        %v2782 = vpack.c.bf16 %v2750, %v2750
        %v2783 = vpack.c.bf16 %v2751, %v2751
        %v2784 = vpack.c.bf16 %v2752, %v2752
        %v2785 = vpack.c.bf16 %v2753, %v2753
        %v2786 = vpack.c.bf16 %v2754, %v2754
        %v2787 = vpack.c.bf16 %v2755, %v2755
        %v2788 = vpack.c.bf16 %v2756, %v2756
        %v2789 = vpack.c.bf16 %v2757, %v2757
        %v2790 = vpack.c.bf16 %v2758, %v2758
        %vm2791 = vcmask 257024
        %2792 = vst.msk [vmem:[#allocation5] sm:$0xf] %vm2791, %v2759
        %2793 = vst.msk [vmem:[#allocation5 + $0xc] sm:$0xf] %vm2791, %v2760
        %2794 = vst.msk [vmem:[#allocation5 + $0x18] sm:$0xf] %vm2791, %v2761
        %2795 = vst.msk [vmem:[#allocation5 + $0x24] sm:$0xf] %vm2791, %v2762
        %2796 = vst.msk [vmem:[#allocation5 + $0x30] sm:$0xf] %vm2791, %v2763
        %2797 = vst.msk [vmem:[#allocation5 + $0x3c] sm:$0xf] %vm2791, %v2764
        %2798 = vst.msk [vmem:[#allocation5 + $0x48] sm:$0xf] %vm2791, %v2765
        %2799 = vst.msk [vmem:[#allocation5 + $0x54] sm:$0xf] %vm2791, %v2766
        %2800 = vst.msk [vmem:[#allocation5 + $0x60] sm:$0xf] %vm2791, %v2767
        %2801 = vst.msk [vmem:[#allocation5 + $0x6c] sm:$0xf] %vm2791, %v2768
        %2802 = vst.msk [vmem:[#allocation5 + $0x78] sm:$0xf] %vm2791, %v2769
        %2803 = vst.msk [vmem:[#allocation5 + $0x84] sm:$0xf] %vm2791, %v2770
        %2804 = vst.msk [vmem:[#allocation5 + $0x90] sm:$0xf] %vm2791, %v2771
        %2805 = vst.msk [vmem:[#allocation5 + $0x9c] sm:$0xf] %vm2791, %v2772
        %2806 = vst.msk [vmem:[#allocation5 + $0xa8] sm:$0xf] %vm2791, %v2773
        %2807 = vst.msk [vmem:[#allocation5 + $0xb4] sm:$0xf] %vm2791, %v2774
        %2808 = vst.msk [vmem:[#allocation5 + $0xc0] sm:$0xf] %vm2791, %v2775
        %2809 = vst.msk [vmem:[#allocation5 + $0xcc] sm:$0xf] %vm2791, %v2776
        %2810 = vst.msk [vmem:[#allocation5 + $0xd8] sm:$0xf] %vm2791, %v2777
        %2811 = vst.msk [vmem:[#allocation5 + $0xe4] sm:$0xf] %vm2791, %v2778
        %2812 = vst.msk [vmem:[#allocation5 + $0xf0] sm:$0xf] %vm2791, %v2779
        %2813 = vst.msk [vmem:[#allocation5 + $0xfc] sm:$0xf] %vm2791, %v2780
        %2814 = vst.msk [vmem:[#allocation5 + $0x108] sm:$0xf] %vm2791, %v2781
        %2815 = vst.msk [vmem:[#allocation5 + $0x114] sm:$0xf] %vm2791, %v2782
        %2816 = vst.msk [vmem:[#allocation5 + $0x120] sm:$0xf] %vm2791, %v2783
        %2817 = vst.msk [vmem:[#allocation5 + $0x12c] sm:$0xf] %vm2791, %v2784
        %2818 = vst.msk [vmem:[#allocation5 + $0x138] sm:$0xf] %vm2791, %v2785
        %2819 = vst.msk [vmem:[#allocation5 + $0x144] sm:$0xf] %vm2791, %v2786
        %2820 = vst.msk [vmem:[#allocation5 + $0x150] sm:$0xf] %vm2791, %v2787
        %2821 = vst.msk [vmem:[#allocation5 + $0x15c] sm:$0xf] %vm2791, %v2788
        %2822 = vst.msk [vmem:[#allocation5 + $0x168] sm:$0xf] %vm2791, %v2789
        %2823 = vst.msk [vmem:[#allocation5 + $0x174] sm:$0xf] %vm2791, %v2790
        %v2824 = vld [vmem:[#allocation3 + $0x1] sm:$0xff]
        %v2825 = vld [vmem:[#allocation3 + $0x9] sm:$0xff]
        %v2826 = vld [vmem:[#allocation3 + $0x19] sm:$0xff]
        %v2827 = vld [vmem:[#allocation3 + $0x21] sm:$0xff]
        %v2828 = vld [vmem:[#allocation3 + $0x31] sm:$0xff]
        %v2829 = vld [vmem:[#allocation3 + $0x39] sm:$0xff]
        %v2830 = vld [vmem:[#allocation3 + $0x49] sm:$0xff]
        %v2831 = vld [vmem:[#allocation3 + $0x51] sm:$0xff]
        %v2832 = vld [vmem:[#allocation3 + $0x61] sm:$0xff]
        %v2833 = vld [vmem:[#allocation3 + $0x69] sm:$0xff]
        %v2834 = vld [vmem:[#allocation3 + $0x79] sm:$0xff]
        %v2835 = vld [vmem:[#allocation3 + $0x81] sm:$0xff]
        %v2836 = vld [vmem:[#allocation3 + $0x91] sm:$0xff]
        %v2837 = vld [vmem:[#allocation3 + $0x99] sm:$0xff]
        %v2838 = vld [vmem:[#allocation3 + $0xa9] sm:$0xff]
        %v2839 = vld [vmem:[#allocation3 + $0xb1] sm:$0xff]
        %v2840 = vld [vmem:[#allocation3 + $0xc1] sm:$0xff]
        %v2841 = vld [vmem:[#allocation3 + $0xc9] sm:$0xff]
        %v2842 = vld [vmem:[#allocation3 + $0xd9] sm:$0xff]
        %v2843 = vld [vmem:[#allocation3 + $0xe1] sm:$0xff]
        %v2844 = vld [vmem:[#allocation3 + $0xf1] sm:$0xff]
        %v2845 = vld [vmem:[#allocation3 + $0xf9] sm:$0xff]
        %v2846 = vld [vmem:[#allocation3 + $0x109] sm:$0xff]
        %v2847 = vld [vmem:[#allocation3 + $0x111] sm:$0xff]
        %v2848 = vld [vmem:[#allocation3 + $0x121] sm:$0xff]
        %v2849 = vld [vmem:[#allocation3 + $0x129] sm:$0xff]
        %v2850 = vld [vmem:[#allocation3 + $0x139] sm:$0xff]
        %v2851 = vld [vmem:[#allocation3 + $0x141] sm:$0xff]
        %v2852 = vld [vmem:[#allocation3 + $0x151] sm:$0xff]
        %v2853 = vld [vmem:[#allocation3 + $0x159] sm:$0xff]
        %v2854 = vld [vmem:[#allocation3 + $0x169] sm:$0xff]
        %v2855 = vld [vmem:[#allocation3 + $0x171] sm:$0xff]
        %v2856 = vpack.c.bf16 %v2824, %v2824
        %v2857 = vpack.c.bf16 %v2825, %v2825
        %v2858 = vpack.c.bf16 %v2826, %v2826
        %v2859 = vpack.c.bf16 %v2827, %v2827
        %v2860 = vpack.c.bf16 %v2828, %v2828
        %v2861 = vpack.c.bf16 %v2829, %v2829
        %v2862 = vpack.c.bf16 %v2830, %v2830
        %v2863 = vpack.c.bf16 %v2831, %v2831
        %v2864 = vpack.c.bf16 %v2832, %v2832
        %v2865 = vpack.c.bf16 %v2833, %v2833
        %v2866 = vpack.c.bf16 %v2834, %v2834
        %v2867 = vpack.c.bf16 %v2835, %v2835
        %v2868 = vpack.c.bf16 %v2836, %v2836
        %v2869 = vpack.c.bf16 %v2837, %v2837
        %v2870 = vpack.c.bf16 %v2838, %v2838
        %v2871 = vpack.c.bf16 %v2839, %v2839
        %v2872 = vpack.c.bf16 %v2840, %v2840
        %v2873 = vpack.c.bf16 %v2841, %v2841
        %v2874 = vpack.c.bf16 %v2842, %v2842
        %v2875 = vpack.c.bf16 %v2843, %v2843
        %v2876 = vpack.c.bf16 %v2844, %v2844
        %v2877 = vpack.c.bf16 %v2845, %v2845
        %v2878 = vpack.c.bf16 %v2846, %v2846
        %v2879 = vpack.c.bf16 %v2847, %v2847
        %v2880 = vpack.c.bf16 %v2848, %v2848
        %v2881 = vpack.c.bf16 %v2849, %v2849
        %v2882 = vpack.c.bf16 %v2850, %v2850
        %v2883 = vpack.c.bf16 %v2851, %v2851
        %v2884 = vpack.c.bf16 %v2852, %v2852
        %v2885 = vpack.c.bf16 %v2853, %v2853
        %v2886 = vpack.c.bf16 %v2854, %v2854
        %v2887 = vpack.c.bf16 %v2855, %v2855
        %2920 = vrot.lane.b32.xlu0 %v2856, 32
        %v2921 = vpop.permute.xlu0 %2920
        %2922 = vrot.lane.b32.xlu0 %v2857, 32
        %v2923 = vpop.permute.xlu0 %2922
        %2924 = vrot.lane.b32.xlu0 %v2858, 32
        %v2925 = vpop.permute.xlu0 %2924
        %2926 = vrot.lane.b32.xlu0 %v2859, 32
        %v2927 = vpop.permute.xlu0 %2926
        %2928 = vrot.lane.b32.xlu0 %v2860, 32
        %v2929 = vpop.permute.xlu0 %2928
        %2930 = vrot.lane.b32.xlu0 %v2861, 32
        %v2931 = vpop.permute.xlu0 %2930
        %2932 = vrot.lane.b32.xlu0 %v2862, 32
        %v2933 = vpop.permute.xlu0 %2932
        %2934 = vrot.lane.b32.xlu0 %v2863, 32
        %v2935 = vpop.permute.xlu0 %2934
        %2936 = vrot.lane.b32.xlu0 %v2864, 32
        %v2937 = vpop.permute.xlu0 %2936
        %2938 = vrot.lane.b32.xlu0 %v2865, 32
        %v2939 = vpop.permute.xlu0 %2938
        %2940 = vrot.lane.b32.xlu0 %v2866, 32
        %v2941 = vpop.permute.xlu0 %2940
        %2942 = vrot.lane.b32.xlu0 %v2867, 32
        %v2943 = vpop.permute.xlu0 %2942
        %2944 = vrot.lane.b32.xlu0 %v2868, 32
        %v2945 = vpop.permute.xlu0 %2944
        %2946 = vrot.lane.b32.xlu0 %v2869, 32
        %v2947 = vpop.permute.xlu0 %2946
        %2948 = vrot.lane.b32.xlu0 %v2870, 32
        %v2949 = vpop.permute.xlu0 %2948
        %2950 = vrot.lane.b32.xlu0 %v2871, 32
        %v2951 = vpop.permute.xlu0 %2950
        %2952 = vrot.lane.b32.xlu0 %v2872, 32
        %v2953 = vpop.permute.xlu0 %2952
        %2954 = vrot.lane.b32.xlu0 %v2873, 32
        %v2955 = vpop.permute.xlu0 %2954
        %2956 = vrot.lane.b32.xlu0 %v2874, 32
        %v2957 = vpop.permute.xlu0 %2956
        %2958 = vrot.lane.b32.xlu0 %v2875, 32
        %v2959 = vpop.permute.xlu0 %2958
        %2960 = vrot.lane.b32.xlu0 %v2876, 32
        %v2961 = vpop.permute.xlu0 %2960
        %2962 = vrot.lane.b32.xlu0 %v2877, 32
        %v2963 = vpop.permute.xlu0 %2962
        %2964 = vrot.lane.b32.xlu0 %v2878, 32
        %v2965 = vpop.permute.xlu0 %2964
        %2966 = vrot.lane.b32.xlu0 %v2879, 32
        %v2967 = vpop.permute.xlu0 %2966
        %2968 = vrot.lane.b32.xlu0 %v2880, 32
        %v2969 = vpop.permute.xlu0 %2968
        %2970 = vrot.lane.b32.xlu0 %v2881, 32
        %v2971 = vpop.permute.xlu0 %2970
        %2972 = vrot.lane.b32.xlu0 %v2882, 32
        %v2973 = vpop.permute.xlu0 %2972
        %2974 = vrot.lane.b32.xlu0 %v2883, 32
        %v2975 = vpop.permute.xlu0 %2974
        %2976 = vrot.lane.b32.xlu0 %v2884, 32
        %v2977 = vpop.permute.xlu0 %2976
        %2978 = vrot.lane.b32.xlu0 %v2885, 32
        %v2979 = vpop.permute.xlu0 %2978
        %2980 = vrot.lane.b32.xlu0 %v2886, 32
        %v2981 = vpop.permute.xlu0 %2980
        %2982 = vrot.lane.b32.xlu0 %v2887, 32
        %v2983 = vpop.permute.xlu0 %2982
        %vm3016 = vcmask 519424
        %3017 = vst.msk [vmem:[#allocation5] sm:$0xf] %vm3016, %v2921
        %3018 = vst.msk [vmem:[#allocation5 + $0xc] sm:$0xf] %vm3016, %v2923
        %3019 = vst.msk [vmem:[#allocation5 + $0x18] sm:$0xf] %vm3016, %v2925
        %3020 = vst.msk [vmem:[#allocation5 + $0x24] sm:$0xf] %vm3016, %v2927
        %3021 = vst.msk [vmem:[#allocation5 + $0x30] sm:$0xf] %vm3016, %v2929
        %3022 = vst.msk [vmem:[#allocation5 + $0x3c] sm:$0xf] %vm3016, %v2931
        %3023 = vst.msk [vmem:[#allocation5 + $0x48] sm:$0xf] %vm3016, %v2933
        %3024 = vst.msk [vmem:[#allocation5 + $0x54] sm:$0xf] %vm3016, %v2935
        %3025 = vst.msk [vmem:[#allocation5 + $0x60] sm:$0xf] %vm3016, %v2937
        %3026 = vst.msk [vmem:[#allocation5 + $0x6c] sm:$0xf] %vm3016, %v2939
        %3027 = vst.msk [vmem:[#allocation5 + $0x78] sm:$0xf] %vm3016, %v2941
        %3028 = vst.msk [vmem:[#allocation5 + $0x84] sm:$0xf] %vm3016, %v2943
        %3029 = vst.msk [vmem:[#allocation5 + $0x90] sm:$0xf] %vm3016, %v2945
        %3030 = vst.msk [vmem:[#allocation5 + $0x9c] sm:$0xf] %vm3016, %v2947
        %3031 = vst.msk [vmem:[#allocation5 + $0xa8] sm:$0xf] %vm3016, %v2949
        %3032 = vst.msk [vmem:[#allocation5 + $0xb4] sm:$0xf] %vm3016, %v2951
        %3033 = vst.msk [vmem:[#allocation5 + $0xc0] sm:$0xf] %vm3016, %v2953
        %3034 = vst.msk [vmem:[#allocation5 + $0xcc] sm:$0xf] %vm3016, %v2955
        %3035 = vst.msk [vmem:[#allocation5 + $0xd8] sm:$0xf] %vm3016, %v2957
        %3036 = vst.msk [vmem:[#allocation5 + $0xe4] sm:$0xf] %vm3016, %v2959
        %3037 = vst.msk [vmem:[#allocation5 + $0xf0] sm:$0xf] %vm3016, %v2961
        %3038 = vst.msk [vmem:[#allocation5 + $0xfc] sm:$0xf] %vm3016, %v2963
        %3039 = vst.msk [vmem:[#allocation5 + $0x108] sm:$0xf] %vm3016, %v2965
        %3040 = vst.msk [vmem:[#allocation5 + $0x114] sm:$0xf] %vm3016, %v2967
        %3041 = vst.msk [vmem:[#allocation5 + $0x120] sm:$0xf] %vm3016, %v2969
        %3042 = vst.msk [vmem:[#allocation5 + $0x12c] sm:$0xf] %vm3016, %v2971
        %3043 = vst.msk [vmem:[#allocation5 + $0x138] sm:$0xf] %vm3016, %v2973
        %3044 = vst.msk [vmem:[#allocation5 + $0x144] sm:$0xf] %vm3016, %v2975
        %3045 = vst.msk [vmem:[#allocation5 + $0x150] sm:$0xf] %vm3016, %v2977
        %3046 = vst.msk [vmem:[#allocation5 + $0x15c] sm:$0xf] %vm3016, %v2979
        %3047 = vst.msk [vmem:[#allocation5 + $0x168] sm:$0xf] %vm3016, %v2981
        %3048 = vst.msk [vmem:[#allocation5 + $0x174] sm:$0xf] %vm3016, %v2983
        %v3049 = vld [vmem:[#allocation3 + $0x2] sm:$0xff]
        %v3050 = vld [vmem:[#allocation3 + $0xa] sm:$0xff]
        %v3051 = vld [vmem:[#allocation3 + $0x1a] sm:$0xff]
        %v3052 = vld [vmem:[#allocation3 + $0x22] sm:$0xff]
        %v3053 = vld [vmem:[#allocation3 + $0x32] sm:$0xff]
        %v3054 = vld [vmem:[#allocation3 + $0x3a] sm:$0xff]
        %v3055 = vld [vmem:[#allocation3 + $0x4a] sm:$0xff]
        %v3056 = vld [vmem:[#allocation3 + $0x52] sm:$0xff]
        %v3057 = vld [vmem:[#allocation3 + $0x62] sm:$0xff]
        %v3058 = vld [vmem:[#allocation3 + $0x6a] sm:$0xff]
        %v3059 = vld [vmem:[#allocation3 + $0x7a] sm:$0xff]
        %v3060 = vld [vmem:[#allocation3 + $0x82] sm:$0xff]
        %v3061 = vld [vmem:[#allocation3 + $0x92] sm:$0xff]
        %v3062 = vld [vmem:[#allocation3 + $0x9a] sm:$0xff]
        %v3063 = vld [vmem:[#allocation3 + $0xaa] sm:$0xff]
        %v3064 = vld [vmem:[#allocation3 + $0xb2] sm:$0xff]
        %v3065 = vld [vmem:[#allocation3 + $0xc2] sm:$0xff]
        %v3066 = vld [vmem:[#allocation3 + $0xca] sm:$0xff]
        %v3067 = vld [vmem:[#allocation3 + $0xda] sm:$0xff]
        %v3068 = vld [vmem:[#allocation3 + $0xe2] sm:$0xff]
        %v3069 = vld [vmem:[#allocation3 + $0xf2] sm:$0xff]
        %v3070 = vld [vmem:[#allocation3 + $0xfa] sm:$0xff]
        %v3071 = vld [vmem:[#allocation3 + $0x10a] sm:$0xff]
        %v3072 = vld [vmem:[#allocation3 + $0x112] sm:$0xff]
        %v3073 = vld [vmem:[#allocation3 + $0x122] sm:$0xff]
        %v3074 = vld [vmem:[#allocation3 + $0x12a] sm:$0xff]
        %v3075 = vld [vmem:[#allocation3 + $0x13a] sm:$0xff]
        %v3076 = vld [vmem:[#allocation3 + $0x142] sm:$0xff]
        %v3077 = vld [vmem:[#allocation3 + $0x152] sm:$0xff]
        %v3078 = vld [vmem:[#allocation3 + $0x15a] sm:$0xff]
        %v3079 = vld [vmem:[#allocation3 + $0x16a] sm:$0xff]
        %v3080 = vld [vmem:[#allocation3 + $0x172] sm:$0xff]
        %v3081 = vpack.c.bf16 %v3049, %v3049
        %v3082 = vpack.c.bf16 %v3050, %v3050
        %v3083 = vpack.c.bf16 %v3051, %v3051
        %v3084 = vpack.c.bf16 %v3052, %v3052
        %v3085 = vpack.c.bf16 %v3053, %v3053
        %v3086 = vpack.c.bf16 %v3054, %v3054
        %v3087 = vpack.c.bf16 %v3055, %v3055
        %v3088 = vpack.c.bf16 %v3056, %v3056
        %v3089 = vpack.c.bf16 %v3057, %v3057
        %v3090 = vpack.c.bf16 %v3058, %v3058
        %v3091 = vpack.c.bf16 %v3059, %v3059
        %v3092 = vpack.c.bf16 %v3060, %v3060
        %v3093 = vpack.c.bf16 %v3061, %v3061
        %v3094 = vpack.c.bf16 %v3062, %v3062
        %v3095 = vpack.c.bf16 %v3063, %v3063
        %v3096 = vpack.c.bf16 %v3064, %v3064
        %v3097 = vpack.c.bf16 %v3065, %v3065
        %v3098 = vpack.c.bf16 %v3066, %v3066
        %v3099 = vpack.c.bf16 %v3067, %v3067
        %v3100 = vpack.c.bf16 %v3068, %v3068
        %v3101 = vpack.c.bf16 %v3069, %v3069
        %v3102 = vpack.c.bf16 %v3070, %v3070
        %v3103 = vpack.c.bf16 %v3071, %v3071
        %v3104 = vpack.c.bf16 %v3072, %v3072
        %v3105 = vpack.c.bf16 %v3073, %v3073
        %v3106 = vpack.c.bf16 %v3074, %v3074
        %v3107 = vpack.c.bf16 %v3075, %v3075
        %v3108 = vpack.c.bf16 %v3076, %v3076
        %v3109 = vpack.c.bf16 %v3077, %v3077
        %v3110 = vpack.c.bf16 %v3078, %v3078
        %v3111 = vpack.c.bf16 %v3079, %v3079
        %v3112 = vpack.c.bf16 %v3080, %v3080
        %3145 = vrot.lane.b32.xlu0 %v3081, 64
        %v3146 = vpop.permute.xlu0 %3145
        %3147 = vrot.lane.b32.xlu0 %v3082, 64
        %v3148 = vpop.permute.xlu0 %3147
        %3149 = vrot.lane.b32.xlu0 %v3083, 64
        %v3150 = vpop.permute.xlu0 %3149
        %3151 = vrot.lane.b32.xlu0 %v3084, 64
        %v3152 = vpop.permute.xlu0 %3151
        %3153 = vrot.lane.b32.xlu0 %v3085, 64
        %v3154 = vpop.permute.xlu0 %3153
        %3155 = vrot.lane.b32.xlu0 %v3086, 64
        %v3156 = vpop.permute.xlu0 %3155
        %3157 = vrot.lane.b32.xlu0 %v3087, 64
        %v3158 = vpop.permute.xlu0 %3157
        %3159 = vrot.lane.b32.xlu0 %v3088, 64
        %v3160 = vpop.permute.xlu0 %3159
        %3161 = vrot.lane.b32.xlu0 %v3089, 64
        %v3162 = vpop.permute.xlu0 %3161
        %3163 = vrot.lane.b32.xlu0 %v3090, 64
        %v3164 = vpop.permute.xlu0 %3163
        %3165 = vrot.lane.b32.xlu0 %v3091, 64
        %v3166 = vpop.permute.xlu0 %3165
        %3167 = vrot.lane.b32.xlu0 %v3092, 64
        %v3168 = vpop.permute.xlu0 %3167
        %3169 = vrot.lane.b32.xlu0 %v3093, 64
        %v3170 = vpop.permute.xlu0 %3169
        %3171 = vrot.lane.b32.xlu0 %v3094, 64
        %v3172 = vpop.permute.xlu0 %3171
        %3173 = vrot.lane.b32.xlu0 %v3095, 64
        %v3174 = vpop.permute.xlu0 %3173
        %3175 = vrot.lane.b32.xlu0 %v3096, 64
        %v3176 = vpop.permute.xlu0 %3175
        %3177 = vrot.lane.b32.xlu0 %v3097, 64
        %v3178 = vpop.permute.xlu0 %3177
        %3179 = vrot.lane.b32.xlu0 %v3098, 64
        %v3180 = vpop.permute.xlu0 %3179
        %3181 = vrot.lane.b32.xlu0 %v3099, 64
        %v3182 = vpop.permute.xlu0 %3181
        %3183 = vrot.lane.b32.xlu0 %v3100, 64
        %v3184 = vpop.permute.xlu0 %3183
        %3185 = vrot.lane.b32.xlu0 %v3101, 64
        %v3186 = vpop.permute.xlu0 %3185
        %3187 = vrot.lane.b32.xlu0 %v3102, 64
        %v3188 = vpop.permute.xlu0 %3187
        %3189 = vrot.lane.b32.xlu0 %v3103, 64
        %v3190 = vpop.permute.xlu0 %3189
        %3191 = vrot.lane.b32.xlu0 %v3104, 64
        %v3192 = vpop.permute.xlu0 %3191
        %3193 = vrot.lane.b32.xlu0 %v3105, 64
        %v3194 = vpop.permute.xlu0 %3193
        %3195 = vrot.lane.b32.xlu0 %v3106, 64
        %v3196 = vpop.permute.xlu0 %3195
        %3197 = vrot.lane.b32.xlu0 %v3107, 64
        %v3198 = vpop.permute.xlu0 %3197
        %3199 = vrot.lane.b32.xlu0 %v3108, 64
        %v3200 = vpop.permute.xlu0 %3199
        %3201 = vrot.lane.b32.xlu0 %v3109, 64
        %v3202 = vpop.permute.xlu0 %3201
        %3203 = vrot.lane.b32.xlu0 %v3110, 64
        %v3204 = vpop.permute.xlu0 %3203
        %3205 = vrot.lane.b32.xlu0 %v3111, 64
        %v3206 = vpop.permute.xlu0 %3205
        %3207 = vrot.lane.b32.xlu0 %v3112, 64
        %v3208 = vpop.permute.xlu0 %3207
        %vm3241 = vcmask 781824
        %3242 = vst.msk [vmem:[#allocation5] sm:$0xf] %vm3241, %v3146
        %3243 = vst.msk [vmem:[#allocation5 + $0xc] sm:$0xf] %vm3241, %v3148
        %3244 = vst.msk [vmem:[#allocation5 + $0x18] sm:$0xf] %vm3241, %v3150
        %3245 = vst.msk [vmem:[#allocation5 + $0x24] sm:$0xf] %vm3241, %v3152
        %3246 = vst.msk [vmem:[#allocation5 + $0x30] sm:$0xf] %vm3241, %v3154
        %3247 = vst.msk [vmem:[#allocation5 + $0x3c] sm:$0xf] %vm3241, %v3156
        %3248 = vst.msk [vmem:[#allocation5 + $0x48] sm:$0xf] %vm3241, %v3158
        %3249 = vst.msk [vmem:[#allocation5 + $0x54] sm:$0xf] %vm3241, %v3160
        %3250 = vst.msk [vmem:[#allocation5 + $0x60] sm:$0xf] %vm3241, %v3162
        %3251 = vst.msk [vmem:[#allocation5 + $0x6c] sm:$0xf] %vm3241, %v3164
        %3252 = vst.msk [vmem:[#allocation5 + $0x78] sm:$0xf] %vm3241, %v3166
        %3253 = vst.msk [vmem:[#allocation5 + $0x84] sm:$0xf] %vm3241, %v3168
        %3254 = vst.msk [vmem:[#allocation5 + $0x90] sm:$0xf] %vm3241, %v3170
        %3255 = vst.msk [vmem:[#allocation5 + $0x9c] sm:$0xf] %vm3241, %v3172
        %3256 = vst.msk [vmem:[#allocation5 + $0xa8] sm:$0xf] %vm3241, %v3174
        %3257 = vst.msk [vmem:[#allocation5 + $0xb4] sm:$0xf] %vm3241, %v3176
        %3258 = vst.msk [vmem:[#allocation5 + $0xc0] sm:$0xf] %vm3241, %v3178
        %3259 = vst.msk [vmem:[#allocation5 + $0xcc] sm:$0xf] %vm3241, %v3180
        %3260 = vst.msk [vmem:[#allocation5 + $0xd8] sm:$0xf] %vm3241, %v3182
        %3261 = vst.msk [vmem:[#allocation5 + $0xe4] sm:$0xf] %vm3241, %v3184
        %3262 = vst.msk [vmem:[#allocation5 + $0xf0] sm:$0xf] %vm3241, %v3186
        %3263 = vst.msk [vmem:[#allocation5 + $0xfc] sm:$0xf] %vm3241, %v3188
        %3264 = vst.msk [vmem:[#allocation5 + $0x108] sm:$0xf] %vm3241, %v3190
        %3265 = vst.msk [vmem:[#allocation5 + $0x114] sm:$0xf] %vm3241, %v3192
        %3266 = vst.msk [vmem:[#allocation5 + $0x120] sm:$0xf] %vm3241, %v3194
        %3267 = vst.msk [vmem:[#allocation5 + $0x12c] sm:$0xf] %vm3241, %v3196
        %3268 = vst.msk [vmem:[#allocation5 + $0x138] sm:$0xf] %vm3241, %v3198
        %3269 = vst.msk [vmem:[#allocation5 + $0x144] sm:$0xf] %vm3241, %v3200
        %3270 = vst.msk [vmem:[#allocation5 + $0x150] sm:$0xf] %vm3241, %v3202
        %3271 = vst.msk [vmem:[#allocation5 + $0x15c] sm:$0xf] %vm3241, %v3204
        %3272 = vst.msk [vmem:[#allocation5 + $0x168] sm:$0xf] %vm3241, %v3206
        %3273 = vst.msk [vmem:[#allocation5 + $0x174] sm:$0xf] %vm3241, %v3208
        %v3274 = vld [vmem:[%s2694] sm:$0xff]
        %v3275 = vld [vmem:[%s2694 + $0x8] sm:$0xff]
        %v3276 = vld [vmem:[%s2694 + $0x18] sm:$0xff]
        %v3277 = vld [vmem:[%s2694 + $0x20] sm:$0xff]
        %v3278 = vld [vmem:[%s2694 + $0x30] sm:$0xff]
        %v3279 = vld [vmem:[%s2694 + $0x38] sm:$0xff]
        %v3280 = vld [vmem:[%s2694 + $0x48] sm:$0xff]
        %v3281 = vld [vmem:[%s2694 + $0x50] sm:$0xff]
        %v3282 = vld [vmem:[%s2694 + $0x60] sm:$0xff]
        %v3283 = vld [vmem:[%s2694 + $0x68] sm:$0xff]
        %v3284 = vld [vmem:[%s2694 + $0x78] sm:$0xff]
        %v3285 = vld [vmem:[%s2694 + $0x80] sm:$0xff]
        %v3286 = vld [vmem:[%s2694 + $0x90] sm:$0xff]
        %v3287 = vld [vmem:[%s2694 + $0x98] sm:$0xff]
        %v3288 = vld [vmem:[%s2694 + $0xa8] sm:$0xff]
        %v3289 = vld [vmem:[%s2694 + $0xb0] sm:$0xff]
        %v3290 = vld [vmem:[%s2694 + $0xc0] sm:$0xff]
        %v3291 = vld [vmem:[%s2694 + $0xc8] sm:$0xff]
        %v3292 = vld [vmem:[%s2694 + $0xd8] sm:$0xff]
        %v3293 = vld [vmem:[%s2694 + $0xe0] sm:$0xff]
        %v3294 = vld [vmem:[%s2694 + $0xf0] sm:$0xff]
        %v3295 = vld [vmem:[%s2694 + $0xf8] sm:$0xff]
        %v3296 = vld [vmem:[%s2694 + $0x108] sm:$0xff]
        %v3297 = vld [vmem:[%s2694 + $0x110] sm:$0xff]
        %v3298 = vld [vmem:[%s2694 + $0x120] sm:$0xff]
        %v3299 = vld [vmem:[%s2694 + $0x128] sm:$0xff]
        %v3300 = vld [vmem:[%s2694 + $0x138] sm:$0xff]
        %v3301 = vld [vmem:[%s2694 + $0x140] sm:$0xff]
        %v3302 = vld [vmem:[%s2694 + $0x150] sm:$0xff]
        %v3303 = vld [vmem:[%s2694 + $0x158] sm:$0xff]
        %v3304 = vld [vmem:[%s2694 + $0x168] sm:$0xff]
        %v3305 = vld [vmem:[%s2694 + $0x170] sm:$0xff]
        %v3306 = vpack.c.bf16 %v3274, %v3274
        %v3307 = vpack.c.bf16 %v3275, %v3275
        %v3308 = vpack.c.bf16 %v3276, %v3276
        %v3309 = vpack.c.bf16 %v3277, %v3277
        %v3310 = vpack.c.bf16 %v3278, %v3278
        %v3311 = vpack.c.bf16 %v3279, %v3279
        %v3312 = vpack.c.bf16 %v3280, %v3280
        %v3313 = vpack.c.bf16 %v3281, %v3281
        %v3314 = vpack.c.bf16 %v3282, %v3282
        %v3315 = vpack.c.bf16 %v3283, %v3283
        %v3316 = vpack.c.bf16 %v3284, %v3284
        %v3317 = vpack.c.bf16 %v3285, %v3285
        %v3318 = vpack.c.bf16 %v3286, %v3286
        %v3319 = vpack.c.bf16 %v3287, %v3287
        %v3320 = vpack.c.bf16 %v3288, %v3288
        %v3321 = vpack.c.bf16 %v3289, %v3289
        %v3322 = vpack.c.bf16 %v3290, %v3290
        %v3323 = vpack.c.bf16 %v3291, %v3291
        %v3324 = vpack.c.bf16 %v3292, %v3292
        %v3325 = vpack.c.bf16 %v3293, %v3293
        %v3326 = vpack.c.bf16 %v3294, %v3294
        %v3327 = vpack.c.bf16 %v3295, %v3295
        %v3328 = vpack.c.bf16 %v3296, %v3296
        %v3329 = vpack.c.bf16 %v3297, %v3297
        %v3330 = vpack.c.bf16 %v3298, %v3298
        %v3331 = vpack.c.bf16 %v3299, %v3299
        %v3332 = vpack.c.bf16 %v3300, %v3300
        %v3333 = vpack.c.bf16 %v3301, %v3301
        %v3334 = vpack.c.bf16 %v3302, %v3302
        %v3335 = vpack.c.bf16 %v3303, %v3303
        %v3336 = vpack.c.bf16 %v3304, %v3304
        %v3337 = vpack.c.bf16 %v3305, %v3305
        %3370 = vrot.lane.b32.xlu0 %v3306, 96
        %v3371 = vpop.permute.xlu0 %3370
        %3372 = vrot.lane.b32.xlu0 %v3307, 96
        %v3373 = vpop.permute.xlu0 %3372
        %3374 = vrot.lane.b32.xlu0 %v3308, 96
        %v3375 = vpop.permute.xlu0 %3374
        %3376 = vrot.lane.b32.xlu0 %v3309, 96
        %v3377 = vpop.permute.xlu0 %3376
        %3378 = vrot.lane.b32.xlu0 %v3310, 96
        %v3379 = vpop.permute.xlu0 %3378
        %3380 = vrot.lane.b32.xlu0 %v3311, 96
        %v3381 = vpop.permute.xlu0 %3380
        %3382 = vrot.lane.b32.xlu0 %v3312, 96
        %v3383 = vpop.permute.xlu0 %3382
        %3384 = vrot.lane.b32.xlu0 %v3313, 96
        %v3385 = vpop.permute.xlu0 %3384
        %3386 = vrot.lane.b32.xlu0 %v3314, 96
        %v3387 = vpop.permute.xlu0 %3386
        %3388 = vrot.lane.b32.xlu0 %v3315, 96
        %v3389 = vpop.permute.xlu0 %3388
        %3390 = vrot.lane.b32.xlu0 %v3316, 96
        %v3391 = vpop.permute.xlu0 %3390
        %3392 = vrot.lane.b32.xlu0 %v3317, 96
        %v3393 = vpop.permute.xlu0 %3392
        %3394 = vrot.lane.b32.xlu0 %v3318, 96
        %v3395 = vpop.permute.xlu0 %3394
        %3396 = vrot.lane.b32.xlu0 %v3319, 96
        %v3397 = vpop.permute.xlu0 %3396
        %3398 = vrot.lane.b32.xlu0 %v3320, 96
        %v3399 = vpop.permute.xlu0 %3398
        %3400 = vrot.lane.b32.xlu0 %v3321, 96
        %v3401 = vpop.permute.xlu0 %3400
        %3402 = vrot.lane.b32.xlu0 %v3322, 96
        %v3403 = vpop.permute.xlu0 %3402
        %3404 = vrot.lane.b32.xlu0 %v3323, 96
        %v3405 = vpop.permute.xlu0 %3404
        %3406 = vrot.lane.b32.xlu0 %v3324, 96
        %v3407 = vpop.permute.xlu0 %3406
        %3408 = vrot.lane.b32.xlu0 %v3325, 96
        %v3409 = vpop.permute.xlu0 %3408
        %3410 = vrot.lane.b32.xlu0 %v3326, 96
        %v3411 = vpop.permute.xlu0 %3410
        %3412 = vrot.lane.b32.xlu0 %v3327, 96
        %v3413 = vpop.permute.xlu0 %3412
        %3414 = vrot.lane.b32.xlu0 %v3328, 96
        %v3415 = vpop.permute.xlu0 %3414
        %3416 = vrot.lane.b32.xlu0 %v3329, 96
        %v3417 = vpop.permute.xlu0 %3416
        %3418 = vrot.lane.b32.xlu0 %v3330, 96
        %v3419 = vpop.permute.xlu0 %3418
        %3420 = vrot.lane.b32.xlu0 %v3331, 96
        %v3421 = vpop.permute.xlu0 %3420
        %3422 = vrot.lane.b32.xlu0 %v3332, 96
        %v3423 = vpop.permute.xlu0 %3422
        %3424 = vrot.lane.b32.xlu0 %v3333, 96
        %v3425 = vpop.permute.xlu0 %3424
        %3426 = vrot.lane.b32.xlu0 %v3334, 96
        %v3427 = vpop.permute.xlu0 %3426
        %3428 = vrot.lane.b32.xlu0 %v3335, 96
        %v3429 = vpop.permute.xlu0 %3428
        %3430 = vrot.lane.b32.xlu0 %v3336, 96
        %v3431 = vpop.permute.xlu0 %3430
        %3432 = vrot.lane.b32.xlu0 %v3337, 96
        %v3433 = vpop.permute.xlu0 %3432
        %vm3466 = vcmask 1044224
        %3467 = vst.msk [vmem:[#allocation5] sm:$0xf] %vm3466, %v3371
        %3468 = vst.msk [vmem:[#allocation5 + $0xc] sm:$0xf] %vm3466, %v3373
        %3469 = vst.msk [vmem:[#allocation5 + $0x18] sm:$0xf] %vm3466, %v3375
        %3470 = vst.msk [vmem:[#allocation5 + $0x24] sm:$0xf] %vm3466, %v3377
        %3471 = vst.msk [vmem:[#allocation5 + $0x30] sm:$0xf] %vm3466, %v3379
        %3472 = vst.msk [vmem:[#allocation5 + $0x3c] sm:$0xf] %vm3466, %v3381
        %3473 = vst.msk [vmem:[#allocation5 + $0x48] sm:$0xf] %vm3466, %v3383
        %3474 = vst.msk [vmem:[#allocation5 + $0x54] sm:$0xf] %vm3466, %v3385
        %3475 = vst.msk [vmem:[#allocation5 + $0x60] sm:$0xf] %vm3466, %v3387
        %3476 = vst.msk [vmem:[#allocation5 + $0x6c] sm:$0xf] %vm3466, %v3389
        %3477 = vst.msk [vmem:[#allocation5 + $0x78] sm:$0xf] %vm3466, %v3391
        %3478 = vst.msk [vmem:[#allocation5 + $0x84] sm:$0xf] %vm3466, %v3393
        %3479 = vst.msk [vmem:[#allocation5 + $0x90] sm:$0xf] %vm3466, %v3395
        %3480 = vst.msk [vmem:[#allocation5 + $0x9c] sm:$0xf] %vm3466, %v3397
        %3481 = vst.msk [vmem:[#allocation5 + $0xa8] sm:$0xf] %vm3466, %v3399
        %3482 = vst.msk [vmem:[#allocation5 + $0xb4] sm:$0xf] %vm3466, %v3401
        %3483 = vst.msk [vmem:[#allocation5 + $0xc0] sm:$0xf] %vm3466, %v3403
        %3484 = vst.msk [vmem:[#allocation5 + $0xcc] sm:$0xf] %vm3466, %v3405
        %3485 = vst.msk [vmem:[#allocation5 + $0xd8] sm:$0xf] %vm3466, %v3407
        %3486 = vst.msk [vmem:[#allocation5 + $0xe4] sm:$0xf] %vm3466, %v3409
        %3487 = vst.msk [vmem:[#allocation5 + $0xf0] sm:$0xf] %vm3466, %v3411
        %3488 = vst.msk [vmem:[#allocation5 + $0xfc] sm:$0xf] %vm3466, %v3413
        %3489 = vst.msk [vmem:[#allocation5 + $0x108] sm:$0xf] %vm3466, %v3415
        %3490 = vst.msk [vmem:[#allocation5 + $0x114] sm:$0xf] %vm3466, %v3417
        %3491 = vst.msk [vmem:[#allocation5 + $0x120] sm:$0xf] %vm3466, %v3419
        %3492 = vst.msk [vmem:[#allocation5 + $0x12c] sm:$0xf] %vm3466, %v3421
        %3493 = vst.msk [vmem:[#allocation5 + $0x138] sm:$0xf] %vm3466, %v3423
        %3494 = vst.msk [vmem:[#allocation5 + $0x144] sm:$0xf] %vm3466, %v3425
        %3495 = vst.msk [vmem:[#allocation5 + $0x150] sm:$0xf] %vm3466, %v3427
        %3496 = vst.msk [vmem:[#allocation5 + $0x15c] sm:$0xf] %vm3466, %v3429
        %3497 = vst.msk [vmem:[#allocation5 + $0x168] sm:$0xf] %vm3466, %v3431
        %3498 = vst.msk [vmem:[#allocation5 + $0x174] sm:$0xf] %vm3466, %v3433
        %v3499 = vld [vmem:[%s2694 + $0x1] sm:$0xff]
        %v3500 = vld [vmem:[%s2694 + $0x9] sm:$0xff]
        %v3501 = vld [vmem:[%s2694 + $0x19] sm:$0xff]
        %v3502 = vld [vmem:[%s2694 + $0x21] sm:$0xff]
        %v3503 = vld [vmem:[%s2694 + $0x31] sm:$0xff]
        %v3504 = vld [vmem:[%s2694 + $0x39] sm:$0xff]
        %v3505 = vld [vmem:[%s2694 + $0x49] sm:$0xff]
        %v3506 = vld [vmem:[%s2694 + $0x51] sm:$0xff]
        %v3507 = vld [vmem:[%s2694 + $0x61] sm:$0xff]
        %v3508 = vld [vmem:[%s2694 + $0x69] sm:$0xff]
        %v3509 = vld [vmem:[%s2694 + $0x79] sm:$0xff]
        %v3510 = vld [vmem:[%s2694 + $0x81] sm:$0xff]
        %v3511 = vld [vmem:[%s2694 + $0x91] sm:$0xff]
        %v3512 = vld [vmem:[%s2694 + $0x99] sm:$0xff]
        %v3513 = vld [vmem:[%s2694 + $0xa9] sm:$0xff]
        %v3514 = vld [vmem:[%s2694 + $0xb1] sm:$0xff]
        %v3515 = vld [vmem:[%s2694 + $0xc1] sm:$0xff]
        %v3516 = vld [vmem:[%s2694 + $0xc9] sm:$0xff]
        %v3517 = vld [vmem:[%s2694 + $0xd9] sm:$0xff]
        %v3518 = vld [vmem:[%s2694 + $0xe1] sm:$0xff]
        %v3519 = vld [vmem:[%s2694 + $0xf1] sm:$0xff]
        %v3520 = vld [vmem:[%s2694 + $0xf9] sm:$0xff]
        %v3521 = vld [vmem:[%s2694 + $0x109] sm:$0xff]
        %v3522 = vld [vmem:[%s2694 + $0x111] sm:$0xff]
        %v3523 = vld [vmem:[%s2694 + $0x121] sm:$0xff]
        %v3524 = vld [vmem:[%s2694 + $0x129] sm:$0xff]
        %v3525 = vld [vmem:[%s2694 + $0x139] sm:$0xff]
        %v3526 = vld [vmem:[%s2694 + $0x141] sm:$0xff]
        %v3527 = vld [vmem:[%s2694 + $0x151] sm:$0xff]
        %v3528 = vld [vmem:[%s2694 + $0x159] sm:$0xff]
        %v3529 = vld [vmem:[%s2694 + $0x169] sm:$0xff]
        %v3530 = vld [vmem:[%s2694 + $0x171] sm:$0xff]
        %v3531 = vpack.c.bf16 %v3499, %v3499
        %v3532 = vpack.c.bf16 %v3500, %v3500
        %v3533 = vpack.c.bf16 %v3501, %v3501
        %v3534 = vpack.c.bf16 %v3502, %v3502
        %v3535 = vpack.c.bf16 %v3503, %v3503
        %v3536 = vpack.c.bf16 %v3504, %v3504
        %v3537 = vpack.c.bf16 %v3505, %v3505
        %v3538 = vpack.c.bf16 %v3506, %v3506
        %v3539 = vpack.c.bf16 %v3507, %v3507
        %v3540 = vpack.c.bf16 %v3508, %v3508
        %v3541 = vpack.c.bf16 %v3509, %v3509
        %v3542 = vpack.c.bf16 %v3510, %v3510
        %v3543 = vpack.c.bf16 %v3511, %v3511
        %v3544 = vpack.c.bf16 %v3512, %v3512
        %v3545 = vpack.c.bf16 %v3513, %v3513
        %v3546 = vpack.c.bf16 %v3514, %v3514
        %v3547 = vpack.c.bf16 %v3515, %v3515
        %v3548 = vpack.c.bf16 %v3516, %v3516
        %v3549 = vpack.c.bf16 %v3517, %v3517
        %v3550 = vpack.c.bf16 %v3518, %v3518
        %v3551 = vpack.c.bf16 %v3519, %v3519
        %v3552 = vpack.c.bf16 %v3520, %v3520
        %v3553 = vpack.c.bf16 %v3521, %v3521
        %v3554 = vpack.c.bf16 %v3522, %v3522
        %v3555 = vpack.c.bf16 %v3523, %v3523
        %v3556 = vpack.c.bf16 %v3524, %v3524
        %v3557 = vpack.c.bf16 %v3525, %v3525
        %v3558 = vpack.c.bf16 %v3526, %v3526
        %v3559 = vpack.c.bf16 %v3527, %v3527
        %v3560 = vpack.c.bf16 %v3528, %v3528
        %v3561 = vpack.c.bf16 %v3529, %v3529
        %v3562 = vpack.c.bf16 %v3530, %v3530
        %3563 = vst.msk [vmem:[#allocation5 + $0x4] sm:$0xf] %vm2791, %v3531
        %3564 = vst.msk [vmem:[#allocation5 + $0x10] sm:$0xf] %vm2791, %v3532
        %3565 = vst.msk [vmem:[#allocation5 + $0x1c] sm:$0xf] %vm2791, %v3533
        %3566 = vst.msk [vmem:[#allocation5 + $0x28] sm:$0xf] %vm2791, %v3534
        %3567 = vst.msk [vmem:[#allocation5 + $0x34] sm:$0xf] %vm2791, %v3535
        %3568 = vst.msk [vmem:[#allocation5 + $0x40] sm:$0xf] %vm2791, %v3536
        %3569 = vst.msk [vmem:[#allocation5 + $0x4c] sm:$0xf] %vm2791, %v3537
        %3570 = vst.msk [vmem:[#allocation5 + $0x58] sm:$0xf] %vm2791, %v3538
        %3571 = vst.msk [vmem:[#allocation5 + $0x64] sm:$0xf] %vm2791, %v3539
        %3572 = vst.msk [vmem:[#allocation5 + $0x70] sm:$0xf] %vm2791, %v3540
        %3573 = vst.msk [vmem:[#allocation5 + $0x7c] sm:$0xf] %vm2791, %v3541
        %3574 = vst.msk [vmem:[#allocation5 + $0x88] sm:$0xf] %vm2791, %v3542
        %3575 = vst.msk [vmem:[#allocation5 + $0x94] sm:$0xf] %vm2791, %v3543
        %3576 = vst.msk [vmem:[#allocation5 + $0xa0] sm:$0xf] %vm2791, %v3544
        %3577 = vst.msk [vmem:[#allocation5 + $0xac] sm:$0xf] %vm2791, %v3545
        %3578 = vst.msk [vmem:[#allocation5 + $0xb8] sm:$0xf] %vm2791, %v3546
        %3579 = vst.msk [vmem:[#allocation5 + $0xc4] sm:$0xf] %vm2791, %v3547
        %3580 = vst.msk [vmem:[#allocation5 + $0xd0] sm:$0xf] %vm2791, %v3548
        %3581 = vst.msk [vmem:[#allocation5 + $0xdc] sm:$0xf] %vm2791, %v3549
        %3582 = vst.msk [vmem:[#allocation5 + $0xe8] sm:$0xf] %vm2791, %v3550
        %3583 = vst.msk [vmem:[#allocation5 + $0xf4] sm:$0xf] %vm2791, %v3551
        %3584 = vst.msk [vmem:[#allocation5 + $0x100] sm:$0xf] %vm2791, %v3552
        %3585 = vst.msk [vmem:[#allocation5 + $0x10c] sm:$0xf] %vm2791, %v3553
        %3586 = vst.msk [vmem:[#allocation5 + $0x118] sm:$0xf] %vm2791, %v3554
        %3587 = vst.msk [vmem:[#allocation5 + $0x124] sm:$0xf] %vm2791, %v3555
        %3588 = vst.msk [vmem:[#allocation5 + $0x130] sm:$0xf] %vm2791, %v3556
        %3589 = vst.msk [vmem:[#allocation5 + $0x13c] sm:$0xf] %vm2791, %v3557
        %3590 = vst.msk [vmem:[#allocation5 + $0x148] sm:$0xf] %vm2791, %v3558
        %3591 = vst.msk [vmem:[#allocation5 + $0x154] sm:$0xf] %vm2791, %v3559
        %3592 = vst.msk [vmem:[#allocation5 + $0x160] sm:$0xf] %vm2791, %v3560
        %3593 = vst.msk [vmem:[#allocation5 + $0x16c] sm:$0xf] %vm2791, %v3561
        %3594 = vst.msk [vmem:[#allocation5 + $0x178] sm:$0xf] %vm2791, %v3562
        %v3595 = vld [vmem:[%s2694 + $0x2] sm:$0xff]
        %v3596 = vld [vmem:[%s2694 + $0xa] sm:$0xff]
        %v3597 = vld [vmem:[%s2694 + $0x1a] sm:$0xff]
        %v3598 = vld [vmem:[%s2694 + $0x22] sm:$0xff]
        %v3599 = vld [vmem:[%s2694 + $0x32] sm:$0xff]
        %v3600 = vld [vmem:[%s2694 + $0x3a] sm:$0xff]
        %v3601 = vld [vmem:[%s2694 + $0x4a] sm:$0xff]
        %v3602 = vld [vmem:[%s2694 + $0x52] sm:$0xff]
        %v3603 = vld [vmem:[%s2694 + $0x62] sm:$0xff]
        %v3604 = vld [vmem:[%s2694 + $0x6a] sm:$0xff]
        %v3605 = vld [vmem:[%s2694 + $0x7a] sm:$0xff]
        %v3606 = vld [vmem:[%s2694 + $0x82] sm:$0xff]
        %v3607 = vld [vmem:[%s2694 + $0x92] sm:$0xff]
        %v3608 = vld [vmem:[%s2694 + $0x9a] sm:$0xff]
        %v3609 = vld [vmem:[%s2694 + $0xaa] sm:$0xff]
        %v3610 = vld [vmem:[%s2694 + $0xb2] sm:$0xff]
        %v3611 = vld [vmem:[%s2694 + $0xc2] sm:$0xff]
        %v3612 = vld [vmem:[%s2694 + $0xca] sm:$0xff]
        %v3613 = vld [vmem:[%s2694 + $0xda] sm:$0xff]
        %v3614 = vld [vmem:[%s2694 + $0xe2] sm:$0xff]
        %v3615 = vld [vmem:[%s2694 + $0xf2] sm:$0xff]
        %v3616 = vld [vmem:[%s2694 + $0xfa] sm:$0xff]
        %v3617 = vld [vmem:[%s2694 + $0x10a] sm:$0xff]
        %v3618 = vld [vmem:[%s2694 + $0x112] sm:$0xff]
        %v3619 = vld [vmem:[%s2694 + $0x122] sm:$0xff]
        %v3620 = vld [vmem:[%s2694 + $0x12a] sm:$0xff]
        %v3621 = vld [vmem:[%s2694 + $0x13a] sm:$0xff]
        %v3622 = vld [vmem:[%s2694 + $0x142] sm:$0xff]
        %v3623 = vld [vmem:[%s2694 + $0x152] sm:$0xff]
        %v3624 = vld [vmem:[%s2694 + $0x15a] sm:$0xff]
        %v3625 = vld [vmem:[%s2694 + $0x16a] sm:$0xff]
        %v3626 = vld [vmem:[%s2694 + $0x172] sm:$0xff]
        %v3627 = vpack.c.bf16 %v3595, %v3595
        %v3628 = vpack.c.bf16 %v3596, %v3596
        %v3629 = vpack.c.bf16 %v3597, %v3597
        %v3630 = vpack.c.bf16 %v3598, %v3598
        %v3631 = vpack.c.bf16 %v3599, %v3599
        %v3632 = vpack.c.bf16 %v3600, %v3600
        %v3633 = vpack.c.bf16 %v3601, %v3601
        %v3634 = vpack.c.bf16 %v3602, %v3602
        %v3635 = vpack.c.bf16 %v3603, %v3603
        %v3636 = vpack.c.bf16 %v3604, %v3604
        %v3637 = vpack.c.bf16 %v3605, %v3605
        %v3638 = vpack.c.bf16 %v3606, %v3606
        %v3639 = vpack.c.bf16 %v3607, %v3607
        %v3640 = vpack.c.bf16 %v3608, %v3608
        %v3641 = vpack.c.bf16 %v3609, %v3609
        %v3642 = vpack.c.bf16 %v3610, %v3610
        %v3643 = vpack.c.bf16 %v3611, %v3611
        %v3644 = vpack.c.bf16 %v3612, %v3612
        %v3645 = vpack.c.bf16 %v3613, %v3613
        %v3646 = vpack.c.bf16 %v3614, %v3614
        %v3647 = vpack.c.bf16 %v3615, %v3615
        %v3648 = vpack.c.bf16 %v3616, %v3616
        %v3649 = vpack.c.bf16 %v3617, %v3617
        %v3650 = vpack.c.bf16 %v3618, %v3618
        %v3651 = vpack.c.bf16 %v3619, %v3619
        %v3652 = vpack.c.bf16 %v3620, %v3620
        %v3653 = vpack.c.bf16 %v3621, %v3621
        %v3654 = vpack.c.bf16 %v3622, %v3622
        %v3655 = vpack.c.bf16 %v3623, %v3623
        %v3656 = vpack.c.bf16 %v3624, %v3624
        %v3657 = vpack.c.bf16 %v3625, %v3625
        %v3658 = vpack.c.bf16 %v3626, %v3626
        %3691 = vrot.lane.b32.xlu0 %v3627, 32
        %v3692 = vpop.permute.xlu0 %3691
        %3693 = vrot.lane.b32.xlu0 %v3628, 32
        %v3694 = vpop.permute.xlu0 %3693
        %3695 = vrot.lane.b32.xlu0 %v3629, 32
        %v3696 = vpop.permute.xlu0 %3695
        %3697 = vrot.lane.b32.xlu0 %v3630, 32
        %v3698 = vpop.permute.xlu0 %3697
        %3699 = vrot.lane.b32.xlu0 %v3631, 32
        %v3700 = vpop.permute.xlu0 %3699
        %3701 = vrot.lane.b32.xlu0 %v3632, 32
        %v3702 = vpop.permute.xlu0 %3701
        %3703 = vrot.lane.b32.xlu0 %v3633, 32
        %v3704 = vpop.permute.xlu0 %3703
        %3705 = vrot.lane.b32.xlu0 %v3634, 32
        %v3706 = vpop.permute.xlu0 %3705
        %3707 = vrot.lane.b32.xlu0 %v3635, 32
        %v3708 = vpop.permute.xlu0 %3707
        %3709 = vrot.lane.b32.xlu0 %v3636, 32
        %v3710 = vpop.permute.xlu0 %3709
        %3711 = vrot.lane.b32.xlu0 %v3637, 32
        %v3712 = vpop.permute.xlu0 %3711
        %3713 = vrot.lane.b32.xlu0 %v3638, 32
        %v3714 = vpop.permute.xlu0 %3713
        %3715 = vrot.lane.b32.xlu0 %v3639, 32
        %v3716 = vpop.permute.xlu0 %3715
        %3717 = vrot.lane.b32.xlu0 %v3640, 32
        %v3718 = vpop.permute.xlu0 %3717
        %3719 = vrot.lane.b32.xlu0 %v3641, 32
        %v3720 = vpop.permute.xlu0 %3719
        %3721 = vrot.lane.b32.xlu0 %v3642, 32
        %v3722 = vpop.permute.xlu0 %3721
        %3723 = vrot.lane.b32.xlu0 %v3643, 32
        %v3724 = vpop.permute.xlu0 %3723
        %3725 = vrot.lane.b32.xlu0 %v3644, 32
        %v3726 = vpop.permute.xlu0 %3725
        %3727 = vrot.lane.b32.xlu0 %v3645, 32
        %v3728 = vpop.permute.xlu0 %3727
        %3729 = vrot.lane.b32.xlu0 %v3646, 32
        %v3730 = vpop.permute.xlu0 %3729
        %3731 = vrot.lane.b32.xlu0 %v3647, 32
        %v3732 = vpop.permute.xlu0 %3731
        %3733 = vrot.lane.b32.xlu0 %v3648, 32
        %v3734 = vpop.permute.xlu0 %3733
        %3735 = vrot.lane.b32.xlu0 %v3649, 32
        %v3736 = vpop.permute.xlu0 %3735
        %3737 = vrot.lane.b32.xlu0 %v3650, 32
        %v3738 = vpop.permute.xlu0 %3737
        %3739 = vrot.lane.b32.xlu0 %v3651, 32
        %v3740 = vpop.permute.xlu0 %3739
        %3741 = vrot.lane.b32.xlu0 %v3652, 32
        %v3742 = vpop.permute.xlu0 %3741
        %3743 = vrot.lane.b32.xlu0 %v3653, 32
        %v3744 = vpop.permute.xlu0 %3743
        %3745 = vrot.lane.b32.xlu0 %v3654, 32
        %v3746 = vpop.permute.xlu0 %3745
        %3747 = vrot.lane.b32.xlu0 %v3655, 32
        %v3748 = vpop.permute.xlu0 %3747
        %3749 = vrot.lane.b32.xlu0 %v3656, 32
        %v3750 = vpop.permute.xlu0 %3749
        %3751 = vrot.lane.b32.xlu0 %v3657, 32
        %v3752 = vpop.permute.xlu0 %3751
        %3753 = vrot.lane.b32.xlu0 %v3658, 32
        %v3754 = vpop.permute.xlu0 %3753
        %3787 = vst.msk [vmem:[#allocation5 + $0x4] sm:$0xf] %vm3016, %v3692
        %3788 = vst.msk [vmem:[#allocation5 + $0x10] sm:$0xf] %vm3016, %v3694
        %3789 = vst.msk [vmem:[#allocation5 + $0x1c] sm:$0xf] %vm3016, %v3696
        %3790 = vst.msk [vmem:[#allocation5 + $0x28] sm:$0xf] %vm3016, %v3698
        %3791 = vst.msk [vmem:[#allocation5 + $0x34] sm:$0xf] %vm3016, %v3700
        %3792 = vst.msk [vmem:[#allocation5 + $0x40] sm:$0xf] %vm3016, %v3702
        %3793 = vst.msk [vmem:[#allocation5 + $0x4c] sm:$0xf] %vm3016, %v3704
        %3794 = vst.msk [vmem:[#allocation5 + $0x58] sm:$0xf] %vm3016, %v3706
        %3795 = vst.msk [vmem:[#allocation5 + $0x64] sm:$0xf] %vm3016, %v3708
        %3796 = vst.msk [vmem:[#allocation5 + $0x70] sm:$0xf] %vm3016, %v3710
        %3797 = vst.msk [vmem:[#allocation5 + $0x7c] sm:$0xf] %vm3016, %v3712
        %3798 = vst.msk [vmem:[#allocation5 + $0x88] sm:$0xf] %vm3016, %v3714
        %3799 = vst.msk [vmem:[#allocation5 + $0x94] sm:$0xf] %vm3016, %v3716
        %3800 = vst.msk [vmem:[#allocation5 + $0xa0] sm:$0xf] %vm3016, %v3718
        %3801 = vst.msk [vmem:[#allocation5 + $0xac] sm:$0xf] %vm3016, %v3720
        %3802 = vst.msk [vmem:[#allocation5 + $0xb8] sm:$0xf] %vm3016, %v3722
        %3803 = vst.msk [vmem:[#allocation5 + $0xc4] sm:$0xf] %vm3016, %v3724
        %3804 = vst.msk [vmem:[#allocation5 + $0xd0] sm:$0xf] %vm3016, %v3726
        %3805 = vst.msk [vmem:[#allocation5 + $0xdc] sm:$0xf] %vm3016, %v3728
        %3806 = vst.msk [vmem:[#allocation5 + $0xe8] sm:$0xf] %vm3016, %v3730
        %3807 = vst.msk [vmem:[#allocation5 + $0xf4] sm:$0xf] %vm3016, %v3732
        %3808 = vst.msk [vmem:[#allocation5 + $0x100] sm:$0xf] %vm3016, %v3734
        %3809 = vst.msk [vmem:[#allocation5 + $0x10c] sm:$0xf] %vm3016, %v3736
        %3810 = vst.msk [vmem:[#allocation5 + $0x118] sm:$0xf] %vm3016, %v3738
        %3811 = vst.msk [vmem:[#allocation5 + $0x124] sm:$0xf] %vm3016, %v3740
        %3812 = vst.msk [vmem:[#allocation5 + $0x130] sm:$0xf] %vm3016, %v3742
        %3813 = vst.msk [vmem:[#allocation5 + $0x13c] sm:$0xf] %vm3016, %v3744
        %3814 = vst.msk [vmem:[#allocation5 + $0x148] sm:$0xf] %vm3016, %v3746
        %3815 = vst.msk [vmem:[#allocation5 + $0x154] sm:$0xf] %vm3016, %v3748
        %3816 = vst.msk [vmem:[#allocation5 + $0x160] sm:$0xf] %vm3016, %v3750
        %3817 = vst.msk [vmem:[#allocation5 + $0x16c] sm:$0xf] %vm3016, %v3752
        %3818 = vst.msk [vmem:[#allocation5 + $0x178] sm:$0xf] %vm3016, %v3754
        %s3819 = scalar_lea.vmem [#allocation3], 48
        %v3820 = vld [vmem:[%s3819] sm:$0xff]
        %v3821 = vld [vmem:[%s3819 + $0x8] sm:$0xff]
        %v3822 = vld [vmem:[%s3819 + $0x18] sm:$0xff]
        %v3823 = vld [vmem:[%s3819 + $0x20] sm:$0xff]
        %v3824 = vld [vmem:[%s3819 + $0x30] sm:$0xff]
        %v3825 = vld [vmem:[%s3819 + $0x38] sm:$0xff]
        %v3826 = vld [vmem:[%s3819 + $0x48] sm:$0xff]
        %v3827 = vld [vmem:[%s3819 + $0x50] sm:$0xff]
        %v3828 = vld [vmem:[%s3819 + $0x60] sm:$0xff]
        %v3829 = vld [vmem:[%s3819 + $0x68] sm:$0xff]
        %v3830 = vld [vmem:[%s3819 + $0x78] sm:$0xff]
        %v3831 = vld [vmem:[%s3819 + $0x80] sm:$0xff]
        %v3832 = vld [vmem:[%s3819 + $0x90] sm:$0xff]
        %v3833 = vld [vmem:[%s3819 + $0x98] sm:$0xff]
        %v3834 = vld [vmem:[%s3819 + $0xa8] sm:$0xff]
        %v3835 = vld [vmem:[%s3819 + $0xb0] sm:$0xff]
        %v3836 = vld [vmem:[%s3819 + $0xc0] sm:$0xff]
        %v3837 = vld [vmem:[%s3819 + $0xc8] sm:$0xff]
        %v3838 = vld [vmem:[%s3819 + $0xd8] sm:$0xff]
        %v3839 = vld [vmem:[%s3819 + $0xe0] sm:$0xff]
        %v3840 = vld [vmem:[%s3819 + $0xf0] sm:$0xff]
        %v3841 = vld [vmem:[%s3819 + $0xf8] sm:$0xff]
        %v3842 = vld [vmem:[%s3819 + $0x108] sm:$0xff]
        %v3843 = vld [vmem:[%s3819 + $0x110] sm:$0xff]
        %v3844 = vld [vmem:[%s3819 + $0x120] sm:$0xff]
        %v3845 = vld [vmem:[%s3819 + $0x128] sm:$0xff]
        %v3846 = vld [vmem:[%s3819 + $0x138] sm:$0xff]
        %v3847 = vld [vmem:[%s3819 + $0x140] sm:$0xff]
        %v3848 = vld [vmem:[%s3819 + $0x150] sm:$0xff]
        %v3849 = vld [vmem:[%s3819 + $0x158] sm:$0xff]
        %v3850 = vld [vmem:[%s3819 + $0x168] sm:$0xff]
        %v3851 = vld [vmem:[%s3819 + $0x170] sm:$0xff]
        %v3852 = vpack.c.bf16 %v3820, %v3820
        %v3853 = vpack.c.bf16 %v3821, %v3821
        %v3854 = vpack.c.bf16 %v3822, %v3822
        %v3855 = vpack.c.bf16 %v3823, %v3823
        %v3856 = vpack.c.bf16 %v3824, %v3824
        %v3857 = vpack.c.bf16 %v3825, %v3825
        %v3858 = vpack.c.bf16 %v3826, %v3826
        %v3859 = vpack.c.bf16 %v3827, %v3827
        %v3860 = vpack.c.bf16 %v3828, %v3828
        %v3861 = vpack.c.bf16 %v3829, %v3829
        %v3862 = vpack.c.bf16 %v3830, %v3830
        %v3863 = vpack.c.bf16 %v3831, %v3831
        %v3864 = vpack.c.bf16 %v3832, %v3832
        %v3865 = vpack.c.bf16 %v3833, %v3833
        %v3866 = vpack.c.bf16 %v3834, %v3834
        %v3867 = vpack.c.bf16 %v3835, %v3835
        %v3868 = vpack.c.bf16 %v3836, %v3836
        %v3869 = vpack.c.bf16 %v3837, %v3837
        %v3870 = vpack.c.bf16 %v3838, %v3838
        %v3871 = vpack.c.bf16 %v3839, %v3839
        %v3872 = vpack.c.bf16 %v3840, %v3840
        %v3873 = vpack.c.bf16 %v3841, %v3841
        %v3874 = vpack.c.bf16 %v3842, %v3842
        %v3875 = vpack.c.bf16 %v3843, %v3843
        %v3876 = vpack.c.bf16 %v3844, %v3844
        %v3877 = vpack.c.bf16 %v3845, %v3845
        %v3878 = vpack.c.bf16 %v3846, %v3846
        %v3879 = vpack.c.bf16 %v3847, %v3847
        %v3880 = vpack.c.bf16 %v3848, %v3848
        %v3881 = vpack.c.bf16 %v3849, %v3849
        %v3882 = vpack.c.bf16 %v3850, %v3850
        %v3883 = vpack.c.bf16 %v3851, %v3851
        %3916 = vrot.lane.b32.xlu0 %v3852, 64
        %v3917 = vpop.permute.xlu0 %3916
        %3918 = vrot.lane.b32.xlu0 %v3853, 64
        %v3919 = vpop.permute.xlu0 %3918
        %3920 = vrot.lane.b32.xlu0 %v3854, 64
        %v3921 = vpop.permute.xlu0 %3920
        %3922 = vrot.lane.b32.xlu0 %v3855, 64
        %v3923 = vpop.permute.xlu0 %3922
        %3924 = vrot.lane.b32.xlu0 %v3856, 64
        %v3925 = vpop.permute.xlu0 %3924
        %3926 = vrot.lane.b32.xlu0 %v3857, 64
        %v3927 = vpop.permute.xlu0 %3926
        %3928 = vrot.lane.b32.xlu0 %v3858, 64
        %v3929 = vpop.permute.xlu0 %3928
        %3930 = vrot.lane.b32.xlu0 %v3859, 64
        %v3931 = vpop.permute.xlu0 %3930
        %3932 = vrot.lane.b32.xlu0 %v3860, 64
        %v3933 = vpop.permute.xlu0 %3932
        %3934 = vrot.lane.b32.xlu0 %v3861, 64
        %v3935 = vpop.permute.xlu0 %3934
        %3936 = vrot.lane.b32.xlu0 %v3862, 64
        %v3937 = vpop.permute.xlu0 %3936
        %3938 = vrot.lane.b32.xlu0 %v3863, 64
        %v3939 = vpop.permute.xlu0 %3938
        %3940 = vrot.lane.b32.xlu0 %v3864, 64
        %v3941 = vpop.permute.xlu0 %3940
        %3942 = vrot.lane.b32.xlu0 %v3865, 64
        %v3943 = vpop.permute.xlu0 %3942
        %3944 = vrot.lane.b32.xlu0 %v3866, 64
        %v3945 = vpop.permute.xlu0 %3944
        %3946 = vrot.lane.b32.xlu0 %v3867, 64
        %v3947 = vpop.permute.xlu0 %3946
        %3948 = vrot.lane.b32.xlu0 %v3868, 64
        %v3949 = vpop.permute.xlu0 %3948
        %3950 = vrot.lane.b32.xlu0 %v3869, 64
        %v3951 = vpop.permute.xlu0 %3950
        %3952 = vrot.lane.b32.xlu0 %v3870, 64
        %v3953 = vpop.permute.xlu0 %3952
        %3954 = vrot.lane.b32.xlu0 %v3871, 64
        %v3955 = vpop.permute.xlu0 %3954
        %3956 = vrot.lane.b32.xlu0 %v3872, 64
        %v3957 = vpop.permute.xlu0 %3956
        %3958 = vrot.lane.b32.xlu0 %v3873, 64
        %v3959 = vpop.permute.xlu0 %3958
        %3960 = vrot.lane.b32.xlu0 %v3874, 64
        %v3961 = vpop.permute.xlu0 %3960
        %3962 = vrot.lane.b32.xlu0 %v3875, 64
        %v3963 = vpop.permute.xlu0 %3962
        %3964 = vrot.lane.b32.xlu0 %v3876, 64
        %v3965 = vpop.permute.xlu0 %3964
        %3966 = vrot.lane.b32.xlu0 %v3877, 64
        %v3967 = vpop.permute.xlu0 %3966
        %3968 = vrot.lane.b32.xlu0 %v3878, 64
        %v3969 = vpop.permute.xlu0 %3968
        %3970 = vrot.lane.b32.xlu0 %v3879, 64
        %v3971 = vpop.permute.xlu0 %3970
        %3972 = vrot.lane.b32.xlu0 %v3880, 64
        %v3973 = vpop.permute.xlu0 %3972
        %3974 = vrot.lane.b32.xlu0 %v3881, 64
        %v3975 = vpop.permute.xlu0 %3974
        %3976 = vrot.lane.b32.xlu0 %v3882, 64
        %v3977 = vpop.permute.xlu0 %3976
        %3978 = vrot.lane.b32.xlu0 %v3883, 64
        %v3979 = vpop.permute.xlu0 %3978
        %4012 = vst.msk [vmem:[#allocation5 + $0x4] sm:$0xf] %vm3241, %v3917
        %4013 = vst.msk [vmem:[#allocation5 + $0x10] sm:$0xf] %vm3241, %v3919
        %4014 = vst.msk [vmem:[#allocation5 + $0x1c] sm:$0xf] %vm3241, %v3921
        %4015 = vst.msk [vmem:[#allocation5 + $0x28] sm:$0xf] %vm3241, %v3923
        %4016 = vst.msk [vmem:[#allocation5 + $0x34] sm:$0xf] %vm3241, %v3925
        %4017 = vst.msk [vmem:[#allocation5 + $0x40] sm:$0xf] %vm3241, %v3927
        %4018 = vst.msk [vmem:[#allocation5 + $0x4c] sm:$0xf] %vm3241, %v3929
        %4019 = vst.msk [vmem:[#allocation5 + $0x58] sm:$0xf] %vm3241, %v3931
        %4020 = vst.msk [vmem:[#allocation5 + $0x64] sm:$0xf] %vm3241, %v3933
        %4021 = vst.msk [vmem:[#allocation5 + $0x70] sm:$0xf] %vm3241, %v3935
        %4022 = vst.msk [vmem:[#allocation5 + $0x7c] sm:$0xf] %vm3241, %v3937
        %4023 = vst.msk [vmem:[#allocation5 + $0x88] sm:$0xf] %vm3241, %v3939
        %4024 = vst.msk [vmem:[#allocation5 + $0x94] sm:$0xf] %vm3241, %v3941
        %4025 = vst.msk [vmem:[#allocation5 + $0xa0] sm:$0xf] %vm3241, %v3943
        %4026 = vst.msk [vmem:[#allocation5 + $0xac] sm:$0xf] %vm3241, %v3945
        %4027 = vst.msk [vmem:[#allocation5 + $0xb8] sm:$0xf] %vm3241, %v3947
        %4028 = vst.msk [vmem:[#allocation5 + $0xc4] sm:$0xf] %vm3241, %v3949
        %4029 = vst.msk [vmem:[#allocation5 + $0xd0] sm:$0xf] %vm3241, %v3951
        %4030 = vst.msk [vmem:[#allocation5 + $0xdc] sm:$0xf] %vm3241, %v3953
        %4031 = vst.msk [vmem:[#allocation5 + $0xe8] sm:$0xf] %vm3241, %v3955
        %4032 = vst.msk [vmem:[#allocation5 + $0xf4] sm:$0xf] %vm3241, %v3957
        %4033 = vst.msk [vmem:[#allocation5 + $0x100] sm:$0xf] %vm3241, %v3959
        %4034 = vst.msk [vmem:[#allocation5 + $0x10c] sm:$0xf] %vm3241, %v3961
        %4035 = vst.msk [vmem:[#allocation5 + $0x118] sm:$0xf] %vm3241, %v3963
        %4036 = vst.msk [vmem:[#allocation5 + $0x124] sm:$0xf] %vm3241, %v3965
        %4037 = vst.msk [vmem:[#allocation5 + $0x130] sm:$0xf] %vm3241, %v3967
        %4038 = vst.msk [vmem:[#allocation5 + $0x13c] sm:$0xf] %vm3241, %v3969
        %4039 = vst.msk [vmem:[#allocation5 + $0x148] sm:$0xf] %vm3241, %v3971
        %4040 = vst.msk [vmem:[#allocation5 + $0x154] sm:$0xf] %vm3241, %v3973
        %4041 = vst.msk [vmem:[#allocation5 + $0x160] sm:$0xf] %vm3241, %v3975
        %4042 = vst.msk [vmem:[#allocation5 + $0x16c] sm:$0xf] %vm3241, %v3977
        %4043 = vst.msk [vmem:[#allocation5 + $0x178] sm:$0xf] %vm3241, %v3979
        %v4044 = vld [vmem:[%s3819 + $0x1] sm:$0xff]
        %v4045 = vld [vmem:[%s3819 + $0x9] sm:$0xff]
        %v4046 = vld [vmem:[%s3819 + $0x19] sm:$0xff]
        %v4047 = vld [vmem:[%s3819 + $0x21] sm:$0xff]
        %v4048 = vld [vmem:[%s3819 + $0x31] sm:$0xff]
        %v4049 = vld [vmem:[%s3819 + $0x39] sm:$0xff]
        %v4050 = vld [vmem:[%s3819 + $0x49] sm:$0xff]
        %v4051 = vld [vmem:[%s3819 + $0x51] sm:$0xff]
        %v4052 = vld [vmem:[%s3819 + $0x61] sm:$0xff]
        %v4053 = vld [vmem:[%s3819 + $0x69] sm:$0xff]
        %v4054 = vld [vmem:[%s3819 + $0x79] sm:$0xff]
        %v4055 = vld [vmem:[%s3819 + $0x81] sm:$0xff]
        %v4056 = vld [vmem:[%s3819 + $0x91] sm:$0xff]
        %v4057 = vld [vmem:[%s3819 + $0x99] sm:$0xff]
        %v4058 = vld [vmem:[%s3819 + $0xa9] sm:$0xff]
        %v4059 = vld [vmem:[%s3819 + $0xb1] sm:$0xff]
        %v4060 = vld [vmem:[%s3819 + $0xc1] sm:$0xff]
        %v4061 = vld [vmem:[%s3819 + $0xc9] sm:$0xff]
        %v4062 = vld [vmem:[%s3819 + $0xd9] sm:$0xff]
        %v4063 = vld [vmem:[%s3819 + $0xe1] sm:$0xff]
        %v4064 = vld [vmem:[%s3819 + $0xf1] sm:$0xff]
        %v4065 = vld [vmem:[%s3819 + $0xf9] sm:$0xff]
        %v4066 = vld [vmem:[%s3819 + $0x109] sm:$0xff]
        %v4067 = vld [vmem:[%s3819 + $0x111] sm:$0xff]
        %v4068 = vld [vmem:[%s3819 + $0x121] sm:$0xff]
        %v4069 = vld [vmem:[%s3819 + $0x129] sm:$0xff]
        %v4070 = vld [vmem:[%s3819 + $0x139] sm:$0xff]
        %v4071 = vld [vmem:[%s3819 + $0x141] sm:$0xff]
        %v4072 = vld [vmem:[%s3819 + $0x151] sm:$0xff]
        %v4073 = vld [vmem:[%s3819 + $0x159] sm:$0xff]
        %v4074 = vld [vmem:[%s3819 + $0x169] sm:$0xff]
        %v4075 = vld [vmem:[%s3819 + $0x171] sm:$0xff]
        %v4076 = vpack.c.bf16 %v4044, %v4044
        %v4077 = vpack.c.bf16 %v4045, %v4045
        %v4078 = vpack.c.bf16 %v4046, %v4046
        %v4079 = vpack.c.bf16 %v4047, %v4047
        %v4080 = vpack.c.bf16 %v4048, %v4048
        %v4081 = vpack.c.bf16 %v4049, %v4049
        %v4082 = vpack.c.bf16 %v4050, %v4050
        %v4083 = vpack.c.bf16 %v4051, %v4051
        %v4084 = vpack.c.bf16 %v4052, %v4052
        %v4085 = vpack.c.bf16 %v4053, %v4053
        %v4086 = vpack.c.bf16 %v4054, %v4054
        %v4087 = vpack.c.bf16 %v4055, %v4055
        %v4088 = vpack.c.bf16 %v4056, %v4056
        %v4089 = vpack.c.bf16 %v4057, %v4057
        %v4090 = vpack.c.bf16 %v4058, %v4058
        %v4091 = vpack.c.bf16 %v4059, %v4059
        %v4092 = vpack.c.bf16 %v4060, %v4060
        %v4093 = vpack.c.bf16 %v4061, %v4061
        %v4094 = vpack.c.bf16 %v4062, %v4062
        %v4095 = vpack.c.bf16 %v4063, %v4063
        %v4096 = vpack.c.bf16 %v4064, %v4064
        %v4097 = vpack.c.bf16 %v4065, %v4065
        %v4098 = vpack.c.bf16 %v4066, %v4066
        %v4099 = vpack.c.bf16 %v4067, %v4067
        %v4100 = vpack.c.bf16 %v4068, %v4068
        %v4101 = vpack.c.bf16 %v4069, %v4069
        %v4102 = vpack.c.bf16 %v4070, %v4070
        %v4103 = vpack.c.bf16 %v4071, %v4071
        %v4104 = vpack.c.bf16 %v4072, %v4072
        %v4105 = vpack.c.bf16 %v4073, %v4073
        %v4106 = vpack.c.bf16 %v4074, %v4074
        %v4107 = vpack.c.bf16 %v4075, %v4075
        %4140 = vrot.lane.b32.xlu0 %v4076, 96
        %v4141 = vpop.permute.xlu0 %4140
        %4142 = vrot.lane.b32.xlu0 %v4077, 96
        %v4143 = vpop.permute.xlu0 %4142
        %4144 = vrot.lane.b32.xlu0 %v4078, 96
        %v4145 = vpop.permute.xlu0 %4144
        %4146 = vrot.lane.b32.xlu0 %v4079, 96
        %v4147 = vpop.permute.xlu0 %4146
        %4148 = vrot.lane.b32.xlu0 %v4080, 96
        %v4149 = vpop.permute.xlu0 %4148
        %4150 = vrot.lane.b32.xlu0 %v4081, 96
        %v4151 = vpop.permute.xlu0 %4150
        %4152 = vrot.lane.b32.xlu0 %v4082, 96
        %v4153 = vpop.permute.xlu0 %4152
        %4154 = vrot.lane.b32.xlu0 %v4083, 96
        %v4155 = vpop.permute.xlu0 %4154
        %4156 = vrot.lane.b32.xlu0 %v4084, 96
        %v4157 = vpop.permute.xlu0 %4156
        %4158 = vrot.lane.b32.xlu0 %v4085, 96
        %v4159 = vpop.permute.xlu0 %4158
        %4160 = vrot.lane.b32.xlu0 %v4086, 96
        %v4161 = vpop.permute.xlu0 %4160
        %4162 = vrot.lane.b32.xlu0 %v4087, 96
        %v4163 = vpop.permute.xlu0 %4162
        %4164 = vrot.lane.b32.xlu0 %v4088, 96
        %v4165 = vpop.permute.xlu0 %4164
        %4166 = vrot.lane.b32.xlu0 %v4089, 96
        %v4167 = vpop.permute.xlu0 %4166
        %4168 = vrot.lane.b32.xlu0 %v4090, 96
        %v4169 = vpop.permute.xlu0 %4168
        %4170 = vrot.lane.b32.xlu0 %v4091, 96
        %v4171 = vpop.permute.xlu0 %4170
        %4172 = vrot.lane.b32.xlu0 %v4092, 96
        %v4173 = vpop.permute.xlu0 %4172
        %4174 = vrot.lane.b32.xlu0 %v4093, 96
        %v4175 = vpop.permute.xlu0 %4174
        %4176 = vrot.lane.b32.xlu0 %v4094, 96
        %v4177 = vpop.permute.xlu0 %4176
        %4178 = vrot.lane.b32.xlu0 %v4095, 96
        %v4179 = vpop.permute.xlu0 %4178
        %4180 = vrot.lane.b32.xlu0 %v4096, 96
        %v4181 = vpop.permute.xlu0 %4180
        %4182 = vrot.lane.b32.xlu0 %v4097, 96
        %v4183 = vpop.permute.xlu0 %4182
        %4184 = vrot.lane.b32.xlu0 %v4098, 96
        %v4185 = vpop.permute.xlu0 %4184
        %4186 = vrot.lane.b32.xlu0 %v4099, 96
        %v4187 = vpop.permute.xlu0 %4186
        %4188 = vrot.lane.b32.xlu0 %v4100, 96
        %v4189 = vpop.permute.xlu0 %4188
        %4190 = vrot.lane.b32.xlu0 %v4101, 96
        %v4191 = vpop.permute.xlu0 %4190
        %4192 = vrot.lane.b32.xlu0 %v4102, 96
        %v4193 = vpop.permute.xlu0 %4192
        %4194 = vrot.lane.b32.xlu0 %v4103, 96
        %v4195 = vpop.permute.xlu0 %4194
        %4196 = vrot.lane.b32.xlu0 %v4104, 96
        %v4197 = vpop.permute.xlu0 %4196
        %4198 = vrot.lane.b32.xlu0 %v4105, 96
        %v4199 = vpop.permute.xlu0 %4198
        %4200 = vrot.lane.b32.xlu0 %v4106, 96
        %v4201 = vpop.permute.xlu0 %4200
        %4202 = vrot.lane.b32.xlu0 %v4107, 96
        %v4203 = vpop.permute.xlu0 %4202
        %4236 = vst.msk [vmem:[#allocation5 + $0x4] sm:$0xf] %vm3466, %v4141
        %4237 = vst.msk [vmem:[#allocation5 + $0x10] sm:$0xf] %vm3466, %v4143
        %4238 = vst.msk [vmem:[#allocation5 + $0x1c] sm:$0xf] %vm3466, %v4145
        %4239 = vst.msk [vmem:[#allocation5 + $0x28] sm:$0xf] %vm3466, %v4147
        %4240 = vst.msk [vmem:[#allocation5 + $0x34] sm:$0xf] %vm3466, %v4149
        %4241 = vst.msk [vmem:[#allocation5 + $0x40] sm:$0xf] %vm3466, %v4151
        %4242 = vst.msk [vmem:[#allocation5 + $0x4c] sm:$0xf] %vm3466, %v4153
        %4243 = vst.msk [vmem:[#allocation5 + $0x58] sm:$0xf] %vm3466, %v4155
        %4244 = vst.msk [vmem:[#allocation5 + $0x64] sm:$0xf] %vm3466, %v4157
        %4245 = vst.msk [vmem:[#allocation5 + $0x70] sm:$0xf] %vm3466, %v4159
        %4246 = vst.msk [vmem:[#allocation5 + $0x7c] sm:$0xf] %vm3466, %v4161
        %4247 = vst.msk [vmem:[#allocation5 + $0x88] sm:$0xf] %vm3466, %v4163
        %4248 = vst.msk [vmem:[#allocation5 + $0x94] sm:$0xf] %vm3466, %v4165
        %4249 = vst.msk [vmem:[#allocation5 + $0xa0] sm:$0xf] %vm3466, %v4167
        %4250 = vst.msk [vmem:[#allocation5 + $0xac] sm:$0xf] %vm3466, %v4169
        %4251 = vst.msk [vmem:[#allocation5 + $0xb8] sm:$0xf] %vm3466, %v4171
        %4252 = vst.msk [vmem:[#allocation5 + $0xc4] sm:$0xf] %vm3466, %v4173
        %4253 = vst.msk [vmem:[#allocation5 + $0xd0] sm:$0xf] %vm3466, %v4175
        %4254 = vst.msk [vmem:[#allocation5 + $0xdc] sm:$0xf] %vm3466, %v4177
        %4255 = vst.msk [vmem:[#allocation5 + $0xe8] sm:$0xf] %vm3466, %v4179
        %4256 = vst.msk [vmem:[#allocation5 + $0xf4] sm:$0xf] %vm3466, %v4181
        %4257 = vst.msk [vmem:[#allocation5 + $0x100] sm:$0xf] %vm3466, %v4183
        %4258 = vst.msk [vmem:[#allocation5 + $0x10c] sm:$0xf] %vm3466, %v4185
        %4259 = vst.msk [vmem:[#allocation5 + $0x118] sm:$0xf] %vm3466, %v4187
        %4260 = vst.msk [vmem:[#allocation5 + $0x124] sm:$0xf] %vm3466, %v4189
        %4261 = vst.msk [vmem:[#allocation5 + $0x130] sm:$0xf] %vm3466, %v4191
        %4262 = vst.msk [vmem:[#allocation5 + $0x13c] sm:$0xf] %vm3466, %v4193
        %4263 = vst.msk [vmem:[#allocation5 + $0x148] sm:$0xf] %vm3466, %v4195
        %4264 = vst.msk [vmem:[#allocation5 + $0x154] sm:$0xf] %vm3466, %v4197
        %4265 = vst.msk [vmem:[#allocation5 + $0x160] sm:$0xf] %vm3466, %v4199
        %4266 = vst.msk [vmem:[#allocation5 + $0x16c] sm:$0xf] %vm3466, %v4201
        %4267 = vst.msk [vmem:[#allocation5 + $0x178] sm:$0xf] %vm3466, %v4203
        %v4268 = vld [vmem:[%s3819 + $0x2] sm:$0xff]
        %v4269 = vld [vmem:[%s3819 + $0xa] sm:$0xff]
        %v4270 = vld [vmem:[%s3819 + $0x1a] sm:$0xff]
        %v4271 = vld [vmem:[%s3819 + $0x22] sm:$0xff]
        %v4272 = vld [vmem:[%s3819 + $0x32] sm:$0xff]
        %v4273 = vld [vmem:[%s3819 + $0x3a] sm:$0xff]
        %v4274 = vld [vmem:[%s3819 + $0x4a] sm:$0xff]
        %v4275 = vld [vmem:[%s3819 + $0x52] sm:$0xff]
        %v4276 = vld [vmem:[%s3819 + $0x62] sm:$0xff]
        %v4277 = vld [vmem:[%s3819 + $0x6a] sm:$0xff]
        %v4278 = vld [vmem:[%s3819 + $0x7a] sm:$0xff]
        %v4279 = vld [vmem:[%s3819 + $0x82] sm:$0xff]
        %v4280 = vld [vmem:[%s3819 + $0x92] sm:$0xff]
        %v4281 = vld [vmem:[%s3819 + $0x9a] sm:$0xff]
        %v4282 = vld [vmem:[%s3819 + $0xaa] sm:$0xff]
        %v4283 = vld [vmem:[%s3819 + $0xb2] sm:$0xff]
        %v4284 = vld [vmem:[%s3819 + $0xc2] sm:$0xff]
        %v4285 = vld [vmem:[%s3819 + $0xca] sm:$0xff]
        %v4286 = vld [vmem:[%s3819 + $0xda] sm:$0xff]
        %v4287 = vld [vmem:[%s3819 + $0xe2] sm:$0xff]
        %v4288 = vld [vmem:[%s3819 + $0xf2] sm:$0xff]
        %v4289 = vld [vmem:[%s3819 + $0xfa] sm:$0xff]
        %v4290 = vld [vmem:[%s3819 + $0x10a] sm:$0xff]
        %v4291 = vld [vmem:[%s3819 + $0x112] sm:$0xff]
        %v4292 = vld [vmem:[%s3819 + $0x122] sm:$0xff]
        %v4293 = vld [vmem:[%s3819 + $0x12a] sm:$0xff]
        %v4294 = vld [vmem:[%s3819 + $0x13a] sm:$0xff]
        %v4295 = vld [vmem:[%s3819 + $0x142] sm:$0xff]
        %v4296 = vld [vmem:[%s3819 + $0x152] sm:$0xff]
        %v4297 = vld [vmem:[%s3819 + $0x15a] sm:$0xff]
        %v4298 = vld [vmem:[%s3819 + $0x16a] sm:$0xff]
        %v4299 = vld [vmem:[%s3819 + $0x172] sm:$0xff]
        %v4300 = vpack.c.bf16 %v4268, %v4268
        %v4301 = vpack.c.bf16 %v4269, %v4269
        %v4302 = vpack.c.bf16 %v4270, %v4270
        %v4303 = vpack.c.bf16 %v4271, %v4271
        %v4304 = vpack.c.bf16 %v4272, %v4272
        %v4305 = vpack.c.bf16 %v4273, %v4273
        %v4306 = vpack.c.bf16 %v4274, %v4274
        %v4307 = vpack.c.bf16 %v4275, %v4275
        %v4308 = vpack.c.bf16 %v4276, %v4276
        %v4309 = vpack.c.bf16 %v4277, %v4277
        %v4310 = vpack.c.bf16 %v4278, %v4278
        %v4311 = vpack.c.bf16 %v4279, %v4279
        %v4312 = vpack.c.bf16 %v4280, %v4280
        %v4313 = vpack.c.bf16 %v4281, %v4281
        %v4314 = vpack.c.bf16 %v4282, %v4282
        %v4315 = vpack.c.bf16 %v4283, %v4283
        %v4316 = vpack.c.bf16 %v4284, %v4284
        %v4317 = vpack.c.bf16 %v4285, %v4285
        %v4318 = vpack.c.bf16 %v4286, %v4286
        %v4319 = vpack.c.bf16 %v4287, %v4287
        %v4320 = vpack.c.bf16 %v4288, %v4288
        %v4321 = vpack.c.bf16 %v4289, %v4289
        %v4322 = vpack.c.bf16 %v4290, %v4290
        %v4323 = vpack.c.bf16 %v4291, %v4291
        %v4324 = vpack.c.bf16 %v4292, %v4292
        %v4325 = vpack.c.bf16 %v4293, %v4293
        %v4326 = vpack.c.bf16 %v4294, %v4294
        %v4327 = vpack.c.bf16 %v4295, %v4295
        %v4328 = vpack.c.bf16 %v4296, %v4296
        %v4329 = vpack.c.bf16 %v4297, %v4297
        %v4330 = vpack.c.bf16 %v4298, %v4298
        %v4331 = vpack.c.bf16 %v4299, %v4299
        %4332 = vst.msk [vmem:[#allocation5 + $0x8] sm:$0xf] %vm2791, %v4300
        %4333 = vst.msk [vmem:[#allocation5 + $0x14] sm:$0xf] %vm2791, %v4301
        %4334 = vst.msk [vmem:[#allocation5 + $0x20] sm:$0xf] %vm2791, %v4302
        %4335 = vst.msk [vmem:[#allocation5 + $0x2c] sm:$0xf] %vm2791, %v4303
        %4336 = vst.msk [vmem:[#allocation5 + $0x38] sm:$0xf] %vm2791, %v4304
        %4337 = vst.msk [vmem:[#allocation5 + $0x44] sm:$0xf] %vm2791, %v4305
        %4338 = vst.msk [vmem:[#allocation5 + $0x50] sm:$0xf] %vm2791, %v4306
        %4339 = vst.msk [vmem:[#allocation5 + $0x5c] sm:$0xf] %vm2791, %v4307
        %4340 = vst.msk [vmem:[#allocation5 + $0x68] sm:$0xf] %vm2791, %v4308
        %4341 = vst.msk [vmem:[#allocation5 + $0x74] sm:$0xf] %vm2791, %v4309
        %4342 = vst.msk [vmem:[#allocation5 + $0x80] sm:$0xf] %vm2791, %v4310
        %4343 = vst.msk [vmem:[#allocation5 + $0x8c] sm:$0xf] %vm2791, %v4311
        %4344 = vst.msk [vmem:[#allocation5 + $0x98] sm:$0xf] %vm2791, %v4312
        %4345 = vst.msk [vmem:[#allocation5 + $0xa4] sm:$0xf] %vm2791, %v4313
        %4346 = vst.msk [vmem:[#allocation5 + $0xb0] sm:$0xf] %vm2791, %v4314
        %4347 = vst.msk [vmem:[#allocation5 + $0xbc] sm:$0xf] %vm2791, %v4315
        %4348 = vst.msk [vmem:[#allocation5 + $0xc8] sm:$0xf] %vm2791, %v4316
        %4349 = vst.msk [vmem:[#allocation5 + $0xd4] sm:$0xf] %vm2791, %v4317
        %4350 = vst.msk [vmem:[#allocation5 + $0xe0] sm:$0xf] %vm2791, %v4318
        %4351 = vst.msk [vmem:[#allocation5 + $0xec] sm:$0xf] %vm2791, %v4319
        %4352 = vst.msk [vmem:[#allocation5 + $0xf8] sm:$0xf] %vm2791, %v4320
        %4353 = vst.msk [vmem:[#allocation5 + $0x104] sm:$0xf] %vm2791, %v4321
        %4354 = vst.msk [vmem:[#allocation5 + $0x110] sm:$0xf] %vm2791, %v4322
        %4355 = vst.msk [vmem:[#allocation5 + $0x11c] sm:$0xf] %vm2791, %v4323
        %4356 = vst.msk [vmem:[#allocation5 + $0x128] sm:$0xf] %vm2791, %v4324
        %4357 = vst.msk [vmem:[#allocation5 + $0x134] sm:$0xf] %vm2791, %v4325
        %4358 = vst.msk [vmem:[#allocation5 + $0x140] sm:$0xf] %vm2791, %v4326
        %4359 = vst.msk [vmem:[#allocation5 + $0x14c] sm:$0xf] %vm2791, %v4327
        %4360 = vst.msk [vmem:[#allocation5 + $0x158] sm:$0xf] %vm2791, %v4328
        %4361 = vst.msk [vmem:[#allocation5 + $0x164] sm:$0xf] %vm2791, %v4329
        %4362 = vst.msk [vmem:[#allocation5 + $0x170] sm:$0xf] %vm2791, %v4330
        %4363 = vst.msk [vmem:[#allocation5 + $0x17c] sm:$0xf] %vm2791, %v4331
        %v4364 = vld [vmem:[#allocation5] sm:$0xff]
        %v4365 = vld [vmem:[#allocation5 + $0x8] sm:$0xf]
        %v4366 = vld [vmem:[#allocation5 + $0xc] sm:$0xff]
        %v4367 = vld [vmem:[#allocation5 + $0x14] sm:$0xf]
        %v4368 = vld [vmem:[#allocation5 + $0x18] sm:$0xff]
        %v4369 = vld [vmem:[#allocation5 + $0x20] sm:$0xf]
        %v4370 = vld [vmem:[#allocation5 + $0x24] sm:$0xff]
        %v4371 = vld [vmem:[#allocation5 + $0x2c] sm:$0xf]
        %v4372 = vld [vmem:[#allocation5 + $0x30] sm:$0xff]
        %v4373 = vld [vmem:[#allocation5 + $0x38] sm:$0xf]
        %v4374 = vld [vmem:[#allocation5 + $0x3c] sm:$0xff]
        %v4375 = vld [vmem:[#allocation5 + $0x44] sm:$0xf]
        %v4376 = vld [vmem:[#allocation5 + $0x48] sm:$0xff]
        %v4377 = vld [vmem:[#allocation5 + $0x50] sm:$0xf]
        %v4378 = vld [vmem:[#allocation5 + $0x54] sm:$0xff]
        %v4379 = vld [vmem:[#allocation5 + $0x5c] sm:$0xf]
        %v4380 = vld [vmem:[#allocation5 + $0x60] sm:$0xff]
        %v4381 = vld [vmem:[#allocation5 + $0x68] sm:$0xf]
        %v4382 = vld [vmem:[#allocation5 + $0x6c] sm:$0xff]
        %v4383 = vld [vmem:[#allocation5 + $0x74] sm:$0xf]
        %v4384 = vld [vmem:[#allocation5 + $0x78] sm:$0xff]
        %v4385 = vld [vmem:[#allocation5 + $0x80] sm:$0xf]
        %v4386 = vld [vmem:[#allocation5 + $0x84] sm:$0xff]
        %v4387 = vld [vmem:[#allocation5 + $0x8c] sm:$0xf]
        %v4388 = vld [vmem:[#allocation5 + $0x90] sm:$0xff]
        %v4389 = vld [vmem:[#allocation5 + $0x98] sm:$0xf]
        %v4390 = vld [vmem:[#allocation5 + $0x9c] sm:$0xff]
        %v4391 = vld [vmem:[#allocation5 + $0xa4] sm:$0xf]
        %v4392 = vld [vmem:[#allocation5 + $0xa8] sm:$0xff]
        %v4393 = vld [vmem:[#allocation5 + $0xb0] sm:$0xf]
        %v4394 = vld [vmem:[#allocation5 + $0xb4] sm:$0xff]
        %v4395 = vld [vmem:[#allocation5 + $0xbc] sm:$0xf]
        %v4396 = vld [vmem:[#allocation5 + $0xc0] sm:$0xff]
        %v4397 = vld [vmem:[#allocation5 + $0xc8] sm:$0xf]
        %v4398 = vld [vmem:[#allocation5 + $0xcc] sm:$0xff]
        %v4399 = vld [vmem:[#allocation5 + $0xd4] sm:$0xf]
        %v4400 = vld [vmem:[#allocation5 + $0xd8] sm:$0xff]
        %v4401 = vld [vmem:[#allocation5 + $0xe0] sm:$0xf]
        %v4402 = vld [vmem:[#allocation5 + $0xe4] sm:$0xff]
        %v4403 = vld [vmem:[#allocation5 + $0xec] sm:$0xf]
        %v4404 = vld [vmem:[#allocation5 + $0xf0] sm:$0xff]
        %v4405 = vld [vmem:[#allocation5 + $0xf8] sm:$0xf]
        %v4406 = vld [vmem:[#allocation5 + $0xfc] sm:$0xff]
        %v4407 = vld [vmem:[#allocation5 + $0x104] sm:$0xf]
        %v4408 = vld [vmem:[#allocation5 + $0x108] sm:$0xff]
        %v4409 = vld [vmem:[#allocation5 + $0x110] sm:$0xf]
        %v4410 = vld [vmem:[#allocation5 + $0x114] sm:$0xff]
        %v4411 = vld [vmem:[#allocation5 + $0x11c] sm:$0xf]
        %v4412 = vld [vmem:[#allocation5 + $0x120] sm:$0xff]
        %v4413 = vld [vmem:[#allocation5 + $0x128] sm:$0xf]
        %v4414 = vld [vmem:[#allocation5 + $0x12c] sm:$0xff]
        %v4415 = vld [vmem:[#allocation5 + $0x134] sm:$0xf]
        %v4416 = vld [vmem:[#allocation5 + $0x138] sm:$0xff]
        %v4417 = vld [vmem:[#allocation5 + $0x140] sm:$0xf]
        %v4418 = vld [vmem:[#allocation5 + $0x144] sm:$0xff]
        %v4419 = vld [vmem:[#allocation5 + $0x14c] sm:$0xf]
        %v4420 = vld [vmem:[#allocation5 + $0x150] sm:$0xff]
        %v4421 = vld [vmem:[#allocation5 + $0x158] sm:$0xf]
        %v4422 = vld [vmem:[#allocation5 + $0x15c] sm:$0xff]
        %v4423 = vld [vmem:[#allocation5 + $0x164] sm:$0xf]
        %v4424 = vld [vmem:[#allocation5 + $0x168] sm:$0xff]
        %v4425 = vld [vmem:[#allocation5 + $0x170] sm:$0xf]
        %v4426 = vld [vmem:[#allocation5 + $0x174] sm:$0xff]
        %v4427 = vld [vmem:[#allocation5 + $0x17c] sm:$0xf]
        %v4428 = vld [vmem:[%s3] sm:$0xf]
        %v4429 = vld [vmem:[%s3 + $0x4] sm:$0xf]
        %v4430 = vld [vmem:[%s3 + $0x8] sm:$0xf]
        %v4431 = vld [vmem:[%s3 + $0xc] sm:$0xf]
        %v4432 = vld [vmem:[%s3 + $0x10] sm:$0xf]
        %v4433 = vld [vmem:[%s3 + $0x14] sm:$0xf]
        %v4434 = vld [vmem:[%s3 + $0x18] sm:$0xf]
        %v4435 = vld [vmem:[%s3 + $0x1c] sm:$0xf]
        %v4436 = vld [vmem:[%s3 + $0x20] sm:$0xf]
        %v4437 = vld [vmem:[%s3 + $0x24] sm:$0xf]
        %v4438 = vld [vmem:[%s3 + $0x28] sm:$0xf]
        %v4439 = vld [vmem:[%s3 + $0x2c] sm:$0xf]
        %v4440 = vld [vmem:[%s3 + $0x30] sm:$0xf]
        %v4441 = vld [vmem:[%s3 + $0x34] sm:$0xf]
        %v4442 = vld [vmem:[%s3 + $0x38] sm:$0xf]
        %v4443 = vld [vmem:[%s3 + $0x3c] sm:$0xf]
        %v4444 = vld [vmem:[%s3 + $0x40] sm:$0xf]
        %v4445 = vld [vmem:[%s3 + $0x44] sm:$0xf]
        %v4446 = vld [vmem:[%s3 + $0x48] sm:$0xf]
        %v4447 = vld [vmem:[%s3 + $0x4c] sm:$0xf]
        %v4448 = vld [vmem:[%s3 + $0x50] sm:$0xf]
        %v4449 = vld [vmem:[%s3 + $0x54] sm:$0xf]
        %v4450 = vld [vmem:[%s3 + $0x58] sm:$0xf]
        %v4451 = vld [vmem:[%s3 + $0x5c] sm:$0xf]
        %v4452 = vld [vmem:[%s3 + $0x60] sm:$0xf]
        %v4453 = vld [vmem:[%s3 + $0x64] sm:$0xf]
        %v4454 = vld [vmem:[%s3 + $0x68] sm:$0xf]
        %v4455 = vld [vmem:[%s3 + $0x6c] sm:$0xf]
        %v4456 = vld [vmem:[%s3 + $0x70] sm:$0xf]
        %v4457 = vld [vmem:[%s3 + $0x74] sm:$0xf]
        %v4458 = vld [vmem:[%s3 + $0x78] sm:$0xf]
        %v4459 = vld [vmem:[%s3 + $0x7c] sm:$0xf]
        %v4460 = vld [vmem:[%s3 + $0x80] sm:$0xf]
        %v4461 = vld [vmem:[%s3 + $0x84] sm:$0xf]
        %v4462 = vld [vmem:[%s3 + $0x88] sm:$0xf]
        %v4463 = vld [vmem:[%s3 + $0x8c] sm:$0xf]
        %v4464 = vld [vmem:[%s4] sm:$0x1]
        %v4466 = vperm.slane %v4464, 0
        %v4532 = vunpack.c.l.b16 %v4364
        %v4533 = vunpack.c.h.b16 %v4364
        %v4534 = vunpack.c.l.b16 %v4365
        %v4535 = vunpack.c.l.b16 %v4366
        %v4536 = vunpack.c.h.b16 %v4366
        %v4537 = vunpack.c.l.b16 %v4367
        %v4538 = vunpack.c.l.b16 %v4368
        %v4539 = vunpack.c.h.b16 %v4368
        %v4540 = vunpack.c.l.b16 %v4369
        %v4541 = vunpack.c.l.b16 %v4370
        %v4542 = vunpack.c.h.b16 %v4370
        %v4543 = vunpack.c.l.b16 %v4371
        %v4544 = vunpack.c.l.b16 %v4372
        %v4545 = vunpack.c.h.b16 %v4372
        %v4546 = vunpack.c.l.b16 %v4373
        %v4547 = vunpack.c.l.b16 %v4374
        %v4548 = vunpack.c.h.b16 %v4374
        %v4549 = vunpack.c.l.b16 %v4375
        %v4550 = vunpack.c.l.b16 %v4376
        %v4551 = vunpack.c.h.b16 %v4376
        %v4552 = vunpack.c.l.b16 %v4377
        %v4553 = vunpack.c.l.b16 %v4378
        %v4554 = vunpack.c.h.b16 %v4378
        %v4555 = vunpack.c.l.b16 %v4379
        %v4556 = vunpack.c.l.b16 %v4380
        %v4557 = vunpack.c.h.b16 %v4380
        %v4558 = vunpack.c.l.b16 %v4381
        %v4559 = vunpack.c.l.b16 %v4382
        %v4560 = vunpack.c.h.b16 %v4382
        %v4561 = vunpack.c.l.b16 %v4383
        %v4562 = vunpack.c.l.b16 %v4384
        %v4563 = vunpack.c.h.b16 %v4384
        %v4564 = vunpack.c.l.b16 %v4385
        %v4565 = vunpack.c.l.b16 %v4386
        %v4566 = vunpack.c.h.b16 %v4386
        %v4567 = vunpack.c.l.b16 %v4387
        %v4568 = vunpack.c.l.b16 %v4388
        %v4569 = vunpack.c.h.b16 %v4388
        %v4570 = vunpack.c.l.b16 %v4389
        %v4571 = vunpack.c.l.b16 %v4390
        %v4572 = vunpack.c.h.b16 %v4390
        %v4573 = vunpack.c.l.b16 %v4391
        %v4574 = vunpack.c.l.b16 %v4392
        %v4575 = vunpack.c.h.b16 %v4392
        %v4576 = vunpack.c.l.b16 %v4393
        %v4577 = vunpack.c.l.b16 %v4394
        %v4578 = vunpack.c.h.b16 %v4394
        %v4579 = vunpack.c.l.b16 %v4395
        %v4580 = vunpack.c.l.b16 %v4396
        %v4581 = vunpack.c.h.b16 %v4396
        %v4582 = vunpack.c.l.b16 %v4397
        %v4583 = vunpack.c.l.b16 %v4398
        %v4584 = vunpack.c.h.b16 %v4398
        %v4585 = vunpack.c.l.b16 %v4399
        %v4586 = vunpack.c.l.b16 %v4400
        %v4587 = vunpack.c.h.b16 %v4400
        %v4588 = vunpack.c.l.b16 %v4401
        %v4589 = vunpack.c.l.b16 %v4402
        %v4590 = vunpack.c.h.b16 %v4402
        %v4591 = vunpack.c.l.b16 %v4403
        %v4592 = vunpack.c.l.b16 %v4404
        %v4593 = vunpack.c.h.b16 %v4404
        %v4594 = vunpack.c.l.b16 %v4405
        %v4595 = vunpack.c.l.b16 %v4406
        %v4596 = vunpack.c.h.b16 %v4406
        %v4597 = vunpack.c.l.b16 %v4407
        %v4598 = vunpack.c.l.b16 %v4408
        %v4599 = vunpack.c.h.b16 %v4408
        %v4600 = vunpack.c.l.b16 %v4409
        %v4601 = vunpack.c.l.b16 %v4410
        %v4602 = vunpack.c.h.b16 %v4410
        %v4603 = vunpack.c.l.b16 %v4411
        %v4604 = vunpack.c.l.b16 %v4412
        %v4605 = vunpack.c.h.b16 %v4412
        %v4606 = vunpack.c.l.b16 %v4413
        %v4607 = vunpack.c.l.b16 %v4414
        %v4608 = vunpack.c.h.b16 %v4414
        %v4609 = vunpack.c.l.b16 %v4415
        %v4610 = vunpack.c.l.b16 %v4416
        %v4611 = vunpack.c.h.b16 %v4416
        %v4612 = vunpack.c.l.b16 %v4417
        %v4613 = vunpack.c.l.b16 %v4418
        %v4614 = vunpack.c.h.b16 %v4418
        %v4615 = vunpack.c.l.b16 %v4419
        %v4616 = vunpack.c.l.b16 %v4420
        %v4617 = vunpack.c.h.b16 %v4420
        %v4618 = vunpack.c.l.b16 %v4421
        %v4619 = vunpack.c.l.b16 %v4422
        %v4620 = vunpack.c.h.b16 %v4422
        %v4621 = vunpack.c.l.b16 %v4423
        %v4622 = vunpack.c.l.b16 %v4424
        %v4623 = vunpack.c.h.b16 %v4424
        %v4624 = vunpack.c.l.b16 %v4425
        %v4625 = vunpack.c.l.b16 %v4426
        %v4626 = vunpack.c.h.b16 %v4426
        %v4627 = vunpack.c.l.b16 %v4427
        %v4628 = vpack.c.b16 %v4535, %v4532
        %v4629 = vpack.c.b16 %v4536, %v4533
        %v4630 = vpack.c.b16 %v4537, %v4534
        %v4631 = vpack.c.b16 %v4541, %v4538
        %v4632 = vpack.c.b16 %v4542, %v4539
        %v4633 = vpack.c.b16 %v4543, %v4540
        %v4634 = vpack.c.b16 %v4547, %v4544
        %v4635 = vpack.c.b16 %v4548, %v4545
        %v4636 = vpack.c.b16 %v4549, %v4546
        %v4637 = vpack.c.b16 %v4553, %v4550
        %v4638 = vpack.c.b16 %v4554, %v4551
        %v4639 = vpack.c.b16 %v4555, %v4552
        %v4640 = vpack.c.b16 %v4559, %v4556
        %v4641 = vpack.c.b16 %v4560, %v4557
        %v4642 = vpack.c.b16 %v4561, %v4558
        %v4643 = vpack.c.b16 %v4565, %v4562
        %v4644 = vpack.c.b16 %v4566, %v4563
        %v4645 = vpack.c.b16 %v4567, %v4564
        %v4646 = vpack.c.b16 %v4571, %v4568
        %v4647 = vpack.c.b16 %v4572, %v4569
        %v4648 = vpack.c.b16 %v4573, %v4570
        %v4649 = vpack.c.b16 %v4577, %v4574
        %v4650 = vpack.c.b16 %v4578, %v4575
        %v4651 = vpack.c.b16 %v4579, %v4576
        %v4652 = vpack.c.b16 %v4583, %v4580
        %v4653 = vpack.c.b16 %v4584, %v4581
        %v4654 = vpack.c.b16 %v4585, %v4582
        %v4655 = vpack.c.b16 %v4589, %v4586
        %v4656 = vpack.c.b16 %v4590, %v4587
        %v4657 = vpack.c.b16 %v4591, %v4588
        %v4658 = vpack.c.b16 %v4595, %v4592
        %v4659 = vpack.c.b16 %v4596, %v4593
        %v4660 = vpack.c.b16 %v4597, %v4594
        %v4661 = vpack.c.b16 %v4601, %v4598
        %v4662 = vpack.c.b16 %v4602, %v4599
        %v4663 = vpack.c.b16 %v4603, %v4600
        %v4664 = vpack.c.b16 %v4607, %v4604
        %v4665 = vpack.c.b16 %v4608, %v4605
        %v4666 = vpack.c.b16 %v4609, %v4606
        %v4667 = vpack.c.b16 %v4613, %v4610
        %v4668 = vpack.c.b16 %v4614, %v4611
        %v4669 = vpack.c.b16 %v4615, %v4612
        %v4670 = vpack.c.b16 %v4619, %v4616
        %v4671 = vpack.c.b16 %v4620, %v4617
        %v4672 = vpack.c.b16 %v4621, %v4618
        %v4673 = vpack.c.b16 %v4625, %v4622
        %v4674 = vpack.c.b16 %v4626, %v4623
        %v4675 = vpack.c.b16 %v4627, %v4624
        %v4744 = vunpack.c.l.b16 %v4428
        %v4745 = vunpack.c.l.b16 %v4429
        %v4746 = vunpack.c.l.b16 %v4430
        %v4747 = vunpack.c.l.b16 %v4431
        %v4748 = vunpack.c.l.b16 %v4432
        %v4749 = vunpack.c.l.b16 %v4433
        %v4750 = vunpack.c.l.b16 %v4434
        %v4751 = vunpack.c.l.b16 %v4435
        %v4752 = vunpack.c.l.b16 %v4436
        %v4753 = vunpack.c.l.b16 %v4437
        %v4754 = vunpack.c.l.b16 %v4438
        %v4755 = vunpack.c.l.b16 %v4439
        %v4756 = vunpack.c.l.b16 %v4440
        %v4757 = vunpack.c.l.b16 %v4441
        %v4758 = vunpack.c.l.b16 %v4442
        %v4759 = vunpack.c.l.b16 %v4443
        %v4760 = vunpack.c.l.b16 %v4444
        %v4761 = vunpack.c.l.b16 %v4445
        %v4762 = vunpack.c.l.b16 %v4446
        %v4763 = vunpack.c.l.b16 %v4447
        %v4764 = vunpack.c.l.b16 %v4448
        %v4765 = vunpack.c.l.b16 %v4449
        %v4766 = vunpack.c.l.b16 %v4450
        %v4767 = vunpack.c.l.b16 %v4451
        %v4768 = vunpack.c.l.b16 %v4452
        %v4769 = vunpack.c.l.b16 %v4453
        %v4770 = vunpack.c.l.b16 %v4454
        %v4771 = vunpack.c.l.b16 %v4455
        %v4772 = vunpack.c.l.b16 %v4456
        %v4773 = vunpack.c.l.b16 %v4457
        %v4774 = vunpack.c.l.b16 %v4458
        %v4775 = vunpack.c.l.b16 %v4459
        %v4776 = vunpack.c.l.b16 %v4460
        %v4777 = vunpack.c.l.b16 %v4461
        %v4778 = vunpack.c.l.b16 %v4462
        %v4779 = vunpack.c.l.b16 %v4463
        %v4780 = vpack.c.b16 %v4745, %v4744
        %v4781 = vpack.c.b16 %v4747, %v4746
        %v4782 = vpack.c.b16 %v4749, %v4748
        %v4783 = vpack.c.b16 %v4751, %v4750
        %v4784 = vpack.c.b16 %v4753, %v4752
        %v4785 = vpack.c.b16 %v4755, %v4754
        %v4786 = vpack.c.b16 %v4757, %v4756
        %v4787 = vpack.c.b16 %v4759, %v4758
        %v4788 = vpack.c.b16 %v4761, %v4760
        %v4789 = vpack.c.b16 %v4763, %v4762
        %v4790 = vpack.c.b16 %v4765, %v4764
        %v4791 = vpack.c.b16 %v4767, %v4766
        %v4792 = vpack.c.b16 %v4769, %v4768
        %v4793 = vpack.c.b16 %v4771, %v4770
        %v4794 = vpack.c.b16 %v4773, %v4772
        %v4795 = vpack.c.b16 %v4775, %v4774
        %v4796 = vpack.c.b16 %v4777, %v4776
        %v4797 = vpack.c.b16 %v4779, %v4778
        %v4817 = vsel %vm2648, %v4630, 0
        %v4820 = vsel %vm2648, %v4633, 0
        %v4823 = vsel %vm2648, %v4636, 0
        %v4826 = vsel %vm2648, %v4639, 0
        %v4829 = vsel %vm2648, %v4642, 0
        %v4832 = vsel %vm2648, %v4645, 0
        %v4835 = vsel %vm2648, %v4648, 0
        %v4838 = vsel %vm2648, %v4651, 0
        %v4841 = vsel %vm2648, %v4654, 0
        %v4844 = vsel %vm2648, %v4657, 0
        %v4847 = vsel %vm2648, %v4660, 0
        %v4850 = vsel %vm2648, %v4663, 0
        %v4853 = vsel %vm2648, %v4666, 0
        %v4856 = vsel %vm2648, %v4669, 0
        %v4859 = vsel %vm2648, %v4672, 0
        %v4862 = vsel %vm2648, %v4675, 0
        %4864 = vmatpush.bf16.msra.mxu0 %v4787
        %4865 = vmatpush.bf16.msra.mxu0 %v4786
        %4866 = vmatpush.bf16.msra.mxu0 %v4785
        %4867 = vmatpush.bf16.msra.mxu0 %v4784
        %4868 = vmatpush.bf16.msra.mxu0 %v4783
        %4869 = vmatpush.bf16.msra.mxu0 %v4782
        %4870 = vmatpush.bf16.msra.mxu0 %v4781
        %4871 = vmatpush.bf16.msra.mxu0 %v4780
        %4872 = vmatmul.bf16.gmra.mxu0 %v4628
        %v4873 = vpop.f32.mrf.mxu0
        %v4874 = vadd.f32 %v4466, %v4873
        %v4875 = vpop.f32.mrf.mxu0
        %v4876 = vadd.f32 %v4466, %v4875
        %4877 = vmatmul.bf16.gmra.mxu0 %v4631
        %v4878 = vpop.f32.mrf.mxu0
        %v4879 = vadd.f32 %v4466, %v4878
        %v4880 = vpop.f32.mrf.mxu0
        %v4881 = vadd.f32 %v4466, %v4880
        %4882 = vmatmul.bf16.gmra.mxu0 %v4634
        %v4883 = vpop.f32.mrf.mxu0
        %v4884 = vadd.f32 %v4466, %v4883
        %v4885 = vpop.f32.mrf.mxu0
        %v4886 = vadd.f32 %v4466, %v4885
        %4887 = vmatmul.bf16.gmra.mxu0 %v4637
        %v4888 = vpop.f32.mrf.mxu0
        %v4889 = vadd.f32 %v4466, %v4888
        %v4890 = vpop.f32.mrf.mxu0
        %v4891 = vadd.f32 %v4466, %v4890
        %4892 = vmatmul.bf16.gmra.mxu0 %v4640
        %v4893 = vpop.f32.mrf.mxu0
        %v4894 = vadd.f32 %v4466, %v4893
        %v4895 = vpop.f32.mrf.mxu0
        %v4896 = vadd.f32 %v4466, %v4895
        %4897 = vmatmul.bf16.gmra.mxu0 %v4643
        %v4898 = vpop.f32.mrf.mxu0
        %v4899 = vadd.f32 %v4466, %v4898
        %v4900 = vpop.f32.mrf.mxu0
        %v4901 = vadd.f32 %v4466, %v4900
        %4902 = vmatmul.bf16.gmra.mxu0 %v4646
        %v4903 = vpop.f32.mrf.mxu0
        %v4904 = vadd.f32 %v4466, %v4903
        %v4905 = vpop.f32.mrf.mxu0
        %v4906 = vadd.f32 %v4466, %v4905
        %4907 = vmatmul.bf16.gmra.mxu0 %v4649
        %v4908 = vpop.f32.mrf.mxu0
        %v4909 = vadd.f32 %v4466, %v4908
        %v4910 = vpop.f32.mrf.mxu0
        %v4911 = vadd.f32 %v4466, %v4910
        %4912 = vmatmul.bf16.gmra.mxu0 %v4652
        %v4913 = vpop.f32.mrf.mxu0
        %v4914 = vadd.f32 %v4466, %v4913
        %v4915 = vpop.f32.mrf.mxu0
        %v4916 = vadd.f32 %v4466, %v4915
        %4917 = vmatmul.bf16.gmra.mxu0 %v4655
        %v4918 = vpop.f32.mrf.mxu0
        %v4919 = vadd.f32 %v4466, %v4918
        %v4920 = vpop.f32.mrf.mxu0
        %v4921 = vadd.f32 %v4466, %v4920
        %4922 = vmatmul.bf16.gmra.mxu0 %v4658
        %v4923 = vpop.f32.mrf.mxu0
        %v4924 = vadd.f32 %v4466, %v4923
        %v4925 = vpop.f32.mrf.mxu0
        %v4926 = vadd.f32 %v4466, %v4925
        %4927 = vmatmul.bf16.gmra.mxu0 %v4661
        %v4928 = vpop.f32.mrf.mxu0
        %v4929 = vadd.f32 %v4466, %v4928
        %v4930 = vpop.f32.mrf.mxu0
        %v4931 = vadd.f32 %v4466, %v4930
        %4932 = vmatmul.bf16.gmra.mxu0 %v4664
        %v4933 = vpop.f32.mrf.mxu0
        %v4934 = vadd.f32 %v4466, %v4933
        %v4935 = vpop.f32.mrf.mxu0
        %v4936 = vadd.f32 %v4466, %v4935
        %4937 = vmatmul.bf16.gmra.mxu0 %v4667
        %v4938 = vpop.f32.mrf.mxu0
        %v4939 = vadd.f32 %v4466, %v4938
        %v4940 = vpop.f32.mrf.mxu0
        %v4941 = vadd.f32 %v4466, %v4940
        %4942 = vmatmul.bf16.gmra.mxu0 %v4670
        %v4943 = vpop.f32.mrf.mxu0
        %v4944 = vadd.f32 %v4466, %v4943
        %v4945 = vpop.f32.mrf.mxu0
        %v4946 = vadd.f32 %v4466, %v4945
        %4947 = vmatmul.bf16.gmra.mxu0 %v4673
        %v4948 = vpop.f32.mrf.mxu0
        %v4949 = vadd.f32 %v4466, %v4948
        %v4950 = vpop.f32.mrf.mxu0
        %v4951 = vadd.f32 %v4466, %v4950
        %4952 = vdwg.mxu0
        %4953 = vmatpush.bf16.msra.mxu0 %v4795
        %4954 = vmatpush.bf16.msra.mxu0 %v4794
        %4955 = vmatpush.bf16.msra.mxu0 %v4793
        %4956 = vmatpush.bf16.msra.mxu0 %v4792
        %4957 = vmatpush.bf16.msra.mxu0 %v4791
        %4958 = vmatpush.bf16.msra.mxu0 %v4790
        %4959 = vmatpush.bf16.msra.mxu0 %v4789
        %4960 = vmatpush.bf16.msra.mxu0 %v4788
        %4961 = vmatmul.bf16.gmra.mxu0 %v4629
        %v4962 = vpop.f32.mrf.mxu0
        %v4963 = vadd.f32 %v4874, %v4962
        %v4964 = vpop.f32.mrf.mxu0
        %v4965 = vadd.f32 %v4876, %v4964
        %4966 = vmatmul.bf16.gmra.mxu0 %v4632
        %v4967 = vpop.f32.mrf.mxu0
        %v4968 = vadd.f32 %v4879, %v4967
        %v4969 = vpop.f32.mrf.mxu0
        %v4970 = vadd.f32 %v4881, %v4969
        %4971 = vmatmul.bf16.gmra.mxu0 %v4635
        %v4972 = vpop.f32.mrf.mxu0
        %v4973 = vadd.f32 %v4884, %v4972
        %v4974 = vpop.f32.mrf.mxu0
        %v4975 = vadd.f32 %v4886, %v4974
        %4976 = vmatmul.bf16.gmra.mxu0 %v4638
        %v4977 = vpop.f32.mrf.mxu0
        %v4978 = vadd.f32 %v4889, %v4977
        %v4979 = vpop.f32.mrf.mxu0
        %v4980 = vadd.f32 %v4891, %v4979
        %4981 = vmatmul.bf16.gmra.mxu0 %v4641
        %v4982 = vpop.f32.mrf.mxu0
        %v4983 = vadd.f32 %v4894, %v4982
        %v4984 = vpop.f32.mrf.mxu0
        %v4985 = vadd.f32 %v4896, %v4984
        %4986 = vmatmul.bf16.gmra.mxu0 %v4644
        %v4987 = vpop.f32.mrf.mxu0
        %v4988 = vadd.f32 %v4899, %v4987
        %v4989 = vpop.f32.mrf.mxu0
        %v4990 = vadd.f32 %v4901, %v4989
        %4991 = vmatmul.bf16.gmra.mxu0 %v4647
        %v4992 = vpop.f32.mrf.mxu0
        %v4993 = vadd.f32 %v4904, %v4992
        %v4994 = vpop.f32.mrf.mxu0
        %v4995 = vadd.f32 %v4906, %v4994
        %4996 = vmatmul.bf16.gmra.mxu0 %v4650
        %v4997 = vpop.f32.mrf.mxu0
        %v4998 = vadd.f32 %v4909, %v4997
        %v4999 = vpop.f32.mrf.mxu0
        %v5000 = vadd.f32 %v4911, %v4999
        %5001 = vmatmul.bf16.gmra.mxu0 %v4653
        %v5002 = vpop.f32.mrf.mxu0
        %v5003 = vadd.f32 %v4914, %v5002
        %v5004 = vpop.f32.mrf.mxu0
        %v5005 = vadd.f32 %v4916, %v5004
        %5006 = vmatmul.bf16.gmra.mxu0 %v4656
        %v5007 = vpop.f32.mrf.mxu0
        %v5008 = vadd.f32 %v4919, %v5007
        %v5009 = vpop.f32.mrf.mxu0
        %v5010 = vadd.f32 %v4921, %v5009
        %5011 = vmatmul.bf16.gmra.mxu0 %v4659
        %v5012 = vpop.f32.mrf.mxu0
        %v5013 = vadd.f32 %v4924, %v5012
        %v5014 = vpop.f32.mrf.mxu0
        %v5015 = vadd.f32 %v4926, %v5014
        %5016 = vmatmul.bf16.gmra.mxu0 %v4662
        %v5017 = vpop.f32.mrf.mxu0
        %v5018 = vadd.f32 %v4929, %v5017
        %v5019 = vpop.f32.mrf.mxu0
        %v5020 = vadd.f32 %v4931, %v5019
        %5021 = vmatmul.bf16.gmra.mxu0 %v4665
        %v5022 = vpop.f32.mrf.mxu0
        %v5023 = vadd.f32 %v4934, %v5022
        %v5024 = vpop.f32.mrf.mxu0
        %v5025 = vadd.f32 %v4936, %v5024
        %5026 = vmatmul.bf16.gmra.mxu0 %v4668
        %v5027 = vpop.f32.mrf.mxu0
        %v5028 = vadd.f32 %v4939, %v5027
        %v5029 = vpop.f32.mrf.mxu0
        %v5030 = vadd.f32 %v4941, %v5029
        %5031 = vmatmul.bf16.gmra.mxu0 %v4671
        %v5032 = vpop.f32.mrf.mxu0
        %v5033 = vadd.f32 %v4944, %v5032
        %v5034 = vpop.f32.mrf.mxu0
        %v5035 = vadd.f32 %v4946, %v5034
        %5036 = vmatmul.bf16.gmra.mxu0 %v4674
        %v5037 = vpop.f32.mrf.mxu0
        %v5038 = vadd.f32 %v4949, %v5037
        %v5039 = vpop.f32.mrf.mxu0
        %v5040 = vadd.f32 %v4951, %v5039
        %5041 = vdwg.mxu0
        %5042 = vmatpush.bf16.msra.mxu0 0
        %5043 = vmatpush.bf16.msra.mxu0 0
        %5044 = vmatpush.bf16.msra.mxu0 0
        %5045 = vmatpush.bf16.msra.mxu0 0
        %5046 = vmatpush.bf16.msra.mxu0 0
        %5047 = vmatpush.bf16.msra.mxu0 0
        %5048 = vmatpush.bf16.msra.mxu0 %v4797
        %5049 = vmatpush.bf16.msra.mxu0 %v4796
        %5050 = vmatmul.bf16.gmra.mxu0 %v4817
        %v5051 = vpop.f32.mrf.mxu0
        %v5052 = vadd.f32 %v4963, %v5051
        %v5053 = vpop.f32.mrf.mxu0
        %v5054 = vadd.f32 %v4965, %v5053
        %5055 = vmatmul.bf16.gmra.mxu0 %v4820
        %v5056 = vpop.f32.mrf.mxu0
        %v5057 = vadd.f32 %v4968, %v5056
        %v5058 = vpop.f32.mrf.mxu0
        %v5059 = vadd.f32 %v4970, %v5058
        %5060 = vmatmul.bf16.gmra.mxu0 %v4823
        %v5061 = vpop.f32.mrf.mxu0
        %v5062 = vadd.f32 %v4973, %v5061
        %v5063 = vpop.f32.mrf.mxu0
        %v5064 = vadd.f32 %v4975, %v5063
        %5065 = vmatmul.bf16.gmra.mxu0 %v4826
        %v5066 = vpop.f32.mrf.mxu0
        %v5067 = vadd.f32 %v4978, %v5066
        %v5068 = vpop.f32.mrf.mxu0
        %v5069 = vadd.f32 %v4980, %v5068
        %5070 = vmatmul.bf16.gmra.mxu0 %v4829
        %v5071 = vpop.f32.mrf.mxu0
        %v5072 = vadd.f32 %v4983, %v5071
        %v5073 = vpop.f32.mrf.mxu0
        %v5074 = vadd.f32 %v4985, %v5073
        %5075 = vmatmul.bf16.gmra.mxu0 %v4832
        %v5076 = vpop.f32.mrf.mxu0
        %v5077 = vadd.f32 %v4988, %v5076
        %v5078 = vpop.f32.mrf.mxu0
        %v5079 = vadd.f32 %v4990, %v5078
        %5080 = vmatmul.bf16.gmra.mxu0 %v4835
        %v5081 = vpop.f32.mrf.mxu0
        %v5082 = vadd.f32 %v4993, %v5081
        %v5083 = vpop.f32.mrf.mxu0
        %v5084 = vadd.f32 %v4995, %v5083
        %5085 = vmatmul.bf16.gmra.mxu0 %v4838
        %v5086 = vpop.f32.mrf.mxu0
        %v5087 = vadd.f32 %v4998, %v5086
        %v5088 = vpop.f32.mrf.mxu0
        %v5089 = vadd.f32 %v5000, %v5088
        %5090 = vmatmul.bf16.gmra.mxu0 %v4841
        %v5091 = vpop.f32.mrf.mxu0
        %v5092 = vadd.f32 %v5003, %v5091
        %v5093 = vpop.f32.mrf.mxu0
        %v5094 = vadd.f32 %v5005, %v5093
        %5095 = vmatmul.bf16.gmra.mxu0 %v4844
        %v5096 = vpop.f32.mrf.mxu0
        %v5097 = vadd.f32 %v5008, %v5096
        %v5098 = vpop.f32.mrf.mxu0
        %v5099 = vadd.f32 %v5010, %v5098
        %5100 = vmatmul.bf16.gmra.mxu0 %v4847
        %v5101 = vpop.f32.mrf.mxu0
        %v5102 = vadd.f32 %v5013, %v5101
        %v5103 = vpop.f32.mrf.mxu0
        %v5104 = vadd.f32 %v5015, %v5103
        %5105 = vmatmul.bf16.gmra.mxu0 %v4850
        %v5106 = vpop.f32.mrf.mxu0
        %v5107 = vadd.f32 %v5018, %v5106
        %v5108 = vpop.f32.mrf.mxu0
        %v5109 = vadd.f32 %v5020, %v5108
        %5110 = vmatmul.bf16.gmra.mxu0 %v4853
        %v5111 = vpop.f32.mrf.mxu0
        %v5112 = vadd.f32 %v5023, %v5111
        %v5113 = vpop.f32.mrf.mxu0
        %v5114 = vadd.f32 %v5025, %v5113
        %5115 = vmatmul.bf16.gmra.mxu0 %v4856
        %v5116 = vpop.f32.mrf.mxu0
        %v5117 = vadd.f32 %v5028, %v5116
        %v5118 = vpop.f32.mrf.mxu0
        %v5119 = vadd.f32 %v5030, %v5118
        %5120 = vmatmul.bf16.gmra.mxu0 %v4859
        %v5121 = vpop.f32.mrf.mxu0
        %v5122 = vadd.f32 %v5033, %v5121
        %v5123 = vpop.f32.mrf.mxu0
        %v5124 = vadd.f32 %v5035, %v5123
        %5125 = vmatmul.bf16.gmra.mxu0 %v4862
        %v5126 = vpop.f32.mrf.mxu0
        %v5127 = vadd.f32 %v5038, %v5126
        %v5128 = vpop.f32.mrf.mxu0
        %v5129 = vadd.f32 %v5040, %v5128
        %5130 = vdwg.mxu0
        %v5131 = vmax.f32 %v5052, 0.0
        %v5132 = vmax.f32 %v5054, 0.0
        %v5133 = vmax.f32 %v5057, 0.0
        %v5134 = vmax.f32 %v5059, 0.0
        %v5135 = vmax.f32 %v5062, 0.0
        %v5136 = vmax.f32 %v5064, 0.0
        %v5137 = vmax.f32 %v5067, 0.0
        %v5138 = vmax.f32 %v5069, 0.0
        %v5139 = vmax.f32 %v5072, 0.0
        %v5140 = vmax.f32 %v5074, 0.0
        %v5141 = vmax.f32 %v5077, 0.0
        %v5142 = vmax.f32 %v5079, 0.0
        %v5143 = vmax.f32 %v5082, 0.0
        %v5144 = vmax.f32 %v5084, 0.0
        %v5145 = vmax.f32 %v5087, 0.0
        %v5146 = vmax.f32 %v5089, 0.0
        %v5147 = vmax.f32 %v5092, 0.0
        %v5148 = vmax.f32 %v5094, 0.0
        %v5149 = vmax.f32 %v5097, 0.0
        %v5150 = vmax.f32 %v5099, 0.0
        %v5151 = vmax.f32 %v5102, 0.0
        %v5152 = vmax.f32 %v5104, 0.0
        %v5153 = vmax.f32 %v5107, 0.0
        %v5154 = vmax.f32 %v5109, 0.0
        %v5155 = vmax.f32 %v5112, 0.0
        %v5156 = vmax.f32 %v5114, 0.0
        %v5157 = vmax.f32 %v5117, 0.0
        %v5158 = vmax.f32 %v5119, 0.0
        %v5159 = vmax.f32 %v5122, 0.0
        %v5160 = vmax.f32 %v5124, 0.0
        %v5161 = vmax.f32 %v5127, 0.0
        %v5162 = vmax.f32 %v5129, 0.0
        %v5163 = vsel %vm2648, %v5131, -inf
        %v5164 = vsel %vm2648, %v5133, -inf
        %v5165 = vmax.f32 %v5163, %v5164
        %v5166 = vsel %vm2648, %v5132, -inf
        %v5167 = vsel %vm2648, %v5134, -inf
        %v5168 = vmax.f32 %v5166, %v5167
        %v5169 = vsel %vm2648, %v5135, -inf
        %v5170 = vsel %vm2648, %v5137, -inf
        %v5171 = vmax.f32 %v5169, %v5170
        %v5172 = vsel %vm2648, %v5136, -inf
        %v5173 = vsel %vm2648, %v5138, -inf
        %v5174 = vmax.f32 %v5172, %v5173
        %v5175 = vsel %vm2648, %v5139, -inf
        %v5176 = vsel %vm2648, %v5141, -inf
        %v5177 = vmax.f32 %v5175, %v5176
        %v5178 = vsel %vm2648, %v5140, -inf
        %v5179 = vsel %vm2648, %v5142, -inf
        %v5180 = vmax.f32 %v5178, %v5179
        %v5181 = vsel %vm2648, %v5143, -inf
        %v5182 = vsel %vm2648, %v5145, -inf
        %v5183 = vmax.f32 %v5181, %v5182
        %v5184 = vsel %vm2648, %v5144, -inf
        %v5185 = vsel %vm2648, %v5146, -inf
        %v5186 = vmax.f32 %v5184, %v5185
        %v5187 = vsel %vm2648, %v5147, -inf
        %v5188 = vsel %vm2648, %v5149, -inf
        %v5189 = vmax.f32 %v5187, %v5188
        %v5190 = vsel %vm2648, %v5148, -inf
        %v5191 = vsel %vm2648, %v5150, -inf
        %v5192 = vmax.f32 %v5190, %v5191
        %v5193 = vsel %vm2648, %v5151, -inf
        %v5194 = vsel %vm2648, %v5153, -inf
        %v5195 = vmax.f32 %v5193, %v5194
        %v5196 = vsel %vm2648, %v5152, -inf
        %v5197 = vsel %vm2648, %v5154, -inf
        %v5198 = vmax.f32 %v5196, %v5197
        %v5199 = vsel %vm2648, %v5155, -inf
        %v5200 = vsel %vm2648, %v5157, -inf
        %v5201 = vmax.f32 %v5199, %v5200
        %v5202 = vsel %vm2648, %v5156, -inf
        %v5203 = vsel %vm2648, %v5158, -inf
        %v5204 = vmax.f32 %v5202, %v5203
        %v5205 = vsel %vm2648, %v5159, -inf
        %v5206 = vsel %vm2648, %v5161, -inf
        %v5207 = vmax.f32 %v5205, %v5206
        %v5208 = vsel %vm2648, %v5160, -inf
        %v5209 = vsel %vm2648, %v5162, -inf
        %v5210 = vmax.f32 %v5208, %v5209
        %v5227 = vrot.slane %v5165, 2
        %v5228 = vrot.slane %v5165, 4
        %v5229 = vrot.slane %v5165, 6
        %v5230 = vrot.slane %v5168, 2
        %v5231 = vrot.slane %v5168, 4
        %v5232 = vrot.slane %v5168, 6
        %v5233 = vrot.slane %v5171, 2
        %v5234 = vrot.slane %v5171, 4
        %v5235 = vrot.slane %v5171, 6
        %v5236 = vrot.slane %v5174, 2
        %v5237 = vrot.slane %v5174, 4
        %v5238 = vrot.slane %v5174, 6
        %v5239 = vrot.slane %v5177, 2
        %v5240 = vrot.slane %v5177, 4
        %v5241 = vrot.slane %v5177, 6
        %v5242 = vrot.slane %v5180, 2
        %v5243 = vrot.slane %v5180, 4
        %v5244 = vrot.slane %v5180, 6
        %v5245 = vrot.slane %v5183, 2
        %v5246 = vrot.slane %v5183, 4
        %v5247 = vrot.slane %v5183, 6
        %v5248 = vrot.slane %v5186, 2
        %v5249 = vrot.slane %v5186, 4
        %v5250 = vrot.slane %v5186, 6
        %v5251 = vrot.slane %v5189, 2
        %v5252 = vrot.slane %v5189, 4
        %v5253 = vrot.slane %v5189, 6
        %v5254 = vrot.slane %v5192, 2
        %v5255 = vrot.slane %v5192, 4
        %v5256 = vrot.slane %v5192, 6
        %v5257 = vrot.slane %v5195, 2
        %v5258 = vrot.slane %v5195, 4
        %v5259 = vrot.slane %v5195, 6
        %v5260 = vrot.slane %v5198, 2
        %v5261 = vrot.slane %v5198, 4
        %v5262 = vrot.slane %v5198, 6
        %v5263 = vrot.slane %v5201, 2
        %v5264 = vrot.slane %v5201, 4
        %v5265 = vrot.slane %v5201, 6
        %v5266 = vrot.slane %v5204, 2
        %v5267 = vrot.slane %v5204, 4
        %v5268 = vrot.slane %v5204, 6
        %v5269 = vrot.slane %v5207, 2
        %v5270 = vrot.slane %v5207, 4
        %v5271 = vrot.slane %v5207, 6
        %v5272 = vrot.slane %v5210, 2
        %v5273 = vrot.slane %v5210, 4
        %v5274 = vrot.slane %v5210, 6
        %v5323 = vsel %vm2651, %v5165, -inf
        %v5324 = vrot.slane %v5323, 4
        %v5325 = vmax.f32 %v5323, %v5324
        %v5326 = vrot.slane %v5325, 2
        %v5327 = vmax.f32 %v5325, %v5326
        %v5328 = vrot.slane %v5327, 1
        %v5329 = vmax.f32 %v5327, %v5328
        %v5330 = vsel %vm2651, %v5227, -inf
        %v5331 = vrot.slane %v5330, 4
        %v5332 = vmax.f32 %v5330, %v5331
        %v5333 = vrot.slane %v5332, 2
        %v5334 = vmax.f32 %v5332, %v5333
        %v5335 = vrot.slane %v5334, 1
        %v5336 = vmax.f32 %v5334, %v5335
        %v5337 = vsel %vm2651, %v5228, -inf
        %v5338 = vrot.slane %v5337, 4
        %v5339 = vmax.f32 %v5337, %v5338
        %v5340 = vrot.slane %v5339, 2
        %v5341 = vmax.f32 %v5339, %v5340
        %v5342 = vrot.slane %v5341, 1
        %v5343 = vmax.f32 %v5341, %v5342
        %v5344 = vsel %vm2651, %v5229, -inf
        %v5345 = vrot.slane %v5344, 4
        %v5346 = vmax.f32 %v5344, %v5345
        %v5347 = vrot.slane %v5346, 2
        %v5348 = vmax.f32 %v5346, %v5347
        %v5349 = vrot.slane %v5348, 1
        %v5350 = vmax.f32 %v5348, %v5349
        %v5351 = vsel %vm2651, %v5168, -inf
        %v5352 = vrot.slane %v5351, 4
        %v5353 = vmax.f32 %v5351, %v5352
        %v5354 = vrot.slane %v5353, 2
        %v5355 = vmax.f32 %v5353, %v5354
        %v5356 = vrot.slane %v5355, 1
        %v5357 = vmax.f32 %v5355, %v5356
        %v5358 = vsel %vm2651, %v5230, -inf
        %v5359 = vrot.slane %v5358, 4
        %v5360 = vmax.f32 %v5358, %v5359
        %v5361 = vrot.slane %v5360, 2
        %v5362 = vmax.f32 %v5360, %v5361
        %v5363 = vrot.slane %v5362, 1
        %v5364 = vmax.f32 %v5362, %v5363
        %v5365 = vsel %vm2651, %v5231, -inf
        %v5366 = vrot.slane %v5365, 4
        %v5367 = vmax.f32 %v5365, %v5366
        %v5368 = vrot.slane %v5367, 2
        %v5369 = vmax.f32 %v5367, %v5368
        %v5370 = vrot.slane %v5369, 1
        %v5371 = vmax.f32 %v5369, %v5370
        %v5372 = vsel %vm2651, %v5232, -inf
        %v5373 = vrot.slane %v5372, 4
        %v5374 = vmax.f32 %v5372, %v5373
        %v5375 = vrot.slane %v5374, 2
        %v5376 = vmax.f32 %v5374, %v5375
        %v5377 = vrot.slane %v5376, 1
        %v5378 = vmax.f32 %v5376, %v5377
        %v5379 = vsel %vm2651, %v5171, -inf
        %v5380 = vrot.slane %v5379, 4
        %v5381 = vmax.f32 %v5379, %v5380
        %v5382 = vrot.slane %v5381, 2
        %v5383 = vmax.f32 %v5381, %v5382
        %v5384 = vrot.slane %v5383, 1
        %v5385 = vmax.f32 %v5383, %v5384
        %v5386 = vsel %vm2651, %v5233, -inf
        %v5387 = vrot.slane %v5386, 4
        %v5388 = vmax.f32 %v5386, %v5387
        %v5389 = vrot.slane %v5388, 2
        %v5390 = vmax.f32 %v5388, %v5389
        %v5391 = vrot.slane %v5390, 1
        %v5392 = vmax.f32 %v5390, %v5391
        %v5393 = vsel %vm2651, %v5234, -inf
        %v5394 = vrot.slane %v5393, 4
        %v5395 = vmax.f32 %v5393, %v5394
        %v5396 = vrot.slane %v5395, 2
        %v5397 = vmax.f32 %v5395, %v5396
        %v5398 = vrot.slane %v5397, 1
        %v5399 = vmax.f32 %v5397, %v5398
        %v5400 = vsel %vm2651, %v5235, -inf
        %v5401 = vrot.slane %v5400, 4
        %v5402 = vmax.f32 %v5400, %v5401
        %v5403 = vrot.slane %v5402, 2
        %v5404 = vmax.f32 %v5402, %v5403
        %v5405 = vrot.slane %v5404, 1
        %v5406 = vmax.f32 %v5404, %v5405
        %v5407 = vsel %vm2651, %v5174, -inf
        %v5408 = vrot.slane %v5407, 4
        %v5409 = vmax.f32 %v5407, %v5408
        %v5410 = vrot.slane %v5409, 2
        %v5411 = vmax.f32 %v5409, %v5410
        %v5412 = vrot.slane %v5411, 1
        %v5413 = vmax.f32 %v5411, %v5412
        %v5414 = vsel %vm2651, %v5236, -inf
        %v5415 = vrot.slane %v5414, 4
        %v5416 = vmax.f32 %v5414, %v5415
        %v5417 = vrot.slane %v5416, 2
        %v5418 = vmax.f32 %v5416, %v5417
        %v5419 = vrot.slane %v5418, 1
        %v5420 = vmax.f32 %v5418, %v5419
        %v5421 = vsel %vm2651, %v5237, -inf
        %v5422 = vrot.slane %v5421, 4
        %v5423 = vmax.f32 %v5421, %v5422
        %v5424 = vrot.slane %v5423, 2
        %v5425 = vmax.f32 %v5423, %v5424
        %v5426 = vrot.slane %v5425, 1
        %v5427 = vmax.f32 %v5425, %v5426
        %v5428 = vsel %vm2651, %v5238, -inf
        %v5429 = vrot.slane %v5428, 4
        %v5430 = vmax.f32 %v5428, %v5429
        %v5431 = vrot.slane %v5430, 2
        %v5432 = vmax.f32 %v5430, %v5431
        %v5433 = vrot.slane %v5432, 1
        %v5434 = vmax.f32 %v5432, %v5433
        %v5435 = vsel %vm2651, %v5177, -inf
        %v5436 = vrot.slane %v5435, 4
        %v5437 = vmax.f32 %v5435, %v5436
        %v5438 = vrot.slane %v5437, 2
        %v5439 = vmax.f32 %v5437, %v5438
        %v5440 = vrot.slane %v5439, 1
        %v5441 = vmax.f32 %v5439, %v5440
        %v5442 = vsel %vm2651, %v5239, -inf
        %v5443 = vrot.slane %v5442, 4
        %v5444 = vmax.f32 %v5442, %v5443
        %v5445 = vrot.slane %v5444, 2
        %v5446 = vmax.f32 %v5444, %v5445
        %v5447 = vrot.slane %v5446, 1
        %v5448 = vmax.f32 %v5446, %v5447
        %v5449 = vsel %vm2651, %v5240, -inf
        %v5450 = vrot.slane %v5449, 4
        %v5451 = vmax.f32 %v5449, %v5450
        %v5452 = vrot.slane %v5451, 2
        %v5453 = vmax.f32 %v5451, %v5452
        %v5454 = vrot.slane %v5453, 1
        %v5455 = vmax.f32 %v5453, %v5454
        %v5456 = vsel %vm2651, %v5241, -inf
        %v5457 = vrot.slane %v5456, 4
        %v5458 = vmax.f32 %v5456, %v5457
        %v5459 = vrot.slane %v5458, 2
        %v5460 = vmax.f32 %v5458, %v5459
        %v5461 = vrot.slane %v5460, 1
        %v5462 = vmax.f32 %v5460, %v5461
        %v5463 = vsel %vm2651, %v5180, -inf
        %v5464 = vrot.slane %v5463, 4
        %v5465 = vmax.f32 %v5463, %v5464
        %v5466 = vrot.slane %v5465, 2
        %v5467 = vmax.f32 %v5465, %v5466
        %v5468 = vrot.slane %v5467, 1
        %v5469 = vmax.f32 %v5467, %v5468
        %v5470 = vsel %vm2651, %v5242, -inf
        %v5471 = vrot.slane %v5470, 4
        %v5472 = vmax.f32 %v5470, %v5471
        %v5473 = vrot.slane %v5472, 2
        %v5474 = vmax.f32 %v5472, %v5473
        %v5475 = vrot.slane %v5474, 1
        %v5476 = vmax.f32 %v5474, %v5475
        %v5477 = vsel %vm2651, %v5243, -inf
        %v5478 = vrot.slane %v5477, 4
        %v5479 = vmax.f32 %v5477, %v5478
        %v5480 = vrot.slane %v5479, 2
        %v5481 = vmax.f32 %v5479, %v5480
        %v5482 = vrot.slane %v5481, 1
        %v5483 = vmax.f32 %v5481, %v5482
        %v5484 = vsel %vm2651, %v5244, -inf
        %v5485 = vrot.slane %v5484, 4
        %v5486 = vmax.f32 %v5484, %v5485
        %v5487 = vrot.slane %v5486, 2
        %v5488 = vmax.f32 %v5486, %v5487
        %v5489 = vrot.slane %v5488, 1
        %v5490 = vmax.f32 %v5488, %v5489
        %v5491 = vsel %vm2651, %v5183, -inf
        %v5492 = vrot.slane %v5491, 4
        %v5493 = vmax.f32 %v5491, %v5492
        %v5494 = vrot.slane %v5493, 2
        %v5495 = vmax.f32 %v5493, %v5494
        %v5496 = vrot.slane %v5495, 1
        %v5497 = vmax.f32 %v5495, %v5496
        %v5498 = vsel %vm2651, %v5245, -inf
        %v5499 = vrot.slane %v5498, 4
        %v5500 = vmax.f32 %v5498, %v5499
        %v5501 = vrot.slane %v5500, 2
        %v5502 = vmax.f32 %v5500, %v5501
        %v5503 = vrot.slane %v5502, 1
        %v5504 = vmax.f32 %v5502, %v5503
        %v5505 = vsel %vm2651, %v5246, -inf
        %v5506 = vrot.slane %v5505, 4
        %v5507 = vmax.f32 %v5505, %v5506
        %v5508 = vrot.slane %v5507, 2
        %v5509 = vmax.f32 %v5507, %v5508
        %v5510 = vrot.slane %v5509, 1
        %v5511 = vmax.f32 %v5509, %v5510
        %v5512 = vsel %vm2651, %v5247, -inf
        %v5513 = vrot.slane %v5512, 4
        %v5514 = vmax.f32 %v5512, %v5513
        %v5515 = vrot.slane %v5514, 2
        %v5516 = vmax.f32 %v5514, %v5515
        %v5517 = vrot.slane %v5516, 1
        %v5518 = vmax.f32 %v5516, %v5517
        %v5519 = vsel %vm2651, %v5186, -inf
        %v5520 = vrot.slane %v5519, 4
        %v5521 = vmax.f32 %v5519, %v5520
        %v5522 = vrot.slane %v5521, 2
        %v5523 = vmax.f32 %v5521, %v5522
        %v5524 = vrot.slane %v5523, 1
        %v5525 = vmax.f32 %v5523, %v5524
        %v5526 = vsel %vm2651, %v5248, -inf
        %v5527 = vrot.slane %v5526, 4
        %v5528 = vmax.f32 %v5526, %v5527
        %v5529 = vrot.slane %v5528, 2
        %v5530 = vmax.f32 %v5528, %v5529
        %v5531 = vrot.slane %v5530, 1
        %v5532 = vmax.f32 %v5530, %v5531
        %v5533 = vsel %vm2651, %v5249, -inf
        %v5534 = vrot.slane %v5533, 4
        %v5535 = vmax.f32 %v5533, %v5534
        %v5536 = vrot.slane %v5535, 2
        %v5537 = vmax.f32 %v5535, %v5536
        %v5538 = vrot.slane %v5537, 1
        %v5539 = vmax.f32 %v5537, %v5538
        %v5540 = vsel %vm2651, %v5250, -inf
        %v5541 = vrot.slane %v5540, 4
        %v5542 = vmax.f32 %v5540, %v5541
        %v5543 = vrot.slane %v5542, 2
        %v5544 = vmax.f32 %v5542, %v5543
        %v5545 = vrot.slane %v5544, 1
        %v5546 = vmax.f32 %v5544, %v5545
        %v5547 = vsel %vm2651, %v5189, -inf
        %v5548 = vrot.slane %v5547, 4
        %v5549 = vmax.f32 %v5547, %v5548
        %v5550 = vrot.slane %v5549, 2
        %v5551 = vmax.f32 %v5549, %v5550
        %v5552 = vrot.slane %v5551, 1
        %v5553 = vmax.f32 %v5551, %v5552
        %v5554 = vsel %vm2651, %v5251, -inf
        %v5555 = vrot.slane %v5554, 4
        %v5556 = vmax.f32 %v5554, %v5555
        %v5557 = vrot.slane %v5556, 2
        %v5558 = vmax.f32 %v5556, %v5557
        %v5559 = vrot.slane %v5558, 1
        %v5560 = vmax.f32 %v5558, %v5559
        %v5561 = vsel %vm2651, %v5252, -inf
        %v5562 = vrot.slane %v5561, 4
        %v5563 = vmax.f32 %v5561, %v5562
        %v5564 = vrot.slane %v5563, 2
        %v5565 = vmax.f32 %v5563, %v5564
        %v5566 = vrot.slane %v5565, 1
        %v5567 = vmax.f32 %v5565, %v5566
        %v5568 = vsel %vm2651, %v5253, -inf
        %v5569 = vrot.slane %v5568, 4
        %v5570 = vmax.f32 %v5568, %v5569
        %v5571 = vrot.slane %v5570, 2
        %v5572 = vmax.f32 %v5570, %v5571
        %v5573 = vrot.slane %v5572, 1
        %v5574 = vmax.f32 %v5572, %v5573
        %v5575 = vsel %vm2651, %v5192, -inf
        %v5576 = vrot.slane %v5575, 4
        %v5577 = vmax.f32 %v5575, %v5576
        %v5578 = vrot.slane %v5577, 2
        %v5579 = vmax.f32 %v5577, %v5578
        %v5580 = vrot.slane %v5579, 1
        %v5581 = vmax.f32 %v5579, %v5580
        %v5582 = vsel %vm2651, %v5254, -inf
        %v5583 = vrot.slane %v5582, 4
        %v5584 = vmax.f32 %v5582, %v5583
        %v5585 = vrot.slane %v5584, 2
        %v5586 = vmax.f32 %v5584, %v5585
        %v5587 = vrot.slane %v5586, 1
        %v5588 = vmax.f32 %v5586, %v5587
        %v5589 = vsel %vm2651, %v5255, -inf
        %v5590 = vrot.slane %v5589, 4
        %v5591 = vmax.f32 %v5589, %v5590
        %v5592 = vrot.slane %v5591, 2
        %v5593 = vmax.f32 %v5591, %v5592
        %v5594 = vrot.slane %v5593, 1
        %v5595 = vmax.f32 %v5593, %v5594
        %v5596 = vsel %vm2651, %v5256, -inf
        %v5597 = vrot.slane %v5596, 4
        %v5598 = vmax.f32 %v5596, %v5597
        %v5599 = vrot.slane %v5598, 2
        %v5600 = vmax.f32 %v5598, %v5599
        %v5601 = vrot.slane %v5600, 1
        %v5602 = vmax.f32 %v5600, %v5601
        %v5603 = vsel %vm2651, %v5195, -inf
        %v5604 = vrot.slane %v5603, 4
        %v5605 = vmax.f32 %v5603, %v5604
        %v5606 = vrot.slane %v5605, 2
        %v5607 = vmax.f32 %v5605, %v5606
        %v5608 = vrot.slane %v5607, 1
        %v5609 = vmax.f32 %v5607, %v5608
        %v5610 = vsel %vm2651, %v5257, -inf
        %v5611 = vrot.slane %v5610, 4
        %v5612 = vmax.f32 %v5610, %v5611
        %v5613 = vrot.slane %v5612, 2
        %v5614 = vmax.f32 %v5612, %v5613
        %v5615 = vrot.slane %v5614, 1
        %v5616 = vmax.f32 %v5614, %v5615
        %v5617 = vsel %vm2651, %v5258, -inf
        %v5618 = vrot.slane %v5617, 4
        %v5619 = vmax.f32 %v5617, %v5618
        %v5620 = vrot.slane %v5619, 2
        %v5621 = vmax.f32 %v5619, %v5620
        %v5622 = vrot.slane %v5621, 1
        %v5623 = vmax.f32 %v5621, %v5622
        %v5624 = vsel %vm2651, %v5259, -inf
        %v5625 = vrot.slane %v5624, 4
        %v5626 = vmax.f32 %v5624, %v5625
        %v5627 = vrot.slane %v5626, 2
        %v5628 = vmax.f32 %v5626, %v5627
        %v5629 = vrot.slane %v5628, 1
        %v5630 = vmax.f32 %v5628, %v5629
        %v5631 = vsel %vm2651, %v5198, -inf
        %v5632 = vrot.slane %v5631, 4
        %v5633 = vmax.f32 %v5631, %v5632
        %v5634 = vrot.slane %v5633, 2
        %v5635 = vmax.f32 %v5633, %v5634
        %v5636 = vrot.slane %v5635, 1
        %v5637 = vmax.f32 %v5635, %v5636
        %v5638 = vsel %vm2651, %v5260, -inf
        %v5639 = vrot.slane %v5638, 4
        %v5640 = vmax.f32 %v5638, %v5639
        %v5641 = vrot.slane %v5640, 2
        %v5642 = vmax.f32 %v5640, %v5641
        %v5643 = vrot.slane %v5642, 1
        %v5644 = vmax.f32 %v5642, %v5643
        %v5645 = vsel %vm2651, %v5261, -inf
        %v5646 = vrot.slane %v5645, 4
        %v5647 = vmax.f32 %v5645, %v5646
        %v5648 = vrot.slane %v5647, 2
        %v5649 = vmax.f32 %v5647, %v5648
        %v5650 = vrot.slane %v5649, 1
        %v5651 = vmax.f32 %v5649, %v5650
        %v5652 = vsel %vm2651, %v5262, -inf
        %v5653 = vrot.slane %v5652, 4
        %v5654 = vmax.f32 %v5652, %v5653
        %v5655 = vrot.slane %v5654, 2
        %v5656 = vmax.f32 %v5654, %v5655
        %v5657 = vrot.slane %v5656, 1
        %v5658 = vmax.f32 %v5656, %v5657
        %v5659 = vsel %vm2651, %v5201, -inf
        %v5660 = vrot.slane %v5659, 4
        %v5661 = vmax.f32 %v5659, %v5660
        %v5662 = vrot.slane %v5661, 2
        %v5663 = vmax.f32 %v5661, %v5662
        %v5664 = vrot.slane %v5663, 1
        %v5665 = vmax.f32 %v5663, %v5664
        %v5666 = vsel %vm2651, %v5263, -inf
        %v5667 = vrot.slane %v5666, 4
        %v5668 = vmax.f32 %v5666, %v5667
        %v5669 = vrot.slane %v5668, 2
        %v5670 = vmax.f32 %v5668, %v5669
        %v5671 = vrot.slane %v5670, 1
        %v5672 = vmax.f32 %v5670, %v5671
        %v5673 = vsel %vm2651, %v5264, -inf
        %v5674 = vrot.slane %v5673, 4
        %v5675 = vmax.f32 %v5673, %v5674
        %v5676 = vrot.slane %v5675, 2
        %v5677 = vmax.f32 %v5675, %v5676
        %v5678 = vrot.slane %v5677, 1
        %v5679 = vmax.f32 %v5677, %v5678
        %v5680 = vsel %vm2651, %v5265, -inf
        %v5681 = vrot.slane %v5680, 4
        %v5682 = vmax.f32 %v5680, %v5681
        %v5683 = vrot.slane %v5682, 2
        %v5684 = vmax.f32 %v5682, %v5683
        %v5685 = vrot.slane %v5684, 1
        %v5686 = vmax.f32 %v5684, %v5685
        %v5687 = vsel %vm2651, %v5204, -inf
        %v5688 = vrot.slane %v5687, 4
        %v5689 = vmax.f32 %v5687, %v5688
        %v5690 = vrot.slane %v5689, 2
        %v5691 = vmax.f32 %v5689, %v5690
        %v5692 = vrot.slane %v5691, 1
        %v5693 = vmax.f32 %v5691, %v5692
        %v5694 = vsel %vm2651, %v5266, -inf
        %v5695 = vrot.slane %v5694, 4
        %v5696 = vmax.f32 %v5694, %v5695
        %v5697 = vrot.slane %v5696, 2
        %v5698 = vmax.f32 %v5696, %v5697
        %v5699 = vrot.slane %v5698, 1
        %v5700 = vmax.f32 %v5698, %v5699
        %v5701 = vsel %vm2651, %v5267, -inf
        %v5702 = vrot.slane %v5701, 4
        %v5703 = vmax.f32 %v5701, %v5702
        %v5704 = vrot.slane %v5703, 2
        %v5705 = vmax.f32 %v5703, %v5704
        %v5706 = vrot.slane %v5705, 1
        %v5707 = vmax.f32 %v5705, %v5706
        %v5708 = vsel %vm2651, %v5268, -inf
        %v5709 = vrot.slane %v5708, 4
        %v5710 = vmax.f32 %v5708, %v5709
        %v5711 = vrot.slane %v5710, 2
        %v5712 = vmax.f32 %v5710, %v5711
        %v5713 = vrot.slane %v5712, 1
        %v5714 = vmax.f32 %v5712, %v5713
        %v5715 = vsel %vm2651, %v5207, -inf
        %v5716 = vrot.slane %v5715, 4
        %v5717 = vmax.f32 %v5715, %v5716
        %v5718 = vrot.slane %v5717, 2
        %v5719 = vmax.f32 %v5717, %v5718
        %v5720 = vrot.slane %v5719, 1
        %v5721 = vmax.f32 %v5719, %v5720
        %v5722 = vsel %vm2651, %v5269, -inf
        %v5723 = vrot.slane %v5722, 4
        %v5724 = vmax.f32 %v5722, %v5723
        %v5725 = vrot.slane %v5724, 2
        %v5726 = vmax.f32 %v5724, %v5725
        %v5727 = vrot.slane %v5726, 1
        %v5728 = vmax.f32 %v5726, %v5727
        %v5729 = vsel %vm2651, %v5270, -inf
        %v5730 = vrot.slane %v5729, 4
        %v5731 = vmax.f32 %v5729, %v5730
        %v5732 = vrot.slane %v5731, 2
        %v5733 = vmax.f32 %v5731, %v5732
        %v5734 = vrot.slane %v5733, 1
        %v5735 = vmax.f32 %v5733, %v5734
        %v5736 = vsel %vm2651, %v5271, -inf
        %v5737 = vrot.slane %v5736, 4
        %v5738 = vmax.f32 %v5736, %v5737
        %v5739 = vrot.slane %v5738, 2
        %v5740 = vmax.f32 %v5738, %v5739
        %v5741 = vrot.slane %v5740, 1
        %v5742 = vmax.f32 %v5740, %v5741
        %v5743 = vsel %vm2651, %v5210, -inf
        %v5744 = vrot.slane %v5743, 4
        %v5745 = vmax.f32 %v5743, %v5744
        %v5746 = vrot.slane %v5745, 2
        %v5747 = vmax.f32 %v5745, %v5746
        %v5748 = vrot.slane %v5747, 1
        %v5749 = vmax.f32 %v5747, %v5748
        %v5750 = vsel %vm2651, %v5272, -inf
        %v5751 = vrot.slane %v5750, 4
        %v5752 = vmax.f32 %v5750, %v5751
        %v5753 = vrot.slane %v5752, 2
        %v5754 = vmax.f32 %v5752, %v5753
        %v5755 = vrot.slane %v5754, 1
        %v5756 = vmax.f32 %v5754, %v5755
        %v5757 = vsel %vm2651, %v5273, -inf
        %v5758 = vrot.slane %v5757, 4
        %v5759 = vmax.f32 %v5757, %v5758
        %v5760 = vrot.slane %v5759, 2
        %v5761 = vmax.f32 %v5759, %v5760
        %v5762 = vrot.slane %v5761, 1
        %v5763 = vmax.f32 %v5761, %v5762
        %v5764 = vsel %vm2651, %v5274, -inf
        %v5765 = vrot.slane %v5764, 4
        %v5766 = vmax.f32 %v5764, %v5765
        %v5767 = vrot.slane %v5766, 2
        %v5768 = vmax.f32 %v5766, %v5767
        %v5769 = vrot.slane %v5768, 1
        %v5770 = vmax.f32 %v5768, %v5769
        %5771 = vst.msk [vmem:[#allocation4] sm:$0xff] %vm2648, 0.0
        %5772 = vst.msk [vmem:[#allocation4 + $0x8] sm:$0x3] %vm2651, 0.0
        %s5773 = scalar_lea.vmem [#allocation4], 144
        %5774 = vst.msk [vmem:[%s5773] sm:$0xff] %vm2648, 0.0
        %5775 = vst.msk [vmem:[%s5773 + $0x8] sm:$0x3] %vm2651, 0.0
        %5776 = vst.msk [vmem:[#allocation4] sm:$0x1] %vm2657, 0.0
        %5777 = vst.msk [vmem:[#allocation4 + $0x10] sm:$0x1] %vm2657, 0.0
        %5778 = vst.msk [vmem:[#allocation4 + $0x20] sm:$0x1] %vm2657, 0.0
        %5779 = vst.msk [vmem:[#allocation4 + $0x30] sm:$0x1] %vm2657, 0.0
        %5780 = vst.msk [vmem:[#allocation4 + $0x40] sm:$0x1] %vm2657, 0.0
        %5781 = vst.msk [vmem:[#allocation4 + $0x50] sm:$0x1] %vm2657, 0.0
        %5782 = vst.msk [vmem:[#allocation4 + $0x60] sm:$0x1] %vm2657, 0.0
        %5783 = vst.msk [vmem:[#allocation4 + $0x70] sm:$0x1] %vm2657, 0.0
        %5784 = vst.msk [vmem:[#allocation4 + $0x80] sm:$0x1] %vm2657, 0.0
        %5785 = vst.msk [vmem:[#allocation4 + $0x90] sm:$0x1] %vm2657, 0.0
        %5786 = vst.msk [vmem:[#allocation4 + $0x9] sm:$0x1] %vm2657, 0.0
        %5787 = vst.msk [vmem:[#allocation4 + $0x19] sm:$0x1] %vm2657, 0.0
        %5788 = vst.msk [vmem:[#allocation4 + $0x29] sm:$0x1] %vm2657, 0.0
        %5789 = vst.msk [vmem:[#allocation4 + $0x39] sm:$0x1] %vm2657, 0.0
        %5790 = vst.msk [vmem:[#allocation4 + $0x49] sm:$0x1] %vm2657, 0.0
        %5791 = vst.msk [vmem:[#allocation4 + $0x59] sm:$0x1] %vm2657, 0.0
        %5792 = vst.msk [vmem:[#allocation4 + $0x69] sm:$0x1] %vm2657, 0.0
        %5793 = vst.msk [vmem:[#allocation4 + $0x79] sm:$0x1] %vm2657, 0.0
        %5794 = vst.msk [vmem:[#allocation4 + $0x89] sm:$0x1] %vm2657, 0.0
        %5795 = vst.msk [vmem:[#allocation4 + $0x99] sm:$0x1] %vm2657, 0.0
        %vm5860 = vcmask 1041409
        %v5861 = vsel %vm5860, %v5336, %v5329
        %vm5862 = vcmask 1042434
        %v5863 = vsel %vm5862, %v5343, %v5861
        %vm5864 = vcmask 1043459
        %v5865 = vsel %vm5864, %v5350, %v5863
        %vm5866 = vcmask 1044484
        %v5867 = vsel %vm5866, %v5357, %v5865
        %vm5868 = vcmask 1045509
        %v5869 = vsel %vm5868, %v5364, %v5867
        %vm5870 = vcmask 1046534
        %v5871 = vsel %vm5870, %v5371, %v5869
        %vm5872 = vcmask 1047559
        %v5873 = vsel %vm5872, %v5378, %v5871
        %v5874 = vsel %vm5860, %v5392, %v5385
        %v5875 = vsel %vm5862, %v5399, %v5874
        %v5876 = vsel %vm5864, %v5406, %v5875
        %v5877 = vsel %vm5866, %v5413, %v5876
        %v5878 = vsel %vm5868, %v5420, %v5877
        %v5879 = vsel %vm5870, %v5427, %v5878
        %v5880 = vsel %vm5872, %v5434, %v5879
        %v5881 = vsel %vm5860, %v5448, %v5441
        %v5882 = vsel %vm5862, %v5455, %v5881
        %v5883 = vsel %vm5864, %v5462, %v5882
        %v5884 = vsel %vm5866, %v5469, %v5883
        %v5885 = vsel %vm5868, %v5476, %v5884
        %v5886 = vsel %vm5870, %v5483, %v5885
        %v5887 = vsel %vm5872, %v5490, %v5886
        %v5888 = vsel %vm5860, %v5504, %v5497
        %v5889 = vsel %vm5862, %v5511, %v5888
        %v5890 = vsel %vm5864, %v5518, %v5889
        %v5891 = vsel %vm5866, %v5525, %v5890
        %v5892 = vsel %vm5868, %v5532, %v5891
        %v5893 = vsel %vm5870, %v5539, %v5892
        %v5894 = vsel %vm5872, %v5546, %v5893
        %v5895 = vsel %vm5860, %v5560, %v5553
        %v5896 = vsel %vm5862, %v5567, %v5895
        %v5897 = vsel %vm5864, %v5574, %v5896
        %v5898 = vsel %vm5866, %v5581, %v5897
        %v5899 = vsel %vm5868, %v5588, %v5898
        %v5900 = vsel %vm5870, %v5595, %v5899
        %v5901 = vsel %vm5872, %v5602, %v5900
        %v5902 = vsel %vm5860, %v5616, %v5609
        %v5903 = vsel %vm5862, %v5623, %v5902
        %v5904 = vsel %vm5864, %v5630, %v5903
        %v5905 = vsel %vm5866, %v5637, %v5904
        %v5906 = vsel %vm5868, %v5644, %v5905
        %v5907 = vsel %vm5870, %v5651, %v5906
        %v5908 = vsel %vm5872, %v5658, %v5907
        %v5909 = vsel %vm5860, %v5672, %v5665
        %v5910 = vsel %vm5862, %v5679, %v5909
        %v5911 = vsel %vm5864, %v5686, %v5910
        %v5912 = vsel %vm5866, %v5693, %v5911
        %v5913 = vsel %vm5868, %v5700, %v5912
        %v5914 = vsel %vm5870, %v5707, %v5913
        %v5915 = vsel %vm5872, %v5714, %v5914
        %v5916 = vsel %vm5860, %v5728, %v5721
        %v5917 = vsel %vm5862, %v5735, %v5916
        %v5918 = vsel %vm5864, %v5742, %v5917
        %v5919 = vsel %vm5866, %v5749, %v5918
        %v5920 = vsel %vm5868, %v5756, %v5919
        %v5921 = vsel %vm5870, %v5763, %v5920
        %v5922 = vsel %vm5872, %v5770, %v5921
        %s5931 = scalar_lea.vmem [#allocation4], 16
        %5932 = vst.msk [vmem:[%s5931 + $0x1] sm:$0xff] %vm2648, %v5873
        %5933 = vst.msk [vmem:[%s5931 + $0x11] sm:$0xff] %vm2648, %v5880
        %5934 = vst.msk [vmem:[%s5931 + $0x21] sm:$0xff] %vm2648, %v5887
        %5935 = vst.msk [vmem:[%s5931 + $0x31] sm:$0xff] %vm2648, %v5894
        %5936 = vst.msk [vmem:[%s5931 + $0x41] sm:$0xff] %vm2648, %v5901
        %5937 = vst.msk [vmem:[%s5931 + $0x51] sm:$0xff] %vm2648, %v5908
        %5938 = vst.msk [vmem:[%s5931 + $0x61] sm:$0xff] %vm2648, %v5915
        %5939 = vst.msk [vmem:[%s5931 + $0x71] sm:$0xff] %vm2648, %v5922
        %v5940 = vld [vmem:[#allocation4] sm:$0xff]
        %v5941 = vld [vmem:[#allocation4 + $0x10] sm:$0xff]
        %v5942 = vld [vmem:[#allocation4 + $0x20] sm:$0xff]
        %v5943 = vld [vmem:[#allocation4 + $0x30] sm:$0xff]
        %v5944 = vld [vmem:[#allocation4 + $0x40] sm:$0xff]
        %v5945 = vld [vmem:[#allocation4 + $0x50] sm:$0xff]
        %v5946 = vld [vmem:[#allocation4 + $0x60] sm:$0xff]
        %v5947 = vld [vmem:[#allocation4 + $0x70] sm:$0xff]
        %v5948 = vpack.c.bf16 %v5940, %v5940
        %v5949 = vpack.c.bf16 %v5941, %v5941
        %v5950 = vpack.c.bf16 %v5942, %v5942
        %v5951 = vpack.c.bf16 %v5943, %v5943
        %v5952 = vpack.c.bf16 %v5944, %v5944
        %v5953 = vpack.c.bf16 %v5945, %v5945
        %v5954 = vpack.c.bf16 %v5946, %v5946
        %v5955 = vpack.c.bf16 %v5947, %v5947
        %5956 = vst.msk [vmem:[#allocation5] sm:$0xf] %vm2791, %v5948
        %5957 = vst.msk [vmem:[#allocation5 + $0xc] sm:$0xf] %vm2791, %v5949
        %5958 = vst.msk [vmem:[#allocation5 + $0x18] sm:$0xf] %vm2791, %v5950
        %5959 = vst.msk [vmem:[#allocation5 + $0x24] sm:$0xf] %vm2791, %v5951
        %5960 = vst.msk [vmem:[#allocation5 + $0x30] sm:$0xf] %vm2791, %v5952
        %5961 = vst.msk [vmem:[#allocation5 + $0x3c] sm:$0xf] %vm2791, %v5953
        %5962 = vst.msk [vmem:[#allocation5 + $0x48] sm:$0xf] %vm2791, %v5954
        %5963 = vst.msk [vmem:[#allocation5 + $0x54] sm:$0xf] %vm2791, %v5955
        %v5964 = vld [vmem:[#allocation4 + $0x1] sm:$0xff]
        %v5965 = vld [vmem:[#allocation4 + $0x11] sm:$0xff]
        %v5966 = vld [vmem:[#allocation4 + $0x21] sm:$0xff]
        %v5967 = vld [vmem:[#allocation4 + $0x31] sm:$0xff]
        %v5968 = vld [vmem:[#allocation4 + $0x41] sm:$0xff]
        %v5969 = vld [vmem:[#allocation4 + $0x51] sm:$0xff]
        %v5970 = vld [vmem:[#allocation4 + $0x61] sm:$0xff]
        %v5971 = vld [vmem:[#allocation4 + $0x71] sm:$0xff]
        %v5972 = vpack.c.bf16 %v5964, %v5964
        %v5973 = vpack.c.bf16 %v5965, %v5965
        %v5974 = vpack.c.bf16 %v5966, %v5966
        %v5975 = vpack.c.bf16 %v5967, %v5967
        %v5976 = vpack.c.bf16 %v5968, %v5968
        %v5977 = vpack.c.bf16 %v5969, %v5969
        %v5978 = vpack.c.bf16 %v5970, %v5970
        %v5979 = vpack.c.bf16 %v5971, %v5971
        %5988 = vrot.lane.b32.xlu0 %v5972, 32
        %v5989 = vpop.permute.xlu0 %5988
        %5990 = vrot.lane.b32.xlu0 %v5973, 32
        %v5991 = vpop.permute.xlu0 %5990
        %5992 = vrot.lane.b32.xlu0 %v5974, 32
        %v5993 = vpop.permute.xlu0 %5992
        %5994 = vrot.lane.b32.xlu0 %v5975, 32
        %v5995 = vpop.permute.xlu0 %5994
        %5996 = vrot.lane.b32.xlu0 %v5976, 32
        %v5997 = vpop.permute.xlu0 %5996
        %5998 = vrot.lane.b32.xlu0 %v5977, 32
        %v5999 = vpop.permute.xlu0 %5998
        %6000 = vrot.lane.b32.xlu0 %v5978, 32
        %v6001 = vpop.permute.xlu0 %6000
        %6002 = vrot.lane.b32.xlu0 %v5979, 32
        %v6003 = vpop.permute.xlu0 %6002
        %6012 = vst.msk [vmem:[#allocation5] sm:$0xf] %vm3016, %v5989
        %6013 = vst.msk [vmem:[#allocation5 + $0xc] sm:$0xf] %vm3016, %v5991
        %6014 = vst.msk [vmem:[#allocation5 + $0x18] sm:$0xf] %vm3016, %v5993
        %6015 = vst.msk [vmem:[#allocation5 + $0x24] sm:$0xf] %vm3016, %v5995
        %6016 = vst.msk [vmem:[#allocation5 + $0x30] sm:$0xf] %vm3016, %v5997
        %6017 = vst.msk [vmem:[#allocation5 + $0x3c] sm:$0xf] %vm3016, %v5999
        %6018 = vst.msk [vmem:[#allocation5 + $0x48] sm:$0xf] %vm3016, %v6001
        %6019 = vst.msk [vmem:[#allocation5 + $0x54] sm:$0xf] %vm3016, %v6003
        %v6020 = vld [vmem:[#allocation4 + $0x2] sm:$0xff]
        %v6021 = vld [vmem:[#allocation4 + $0x12] sm:$0xff]
        %v6022 = vld [vmem:[#allocation4 + $0x22] sm:$0xff]
        %v6023 = vld [vmem:[#allocation4 + $0x32] sm:$0xff]
        %v6024 = vld [vmem:[#allocation4 + $0x42] sm:$0xff]
        %v6025 = vld [vmem:[#allocation4 + $0x52] sm:$0xff]
        %v6026 = vld [vmem:[#allocation4 + $0x62] sm:$0xff]
        %v6027 = vld [vmem:[#allocation4 + $0x72] sm:$0xff]
        %v6028 = vpack.c.bf16 %v6020, %v6020
        %v6029 = vpack.c.bf16 %v6021, %v6021
        %v6030 = vpack.c.bf16 %v6022, %v6022
        %v6031 = vpack.c.bf16 %v6023, %v6023
        %v6032 = vpack.c.bf16 %v6024, %v6024
        %v6033 = vpack.c.bf16 %v6025, %v6025
        %v6034 = vpack.c.bf16 %v6026, %v6026
        %v6035 = vpack.c.bf16 %v6027, %v6027
        %6044 = vrot.lane.b32.xlu0 %v6028, 64
        %v6045 = vpop.permute.xlu0 %6044
        %6046 = vrot.lane.b32.xlu0 %v6029, 64
        %v6047 = vpop.permute.xlu0 %6046
        %6048 = vrot.lane.b32.xlu0 %v6030, 64
        %v6049 = vpop.permute.xlu0 %6048
        %6050 = vrot.lane.b32.xlu0 %v6031, 64
        %v6051 = vpop.permute.xlu0 %6050
        %6052 = vrot.lane.b32.xlu0 %v6032, 64
        %v6053 = vpop.permute.xlu0 %6052
        %6054 = vrot.lane.b32.xlu0 %v6033, 64
        %v6055 = vpop.permute.xlu0 %6054
        %6056 = vrot.lane.b32.xlu0 %v6034, 64
        %v6057 = vpop.permute.xlu0 %6056
        %6058 = vrot.lane.b32.xlu0 %v6035, 64
        %v6059 = vpop.permute.xlu0 %6058
        %6068 = vst.msk [vmem:[#allocation5] sm:$0xf] %vm3241, %v6045
        %6069 = vst.msk [vmem:[#allocation5 + $0xc] sm:$0xf] %vm3241, %v6047
        %6070 = vst.msk [vmem:[#allocation5 + $0x18] sm:$0xf] %vm3241, %v6049
        %6071 = vst.msk [vmem:[#allocation5 + $0x24] sm:$0xf] %vm3241, %v6051
        %6072 = vst.msk [vmem:[#allocation5 + $0x30] sm:$0xf] %vm3241, %v6053
        %6073 = vst.msk [vmem:[#allocation5 + $0x3c] sm:$0xf] %vm3241, %v6055
        %6074 = vst.msk [vmem:[#allocation5 + $0x48] sm:$0xf] %vm3241, %v6057
        %6075 = vst.msk [vmem:[#allocation5 + $0x54] sm:$0xf] %vm3241, %v6059
        %v6076 = vld [vmem:[%s5931] sm:$0xff]
        %v6077 = vld [vmem:[%s5931 + $0x10] sm:$0xff]
        %v6078 = vld [vmem:[%s5931 + $0x20] sm:$0xff]
        %v6079 = vld [vmem:[%s5931 + $0x30] sm:$0xff]
        %v6080 = vld [vmem:[%s5931 + $0x40] sm:$0xff]
        %v6081 = vld [vmem:[%s5931 + $0x50] sm:$0xff]
        %v6082 = vld [vmem:[%s5931 + $0x60] sm:$0xff]
        %v6083 = vld [vmem:[%s5931 + $0x70] sm:$0xff]
        %v6084 = vpack.c.bf16 %v6076, %v6076
        %v6085 = vpack.c.bf16 %v6077, %v6077
        %v6086 = vpack.c.bf16 %v6078, %v6078
        %v6087 = vpack.c.bf16 %v6079, %v6079
        %v6088 = vpack.c.bf16 %v6080, %v6080
        %v6089 = vpack.c.bf16 %v6081, %v6081
        %v6090 = vpack.c.bf16 %v6082, %v6082
        %v6091 = vpack.c.bf16 %v6083, %v6083
        %6100 = vrot.lane.b32.xlu0 %v6084, 96
        %v6101 = vpop.permute.xlu0 %6100
        %6102 = vrot.lane.b32.xlu0 %v6085, 96
        %v6103 = vpop.permute.xlu0 %6102
        %6104 = vrot.lane.b32.xlu0 %v6086, 96
        %v6105 = vpop.permute.xlu0 %6104
        %6106 = vrot.lane.b32.xlu0 %v6087, 96
        %v6107 = vpop.permute.xlu0 %6106
        %6108 = vrot.lane.b32.xlu0 %v6088, 96
        %v6109 = vpop.permute.xlu0 %6108
        %6110 = vrot.lane.b32.xlu0 %v6089, 96
        %v6111 = vpop.permute.xlu0 %6110
        %6112 = vrot.lane.b32.xlu0 %v6090, 96
        %v6113 = vpop.permute.xlu0 %6112
        %6114 = vrot.lane.b32.xlu0 %v6091, 96
        %v6115 = vpop.permute.xlu0 %6114
        %6124 = vst.msk [vmem:[#allocation5] sm:$0xf] %vm3466, %v6101
        %6125 = vst.msk [vmem:[#allocation5 + $0xc] sm:$0xf] %vm3466, %v6103
        %6126 = vst.msk [vmem:[#allocation5 + $0x18] sm:$0xf] %vm3466, %v6105
        %6127 = vst.msk [vmem:[#allocation5 + $0x24] sm:$0xf] %vm3466, %v6107
        %6128 = vst.msk [vmem:[#allocation5 + $0x30] sm:$0xf] %vm3466, %v6109
        %6129 = vst.msk [vmem:[#allocation5 + $0x3c] sm:$0xf] %vm3466, %v6111
        %6130 = vst.msk [vmem:[#allocation5 + $0x48] sm:$0xf] %vm3466, %v6113
        %6131 = vst.msk [vmem:[#allocation5 + $0x54] sm:$0xf] %vm3466, %v6115
        %v6132 = vld [vmem:[%s5931 + $0x1] sm:$0xff]
        %v6133 = vld [vmem:[%s5931 + $0x11] sm:$0xff]
        %v6134 = vld [vmem:[%s5931 + $0x21] sm:$0xff]
        %v6135 = vld [vmem:[%s5931 + $0x31] sm:$0xff]
        %v6136 = vld [vmem:[%s5931 + $0x41] sm:$0xff]
        %v6137 = vld [vmem:[%s5931 + $0x51] sm:$0xff]
        %v6138 = vld [vmem:[%s5931 + $0x61] sm:$0xff]
        %v6139 = vld [vmem:[%s5931 + $0x71] sm:$0xff]
        %v6140 = vpack.c.bf16 %v6132, %v6132
        %v6141 = vpack.c.bf16 %v6133, %v6133
        %v6142 = vpack.c.bf16 %v6134, %v6134
        %v6143 = vpack.c.bf16 %v6135, %v6135
        %v6144 = vpack.c.bf16 %v6136, %v6136
        %v6145 = vpack.c.bf16 %v6137, %v6137
        %v6146 = vpack.c.bf16 %v6138, %v6138
        %v6147 = vpack.c.bf16 %v6139, %v6139
        %6148 = vst.msk [vmem:[#allocation5 + $0x4] sm:$0xf] %vm2791, %v6140
        %6149 = vst.msk [vmem:[#allocation5 + $0x10] sm:$0xf] %vm2791, %v6141
        %6150 = vst.msk [vmem:[#allocation5 + $0x1c] sm:$0xf] %vm2791, %v6142
        %6151 = vst.msk [vmem:[#allocation5 + $0x28] sm:$0xf] %vm2791, %v6143
        %6152 = vst.msk [vmem:[#allocation5 + $0x34] sm:$0xf] %vm2791, %v6144
        %6153 = vst.msk [vmem:[#allocation5 + $0x40] sm:$0xf] %vm2791, %v6145
        %6154 = vst.msk [vmem:[#allocation5 + $0x4c] sm:$0xf] %vm2791, %v6146
        %6155 = vst.msk [vmem:[#allocation5 + $0x58] sm:$0xf] %vm2791, %v6147
        %v6156 = vld [vmem:[%s5931 + $0x2] sm:$0xff]
        %v6157 = vld [vmem:[%s5931 + $0x12] sm:$0xff]
        %v6158 = vld [vmem:[%s5931 + $0x22] sm:$0xff]
        %v6159 = vld [vmem:[%s5931 + $0x32] sm:$0xff]
        %v6160 = vld [vmem:[%s5931 + $0x42] sm:$0xff]
        %v6161 = vld [vmem:[%s5931 + $0x52] sm:$0xff]
        %v6162 = vld [vmem:[%s5931 + $0x62] sm:$0xff]
        %v6163 = vld [vmem:[%s5931 + $0x72] sm:$0xff]
        %v6164 = vpack.c.bf16 %v6156, %v6156
        %v6165 = vpack.c.bf16 %v6157, %v6157
        %v6166 = vpack.c.bf16 %v6158, %v6158
        %v6167 = vpack.c.bf16 %v6159, %v6159
        %v6168 = vpack.c.bf16 %v6160, %v6160
        %v6169 = vpack.c.bf16 %v6161, %v6161
        %v6170 = vpack.c.bf16 %v6162, %v6162
        %v6171 = vpack.c.bf16 %v6163, %v6163
        %6180 = vrot.lane.b32.xlu0 %v6164, 32
        %v6181 = vpop.permute.xlu0 %6180
        %6182 = vrot.lane.b32.xlu0 %v6165, 32
        %v6183 = vpop.permute.xlu0 %6182
        %6184 = vrot.lane.b32.xlu0 %v6166, 32
        %v6185 = vpop.permute.xlu0 %6184
        %6186 = vrot.lane.b32.xlu0 %v6167, 32
        %v6187 = vpop.permute.xlu0 %6186
        %6188 = vrot.lane.b32.xlu0 %v6168, 32
        %v6189 = vpop.permute.xlu0 %6188
        %6190 = vrot.lane.b32.xlu0 %v6169, 32
        %v6191 = vpop.permute.xlu0 %6190
        %6192 = vrot.lane.b32.xlu0 %v6170, 32
        %v6193 = vpop.permute.xlu0 %6192
        %6194 = vrot.lane.b32.xlu0 %v6171, 32
        %v6195 = vpop.permute.xlu0 %6194
        %6204 = vst.msk [vmem:[#allocation5 + $0x4] sm:$0xf] %vm3016, %v6181
        %6205 = vst.msk [vmem:[#allocation5 + $0x10] sm:$0xf] %vm3016, %v6183
        %6206 = vst.msk [vmem:[#allocation5 + $0x1c] sm:$0xf] %vm3016, %v6185
        %6207 = vst.msk [vmem:[#allocation5 + $0x28] sm:$0xf] %vm3016, %v6187
        %6208 = vst.msk [vmem:[#allocation5 + $0x34] sm:$0xf] %vm3016, %v6189
        %6209 = vst.msk [vmem:[#allocation5 + $0x40] sm:$0xf] %vm3016, %v6191
        %6210 = vst.msk [vmem:[#allocation5 + $0x4c] sm:$0xf] %vm3016, %v6193
        %6211 = vst.msk [vmem:[#allocation5 + $0x58] sm:$0xf] %vm3016, %v6195
        %s6212 = scalar_lea.vmem [#allocation4], 32
        %v6213 = vld [vmem:[%s6212] sm:$0xff]
        %v6214 = vld [vmem:[%s6212 + $0x10] sm:$0xff]
        %v6215 = vld [vmem:[%s6212 + $0x20] sm:$0xff]
        %v6216 = vld [vmem:[%s6212 + $0x30] sm:$0xff]
        %v6217 = vld [vmem:[%s6212 + $0x40] sm:$0xff]
        %v6218 = vld [vmem:[%s6212 + $0x50] sm:$0xff]
        %v6219 = vld [vmem:[%s6212 + $0x60] sm:$0xff]
        %v6220 = vld [vmem:[%s6212 + $0x70] sm:$0xff]
        %v6221 = vpack.c.bf16 %v6213, %v6213
        %v6222 = vpack.c.bf16 %v6214, %v6214
        %v6223 = vpack.c.bf16 %v6215, %v6215
        %v6224 = vpack.c.bf16 %v6216, %v6216
        %v6225 = vpack.c.bf16 %v6217, %v6217
        %v6226 = vpack.c.bf16 %v6218, %v6218
        %v6227 = vpack.c.bf16 %v6219, %v6219
        %v6228 = vpack.c.bf16 %v6220, %v6220
        %6237 = vrot.lane.b32.xlu0 %v6221, 64
        %v6238 = vpop.permute.xlu0 %6237
        %6239 = vrot.lane.b32.xlu0 %v6222, 64
        %v6240 = vpop.permute.xlu0 %6239
        %6241 = vrot.lane.b32.xlu0 %v6223, 64
        %v6242 = vpop.permute.xlu0 %6241
        %6243 = vrot.lane.b32.xlu0 %v6224, 64
        %v6244 = vpop.permute.xlu0 %6243
        %6245 = vrot.lane.b32.xlu0 %v6225, 64
        %v6246 = vpop.permute.xlu0 %6245
        %6247 = vrot.lane.b32.xlu0 %v6226, 64
        %v6248 = vpop.permute.xlu0 %6247
        %6249 = vrot.lane.b32.xlu0 %v6227, 64
        %v6250 = vpop.permute.xlu0 %6249
        %6251 = vrot.lane.b32.xlu0 %v6228, 64
        %v6252 = vpop.permute.xlu0 %6251
        %6261 = vst.msk [vmem:[#allocation5 + $0x4] sm:$0xf] %vm3241, %v6238
        %6262 = vst.msk [vmem:[#allocation5 + $0x10] sm:$0xf] %vm3241, %v6240
        %6263 = vst.msk [vmem:[#allocation5 + $0x1c] sm:$0xf] %vm3241, %v6242
        %6264 = vst.msk [vmem:[#allocation5 + $0x28] sm:$0xf] %vm3241, %v6244
        %6265 = vst.msk [vmem:[#allocation5 + $0x34] sm:$0xf] %vm3241, %v6246
        %6266 = vst.msk [vmem:[#allocation5 + $0x40] sm:$0xf] %vm3241, %v6248
        %6267 = vst.msk [vmem:[#allocation5 + $0x4c] sm:$0xf] %vm3241, %v6250
        %6268 = vst.msk [vmem:[#allocation5 + $0x58] sm:$0xf] %vm3241, %v6252
        %v6269 = vld [vmem:[%s6212 + $0x1] sm:$0xff]
        %v6270 = vld [vmem:[%s6212 + $0x11] sm:$0xff]
        %v6271 = vld [vmem:[%s6212 + $0x21] sm:$0xff]
        %v6272 = vld [vmem:[%s6212 + $0x31] sm:$0xff]
        %v6273 = vld [vmem:[%s6212 + $0x41] sm:$0xff]
        %v6274 = vld [vmem:[%s6212 + $0x51] sm:$0xff]
        %v6275 = vld [vmem:[%s6212 + $0x61] sm:$0xff]
        %v6276 = vld [vmem:[%s6212 + $0x71] sm:$0xff]
        %v6277 = vpack.c.bf16 %v6269, %v6269
        %v6278 = vpack.c.bf16 %v6270, %v6270
        %v6279 = vpack.c.bf16 %v6271, %v6271
        %v6280 = vpack.c.bf16 %v6272, %v6272
        %v6281 = vpack.c.bf16 %v6273, %v6273
        %v6282 = vpack.c.bf16 %v6274, %v6274
        %v6283 = vpack.c.bf16 %v6275, %v6275
        %v6284 = vpack.c.bf16 %v6276, %v6276
        %6293 = vrot.lane.b32.xlu0 %v6277, 96
        %v6294 = vpop.permute.xlu0 %6293
        %6295 = vrot.lane.b32.xlu0 %v6278, 96
        %v6296 = vpop.permute.xlu0 %6295
        %6297 = vrot.lane.b32.xlu0 %v6279, 96
        %v6298 = vpop.permute.xlu0 %6297
        %6299 = vrot.lane.b32.xlu0 %v6280, 96
        %v6300 = vpop.permute.xlu0 %6299
        %6301 = vrot.lane.b32.xlu0 %v6281, 96
        %v6302 = vpop.permute.xlu0 %6301
        %6303 = vrot.lane.b32.xlu0 %v6282, 96
        %v6304 = vpop.permute.xlu0 %6303
        %6305 = vrot.lane.b32.xlu0 %v6283, 96
        %v6306 = vpop.permute.xlu0 %6305
        %6307 = vrot.lane.b32.xlu0 %v6284, 96
        %v6308 = vpop.permute.xlu0 %6307
        %6317 = vst.msk [vmem:[#allocation5 + $0x4] sm:$0xf] %vm3466, %v6294
        %6318 = vst.msk [vmem:[#allocation5 + $0x10] sm:$0xf] %vm3466, %v6296
        %6319 = vst.msk [vmem:[#allocation5 + $0x1c] sm:$0xf] %vm3466, %v6298
        %6320 = vst.msk [vmem:[#allocation5 + $0x28] sm:$0xf] %vm3466, %v6300
        %6321 = vst.msk [vmem:[#allocation5 + $0x34] sm:$0xf] %vm3466, %v6302
        %6322 = vst.msk [vmem:[#allocation5 + $0x40] sm:$0xf] %vm3466, %v6304
        %6323 = vst.msk [vmem:[#allocation5 + $0x4c] sm:$0xf] %vm3466, %v6306
        %6324 = vst.msk [vmem:[#allocation5 + $0x58] sm:$0xf] %vm3466, %v6308
        %v6325 = vld [vmem:[%s6212 + $0x2] sm:$0xff]
        %v6326 = vld [vmem:[%s6212 + $0x12] sm:$0xff]
        %v6327 = vld [vmem:[%s6212 + $0x22] sm:$0xff]
        %v6328 = vld [vmem:[%s6212 + $0x32] sm:$0xff]
        %v6329 = vld [vmem:[%s6212 + $0x42] sm:$0xff]
        %v6330 = vld [vmem:[%s6212 + $0x52] sm:$0xff]
        %v6331 = vld [vmem:[%s6212 + $0x62] sm:$0xff]
        %v6332 = vld [vmem:[%s6212 + $0x72] sm:$0xff]
        %v6333 = vpack.c.bf16 %v6325, %v6325
        %v6334 = vpack.c.bf16 %v6326, %v6326
        %v6335 = vpack.c.bf16 %v6327, %v6327
        %v6336 = vpack.c.bf16 %v6328, %v6328
        %v6337 = vpack.c.bf16 %v6329, %v6329
        %v6338 = vpack.c.bf16 %v6330, %v6330
        %v6339 = vpack.c.bf16 %v6331, %v6331
        %v6340 = vpack.c.bf16 %v6332, %v6332
        %6341 = vst.msk [vmem:[#allocation5 + $0x8] sm:$0xf] %vm2791, %v6333
        %6342 = vst.msk [vmem:[#allocation5 + $0x14] sm:$0xf] %vm2791, %v6334
        %6343 = vst.msk [vmem:[#allocation5 + $0x20] sm:$0xf] %vm2791, %v6335
        %6344 = vst.msk [vmem:[#allocation5 + $0x2c] sm:$0xf] %vm2791, %v6336
        %6345 = vst.msk [vmem:[#allocation5 + $0x38] sm:$0xf] %vm2791, %v6337
        %6346 = vst.msk [vmem:[#allocation5 + $0x44] sm:$0xf] %vm2791, %v6338
        %6347 = vst.msk [vmem:[#allocation5 + $0x50] sm:$0xf] %vm2791, %v6339
        %6348 = vst.msk [vmem:[#allocation5 + $0x5c] sm:$0xf] %vm2791, %v6340
        %v6349 = vld [vmem:[#allocation5] sm:$0xff]
        %v6350 = vld [vmem:[#allocation5 + $0x8] sm:$0xf]
        %v6351 = vld [vmem:[#allocation5 + $0xc] sm:$0xff]
        %v6352 = vld [vmem:[#allocation5 + $0x14] sm:$0xf]
        %v6353 = vld [vmem:[#allocation5 + $0x18] sm:$0xff]
        %v6354 = vld [vmem:[#allocation5 + $0x20] sm:$0xf]
        %v6355 = vld [vmem:[#allocation5 + $0x24] sm:$0xff]
        %v6356 = vld [vmem:[#allocation5 + $0x2c] sm:$0xf]
        %v6357 = vld [vmem:[#allocation5 + $0x30] sm:$0xff]
        %v6358 = vld [vmem:[#allocation5 + $0x38] sm:$0xf]
        %v6359 = vld [vmem:[#allocation5 + $0x3c] sm:$0xff]
        %v6360 = vld [vmem:[#allocation5 + $0x44] sm:$0xf]
        %v6361 = vld [vmem:[#allocation5 + $0x48] sm:$0xff]
        %v6362 = vld [vmem:[#allocation5 + $0x50] sm:$0xf]
        %v6363 = vld [vmem:[#allocation5 + $0x54] sm:$0xff]
        %v6364 = vld [vmem:[#allocation5 + $0x5c] sm:$0xf]
        %v6365 = vld [vmem:[%s5] sm:$0xf]
        %v6366 = vld [vmem:[%s5 + $0x4] sm:$0xf]
        %v6367 = vld [vmem:[%s5 + $0x8] sm:$0xf]
        %v6368 = vld [vmem:[%s5 + $0xc] sm:$0xf]
        %v6369 = vld [vmem:[%s5 + $0x10] sm:$0xf]
        %v6370 = vld [vmem:[%s5 + $0x14] sm:$0xf]
        %v6371 = vld [vmem:[%s5 + $0x18] sm:$0xf]
        %v6372 = vld [vmem:[%s5 + $0x1c] sm:$0xf]
        %v6373 = vld [vmem:[%s5 + $0x20] sm:$0xf]
        %v6374 = vld [vmem:[%s5 + $0x24] sm:$0xf]
        %v6375 = vld [vmem:[%s5 + $0x28] sm:$0xf]
        %v6376 = vld [vmem:[%s5 + $0x2c] sm:$0xf]
        %v6377 = vld [vmem:[%s5 + $0x30] sm:$0xf]
        %v6378 = vld [vmem:[%s5 + $0x34] sm:$0xf]
        %v6379 = vld [vmem:[%s5 + $0x38] sm:$0xf]
        %v6380 = vld [vmem:[%s5 + $0x3c] sm:$0xf]
        %v6381 = vld [vmem:[%s5 + $0x40] sm:$0xf]
        %v6382 = vld [vmem:[%s5 + $0x44] sm:$0xf]
        %v6383 = vld [vmem:[%s5 + $0x48] sm:$0xf]
        %v6384 = vld [vmem:[%s5 + $0x4c] sm:$0xf]
        %v6385 = vld [vmem:[%s5 + $0x50] sm:$0xf]
        %v6386 = vld [vmem:[%s5 + $0x54] sm:$0xf]
        %v6387 = vld [vmem:[%s5 + $0x58] sm:$0xf]
        %v6388 = vld [vmem:[%s5 + $0x5c] sm:$0xf]
        %v6389 = vld [vmem:[%s5 + $0x60] sm:$0xf]
        %v6390 = vld [vmem:[%s5 + $0x64] sm:$0xf]
        %v6391 = vld [vmem:[%s5 + $0x68] sm:$0xf]
        %v6392 = vld [vmem:[%s5 + $0x6c] sm:$0xf]
        %v6393 = vld [vmem:[%s5 + $0x70] sm:$0xf]
        %v6394 = vld [vmem:[%s5 + $0x74] sm:$0xf]
        %v6395 = vld [vmem:[%s5 + $0x78] sm:$0xf]
        %v6396 = vld [vmem:[%s5 + $0x7c] sm:$0xf]
        %v6397 = vld [vmem:[%s5 + $0x80] sm:$0xf]
        %v6398 = vld [vmem:[%s5 + $0x84] sm:$0xf]
        %v6399 = vld [vmem:[%s5 + $0x88] sm:$0xf]
        %v6400 = vld [vmem:[%s5 + $0x8c] sm:$0xf]
        %v6401 = vld [vmem:[%s6] sm:$0x1]
        %v6403 = vperm.slane %v6401, 0
        %v6421 = vunpack.c.l.b16 %v6349
        %v6422 = vunpack.c.h.b16 %v6349
        %v6423 = vunpack.c.l.b16 %v6350
        %v6424 = vunpack.c.l.b16 %v6351
        %v6425 = vunpack.c.h.b16 %v6351
        %v6426 = vunpack.c.l.b16 %v6352
        %v6427 = vunpack.c.l.b16 %v6353
        %v6428 = vunpack.c.h.b16 %v6353
        %v6429 = vunpack.c.l.b16 %v6354
        %v6430 = vunpack.c.l.b16 %v6355
        %v6431 = vunpack.c.h.b16 %v6355
        %v6432 = vunpack.c.l.b16 %v6356
        %v6433 = vunpack.c.l.b16 %v6357
        %v6434 = vunpack.c.h.b16 %v6357
        %v6435 = vunpack.c.l.b16 %v6358
        %v6436 = vunpack.c.l.b16 %v6359
        %v6437 = vunpack.c.h.b16 %v6359
        %v6438 = vunpack.c.l.b16 %v6360
        %v6439 = vunpack.c.l.b16 %v6361
        %v6440 = vunpack.c.h.b16 %v6361
        %v6441 = vunpack.c.l.b16 %v6362
        %v6442 = vunpack.c.l.b16 %v6363
        %v6443 = vunpack.c.h.b16 %v6363
        %v6444 = vunpack.c.l.b16 %v6364
        %v6445 = vpack.c.b16 %v6424, %v6421
        %v6446 = vpack.c.b16 %v6425, %v6422
        %v6447 = vpack.c.b16 %v6426, %v6423
        %v6448 = vpack.c.b16 %v6430, %v6427
        %v6449 = vpack.c.b16 %v6431, %v6428
        %v6450 = vpack.c.b16 %v6432, %v6429
        %v6451 = vpack.c.b16 %v6436, %v6433
        %v6452 = vpack.c.b16 %v6437, %v6434
        %v6453 = vpack.c.b16 %v6438, %v6435
        %v6454 = vpack.c.b16 %v6442, %v6439
        %v6455 = vpack.c.b16 %v6443, %v6440
        %v6456 = vpack.c.b16 %v6444, %v6441
        %v6501 = vunpack.c.l.b16 %v6365
        %v6502 = vunpack.c.l.b16 %v6366
        %v6503 = vunpack.c.l.b16 %v6367
        %v6504 = vunpack.c.l.b16 %v6368
        %v6505 = vunpack.c.l.b16 %v6369
        %v6506 = vunpack.c.l.b16 %v6370
        %v6507 = vunpack.c.l.b16 %v6371
        %v6508 = vunpack.c.l.b16 %v6372
        %v6509 = vunpack.c.l.b16 %v6373
        %v6510 = vunpack.c.l.b16 %v6374
        %v6511 = vunpack.c.l.b16 %v6375
        %v6512 = vunpack.c.l.b16 %v6376
        %v6513 = vunpack.c.l.b16 %v6377
        %v6514 = vunpack.c.l.b16 %v6378
        %v6515 = vunpack.c.l.b16 %v6379
        %v6516 = vunpack.c.l.b16 %v6380
        %v6517 = vunpack.c.l.b16 %v6381
        %v6518 = vunpack.c.l.b16 %v6382
        %v6519 = vunpack.c.l.b16 %v6383
        %v6520 = vunpack.c.l.b16 %v6384
        %v6521 = vunpack.c.l.b16 %v6385
        %v6522 = vunpack.c.l.b16 %v6386
        %v6523 = vunpack.c.l.b16 %v6387
        %v6524 = vunpack.c.l.b16 %v6388
        %v6525 = vunpack.c.l.b16 %v6389
        %v6526 = vunpack.c.l.b16 %v6390
        %v6527 = vunpack.c.l.b16 %v6391
        %v6528 = vunpack.c.l.b16 %v6392
        %v6529 = vunpack.c.l.b16 %v6393
        %v6530 = vunpack.c.l.b16 %v6394
        %v6531 = vunpack.c.l.b16 %v6395
        %v6532 = vunpack.c.l.b16 %v6396
        %v6533 = vunpack.c.l.b16 %v6397
        %v6534 = vunpack.c.l.b16 %v6398
        %v6535 = vunpack.c.l.b16 %v6399
        %v6536 = vunpack.c.l.b16 %v6400
        %v6537 = vpack.c.b16 %v6502, %v6501
        %v6538 = vpack.c.b16 %v6504, %v6503
        %v6539 = vpack.c.b16 %v6506, %v6505
        %v6540 = vpack.c.b16 %v6508, %v6507
        %v6541 = vpack.c.b16 %v6510, %v6509
        %v6542 = vpack.c.b16 %v6512, %v6511
        %v6543 = vpack.c.b16 %v6514, %v6513
        %v6544 = vpack.c.b16 %v6516, %v6515
        %v6545 = vpack.c.b16 %v6518, %v6517
        %v6546 = vpack.c.b16 %v6520, %v6519
        %v6547 = vpack.c.b16 %v6522, %v6521
        %v6548 = vpack.c.b16 %v6524, %v6523
        %v6549 = vpack.c.b16 %v6526, %v6525
        %v6550 = vpack.c.b16 %v6528, %v6527
        %v6551 = vpack.c.b16 %v6530, %v6529
        %v6552 = vpack.c.b16 %v6532, %v6531
        %v6553 = vpack.c.b16 %v6534, %v6533
        %v6554 = vpack.c.b16 %v6536, %v6535
        %v6574 = vsel %vm2648, %v6447, 0
        %v6577 = vsel %vm2648, %v6450, 0
        %v6580 = vsel %vm2648, %v6453, 0
        %v6583 = vsel %vm2648, %v6456, 0
        %6585 = vmatpush.bf16.msra.mxu0 %v6544
        %6586 = vmatpush.bf16.msra.mxu0 %v6543
        %6587 = vmatpush.bf16.msra.mxu0 %v6542
        %6588 = vmatpush.bf16.msra.mxu0 %v6541
        %6589 = vmatpush.bf16.msra.mxu0 %v6540
        %6590 = vmatpush.bf16.msra.mxu0 %v6539
        %6591 = vmatpush.bf16.msra.mxu0 %v6538
        %6592 = vmatpush.bf16.msra.mxu0 %v6537
        %6593 = vmatmul.bf16.gmra.mxu0 %v6445
        %v6594 = vpop.f32.mrf.mxu0
        %v6595 = vadd.f32 %v6403, %v6594
        %v6596 = vpop.f32.mrf.mxu0
        %v6597 = vadd.f32 %v6403, %v6596
        %6598 = vmatmul.bf16.gmra.mxu0 %v6448
        %v6599 = vpop.f32.mrf.mxu0
        %v6600 = vadd.f32 %v6403, %v6599
        %v6601 = vpop.f32.mrf.mxu0
        %v6602 = vadd.f32 %v6403, %v6601
        %6603 = vmatmul.bf16.gmra.mxu0 %v6451
        %v6604 = vpop.f32.mrf.mxu0
        %v6605 = vadd.f32 %v6403, %v6604
        %v6606 = vpop.f32.mrf.mxu0
        %v6607 = vadd.f32 %v6403, %v6606
        %6608 = vmatmul.bf16.gmra.mxu0 %v6454
        %v6609 = vpop.f32.mrf.mxu0
        %v6610 = vadd.f32 %v6403, %v6609
        %v6611 = vpop.f32.mrf.mxu0
        %v6612 = vadd.f32 %v6403, %v6611
        %6613 = vdwg.mxu0
        %6614 = vmatpush.bf16.msra.mxu0 %v6552
        %6615 = vmatpush.bf16.msra.mxu0 %v6551
        %6616 = vmatpush.bf16.msra.mxu0 %v6550
        %6617 = vmatpush.bf16.msra.mxu0 %v6549
        %6618 = vmatpush.bf16.msra.mxu0 %v6548
        %6619 = vmatpush.bf16.msra.mxu0 %v6547
        %6620 = vmatpush.bf16.msra.mxu0 %v6546
        %6621 = vmatpush.bf16.msra.mxu0 %v6545
        %6622 = vmatmul.bf16.gmra.mxu0 %v6446
        %v6623 = vpop.f32.mrf.mxu0
        %v6624 = vadd.f32 %v6595, %v6623
        %v6625 = vpop.f32.mrf.mxu0
        %v6626 = vadd.f32 %v6597, %v6625
        %6627 = vmatmul.bf16.gmra.mxu0 %v6449
        %v6628 = vpop.f32.mrf.mxu0
        %v6629 = vadd.f32 %v6600, %v6628
        %v6630 = vpop.f32.mrf.mxu0
        %v6631 = vadd.f32 %v6602, %v6630
        %6632 = vmatmul.bf16.gmra.mxu0 %v6452
        %v6633 = vpop.f32.mrf.mxu0
        %v6634 = vadd.f32 %v6605, %v6633
        %v6635 = vpop.f32.mrf.mxu0
        %v6636 = vadd.f32 %v6607, %v6635
        %6637 = vmatmul.bf16.gmra.mxu0 %v6455
        %v6638 = vpop.f32.mrf.mxu0
        %v6639 = vadd.f32 %v6610, %v6638
        %v6640 = vpop.f32.mrf.mxu0
        %v6641 = vadd.f32 %v6612, %v6640
        %6642 = vdwg.mxu0
        %6643 = vmatpush.bf16.msra.mxu0 0
        %6644 = vmatpush.bf16.msra.mxu0 0
        %6645 = vmatpush.bf16.msra.mxu0 0
        %6646 = vmatpush.bf16.msra.mxu0 0
        %6647 = vmatpush.bf16.msra.mxu0 0
        %6648 = vmatpush.bf16.msra.mxu0 0
        %6649 = vmatpush.bf16.msra.mxu0 %v6554
        %6650 = vmatpush.bf16.msra.mxu0 %v6553
        %6651 = vmatmul.bf16.gmra.mxu0 %v6574
        %v6652 = vpop.f32.mrf.mxu0
        %v6653 = vadd.f32 %v6624, %v6652
        %v6654 = vpop.f32.mrf.mxu0
        %v6655 = vadd.f32 %v6626, %v6654
        %6656 = vmatmul.bf16.gmra.mxu0 %v6577
        %v6657 = vpop.f32.mrf.mxu0
        %v6658 = vadd.f32 %v6629, %v6657
        %v6659 = vpop.f32.mrf.mxu0
        %v6660 = vadd.f32 %v6631, %v6659
        %6661 = vmatmul.bf16.gmra.mxu0 %v6580
        %v6662 = vpop.f32.mrf.mxu0
        %v6663 = vadd.f32 %v6634, %v6662
        %v6664 = vpop.f32.mrf.mxu0
        %v6665 = vadd.f32 %v6636, %v6664
        %6666 = vmatmul.bf16.gmra.mxu0 %v6583
        %v6667 = vpop.f32.mrf.mxu0
        %v6668 = vadd.f32 %v6639, %v6667
        %v6669 = vpop.f32.mrf.mxu0
        %v6670 = vadd.f32 %v6641, %v6669
        %6671 = vdwg.mxu0
        %v6672 = vmax.f32 %v6653, 0.0
        %v6673 = vmax.f32 %v6655, 0.0
        %v6674 = vmax.f32 %v6658, 0.0
        %v6675 = vmax.f32 %v6660, 0.0
        %v6676 = vmax.f32 %v6663, 0.0
        %v6677 = vmax.f32 %v6665, 0.0
        %v6678 = vmax.f32 %v6668, 0.0
        %v6679 = vmax.f32 %v6670, 0.0
        %v6681 = vrot.slane %v6672, 1
        %6682 = vrot.lane.b32.xlu0 %v6681, 32
        %v6683 = vpop.permute.xlu0 %6682
        %v6685 = vrot.slane %v6672, 2
        %6686 = vrot.lane.b32.xlu0 %v6685, 64
        %v6687 = vpop.permute.xlu0 %6686
        %v6689 = vrot.slane %v6672, 3
        %6690 = vrot.lane.b32.xlu0 %v6689, 96
        %v6691 = vpop.permute.xlu0 %6690
        %v6693 = vsel %vm2648, %v6672, %v6683
        %vm6694 = vcmask 523264
        %v6695 = vsel %vm6694, %v6693, %v6687
        %vm6696 = vcmask 785408
        %v6697 = vsel %vm6696, %v6695, %v6691
        %v6699 = vrot.slane %v6673, 1
        %6700 = vrot.lane.b32.xlu0 %v6699, 32
        %v6701 = vpop.permute.xlu0 %6700
        %v6703 = vrot.slane %v6673, 2
        %6704 = vrot.lane.b32.xlu0 %v6703, 64
        %v6705 = vpop.permute.xlu0 %6704
        %v6707 = vrot.slane %v6673, 3
        %6708 = vrot.lane.b32.xlu0 %v6707, 96
        %v6709 = vpop.permute.xlu0 %6708
        %v6711 = vsel %vm2648, %v6673, %v6701
        %v6712 = vsel %vm6694, %v6711, %v6705
        %v6713 = vsel %vm6696, %v6712, %v6709
        %v6715 = vrot.slane %v6674, 1
        %6716 = vrot.lane.b32.xlu0 %v6715, 32
        %v6717 = vpop.permute.xlu0 %6716
        %v6719 = vrot.slane %v6674, 2
        %6720 = vrot.lane.b32.xlu0 %v6719, 64
        %v6721 = vpop.permute.xlu0 %6720
        %v6723 = vrot.slane %v6674, 3
        %6724 = vrot.lane.b32.xlu0 %v6723, 96
        %v6725 = vpop.permute.xlu0 %6724
        %v6727 = vsel %vm2648, %v6674, %v6717
        %v6728 = vsel %vm6694, %v6727, %v6721
        %v6729 = vsel %vm6696, %v6728, %v6725
        %v6731 = vrot.slane %v6675, 1
        %6732 = vrot.lane.b32.xlu0 %v6731, 32
        %v6733 = vpop.permute.xlu0 %6732
        %v6735 = vrot.slane %v6675, 2
        %6736 = vrot.lane.b32.xlu0 %v6735, 64
        %v6737 = vpop.permute.xlu0 %6736
        %v6739 = vrot.slane %v6675, 3
        %6740 = vrot.lane.b32.xlu0 %v6739, 96
        %v6741 = vpop.permute.xlu0 %6740
        %v6743 = vsel %vm2648, %v6675, %v6733
        %v6744 = vsel %vm6694, %v6743, %v6737
        %v6745 = vsel %vm6696, %v6744, %v6741
        %v6747 = vrot.slane %v6676, 1
        %6748 = vrot.lane.b32.xlu0 %v6747, 32
        %v6749 = vpop.permute.xlu0 %6748
        %v6751 = vrot.slane %v6676, 2
        %6752 = vrot.lane.b32.xlu0 %v6751, 64
        %v6753 = vpop.permute.xlu0 %6752
        %v6755 = vrot.slane %v6676, 3
        %6756 = vrot.lane.b32.xlu0 %v6755, 96
        %v6757 = vpop.permute.xlu0 %6756
        %v6759 = vsel %vm2648, %v6676, %v6749
        %v6760 = vsel %vm6694, %v6759, %v6753
        %v6761 = vsel %vm6696, %v6760, %v6757
        %v6763 = vrot.slane %v6677, 1
        %6764 = vrot.lane.b32.xlu0 %v6763, 32
        %v6765 = vpop.permute.xlu0 %6764
        %v6767 = vrot.slane %v6677, 2
        %6768 = vrot.lane.b32.xlu0 %v6767, 64
        %v6769 = vpop.permute.xlu0 %6768
        %v6771 = vrot.slane %v6677, 3
        %6772 = vrot.lane.b32.xlu0 %v6771, 96
        %v6773 = vpop.permute.xlu0 %6772
        %v6775 = vsel %vm2648, %v6677, %v6765
        %v6776 = vsel %vm6694, %v6775, %v6769
        %v6777 = vsel %vm6696, %v6776, %v6773
        %v6779 = vrot.slane %v6678, 1
        %6780 = vrot.lane.b32.xlu0 %v6779, 32
        %v6781 = vpop.permute.xlu0 %6780
        %v6783 = vrot.slane %v6678, 2
        %6784 = vrot.lane.b32.xlu0 %v6783, 64
        %v6785 = vpop.permute.xlu0 %6784
        %v6787 = vrot.slane %v6678, 3
        %6788 = vrot.lane.b32.xlu0 %v6787, 96
        %v6789 = vpop.permute.xlu0 %6788
        %v6791 = vsel %vm2648, %v6678, %v6781
        %v6792 = vsel %vm6694, %v6791, %v6785
        %v6793 = vsel %vm6696, %v6792, %v6789
        %v6795 = vrot.slane %v6679, 1
        %6796 = vrot.lane.b32.xlu0 %v6795, 32
        %v6797 = vpop.permute.xlu0 %6796
        %v6799 = vrot.slane %v6679, 2
        %6800 = vrot.lane.b32.xlu0 %v6799, 64
        %v6801 = vpop.permute.xlu0 %6800
        %v6803 = vrot.slane %v6679, 3
        %6804 = vrot.lane.b32.xlu0 %v6803, 96
        %v6805 = vpop.permute.xlu0 %6804
        %v6807 = vsel %vm2648, %v6679, %v6797
        %v6808 = vsel %vm6694, %v6807, %v6801
        %v6809 = vsel %vm6696, %v6808, %v6805
        %v6811 = vrot.slane %v6697, 4
        %v6814 = vrot.slane %v6713, 4
        %v6817 = vrot.slane %v6729, 4
        %v6820 = vrot.slane %v6745, 4
        %v6823 = vrot.slane %v6761, 4
        %v6826 = vrot.slane %v6777, 4
        %v6829 = vrot.slane %v6793, 4
        %v6832 = vrot.slane %v6809, 4
        %v6834 = vpack.c.bf16 %v6697, %v6697
        %v6835 = vpack.c.bf16 %v6811, %v6811
        %v6836 = vpack.c.bf16 %v6713, %v6713
        %v6837 = vpack.c.bf16 %v6814, %v6814
        %v6838 = vpack.c.bf16 %v6729, %v6729
        %v6839 = vpack.c.bf16 %v6817, %v6817
        %v6840 = vpack.c.bf16 %v6745, %v6745
        %v6841 = vpack.c.bf16 %v6820, %v6820
        %v6842 = vpack.c.bf16 %v6761, %v6761
        %v6843 = vpack.c.bf16 %v6823, %v6823
        %v6844 = vpack.c.bf16 %v6777, %v6777
        %v6845 = vpack.c.bf16 %v6826, %v6826
        %v6846 = vpack.c.bf16 %v6793, %v6793
        %v6847 = vpack.c.bf16 %v6829, %v6829
        %v6848 = vpack.c.bf16 %v6809, %v6809
        %v6849 = vpack.c.bf16 %v6832, %v6832
        %v6850 = vld [vmem:[%s7] sm:$0xf]
        %v6851 = vld [vmem:[%s7 + $0x4] sm:$0xf]
        %v6852 = vld [vmem:[%s7 + $0x8] sm:$0xf]
        %v6853 = vld [vmem:[%s7 + $0xc] sm:$0xf]
        %v6854 = vld [vmem:[%s7 + $0x10] sm:$0xf]
        %v6855 = vld [vmem:[%s7 + $0x14] sm:$0xf]
        %v6856 = vld [vmem:[%s7 + $0x18] sm:$0xf]
        %v6857 = vld [vmem:[%s7 + $0x1c] sm:$0xf]
        %v6858 = vld [vmem:[%s7 + $0x20] sm:$0xf]
        %v6859 = vld [vmem:[%s7 + $0x24] sm:$0xf]
        %v6860 = vld [vmem:[%s7 + $0x28] sm:$0xf]
        %v6861 = vld [vmem:[%s7 + $0x2c] sm:$0xf]
        %v6862 = vld [vmem:[%s7 + $0x30] sm:$0xf]
        %v6863 = vld [vmem:[%s7 + $0x34] sm:$0xf]
        %v6864 = vld [vmem:[%s7 + $0x38] sm:$0xf]
        %v6865 = vld [vmem:[%s7 + $0x3c] sm:$0xf]
        %v6866 = vld [vmem:[%s7 + $0x40] sm:$0xf]
        %v6867 = vld [vmem:[%s7 + $0x44] sm:$0xf]
        %v6868 = vld [vmem:[%s7 + $0x48] sm:$0xf]
        %v6869 = vld [vmem:[%s7 + $0x4c] sm:$0xf]
        %v6870 = vld [vmem:[%s7 + $0x50] sm:$0xf]
        %v6871 = vld [vmem:[%s7 + $0x54] sm:$0xf]
        %v6872 = vld [vmem:[%s7 + $0x58] sm:$0xf]
        %v6873 = vld [vmem:[%s7 + $0x5c] sm:$0xf]
        %v6874 = vld [vmem:[%s7 + $0x60] sm:$0xf]
        %v6875 = vld [vmem:[%s7 + $0x64] sm:$0xf]
        %v6876 = vld [vmem:[%s7 + $0x68] sm:$0xf]
        %v6877 = vld [vmem:[%s7 + $0x6c] sm:$0xf]
        %v6878 = vld [vmem:[%s7 + $0x70] sm:$0xf]
        %v6879 = vld [vmem:[%s7 + $0x74] sm:$0xf]
        %v6880 = vld [vmem:[%s7 + $0x78] sm:$0xf]
        %v6881 = vld [vmem:[%s7 + $0x7c] sm:$0xf]
        %v6882 = vld [vmem:[%s7 + $0x80] sm:$0xf]
        %v6883 = vld [vmem:[%s7 + $0x84] sm:$0xf]
        %v6884 = vld [vmem:[%s7 + $0x88] sm:$0xf]
        %v6885 = vld [vmem:[%s7 + $0x8c] sm:$0xf]
        %v6886 = vld [vmem:[%s7 + $0x90] sm:$0xf]
        %v6887 = vld [vmem:[%s7 + $0x94] sm:$0xf]
        %v6888 = vld [vmem:[%s7 + $0x98] sm:$0xf]
        %v6889 = vld [vmem:[%s7 + $0x9c] sm:$0xf]
        %v6890 = vld [vmem:[%s7 + $0xa0] sm:$0xf]
        %v6891 = vld [vmem:[%s7 + $0xa4] sm:$0xf]
        %v6892 = vld [vmem:[%s7 + $0xa8] sm:$0xf]
        %v6893 = vld [vmem:[%s7 + $0xac] sm:$0xf]
        %v6894 = vld [vmem:[%s7 + $0xb0] sm:$0xf]
        %v6895 = vld [vmem:[%s7 + $0xb4] sm:$0xf]
        %v6896 = vld [vmem:[%s7 + $0xb8] sm:$0xf]
        %v6897 = vld [vmem:[%s7 + $0xbc] sm:$0xf]
        %v6898 = vld [vmem:[%s7 + $0xc0] sm:$0xf]
        %v6899 = vld [vmem:[%s7 + $0xc4] sm:$0xf]
        %v6900 = vld [vmem:[%s7 + $0xc8] sm:$0xf]
        %v6901 = vld [vmem:[%s7 + $0xcc] sm:$0xf]
        %v6902 = vld [vmem:[%s7 + $0xd0] sm:$0xf]
        %v6903 = vld [vmem:[%s7 + $0xd4] sm:$0xf]
        %v6904 = vld [vmem:[%s7 + $0xd8] sm:$0xf]
        %v6905 = vld [vmem:[%s7 + $0xdc] sm:$0xf]
        %v6906 = vld [vmem:[%s7 + $0xe0] sm:$0xf]
        %v6907 = vld [vmem:[%s7 + $0xe4] sm:$0xf]
        %v6908 = vld [vmem:[%s7 + $0xe8] sm:$0xf]
        %v6909 = vld [vmem:[%s7 + $0xec] sm:$0xf]
        %v6910 = vld [vmem:[%s7 + $0xf0] sm:$0xf]
        %v6911 = vld [vmem:[%s7 + $0xf4] sm:$0xf]
        %v6912 = vld [vmem:[%s7 + $0xf8] sm:$0xf]
        %v6913 = vld [vmem:[%s7 + $0xfc] sm:$0xf]
        %v6914 = vld [vmem:[%s7 + $0x100] sm:$0xf]
        %v6915 = vld [vmem:[%s7 + $0x104] sm:$0xf]
        %v6916 = vld [vmem:[%s7 + $0x108] sm:$0xf]
        %v6917 = vld [vmem:[%s7 + $0x10c] sm:$0xf]
        %v6918 = vld [vmem:[%s7 + $0x110] sm:$0xf]
        %v6919 = vld [vmem:[%s7 + $0x114] sm:$0xf]
        %v6920 = vld [vmem:[%s7 + $0x118] sm:$0xf]
        %v6921 = vld [vmem:[%s7 + $0x11c] sm:$0xf]
        %v6922 = vld [vmem:[%s7 + $0x120] sm:$0xf]
        %v6923 = vld [vmem:[%s7 + $0x124] sm:$0xf]
        %v6924 = vld [vmem:[%s7 + $0x128] sm:$0xf]
        %v6925 = vld [vmem:[%s7 + $0x12c] sm:$0xf]
        %v6926 = vld [vmem:[%s7 + $0x130] sm:$0xf]
        %v6927 = vld [vmem:[%s7 + $0x134] sm:$0xf]
        %v6928 = vld [vmem:[%s7 + $0x138] sm:$0xf]
        %v6929 = vld [vmem:[%s7 + $0x13c] sm:$0xf]
        %v6930 = vld [vmem:[%s7 + $0x140] sm:$0xf]
        %v6931 = vld [vmem:[%s7 + $0x144] sm:$0xf]
        %v6932 = vld [vmem:[%s7 + $0x148] sm:$0xf]
        %v6933 = vld [vmem:[%s7 + $0x14c] sm:$0xf]
        %v6934 = vld [vmem:[%s7 + $0x150] sm:$0xf]
        %v6935 = vld [vmem:[%s7 + $0x154] sm:$0xf]
        %v6936 = vld [vmem:[%s7 + $0x158] sm:$0xf]
        %v6937 = vld [vmem:[%s7 + $0x15c] sm:$0xf]
        %v6938 = vld [vmem:[%s7 + $0x160] sm:$0xf]
        %v6939 = vld [vmem:[%s7 + $0x164] sm:$0xf]
        %v6940 = vld [vmem:[%s7 + $0x168] sm:$0xf]
        %v6941 = vld [vmem:[%s7 + $0x16c] sm:$0xf]
        %v6942 = vld [vmem:[%s7 + $0x170] sm:$0xf]
        %v6943 = vld [vmem:[%s7 + $0x174] sm:$0xf]
        %v6944 = vld [vmem:[%s7 + $0x178] sm:$0xf]
        %v6945 = vld [vmem:[%s7 + $0x17c] sm:$0xf]
        %v6946 = vld [vmem:[%s7 + $0x180] sm:$0xf]
        %v6947 = vld [vmem:[%s7 + $0x184] sm:$0xf]
        %v6948 = vld [vmem:[%s7 + $0x188] sm:$0xf]
        %v6949 = vld [vmem:[%s7 + $0x18c] sm:$0xf]
        %v6950 = vld [vmem:[%s7 + $0x190] sm:$0xf]
        %v6951 = vld [vmem:[%s7 + $0x194] sm:$0xf]
        %v6952 = vld [vmem:[%s7 + $0x198] sm:$0xf]
        %v6953 = vld [vmem:[%s7 + $0x19c] sm:$0xf]
        %v6954 = vld [vmem:[%s7 + $0x1a0] sm:$0xf]
        %v6955 = vld [vmem:[%s7 + $0x1a4] sm:$0xf]
        %v6956 = vld [vmem:[%s7 + $0x1a8] sm:$0xf]
        %v6957 = vld [vmem:[%s7 + $0x1ac] sm:$0xf]
        %v6958 = vld [vmem:[%s7 + $0x1b0] sm:$0xf]
        %v6959 = vld [vmem:[%s7 + $0x1b4] sm:$0xf]
        %v6960 = vld [vmem:[%s7 + $0x1b8] sm:$0xf]
        %v6961 = vld [vmem:[%s7 + $0x1bc] sm:$0xf]
        %v6962 = vld [vmem:[%s7 + $0x1c0] sm:$0xf]
        %v6963 = vld [vmem:[%s7 + $0x1c4] sm:$0xf]
        %v6964 = vld [vmem:[%s7 + $0x1c8] sm:$0xf]
        %v6965 = vld [vmem:[%s7 + $0x1cc] sm:$0xf]
        %v6966 = vld [vmem:[%s7 + $0x1d0] sm:$0xf]
        %v6967 = vld [vmem:[%s7 + $0x1d4] sm:$0xf]
        %v6968 = vld [vmem:[%s7 + $0x1d8] sm:$0xf]
        %v6969 = vld [vmem:[%s7 + $0x1dc] sm:$0xf]
        %v6970 = vld [vmem:[%s7 + $0x1e0] sm:$0xf]
        %v6971 = vld [vmem:[%s7 + $0x1e4] sm:$0xf]
        %v6972 = vld [vmem:[%s7 + $0x1e8] sm:$0xf]
        %v6973 = vld [vmem:[%s7 + $0x1ec] sm:$0xf]
        %v6974 = vld [vmem:[%s7 + $0x1f0] sm:$0xf]
        %v6975 = vld [vmem:[%s7 + $0x1f4] sm:$0xf]
        %v6976 = vld [vmem:[%s7 + $0x1f8] sm:$0xf]
        %v6977 = vld [vmem:[%s7 + $0x1fc] sm:$0xf]
        %v6978 = vld [vmem:[%s7 + $0x200] sm:$0xf]
        %v6979 = vld [vmem:[%s7 + $0x204] sm:$0xf]
        %v6980 = vld [vmem:[%s7 + $0x208] sm:$0xf]
        %v6981 = vld [vmem:[%s7 + $0x20c] sm:$0xf]
        %v6982 = vld [vmem:[%s7 + $0x210] sm:$0xf]
        %v6983 = vld [vmem:[%s7 + $0x214] sm:$0xf]
        %v6984 = vld [vmem:[%s7 + $0x218] sm:$0xf]
        %v6985 = vld [vmem:[%s7 + $0x21c] sm:$0xf]
        %v6986 = vld [vmem:[%s7 + $0x220] sm:$0xf]
        %v6987 = vld [vmem:[%s7 + $0x224] sm:$0xf]
        %v6988 = vld [vmem:[%s7 + $0x228] sm:$0xf]
        %v6989 = vld [vmem:[%s7 + $0x22c] sm:$0xf]
        %v6990 = vld [vmem:[%s7 + $0x230] sm:$0xf]
        %v6991 = vld [vmem:[%s7 + $0x234] sm:$0xf]
        %v6992 = vld [vmem:[%s7 + $0x238] sm:$0xf]
        %v6993 = vld [vmem:[%s7 + $0x23c] sm:$0xf]
        %v6994 = vld [vmem:[%s7 + $0x240] sm:$0xf]
        %v6995 = vld [vmem:[%s7 + $0x244] sm:$0xf]
        %v6996 = vld [vmem:[%s7 + $0x248] sm:$0xf]
        %v6997 = vld [vmem:[%s7 + $0x24c] sm:$0xf]
        %v6998 = vld [vmem:[%s7 + $0x250] sm:$0xf]
        %v6999 = vld [vmem:[%s7 + $0x254] sm:$0xf]
        %v7000 = vld [vmem:[%s7 + $0x258] sm:$0xf]
        %v7001 = vld [vmem:[%s7 + $0x25c] sm:$0xf]
        %v7002 = vld [vmem:[%s7 + $0x260] sm:$0xf]
        %v7003 = vld [vmem:[%s7 + $0x264] sm:$0xf]
        %v7004 = vld [vmem:[%s7 + $0x268] sm:$0xf]
        %v7005 = vld [vmem:[%s7 + $0x26c] sm:$0xf]
        %v7006 = vld [vmem:[%s7 + $0x270] sm:$0xf]
        %v7007 = vld [vmem:[%s7 + $0x274] sm:$0xf]
        %v7008 = vld [vmem:[%s7 + $0x278] sm:$0xf]
        %v7009 = vld [vmem:[%s7 + $0x27c] sm:$0xf]
        %v7010 = vld [vmem:[%s7 + $0x280] sm:$0xf]
        %v7011 = vld [vmem:[%s7 + $0x284] sm:$0xf]
        %v7012 = vld [vmem:[%s7 + $0x288] sm:$0xf]
        %v7013 = vld [vmem:[%s7 + $0x28c] sm:$0xf]
        %v7014 = vld [vmem:[%s7 + $0x290] sm:$0xf]
        %v7015 = vld [vmem:[%s7 + $0x294] sm:$0xf]
        %v7016 = vld [vmem:[%s7 + $0x298] sm:$0xf]
        %v7017 = vld [vmem:[%s7 + $0x29c] sm:$0xf]
        %v7018 = vld [vmem:[%s7 + $0x2a0] sm:$0xf]
        %v7019 = vld [vmem:[%s7 + $0x2a4] sm:$0xf]
        %v7020 = vld [vmem:[%s7 + $0x2a8] sm:$0xf]
        %v7021 = vld [vmem:[%s7 + $0x2ac] sm:$0xf]
        %v7022 = vld [vmem:[%s7 + $0x2b0] sm:$0xf]
        %v7023 = vld [vmem:[%s7 + $0x2b4] sm:$0xf]
        %v7024 = vld [vmem:[%s7 + $0x2b8] sm:$0xf]
        %v7025 = vld [vmem:[%s7 + $0x2bc] sm:$0xf]
        %v7026 = vld [vmem:[%s7 + $0x2c0] sm:$0xf]
        %v7027 = vld [vmem:[%s7 + $0x2c4] sm:$0xf]
        %v7028 = vld [vmem:[%s7 + $0x2c8] sm:$0xf]
        %v7029 = vld [vmem:[%s7 + $0x2cc] sm:$0xf]
        %v7030 = vld [vmem:[%s7 + $0x2d0] sm:$0xf]
        %v7031 = vld [vmem:[%s7 + $0x2d4] sm:$0xf]
        %v7032 = vld [vmem:[%s7 + $0x2d8] sm:$0xf]
        %v7033 = vld [vmem:[%s7 + $0x2dc] sm:$0xf]
        %v7034 = vld [vmem:[%s7 + $0x2e0] sm:$0xf]
        %v7035 = vld [vmem:[%s7 + $0x2e4] sm:$0xf]
        %v7036 = vld [vmem:[%s7 + $0x2e8] sm:$0xf]
        %v7037 = vld [vmem:[%s7 + $0x2ec] sm:$0xf]
        %v7038 = vld [vmem:[%s7 + $0x2f0] sm:$0xf]
        %v7039 = vld [vmem:[%s7 + $0x2f4] sm:$0xf]
        %v7040 = vld [vmem:[%s7 + $0x2f8] sm:$0xf]
        %v7041 = vld [vmem:[%s7 + $0x2fc] sm:$0xf]
        %v7042 = vld [vmem:[%s7 + $0x300] sm:$0xf]
        %v7043 = vld [vmem:[%s7 + $0x304] sm:$0xf]
        %v7044 = vld [vmem:[%s7 + $0x308] sm:$0xf]
        %v7045 = vld [vmem:[%s7 + $0x30c] sm:$0xf]
        %v7046 = vld [vmem:[%s7 + $0x310] sm:$0xf]
        %v7047 = vld [vmem:[%s7 + $0x314] sm:$0xf]
        %v7048 = vld [vmem:[%s7 + $0x318] sm:$0xf]
        %v7049 = vld [vmem:[%s7 + $0x31c] sm:$0xf]
        %v7050 = vld [vmem:[%s7 + $0x320] sm:$0xf]
        %v7051 = vld [vmem:[%s7 + $0x324] sm:$0xf]
        %v7052 = vld [vmem:[%s7 + $0x328] sm:$0xf]
        %v7053 = vld [vmem:[%s7 + $0x32c] sm:$0xf]
        %v7054 = vld [vmem:[%s7 + $0x330] sm:$0xf]
        %v7055 = vld [vmem:[%s7 + $0x334] sm:$0xf]
        %v7056 = vld [vmem:[%s7 + $0x338] sm:$0xf]
        %v7057 = vld [vmem:[%s7 + $0x33c] sm:$0xf]
        %v7058 = vld [vmem:[%s7 + $0x340] sm:$0xf]
        %v7059 = vld [vmem:[%s7 + $0x344] sm:$0xf]
        %v7060 = vld [vmem:[%s7 + $0x348] sm:$0xf]
        %v7061 = vld [vmem:[%s7 + $0x34c] sm:$0xf]
        %v7062 = vld [vmem:[%s7 + $0x350] sm:$0xf]
        %v7063 = vld [vmem:[%s7 + $0x354] sm:$0xf]
        %v7064 = vld [vmem:[%s7 + $0x358] sm:$0xf]
        %v7065 = vld [vmem:[%s7 + $0x35c] sm:$0xf]
        %v7066 = vld [vmem:[%s7 + $0x360] sm:$0xf]
        %v7067 = vld [vmem:[%s7 + $0x364] sm:$0xf]
        %v7068 = vld [vmem:[%s7 + $0x368] sm:$0xf]
        %v7069 = vld [vmem:[%s7 + $0x36c] sm:$0xf]
        %v7070 = vld [vmem:[%s7 + $0x370] sm:$0xf]
        %v7071 = vld [vmem:[%s7 + $0x374] sm:$0xf]
        %v7072 = vld [vmem:[%s7 + $0x378] sm:$0xf]
        %v7073 = vld [vmem:[%s7 + $0x37c] sm:$0xf]
        %v7074 = vld [vmem:[%s7 + $0x380] sm:$0xf]
        %v7075 = vld [vmem:[%s7 + $0x384] sm:$0xf]
        %v7076 = vld [vmem:[%s7 + $0x388] sm:$0xf]
        %v7077 = vld [vmem:[%s7 + $0x38c] sm:$0xf]
        %v7078 = vld [vmem:[%s7 + $0x390] sm:$0xf]
        %v7079 = vld [vmem:[%s7 + $0x394] sm:$0xf]
        %v7080 = vld [vmem:[%s7 + $0x398] sm:$0xf]
        %v7081 = vld [vmem:[%s7 + $0x39c] sm:$0xf]
        %v7082 = vld [vmem:[%s7 + $0x3a0] sm:$0xf]
        %v7083 = vld [vmem:[%s7 + $0x3a4] sm:$0xf]
        %v7084 = vld [vmem:[%s7 + $0x3a8] sm:$0xf]
        %v7085 = vld [vmem:[%s7 + $0x3ac] sm:$0xf]
        %v7086 = vld [vmem:[%s7 + $0x3b0] sm:$0xf]
        %v7087 = vld [vmem:[%s7 + $0x3b4] sm:$0xf]
        %v7088 = vld [vmem:[%s7 + $0x3b8] sm:$0xf]
        %v7089 = vld [vmem:[%s7 + $0x3bc] sm:$0xf]
        %v7090 = vld [vmem:[%s7 + $0x3c0] sm:$0xf]
        %v7091 = vld [vmem:[%s7 + $0x3c4] sm:$0xf]
        %v7092 = vld [vmem:[%s7 + $0x3c8] sm:$0xf]
        %v7093 = vld [vmem:[%s7 + $0x3cc] sm:$0xf]
        %v7094 = vld [vmem:[%s7 + $0x3d0] sm:$0xf]
        %v7095 = vld [vmem:[%s7 + $0x3d4] sm:$0xf]
        %v7096 = vld [vmem:[%s7 + $0x3d8] sm:$0xf]
        %v7097 = vld [vmem:[%s7 + $0x3dc] sm:$0xf]
        %v7098 = vld [vmem:[%s7 + $0x3e0] sm:$0xf]
        %v7099 = vld [vmem:[%s7 + $0x3e4] sm:$0xf]
        %v7100 = vld [vmem:[%s7 + $0x3e8] sm:$0xf]
        %v7101 = vld [vmem:[%s7 + $0x3ec] sm:$0xf]
        %v7102 = vld [vmem:[%s7 + $0x3f0] sm:$0xf]
        %v7103 = vld [vmem:[%s7 + $0x3f4] sm:$0xf]
        %v7104 = vld [vmem:[%s7 + $0x3f8] sm:$0xf]
        %v7105 = vld [vmem:[%s7 + $0x3fc] sm:$0xf]
        %v7106 = vld [vmem:[%s8] sm:$0x1]
        %v7363 = vunpack.c.l.b16 %v6850
        %v7364 = vunpack.c.l.b16 %v6851
        %v7365 = vunpack.c.l.b16 %v6852
        %v7366 = vunpack.c.l.b16 %v6853
        %v7367 = vunpack.c.l.b16 %v6854
        %v7368 = vunpack.c.l.b16 %v6855
        %v7369 = vunpack.c.l.b16 %v6856
        %v7370 = vunpack.c.l.b16 %v6857
        %v7371 = vunpack.c.l.b16 %v6858
        %v7372 = vunpack.c.l.b16 %v6859
        %v7373 = vunpack.c.l.b16 %v6860
        %v7374 = vunpack.c.l.b16 %v6861
        %v7375 = vunpack.c.l.b16 %v6862
        %v7376 = vunpack.c.l.b16 %v6863
        %v7377 = vunpack.c.l.b16 %v6864
        %v7378 = vunpack.c.l.b16 %v6865
        %v7379 = vunpack.c.l.b16 %v6866
        %v7380 = vunpack.c.l.b16 %v6867
        %v7381 = vunpack.c.l.b16 %v6868
        %v7382 = vunpack.c.l.b16 %v6869
        %v7383 = vunpack.c.l.b16 %v6870
        %v7384 = vunpack.c.l.b16 %v6871
        %v7385 = vunpack.c.l.b16 %v6872
        %v7386 = vunpack.c.l.b16 %v6873
        %v7387 = vunpack.c.l.b16 %v6874
        %v7388 = vunpack.c.l.b16 %v6875
        %v7389 = vunpack.c.l.b16 %v6876
        %v7390 = vunpack.c.l.b16 %v6877
        %v7391 = vunpack.c.l.b16 %v6878
        %v7392 = vunpack.c.l.b16 %v6879
        %v7393 = vunpack.c.l.b16 %v6880
        %v7394 = vunpack.c.l.b16 %v6881
        %v7395 = vunpack.c.l.b16 %v6882
        %v7396 = vunpack.c.l.b16 %v6883
        %v7397 = vunpack.c.l.b16 %v6884
        %v7398 = vunpack.c.l.b16 %v6885
        %v7399 = vunpack.c.l.b16 %v6886
        %v7400 = vunpack.c.l.b16 %v6887
        %v7401 = vunpack.c.l.b16 %v6888
        %v7402 = vunpack.c.l.b16 %v6889
        %v7403 = vunpack.c.l.b16 %v6890
        %v7404 = vunpack.c.l.b16 %v6891
        %v7405 = vunpack.c.l.b16 %v6892
        %v7406 = vunpack.c.l.b16 %v6893
        %v7407 = vunpack.c.l.b16 %v6894
        %v7408 = vunpack.c.l.b16 %v6895
        %v7409 = vunpack.c.l.b16 %v6896
        %v7410 = vunpack.c.l.b16 %v6897
        %v7411 = vunpack.c.l.b16 %v6898
        %v7412 = vunpack.c.l.b16 %v6899
        %v7413 = vunpack.c.l.b16 %v6900
        %v7414 = vunpack.c.l.b16 %v6901
        %v7415 = vunpack.c.l.b16 %v6902
        %v7416 = vunpack.c.l.b16 %v6903
        %v7417 = vunpack.c.l.b16 %v6904
        %v7418 = vunpack.c.l.b16 %v6905
        %v7419 = vunpack.c.l.b16 %v6906
        %v7420 = vunpack.c.l.b16 %v6907
        %v7421 = vunpack.c.l.b16 %v6908
        %v7422 = vunpack.c.l.b16 %v6909
        %v7423 = vunpack.c.l.b16 %v6910
        %v7424 = vunpack.c.l.b16 %v6911
        %v7425 = vunpack.c.l.b16 %v6912
        %v7426 = vunpack.c.l.b16 %v6913
        %v7427 = vunpack.c.l.b16 %v6914
        %v7428 = vunpack.c.l.b16 %v6915
        %v7429 = vunpack.c.l.b16 %v6916
        %v7430 = vunpack.c.l.b16 %v6917
        %v7431 = vunpack.c.l.b16 %v6918
        %v7432 = vunpack.c.l.b16 %v6919
        %v7433 = vunpack.c.l.b16 %v6920
        %v7434 = vunpack.c.l.b16 %v6921
        %v7435 = vunpack.c.l.b16 %v6922
        %v7436 = vunpack.c.l.b16 %v6923
        %v7437 = vunpack.c.l.b16 %v6924
        %v7438 = vunpack.c.l.b16 %v6925
        %v7439 = vunpack.c.l.b16 %v6926
        %v7440 = vunpack.c.l.b16 %v6927
        %v7441 = vunpack.c.l.b16 %v6928
        %v7442 = vunpack.c.l.b16 %v6929
        %v7443 = vunpack.c.l.b16 %v6930
        %v7444 = vunpack.c.l.b16 %v6931
        %v7445 = vunpack.c.l.b16 %v6932
        %v7446 = vunpack.c.l.b16 %v6933
        %v7447 = vunpack.c.l.b16 %v6934
        %v7448 = vunpack.c.l.b16 %v6935
        %v7449 = vunpack.c.l.b16 %v6936
        %v7450 = vunpack.c.l.b16 %v6937
        %v7451 = vunpack.c.l.b16 %v6938
        %v7452 = vunpack.c.l.b16 %v6939
        %v7453 = vunpack.c.l.b16 %v6940
        %v7454 = vunpack.c.l.b16 %v6941
        %v7455 = vunpack.c.l.b16 %v6942
        %v7456 = vunpack.c.l.b16 %v6943
        %v7457 = vunpack.c.l.b16 %v6944
        %v7458 = vunpack.c.l.b16 %v6945
        %v7459 = vunpack.c.l.b16 %v6946
        %v7460 = vunpack.c.l.b16 %v6947
        %v7461 = vunpack.c.l.b16 %v6948
        %v7462 = vunpack.c.l.b16 %v6949
        %v7463 = vunpack.c.l.b16 %v6950
        %v7464 = vunpack.c.l.b16 %v6951
        %v7465 = vunpack.c.l.b16 %v6952
        %v7466 = vunpack.c.l.b16 %v6953
        %v7467 = vunpack.c.l.b16 %v6954
        %v7468 = vunpack.c.l.b16 %v6955
        %v7469 = vunpack.c.l.b16 %v6956
        %v7470 = vunpack.c.l.b16 %v6957
        %v7471 = vunpack.c.l.b16 %v6958
        %v7472 = vunpack.c.l.b16 %v6959
        %v7473 = vunpack.c.l.b16 %v6960
        %v7474 = vunpack.c.l.b16 %v6961
        %v7475 = vunpack.c.l.b16 %v6962
        %v7476 = vunpack.c.l.b16 %v6963
        %v7477 = vunpack.c.l.b16 %v6964
        %v7478 = vunpack.c.l.b16 %v6965
        %v7479 = vunpack.c.l.b16 %v6966
        %v7480 = vunpack.c.l.b16 %v6967
        %v7481 = vunpack.c.l.b16 %v6968
        %v7482 = vunpack.c.l.b16 %v6969
        %v7483 = vunpack.c.l.b16 %v6970
        %v7484 = vunpack.c.l.b16 %v6971
        %v7485 = vunpack.c.l.b16 %v6972
        %v7486 = vunpack.c.l.b16 %v6973
        %v7487 = vunpack.c.l.b16 %v6974
        %v7488 = vunpack.c.l.b16 %v6975
        %v7489 = vunpack.c.l.b16 %v6976
        %v7490 = vunpack.c.l.b16 %v6977
        %v7491 = vunpack.c.l.b16 %v6978
        %v7492 = vunpack.c.l.b16 %v6979
        %v7493 = vunpack.c.l.b16 %v6980
        %v7494 = vunpack.c.l.b16 %v6981
        %v7495 = vunpack.c.l.b16 %v6982
        %v7496 = vunpack.c.l.b16 %v6983
        %v7497 = vunpack.c.l.b16 %v6984
        %v7498 = vunpack.c.l.b16 %v6985
        %v7499 = vunpack.c.l.b16 %v6986
        %v7500 = vunpack.c.l.b16 %v6987
        %v7501 = vunpack.c.l.b16 %v6988
        %v7502 = vunpack.c.l.b16 %v6989
        %v7503 = vunpack.c.l.b16 %v6990
        %v7504 = vunpack.c.l.b16 %v6991
        %v7505 = vunpack.c.l.b16 %v6992
        %v7506 = vunpack.c.l.b16 %v6993
        %v7507 = vunpack.c.l.b16 %v6994
        %v7508 = vunpack.c.l.b16 %v6995
        %v7509 = vunpack.c.l.b16 %v6996
        %v7510 = vunpack.c.l.b16 %v6997
        %v7511 = vunpack.c.l.b16 %v6998
        %v7512 = vunpack.c.l.b16 %v6999
        %v7513 = vunpack.c.l.b16 %v7000
        %v7514 = vunpack.c.l.b16 %v7001
        %v7515 = vunpack.c.l.b16 %v7002
        %v7516 = vunpack.c.l.b16 %v7003
        %v7517 = vunpack.c.l.b16 %v7004
        %v7518 = vunpack.c.l.b16 %v7005
        %v7519 = vunpack.c.l.b16 %v7006
        %v7520 = vunpack.c.l.b16 %v7007
        %v7521 = vunpack.c.l.b16 %v7008
        %v7522 = vunpack.c.l.b16 %v7009
        %v7523 = vunpack.c.l.b16 %v7010
        %v7524 = vunpack.c.l.b16 %v7011
        %v7525 = vunpack.c.l.b16 %v7012
        %v7526 = vunpack.c.l.b16 %v7013
        %v7527 = vunpack.c.l.b16 %v7014
        %v7528 = vunpack.c.l.b16 %v7015
        %v7529 = vunpack.c.l.b16 %v7016
        %v7530 = vunpack.c.l.b16 %v7017
        %v7531 = vunpack.c.l.b16 %v7018
        %v7532 = vunpack.c.l.b16 %v7019
        %v7533 = vunpack.c.l.b16 %v7020
        %v7534 = vunpack.c.l.b16 %v7021
        %v7535 = vunpack.c.l.b16 %v7022
        %v7536 = vunpack.c.l.b16 %v7023
        %v7537 = vunpack.c.l.b16 %v7024
        %v7538 = vunpack.c.l.b16 %v7025
        %v7539 = vunpack.c.l.b16 %v7026
        %v7540 = vunpack.c.l.b16 %v7027
        %v7541 = vunpack.c.l.b16 %v7028
        %v7542 = vunpack.c.l.b16 %v7029
        %v7543 = vunpack.c.l.b16 %v7030
        %v7544 = vunpack.c.l.b16 %v7031
        %v7545 = vunpack.c.l.b16 %v7032
        %v7546 = vunpack.c.l.b16 %v7033
        %v7547 = vunpack.c.l.b16 %v7034
        %v7548 = vunpack.c.l.b16 %v7035
        %v7549 = vunpack.c.l.b16 %v7036
        %v7550 = vunpack.c.l.b16 %v7037
        %v7551 = vunpack.c.l.b16 %v7038
        %v7552 = vunpack.c.l.b16 %v7039
        %v7553 = vunpack.c.l.b16 %v7040
        %v7554 = vunpack.c.l.b16 %v7041
        %v7555 = vunpack.c.l.b16 %v7042
        %v7556 = vunpack.c.l.b16 %v7043
        %v7557 = vunpack.c.l.b16 %v7044
        %v7558 = vunpack.c.l.b16 %v7045
        %v7559 = vunpack.c.l.b16 %v7046
        %v7560 = vunpack.c.l.b16 %v7047
        %v7561 = vunpack.c.l.b16 %v7048
        %v7562 = vunpack.c.l.b16 %v7049
        %v7563 = vunpack.c.l.b16 %v7050
        %v7564 = vunpack.c.l.b16 %v7051
        %v7565 = vunpack.c.l.b16 %v7052
        %v7566 = vunpack.c.l.b16 %v7053
        %v7567 = vunpack.c.l.b16 %v7054
        %v7568 = vunpack.c.l.b16 %v7055
        %v7569 = vunpack.c.l.b16 %v7056
        %v7570 = vunpack.c.l.b16 %v7057
        %v7571 = vunpack.c.l.b16 %v7058
        %v7572 = vunpack.c.l.b16 %v7059
        %v7573 = vunpack.c.l.b16 %v7060
        %v7574 = vunpack.c.l.b16 %v7061
        %v7575 = vunpack.c.l.b16 %v7062
        %v7576 = vunpack.c.l.b16 %v7063
        %v7577 = vunpack.c.l.b16 %v7064
        %v7578 = vunpack.c.l.b16 %v7065
        %v7579 = vunpack.c.l.b16 %v7066
        %v7580 = vunpack.c.l.b16 %v7067
        %v7581 = vunpack.c.l.b16 %v7068
        %v7582 = vunpack.c.l.b16 %v7069
        %v7583 = vunpack.c.l.b16 %v7070
        %v7584 = vunpack.c.l.b16 %v7071
        %v7585 = vunpack.c.l.b16 %v7072
        %v7586 = vunpack.c.l.b16 %v7073
        %v7587 = vunpack.c.l.b16 %v7074
        %v7588 = vunpack.c.l.b16 %v7075
        %v7589 = vunpack.c.l.b16 %v7076
        %v7590 = vunpack.c.l.b16 %v7077
        %v7591 = vunpack.c.l.b16 %v7078
        %v7592 = vunpack.c.l.b16 %v7079
        %v7593 = vunpack.c.l.b16 %v7080
        %v7594 = vunpack.c.l.b16 %v7081
        %v7595 = vunpack.c.l.b16 %v7082
        %v7596 = vunpack.c.l.b16 %v7083
        %v7597 = vunpack.c.l.b16 %v7084
        %v7598 = vunpack.c.l.b16 %v7085
        %v7599 = vunpack.c.l.b16 %v7086
        %v7600 = vunpack.c.l.b16 %v7087
        %v7601 = vunpack.c.l.b16 %v7088
        %v7602 = vunpack.c.l.b16 %v7089
        %v7603 = vunpack.c.l.b16 %v7090
        %v7604 = vunpack.c.l.b16 %v7091
        %v7605 = vunpack.c.l.b16 %v7092
        %v7606 = vunpack.c.l.b16 %v7093
        %v7607 = vunpack.c.l.b16 %v7094
        %v7608 = vunpack.c.l.b16 %v7095
        %v7609 = vunpack.c.l.b16 %v7096
        %v7610 = vunpack.c.l.b16 %v7097
        %v7611 = vunpack.c.l.b16 %v7098
        %v7612 = vunpack.c.l.b16 %v7099
        %v7613 = vunpack.c.l.b16 %v7100
        %v7614 = vunpack.c.l.b16 %v7101
        %v7615 = vunpack.c.l.b16 %v7102
        %v7616 = vunpack.c.l.b16 %v7103
        %v7617 = vunpack.c.l.b16 %v7104
        %v7618 = vunpack.c.l.b16 %v7105
        %v7619 = vpack.c.b16 %v7364, %v7363
        %v7620 = vpack.c.b16 %v7366, %v7365
        %v7621 = vpack.c.b16 %v7368, %v7367
        %v7622 = vpack.c.b16 %v7370, %v7369
        %v7623 = vpack.c.b16 %v7372, %v7371
        %v7624 = vpack.c.b16 %v7374, %v7373
        %v7625 = vpack.c.b16 %v7376, %v7375
        %v7626 = vpack.c.b16 %v7378, %v7377
        %v7627 = vpack.c.b16 %v7380, %v7379
        %v7628 = vpack.c.b16 %v7382, %v7381
        %v7629 = vpack.c.b16 %v7384, %v7383
        %v7630 = vpack.c.b16 %v7386, %v7385
        %v7631 = vpack.c.b16 %v7388, %v7387
        %v7632 = vpack.c.b16 %v7390, %v7389
        %v7633 = vpack.c.b16 %v7392, %v7391
        %v7634 = vpack.c.b16 %v7394, %v7393
        %v7635 = vpack.c.b16 %v7396, %v7395
        %v7636 = vpack.c.b16 %v7398, %v7397
        %v7637 = vpack.c.b16 %v7400, %v7399
        %v7638 = vpack.c.b16 %v7402, %v7401
        %v7639 = vpack.c.b16 %v7404, %v7403
        %v7640 = vpack.c.b16 %v7406, %v7405
        %v7641 = vpack.c.b16 %v7408, %v7407
        %v7642 = vpack.c.b16 %v7410, %v7409
        %v7643 = vpack.c.b16 %v7412, %v7411
        %v7644 = vpack.c.b16 %v7414, %v7413
        %v7645 = vpack.c.b16 %v7416, %v7415
        %v7646 = vpack.c.b16 %v7418, %v7417
        %v7647 = vpack.c.b16 %v7420, %v7419
        %v7648 = vpack.c.b16 %v7422, %v7421
        %v7649 = vpack.c.b16 %v7424, %v7423
        %v7650 = vpack.c.b16 %v7426, %v7425
        %v7651 = vpack.c.b16 %v7428, %v7427
        %v7652 = vpack.c.b16 %v7430, %v7429
        %v7653 = vpack.c.b16 %v7432, %v7431
        %v7654 = vpack.c.b16 %v7434, %v7433
        %v7655 = vpack.c.b16 %v7436, %v7435
        %v7656 = vpack.c.b16 %v7438, %v7437
        %v7657 = vpack.c.b16 %v7440, %v7439
        %v7658 = vpack.c.b16 %v7442, %v7441
        %v7659 = vpack.c.b16 %v7444, %v7443
        %v7660 = vpack.c.b16 %v7446, %v7445
        %v7661 = vpack.c.b16 %v7448, %v7447
        %v7662 = vpack.c.b16 %v7450, %v7449
        %v7663 = vpack.c.b16 %v7452, %v7451
        %v7664 = vpack.c.b16 %v7454, %v7453
        %v7665 = vpack.c.b16 %v7456, %v7455
        %v7666 = vpack.c.b16 %v7458, %v7457
        %v7667 = vpack.c.b16 %v7460, %v7459
        %v7668 = vpack.c.b16 %v7462, %v7461
        %v7669 = vpack.c.b16 %v7464, %v7463
        %v7670 = vpack.c.b16 %v7466, %v7465
        %v7671 = vpack.c.b16 %v7468, %v7467
        %v7672 = vpack.c.b16 %v7470, %v7469
        %v7673 = vpack.c.b16 %v7472, %v7471
        %v7674 = vpack.c.b16 %v7474, %v7473
        %v7675 = vpack.c.b16 %v7476, %v7475
        %v7676 = vpack.c.b16 %v7478, %v7477
        %v7677 = vpack.c.b16 %v7480, %v7479
        %v7678 = vpack.c.b16 %v7482, %v7481
        %v7679 = vpack.c.b16 %v7484, %v7483
        %v7680 = vpack.c.b16 %v7486, %v7485
        %v7681 = vpack.c.b16 %v7488, %v7487
        %v7682 = vpack.c.b16 %v7490, %v7489
        %v7683 = vpack.c.b16 %v7492, %v7491
        %v7684 = vpack.c.b16 %v7494, %v7493
        %v7685 = vpack.c.b16 %v7496, %v7495
        %v7686 = vpack.c.b16 %v7498, %v7497
        %v7687 = vpack.c.b16 %v7500, %v7499
        %v7688 = vpack.c.b16 %v7502, %v7501
        %v7689 = vpack.c.b16 %v7504, %v7503
        %v7690 = vpack.c.b16 %v7506, %v7505
        %v7691 = vpack.c.b16 %v7508, %v7507
        %v7692 = vpack.c.b16 %v7510, %v7509
        %v7693 = vpack.c.b16 %v7512, %v7511
        %v7694 = vpack.c.b16 %v7514, %v7513
        %v7695 = vpack.c.b16 %v7516, %v7515
        %v7696 = vpack.c.b16 %v7518, %v7517
        %v7697 = vpack.c.b16 %v7520, %v7519
        %v7698 = vpack.c.b16 %v7522, %v7521
        %v7699 = vpack.c.b16 %v7524, %v7523
        %v7700 = vpack.c.b16 %v7526, %v7525
        %v7701 = vpack.c.b16 %v7528, %v7527
        %v7702 = vpack.c.b16 %v7530, %v7529
        %v7703 = vpack.c.b16 %v7532, %v7531
        %v7704 = vpack.c.b16 %v7534, %v7533
        %v7705 = vpack.c.b16 %v7536, %v7535
        %v7706 = vpack.c.b16 %v7538, %v7537
        %v7707 = vpack.c.b16 %v7540, %v7539
        %v7708 = vpack.c.b16 %v7542, %v7541
        %v7709 = vpack.c.b16 %v7544, %v7543
        %v7710 = vpack.c.b16 %v7546, %v7545
        %v7711 = vpack.c.b16 %v7548, %v7547
        %v7712 = vpack.c.b16 %v7550, %v7549
        %v7713 = vpack.c.b16 %v7552, %v7551
        %v7714 = vpack.c.b16 %v7554, %v7553
        %v7715 = vpack.c.b16 %v7556, %v7555
        %v7716 = vpack.c.b16 %v7558, %v7557
        %v7717 = vpack.c.b16 %v7560, %v7559
        %v7718 = vpack.c.b16 %v7562, %v7561
        %v7719 = vpack.c.b16 %v7564, %v7563
        %v7720 = vpack.c.b16 %v7566, %v7565
        %v7721 = vpack.c.b16 %v7568, %v7567
        %v7722 = vpack.c.b16 %v7570, %v7569
        %v7723 = vpack.c.b16 %v7572, %v7571
        %v7724 = vpack.c.b16 %v7574, %v7573
        %v7725 = vpack.c.b16 %v7576, %v7575
        %v7726 = vpack.c.b16 %v7578, %v7577
        %v7727 = vpack.c.b16 %v7580, %v7579
        %v7728 = vpack.c.b16 %v7582, %v7581
        %v7729 = vpack.c.b16 %v7584, %v7583
        %v7730 = vpack.c.b16 %v7586, %v7585
        %v7731 = vpack.c.b16 %v7588, %v7587
        %v7732 = vpack.c.b16 %v7590, %v7589
        %v7733 = vpack.c.b16 %v7592, %v7591
        %v7734 = vpack.c.b16 %v7594, %v7593
        %v7735 = vpack.c.b16 %v7596, %v7595
        %v7736 = vpack.c.b16 %v7598, %v7597
        %v7737 = vpack.c.b16 %v7600, %v7599
        %v7738 = vpack.c.b16 %v7602, %v7601
        %v7739 = vpack.c.b16 %v7604, %v7603
        %v7740 = vpack.c.b16 %v7606, %v7605
        %v7741 = vpack.c.b16 %v7608, %v7607
        %v7742 = vpack.c.b16 %v7610, %v7609
        %v7743 = vpack.c.b16 %v7612, %v7611
        %v7744 = vpack.c.b16 %v7614, %v7613
        %v7745 = vpack.c.b16 %v7616, %v7615
        %v7746 = vpack.c.b16 %v7618, %v7617
        %7875 = vmatpush.bf16.msra.mxu0 %v7626
        %7876 = vmatpush.bf16.msra.mxu0 %v7625
        %7877 = vmatpush.bf16.msra.mxu0 %v7624
        %7878 = vmatpush.bf16.msra.mxu0 %v7623
        %7879 = vmatpush.bf16.msra.mxu0 %v7622
        %7880 = vmatpush.bf16.msra.mxu0 %v7621
        %7881 = vmatpush.bf16.msra.mxu0 %v7620
        %7882 = vmatpush.bf16.msra.mxu0 %v7619
        %7883 = vmatmul.bf16.gmra.mxu0 %v6834
        %v7884 = vpop.f32.mrf.mxu0
        %v7885 = vadd.f32 %v7106, %v7884
        %v7886 = vpop.f32.mrf.mxu0
        %7887 = vdwg.mxu0
        %7888 = vmatpush.bf16.msra.mxu0 %v7634
        %7889 = vmatpush.bf16.msra.mxu0 %v7633
        %7890 = vmatpush.bf16.msra.mxu0 %v7632
        %7891 = vmatpush.bf16.msra.mxu0 %v7631
        %7892 = vmatpush.bf16.msra.mxu0 %v7630
        %7893 = vmatpush.bf16.msra.mxu0 %v7629
        %7894 = vmatpush.bf16.msra.mxu0 %v7628
        %7895 = vmatpush.bf16.msra.mxu0 %v7627
        %7896 = vmatmul.bf16.gmra.mxu0 %v6835
        %v7897 = vpop.f32.mrf.mxu0
        %v7898 = vadd.f32 %v7885, %v7897
        %v7899 = vpop.f32.mrf.mxu0
        %7900 = vdwg.mxu0
        %7901 = vmatpush.bf16.msra.mxu0 %v7642
        %7902 = vmatpush.bf16.msra.mxu0 %v7641
        %7903 = vmatpush.bf16.msra.mxu0 %v7640
        %7904 = vmatpush.bf16.msra.mxu0 %v7639
        %7905 = vmatpush.bf16.msra.mxu0 %v7638
        %7906 = vmatpush.bf16.msra.mxu0 %v7637
        %7907 = vmatpush.bf16.msra.mxu0 %v7636
        %7908 = vmatpush.bf16.msra.mxu0 %v7635
        %7909 = vmatmul.bf16.gmra.mxu0 %v6836
        %v7910 = vpop.f32.mrf.mxu0
        %v7911 = vadd.f32 %v7898, %v7910
        %v7912 = vpop.f32.mrf.mxu0
        %7913 = vdwg.mxu0
        %7914 = vmatpush.bf16.msra.mxu0 %v7650
        %7915 = vmatpush.bf16.msra.mxu0 %v7649
        %7916 = vmatpush.bf16.msra.mxu0 %v7648
        %7917 = vmatpush.bf16.msra.mxu0 %v7647
        %7918 = vmatpush.bf16.msra.mxu0 %v7646
        %7919 = vmatpush.bf16.msra.mxu0 %v7645
        %7920 = vmatpush.bf16.msra.mxu0 %v7644
        %7921 = vmatpush.bf16.msra.mxu0 %v7643
        %7922 = vmatmul.bf16.gmra.mxu0 %v6837
        %v7923 = vpop.f32.mrf.mxu0
        %v7924 = vadd.f32 %v7911, %v7923
        %v7925 = vpop.f32.mrf.mxu0
        %7926 = vdwg.mxu0
        %7927 = vmatpush.bf16.msra.mxu0 %v7658
        %7928 = vmatpush.bf16.msra.mxu0 %v7657
        %7929 = vmatpush.bf16.msra.mxu0 %v7656
        %7930 = vmatpush.bf16.msra.mxu0 %v7655
        %7931 = vmatpush.bf16.msra.mxu0 %v7654
        %7932 = vmatpush.bf16.msra.mxu0 %v7653
        %7933 = vmatpush.bf16.msra.mxu0 %v7652
        %7934 = vmatpush.bf16.msra.mxu0 %v7651
        %7935 = vmatmul.bf16.gmra.mxu0 %v6838
        %v7936 = vpop.f32.mrf.mxu0
        %v7937 = vadd.f32 %v7924, %v7936
        %v7938 = vpop.f32.mrf.mxu0
        %7939 = vdwg.mxu0
        %7940 = vmatpush.bf16.msra.mxu0 %v7666
        %7941 = vmatpush.bf16.msra.mxu0 %v7665
        %7942 = vmatpush.bf16.msra.mxu0 %v7664
        %7943 = vmatpush.bf16.msra.mxu0 %v7663
        %7944 = vmatpush.bf16.msra.mxu0 %v7662
        %7945 = vmatpush.bf16.msra.mxu0 %v7661
        %7946 = vmatpush.bf16.msra.mxu0 %v7660
        %7947 = vmatpush.bf16.msra.mxu0 %v7659
        %7948 = vmatmul.bf16.gmra.mxu0 %v6839
        %v7949 = vpop.f32.mrf.mxu0
        %v7950 = vadd.f32 %v7937, %v7949
        %v7951 = vpop.f32.mrf.mxu0
        %7952 = vdwg.mxu0
        %7953 = vmatpush.bf16.msra.mxu0 %v7674
        %7954 = vmatpush.bf16.msra.mxu0 %v7673
        %7955 = vmatpush.bf16.msra.mxu0 %v7672
        %7956 = vmatpush.bf16.msra.mxu0 %v7671
        %7957 = vmatpush.bf16.msra.mxu0 %v7670
        %7958 = vmatpush.bf16.msra.mxu0 %v7669
        %7959 = vmatpush.bf16.msra.mxu0 %v7668
        %7960 = vmatpush.bf16.msra.mxu0 %v7667
        %7961 = vmatmul.bf16.gmra.mxu0 %v6840
        %v7962 = vpop.f32.mrf.mxu0
        %v7963 = vadd.f32 %v7950, %v7962
        %v7964 = vpop.f32.mrf.mxu0
        %7965 = vdwg.mxu0
        %7966 = vmatpush.bf16.msra.mxu0 %v7682
        %7967 = vmatpush.bf16.msra.mxu0 %v7681
        %7968 = vmatpush.bf16.msra.mxu0 %v7680
        %7969 = vmatpush.bf16.msra.mxu0 %v7679
        %7970 = vmatpush.bf16.msra.mxu0 %v7678
        %7971 = vmatpush.bf16.msra.mxu0 %v7677
        %7972 = vmatpush.bf16.msra.mxu0 %v7676
        %7973 = vmatpush.bf16.msra.mxu0 %v7675
        %7974 = vmatmul.bf16.gmra.mxu0 %v6841
        %v7975 = vpop.f32.mrf.mxu0
        %v7976 = vadd.f32 %v7963, %v7975
        %v7977 = vpop.f32.mrf.mxu0
        %7978 = vdwg.mxu0
        %7979 = vmatpush.bf16.msra.mxu0 %v7690
        %7980 = vmatpush.bf16.msra.mxu0 %v7689
        %7981 = vmatpush.bf16.msra.mxu0 %v7688
        %7982 = vmatpush.bf16.msra.mxu0 %v7687
        %7983 = vmatpush.bf16.msra.mxu0 %v7686
        %7984 = vmatpush.bf16.msra.mxu0 %v7685
        %7985 = vmatpush.bf16.msra.mxu0 %v7684
        %7986 = vmatpush.bf16.msra.mxu0 %v7683
        %7987 = vmatmul.bf16.gmra.mxu0 %v6842
        %v7988 = vpop.f32.mrf.mxu0
        %v7989 = vadd.f32 %v7976, %v7988
        %v7990 = vpop.f32.mrf.mxu0
        %7991 = vdwg.mxu0
        %7992 = vmatpush.bf16.msra.mxu0 %v7698
        %7993 = vmatpush.bf16.msra.mxu0 %v7697
        %7994 = vmatpush.bf16.msra.mxu0 %v7696
        %7995 = vmatpush.bf16.msra.mxu0 %v7695
        %7996 = vmatpush.bf16.msra.mxu0 %v7694
        %7997 = vmatpush.bf16.msra.mxu0 %v7693
        %7998 = vmatpush.bf16.msra.mxu0 %v7692
        %7999 = vmatpush.bf16.msra.mxu0 %v7691
        %8000 = vmatmul.bf16.gmra.mxu0 %v6843
        %v8001 = vpop.f32.mrf.mxu0
        %v8002 = vadd.f32 %v7989, %v8001
        %v8003 = vpop.f32.mrf.mxu0
        %8004 = vdwg.mxu0
        %8005 = vmatpush.bf16.msra.mxu0 %v7706
        %8006 = vmatpush.bf16.msra.mxu0 %v7705
        %8007 = vmatpush.bf16.msra.mxu0 %v7704
        %8008 = vmatpush.bf16.msra.mxu0 %v7703
        %8009 = vmatpush.bf16.msra.mxu0 %v7702
        %8010 = vmatpush.bf16.msra.mxu0 %v7701
        %8011 = vmatpush.bf16.msra.mxu0 %v7700
        %8012 = vmatpush.bf16.msra.mxu0 %v7699
        %8013 = vmatmul.bf16.gmra.mxu0 %v6844
        %v8014 = vpop.f32.mrf.mxu0
        %v8015 = vadd.f32 %v8002, %v8014
        %v8016 = vpop.f32.mrf.mxu0
        %8017 = vdwg.mxu0
        %8018 = vmatpush.bf16.msra.mxu0 %v7714
        %8019 = vmatpush.bf16.msra.mxu0 %v7713
        %8020 = vmatpush.bf16.msra.mxu0 %v7712
        %8021 = vmatpush.bf16.msra.mxu0 %v7711
        %8022 = vmatpush.bf16.msra.mxu0 %v7710
        %8023 = vmatpush.bf16.msra.mxu0 %v7709
        %8024 = vmatpush.bf16.msra.mxu0 %v7708
        %8025 = vmatpush.bf16.msra.mxu0 %v7707
        %8026 = vmatmul.bf16.gmra.mxu0 %v6845
        %v8027 = vpop.f32.mrf.mxu0
        %v8028 = vadd.f32 %v8015, %v8027
        %v8029 = vpop.f32.mrf.mxu0
        %8030 = vdwg.mxu0
        %8031 = vmatpush.bf16.msra.mxu0 %v7722
        %8032 = vmatpush.bf16.msra.mxu0 %v7721
        %8033 = vmatpush.bf16.msra.mxu0 %v7720
        %8034 = vmatpush.bf16.msra.mxu0 %v7719
        %8035 = vmatpush.bf16.msra.mxu0 %v7718
        %8036 = vmatpush.bf16.msra.mxu0 %v7717
        %8037 = vmatpush.bf16.msra.mxu0 %v7716
        %8038 = vmatpush.bf16.msra.mxu0 %v7715
        %8039 = vmatmul.bf16.gmra.mxu0 %v6846
        %v8040 = vpop.f32.mrf.mxu0
        %v8041 = vadd.f32 %v8028, %v8040
        %v8042 = vpop.f32.mrf.mxu0
        %8043 = vdwg.mxu0
        %8044 = vmatpush.bf16.msra.mxu0 %v7730
        %8045 = vmatpush.bf16.msra.mxu0 %v7729
        %8046 = vmatpush.bf16.msra.mxu0 %v7728
        %8047 = vmatpush.bf16.msra.mxu0 %v7727
        %8048 = vmatpush.bf16.msra.mxu0 %v7726
        %8049 = vmatpush.bf16.msra.mxu0 %v7725
        %8050 = vmatpush.bf16.msra.mxu0 %v7724
        %8051 = vmatpush.bf16.msra.mxu0 %v7723
        %8052 = vmatmul.bf16.gmra.mxu0 %v6847
        %v8053 = vpop.f32.mrf.mxu0
        %v8054 = vadd.f32 %v8041, %v8053
        %v8055 = vpop.f32.mrf.mxu0
        %8056 = vdwg.mxu0
        %8057 = vmatpush.bf16.msra.mxu0 %v7738
        %8058 = vmatpush.bf16.msra.mxu0 %v7737
        %8059 = vmatpush.bf16.msra.mxu0 %v7736
        %8060 = vmatpush.bf16.msra.mxu0 %v7735
        %8061 = vmatpush.bf16.msra.mxu0 %v7734
        %8062 = vmatpush.bf16.msra.mxu0 %v7733
        %8063 = vmatpush.bf16.msra.mxu0 %v7732
        %8064 = vmatpush.bf16.msra.mxu0 %v7731
        %8065 = vmatmul.bf16.gmra.mxu0 %v6848
        %v8066 = vpop.f32.mrf.mxu0
        %v8067 = vadd.f32 %v8054, %v8066
        %v8068 = vpop.f32.mrf.mxu0
        %8069 = vdwg.mxu0
        %8070 = vmatpush.bf16.msra.mxu0 %v7746
        %8071 = vmatpush.bf16.msra.mxu0 %v7745
        %8072 = vmatpush.bf16.msra.mxu0 %v7744
        %8073 = vmatpush.bf16.msra.mxu0 %v7743
        %8074 = vmatpush.bf16.msra.mxu0 %v7742
        %8075 = vmatpush.bf16.msra.mxu0 %v7741
        %8076 = vmatpush.bf16.msra.mxu0 %v7740
        %8077 = vmatpush.bf16.msra.mxu0 %v7739
        %8078 = vmatmul.bf16.gmra.mxu0 %v6849
        %v8079 = vpop.f32.mrf.mxu0
        %v8080 = vadd.f32 %v8067, %v8079
        %v8081 = vpop.f32.mrf.mxu0
        %8082 = vdwg.mxu0
        %vm8083 = vcmask 73728
        %8084 = vst.msk [vmem:[%s324] sm:$0x1] %vm8083, %v8080
        %s8085 = sand.u32 %s225, 1
        %s8086 = scalar_lea.sflag [#allocation7], %s8085
        %s8087 = sand.u32 %s225, 1
        %s8088 = scalar_lea.vmem [#allocation6], %s8087
        // Predicated region
        $region57: #{svhn_forward.1} parent=55 // pred_check
          %p8089 = pneg %p235
        $region58: #{svhn_forward.1} parent=55 // pred_check_branch
          %8091 = sbr.rel (%p8089) target = $region60
        $region59: #{svhn_forward.1} parent=55 // pred_region
          %8093 = vsyncadd %s8086, 0
          %s8094 = scalar_lea.hbm %s9, %s23
          %s8096 = sshll.u32 %s8088, 4
          %s8097 = int_to_ptr.vmem [resolvable:$true] %s8096
          %s8098 = sshll.u32 %s8094, 4
          %s8099 = int_to_ptr.hbm [resolvable:$true] %s8098
          %8101 = dma.vmem_to_hbm [thread:$0]  %s8097, 16, %s8099, %s8086
        $region60: #{svhn_forward.1} parent=55 // pred_fallthru
          _
      $region56: #{svhn_forward.1} parent=5 // pred_fallthru
        _
      %p8102 = scmp.le.s32.totalorder 2, %s18
      // Predicated region
      $region61: #{svhn_forward.1} parent=5 // pred_check
        %p8103 = pneg %p8102
      $region62: #{svhn_forward.1} parent=5 // pred_check_branch
        %8105 = sbr.rel (%p8103) target = $region64
      $region63: #{svhn_forward.1} parent=5 // pred_region
        %s8106 = ssub.s32 %s18, 2
        // Predicated region
        $region65: #{svhn_forward.1} parent=63 // pred_check
          %p8107 = pneg %p241
        $region66: #{svhn_forward.1} parent=63 // pred_check_branch
          %8109 = sbr.rel (%p8107) target = $region68
        $region67: #{svhn_forward.1} parent=63 // pred_region
          %s8110 = sand.u32 %s226, 1
          %s8111 = scalar_lea.sflag [#allocation7], %s8110
          %s8112 = sand.u32 %s226, 1
          %s8113 = scalar_lea.vmem [#allocation6], %s8112
          %8115 = dma.done %s8111, 16
        $region68: #{svhn_forward.1} parent=63 // pred_fallthru
          _
      $region64: #{svhn_forward.1} parent=5 // pred_fallthru
        _
    $region6: #{svhn_forward.1} parent=1 // loop_footer
      %s22 = sadd.s32 1, %s18
    $region7: #{svhn_forward.1} parent=1 // loop_footer_branch
      %17 = sbr.rel target = $region3
    $region8: #{svhn_forward.1} parent=1 // loop_exit
      _
    %8116 = vsyncpa [#allocation7], 1
    %s8117 = scalar_lea.sflag [#allocation7], 1
    %8118 = vsyncpa %s8117, 1

</llo_original>
